<compile_context>
chip_gen: v7x
topology: tpu7x:2x2x1
jax: 0.10.0
libtpu: 0.0.40
codegen_flags: <defaults>
</compile_context>

<pallas_src>
import functools

import jax
import jax.numpy as jnp
from jax.experimental import pallas as pl
from jax.experimental.pallas import tpu as pltpu


_SLAB = 512   # rows of x processed per in-kernel step (bounds live vregs)


def _round_up(n, m):
    return (n + m - 1) // m * m


# ----------------------------------------------------------------------------
# Fused MLP kernel: one batch tile per grid step.
#   refs = (x, w_in, b_in, [w_h, b_h] * n_hidden, w_e, b_e, out)
# x:(TB,Din)  w_in:(Din,H)  b_in:(1,H)  w_h:(H,H)  b_h:(1,H)
# w_e:(1,H)   b_e:(1,1)     out:(1,TB)  (energy, batch on the lane axis)
#
# NOTE: rows of x past the true batch size are garbage (ragged last block /
# oversized block).  This is safe ONLY because there is no cross-row
# reduction anywhere in this kernel; garbage energies land in padded output
# lanes and are sliced off in the wrapper.
# ----------------------------------------------------------------------------
def _fused_mlp_kernel(*refs, n_hidden, compute_dtype, slab):
    x_ref = refs[0]
    w_in_ref, b_in_ref = refs[1], refs[2]
    hidden_refs = refs[3:3 + 2 * n_hidden]
    w_e_ref = refs[3 + 2 * n_hidden]
    b_e_ref = refs[4 + 2 * n_hidden]
    o_ref = refs[5 + 2 * n_hidden]

    cd = compute_dtype
    tb = x_ref.shape[0]
    n_slabs = tb // slab                       # static Python int

    # VMEM-resident weights, loaded once per grid step.  They arrive already
    # in the compute dtype (pre-cast in the wrapper) -> no per-step casts.
    w_in = w_in_ref[...]
    b_in = b_in_ref[...]
    w_h = [hidden_refs[2 * l][...] for l in range(n_hidden)]
    b_h = [hidden_refs[2 * l + 1][...] for l in range(n_hidden)]
    w_e = w_e_ref[...]                          # (1, H) f32
    b_e = b_e_ref[...]                          # (1, 1) f32

    # Statically-unrolled slab loop: keeps the live (slab, H) f32 activation
    # small even for 4096-row batch tiles; all slices are static (free).
    for s in range(n_slabs):
        r0 = s * slab
        # Input layer: MXU matmul (f32 accumulation); bias + ReLU in f32.
        h = jnp.dot(x_ref[r0:r0 + slab, :].astype(cd), w_in,
                    preferred_element_type=jnp.float32)
        h = jnp.maximum(h + b_in, 0.0)
        # Hidden layers (unrolled at trace time).
        for l in range(n_hidden):
            h = jnp.dot(h.astype(cd), w_h[l],
                        preferred_element_type=jnp.float32)
            h = jnp.maximum(h + b_h[l], 0.0)
        # Energy head (single output unit): VPU multiply + XLU lane reduce
        # instead of a 1-column MXU matmul; stored lane-dense into (1, TB).
        e = jnp.sum(h * w_e, axis=-1)                       # (slab,)
        o_ref[:, r0:r0 + slab] = (e[None, :] + b_e).astype(o_ref.dtype)


# ----------------------------------------------------------------------------
# Batch-tile selection (multiples of _SLAB).
# ----------------------------------------------------------------------------
def _pick_batch_tile(batch, row_bytes, block_b):
    #  * as large as block_b allows (amortizes ~0.35 us/grid-step overhead)
    tb = _round_up(max(1, min(int(block_b), batch)), _SLAB)
    #  * double-buffered x tile <= ~12 MiB (fits v5e's 16 MiB default scoped
    #    VMEM with headroom for weights/output; v6e/v7x have >= 32 MiB scoped)
    vmem_cap = max(_SLAB, ((12 << 20) // (2 * row_bytes)) // _SLAB * _SLAB)
    tb = min(tb, vmem_cap)
    #  * keep >= 2 grid steps when the batch allows so the "parallel" batch
    #    axis actually shards across both TensorCores on v7x
    if batch >= 2 * _SLAB:
        tb = min(tb, max(_SLAB, _round_up(pl.cdiv(batch, 2), _SLAB)))
    return tb


# ----------------------------------------------------------------------------
# Wrapper: F.forward = energy_output(NeuralNet(x)).squeeze()
# ----------------------------------------------------------------------------
def f_forward(params, x, *, block_b=4096, compute_dtype=jnp.bfloat16):
    # NeuralNet.forward flatten: NCHW -> (B, C*H*W).  (The torch code uses
    # x.reshape(-1, H*W*n_ch), which assumes H == W; reshape(B, -1) is the
    # safe equivalent for contiguous NCHW input.)
    if x.ndim > 2:
        x = x.reshape(x.shape[0], -1)
    # x is DMA'd in its incoming dtype: no wrapper-side f32 cast, no jnp.pad.
    B, d_in = x.shape
    d_h = params["w_in"].shape[1]
    hidden = params["hidden"]
    n_hidden = len(hidden)

    tb = _pick_batch_tile(B, d_in * x.dtype.itemsize, block_b)
    n_tiles = pl.cdiv(B, tb)
    slab = min(_SLAB, tb)

    cd = jnp.dtype(compute_dtype)
    const = lambda i: (0, 0)                    # weights: VMEM-resident blocks
    # TODO(synk): pipeline_mode=pl.Buffered(1) on the constant weight specs
    # was considered; skipped since all weights total ~46 KB (no VMEM pressure).
    in_specs = [pl.BlockSpec((tb, d_in), lambda i: (i, 0))]   # x: batch-tiled
    args = [x]
    in_specs += [pl.BlockSpec((d_in, d_h), const), pl.BlockSpec((1, d_h), const)]
    args += [params["w_in"].astype(cd),
             params["b_in"].reshape(1, d_h).astype(jnp.float32)]
    for (w, b) in hidden:
        in_specs += [pl.BlockSpec((d_h, d_h), const), pl.BlockSpec((1, d_h), const)]
        args += [w.astype(cd), b.reshape(1, d_h).astype(jnp.float32)]
    in_specs += [pl.BlockSpec((1, d_h), const), pl.BlockSpec((1, 1), const)]
    args += [params["w_energy"].reshape(1, d_h).astype(jnp.float32),
             params["b_energy"].reshape(1, 1).astype(jnp.float32)]

    # Advisory cost estimate so XLA can overlap this mem-bound call.
    flops = 2 * B * (d_in * d_h + n_hidden * d_h * d_h + d_h)
    w_bytes = sum(int(a.size) * a.dtype.itemsize for a in args[1:])
    cost = pl.CostEstimate(
        flops=flops, transcendentals=0,
        bytes_accessed=int(B) * d_in * x.dtype.itemsize + w_bytes + int(B) * 4)

    out = pl.pallas_call(
        functools.partial(_fused_mlp_kernel, n_hidden=n_hidden,
                          compute_dtype=cd, slab=slab),
        out_shape=jax.ShapeDtypeStruct((1, n_tiles * tb), jnp.float32),
        grid=(n_tiles,),
        in_specs=in_specs,
        out_specs=pl.BlockSpec((1, tb), lambda i: (0, i)),
        compiler_params=pltpu.CompilerParams(
            dimension_semantics=("parallel",)),
        cost_estimate=cost,
    )(*args)

    # Only the tiny (1, n_tiles*tb) output was padded; slice back to B.
    return jnp.squeeze(out[0, :B])   # matches torch .squeeze() on (B, 1)


# ----------------------------------------------------------------------------
# Deterministic parameter init (PyTorch nn.Linear default: U(+/-1/sqrt(fan_in))
# for both weight and bias).  Weights stored transposed to (in, out).
# ----------------------------------------------------------------------------
def _init_linear(key, fan_in, fan_out):
    kw, kb = jax.random.split(key)
    bound = 1.0 / jnp.sqrt(float(fan_in))
    w = jax.random.uniform(kw, (fan_in, fan_out), jnp.float32, -bound, bound)
    b = jax.random.uniform(kb, (fan_out,), jnp.float32, -bound, bound)
    return w, b


def init_f_params(key, input_size, hidden_size, extra_layers, n_classes=10):
    keys = jax.random.split(key, extra_layers + 3)
    params = {}
    params["w_in"], params["b_in"] = _init_linear(keys[0], input_size, hidden_size)
    params["hidden"] = []
    for i in range(extra_layers):
        params["hidden"].append(_init_linear(keys[1 + i], hidden_size, hidden_size))
    params["w_energy"], params["b_energy"] = _init_linear(
        keys[1 + extra_layers], hidden_size, 1)
    # class_output exists in the module but is unused by F.forward.
    params["w_class"], params["b_class"] = _init_linear(
        keys[2 + extra_layers], hidden_size, n_classes)
    return params


def f_forward_ref(params, x):
    """Pure-JAX reference for correctness checking."""
    if x.ndim > 2:
        x = x.reshape(x.shape[0], -1)
    x = x.astype(jnp.float32)
    h = jnp.maximum(x @ params["w_in"] + params["b_in"], 0.0)
    for (w, b) in params["hidden"]:
        h = jnp.maximum(h @ w + b, 0.0)
    return jnp.squeeze(h @ params["w_energy"] + params["b_energy"])


if __name__ == "__main__":
    hidden_size, extra_layers = 32, 2

    # Small example consistent with the module: NCHW, n_ch=1, 16x16 images.
    B, C, Him, Wim = 2, 1, 16, 16
    input_size = Him * Wim              # 256

    key = jax.random.PRNGKey(0)
    kp, kx, kx2 = jax.random.split(key, 3)
    params = init_f_params(kp, input_size, hidden_size, extra_layers)
    x = jax.random.normal(kx, (B, C, Him, Wim), jnp.float32)

    ref = f_forward_ref(params, x)

    # f32 compute path (exercises the oversized/ragged batch block: B=2 < tile).
    out_f32 = jax.block_until_ready(f_forward(params, x, compute_dtype=jnp.float32))
    assert out_f32.shape == (B,), out_f32.shape
    assert jnp.allclose(out_f32, ref, atol=3e-2, rtol=3e-2), (out_f32, ref)

    # Default bf16-MXU path (f32 accumulation, f32 elementwise).
    out = jax.block_until_ready(f_forward(params, x))
    assert out.shape == (B,), out.shape
    assert jnp.allclose(out, ref, atol=3e-2, rtol=3e-2), (out, ref)

    # Secondary check: multi-tile grid + ragged last block + multi-slab loop,
    # plus the bf16-input path (halves HBM traffic on x).
    B2 = 1200
    x2 = jax.random.normal(kx2, (B2, C, Him, Wim), jnp.float32)
    ref2 = f_forward_ref(params, x2)
    out2_f32 = jax.block_until_ready(
        f_forward(params, x2, compute_dtype=jnp.float32))
    assert out2_f32.shape == (B2,), out2_f32.shape
    assert jnp.allclose(out2_f32, ref2, atol=3e-2, rtol=3e-2)

    x2_bf16 = x2.astype(jnp.bfloat16)
    ref2_bf16 = f_forward_ref(params, x2_bf16)   # ref on the same rounded input
    out2 = jax.block_until_ready(f_forward(params, x2_bf16))
    assert out2.shape == (B2,), out2.shape
    assert jnp.allclose(out2, ref2_bf16, atol=1e-1, rtol=1e-1)

    # TODO(synk): BatchNorm1d / VirtualBatchNorm / Dropout / sine-swish-softplus
    # branches of NeuralNet are disabled in this config and not implemented.
    print("KERNEL_OK")
</pallas_src>

<mosaic_0001>
module attributes {stable_mosaic.version = 11 : i64} {
  func.func @_fused_mlp_kernel(%arg0: i32, %arg1: memref<512x256xf32, #tpu.memory_space<vmem>>, %arg2: memref<256x32xf32, #tpu.memory_space<vmem>>, %arg3: memref<1x32xf32, #tpu.memory_space<vmem>>, %arg4: memref<32x32xf32, #tpu.memory_space<vmem>>, %arg5: memref<1x32xf32, #tpu.memory_space<vmem>>, %arg6: memref<32x32xf32, #tpu.memory_space<vmem>>, %arg7: memref<1x32xf32, #tpu.memory_space<vmem>>, %arg8: memref<1x32xf32, #tpu.memory_space<vmem>>, %arg9: memref<1x1xf32, #tpu.memory_space<vmem>>, %arg10: memref<1x512xf32, #tpu.memory_space<vmem>>) attributes {dimension_semantics = [#tpu.dimension_semantics<parallel>], iteration_bounds = array<i64: 1>, scalar_prefetch = 0 : i64, scratch_operands = 0 : i64, tpu.core_type = #tpu.core_type<tc>, window_params = [{transform_indices = @transform_0, window_bounds = array<i64: 512, 256>}, {pipeline_mode = #tpu.pipeline_mode<synchronous>, transform_indices = @transform_1, window_bounds = array<i64: 256, 32>}, {pipeline_mode = #tpu.pipeline_mode<synchronous>, transform_indices = @transform_2, window_bounds = array<i64: 1, 32>}, {pipeline_mode = #tpu.pipeline_mode<synchronous>, transform_indices = @transform_3, window_bounds = array<i64: 32, 32>}, {pipeline_mode = #tpu.pipeline_mode<synchronous>, transform_indices = @transform_4, window_bounds = array<i64: 1, 32>}, {pipeline_mode = #tpu.pipeline_mode<synchronous>, transform_indices = @transform_5, window_bounds = array<i64: 32, 32>}, {pipeline_mode = #tpu.pipeline_mode<synchronous>, transform_indices = @transform_6, window_bounds = array<i64: 1, 32>}, {pipeline_mode = #tpu.pipeline_mode<synchronous>, transform_indices = @transform_7, window_bounds = array<i64: 1, 32>}, {pipeline_mode = #tpu.pipeline_mode<synchronous>, transform_indices = @transform_8, window_bounds = array<i64: 1, 1>}, {transform_indices = @transform_9, window_bounds = array<i64: 1, 512>}]} {
    %c0 = arith.constant 0 : index
    %c0_0 = arith.constant 0 : index
    %0 = vector.load %arg2[%c0, %c0_0] : memref<256x32xf32, #tpu.memory_space<vmem>>, vector<256x32xf32>
    %c0_1 = arith.constant 0 : index
    %c0_2 = arith.constant 0 : index
    %1 = vector.load %arg3[%c0_1, %c0_2] : memref<1x32xf32, #tpu.memory_space<vmem>>, vector<1x32xf32>
    %c0_3 = arith.constant 0 : index
    %c0_4 = arith.constant 0 : index
    %2 = vector.load %arg4[%c0_3, %c0_4] : memref<32x32xf32, #tpu.memory_space<vmem>>, vector<32x32xf32>
    %c0_5 = arith.constant 0 : index
    %c0_6 = arith.constant 0 : index
    %3 = vector.load %arg6[%c0_5, %c0_6] : memref<32x32xf32, #tpu.memory_space<vmem>>, vector<32x32xf32>
    %c0_7 = arith.constant 0 : index
    %c0_8 = arith.constant 0 : index
    %4 = vector.load %arg5[%c0_7, %c0_8] : memref<1x32xf32, #tpu.memory_space<vmem>>, vector<1x32xf32>
    %c0_9 = arith.constant 0 : index
    %c0_10 = arith.constant 0 : index
    %5 = vector.load %arg7[%c0_9, %c0_10] : memref<1x32xf32, #tpu.memory_space<vmem>>, vector<1x32xf32>
    %c0_11 = arith.constant 0 : index
    %c0_12 = arith.constant 0 : index
    %6 = vector.load %arg8[%c0_11, %c0_12] : memref<1x32xf32, #tpu.memory_space<vmem>>, vector<1x32xf32>
    %c0_13 = arith.constant 0 : index
    %c0_14 = arith.constant 0 : index
    %7 = vector.load %arg9[%c0_13, %c0_14] : memref<1x1xf32, #tpu.memory_space<vmem>>, vector<1x1xf32>
    %c0_15 = arith.constant 0 : index
    %c0_16 = arith.constant 0 : index
    %8 = vector.load %arg1[%c0_15, %c0_16] : memref<512x256xf32, #tpu.memory_space<vmem>>, vector<512x256xf32>
    %cst = arith.constant dense<0.000000e+00> : vector<512x32xf32>
    %9 = tpu.matmul %8, %0, %cst {dimension_numbers = #tpu.dot_dimension_numbers<[1], [0], [0], [1], [0, 0, 1, 1], [], []>} : vector<512x256xf32>, vector<256x32xf32>, vector<512x32xf32> -> vector<512x32xf32>
    %10 = vector.broadcast %1 : vector<1x32xf32> to vector<512x32xf32>
    %11 = arith.addf %9, %10 : vector<512x32xf32>
    %cst_17 = arith.constant 0.000000e+00 : f32
    %12 = vector.broadcast %cst_17 : f32 to vector<512x32xf32>
    %13 = arith.maximumf %11, %12 : vector<512x32xf32>
    %cst_18 = arith.constant dense<0.000000e+00> : vector<512x32xf32>
    %14 = tpu.matmul %13, %2, %cst_18 {dimension_numbers = #tpu.dot_dimension_numbers<[1], [0], [0], [1], [0, 0, 1, 1], [], []>} : vector<512x32xf32>, vector<32x32xf32>, vector<512x32xf32> -> vector<512x32xf32>
    %15 = vector.broadcast %4 : vector<1x32xf32> to vector<512x32xf32>
    %16 = arith.addf %14, %15 : vector<512x32xf32>
    %cst_19 = arith.constant 0.000000e+00 : f32
    %17 = vector.broadcast %cst_19 : f32 to vector<512x32xf32>
    %18 = arith.maximumf %16, %17 : vector<512x32xf32>
    %cst_20 = arith.constant dense<0.000000e+00> : vector<512x32xf32>
    %19 = tpu.matmul %18, %3, %cst_20 {dimension_numbers = #tpu.dot_dimension_numbers<[1], [0], [0], [1], [0, 0, 1, 1], [], []>} : vector<512x32xf32>, vector<32x32xf32>, vector<512x32xf32> -> vector<512x32xf32>
    %20 = vector.broadcast %5 : vector<1x32xf32> to vector<512x32xf32>
    %21 = arith.addf %19, %20 : vector<512x32xf32>
    %cst_21 = arith.constant 0.000000e+00 : f32
    %22 = vector.broadcast %cst_21 : f32 to vector<512x32xf32>
    %23 = arith.maximumf %21, %22 : vector<512x32xf32>
    %24 = vector.broadcast %6 : vector<1x32xf32> to vector<512x32xf32>
    %25 = arith.mulf %23, %24 : vector<512x32xf32>
    %cst_22 = arith.constant dense<0.000000e+00> : vector<512xf32>
    %26 = vector.multi_reduction <add>, %25, %cst_22 [1] : vector<512x32xf32> to vector<512xf32>
    %27 = vector.shape_cast %26 : vector<512xf32> to vector<1x512xf32>
    %28 = vector.broadcast %7 : vector<1x1xf32> to vector<1x512xf32>
    %29 = arith.addf %27, %28 : vector<1x512xf32>
    %c0_23 = arith.constant 0 : index
    %c0_24 = arith.constant 0 : index
    %30 = vector.load %arg10[%c0_23, %c0_24] : memref<1x512xf32, #tpu.memory_space<vmem>>, vector<1x512xf32>
    tpu.vector_store %arg10[%c0_23, %c0_24], %29 {strides = array<i32>} : memref<1x512xf32, #tpu.memory_space<vmem>>, vector<1x512xf32>,
    return
  }
  func.func @transform_0(%arg0: i32) -> (i32, i32) {
    %c0_i32 = arith.constant 0 : i32
    %c0_i32_0 = arith.constant 0 : i32
    return %arg0, %c0_i32 : i32, i32
  }
  func.func @transform_1(%arg0: i32) -> (i32, i32) {
    %c0_i32 = arith.constant 0 : i32
    %c0_i32_0 = arith.constant 0 : i32
    %c0_i32_1 = arith.constant 0 : i32
    return %c0_i32, %c0_i32_0 : i32, i32
  }
  func.func @transform_2(%arg0: i32) -> (i32, i32) {
    %c0_i32 = arith.constant 0 : i32
    %c0_i32_0 = arith.constant 0 : i32
    %c0_i32_1 = arith.constant 0 : i32
    return %c0_i32, %c0_i32_0 : i32, i32
  }
  func.func @transform_3(%arg0: i32) -> (i32, i32) {
    %c0_i32 = arith.constant 0 : i32
    %c0_i32_0 = arith.constant 0 : i32
    %c0_i32_1 = arith.constant 0 : i32
    return %c0_i32, %c0_i32_0 : i32, i32
  }
  func.func @transform_4(%arg0: i32) -> (i32, i32) {
    %c0_i32 = arith.constant 0 : i32
    %c0_i32_0 = arith.constant 0 : i32
    %c0_i32_1 = arith.constant 0 : i32
    return %c0_i32, %c0_i32_0 : i32, i32
  }
  func.func @transform_5(%arg0: i32) -> (i32, i32) {
    %c0_i32 = arith.constant 0 : i32
    %c0_i32_0 = arith.constant 0 : i32
    %c0_i32_1 = arith.constant 0 : i32
    return %c0_i32, %c0_i32_0 : i32, i32
  }
  func.func @transform_6(%arg0: i32) -> (i32, i32) {
    %c0_i32 = arith.constant 0 : i32
    %c0_i32_0 = arith.constant 0 : i32
    %c0_i32_1 = arith.constant 0 : i32
    return %c0_i32, %c0_i32_0 : i32, i32
  }
  func.func @transform_7(%arg0: i32) -> (i32, i32) {
    %c0_i32 = arith.constant 0 : i32
    %c0_i32_0 = arith.constant 0 : i32
    %c0_i32_1 = arith.constant 0 : i32
    return %c0_i32, %c0_i32_0 : i32, i32
  }
  func.func @transform_8(%arg0: i32) -> (i32, i32) {
    %c0_i32 = arith.constant 0 : i32
    %c0_i32_0 = arith.constant 0 : i32
    %c0_i32_1 = arith.constant 0 : i32
    return %c0_i32, %c0_i32_0 : i32, i32
  }
  func.func @transform_9(%arg0: i32) -> (i32, i32) {
    %c0_i32 = arith.constant 0 : i32
    %c0_i32_0 = arith.constant 0 : i32
    return %c0_i32, %arg0 : i32, i32
  }
}

</mosaic_0001>

<llo_original>
// kernel: tpu_custom_call.1
$region0: #{tpu_custom_call.1}
  #allocation0 [shape = 'u32[]', space=smem, size = 0x4, offset = 0x4, fixed_abs, tag = 'smem constant byte address 0x4 - core index']
  #allocation1 [shape = 'u32[144,128]{1,0:T(1,128)}', space=vmem, size = 0x12000, scoped, tag = 'internal scratch']
  #allocation2 [shape = 'f32[1,1]{1,0:T(1,128)S(1)}', space=vmem, size = 0x200, scoped, tag = 'scoped memory for tpu_custom_call.1']
  %s0 = inlined_call_operand.vmem [shape: f32[2,256], index: 0, kind: input, shape index: {}]
  %s1 = inlined_call_operand.vmem [shape: f32[256,32], index: 1, kind: input, shape index: {}]
  %s2 = inlined_call_operand.vmem [shape: f32[1,32], index: 2, kind: input, shape index: {}]
  %s3 = inlined_call_operand.vmem [shape: f32[32,32], index: 3, kind: input, shape index: {}]
  %s4 = inlined_call_operand.vmem [shape: f32[1,32], index: 4, kind: input, shape index: {}]
  %s5 = inlined_call_operand.vmem [shape: f32[32,32], index: 5, kind: input, shape index: {}]
  %s6 = inlined_call_operand.vmem [shape: f32[1,32], index: 6, kind: input, shape index: {}]
  %s7 = inlined_call_operand.vmem [shape: f32[1,32], index: 7, kind: input, shape index: {}]
  %s8 = inlined_call_operand.<no memory space> [shape: f32[1,1], index: 8, kind: input, shape index: {}]
  %s9 = inlined_call_operand.hbm [shape: f32[1,512], index: 9, kind: output, shape index: {}]
  %s10 = sld [smem:[#allocation0]]
  $region46: #{tpu_custom_call.1} parent=0
    _
  %s12 = ssub.s32 1, %s10
  %s13 = scalar_select 0, %s12, %s10
  %v14 = vstv %s8
  %15 = vst [vmem:[#allocation2] sm:$0x1] %v14
  $region1: #{tpu_custom_call.1} parent=0
    #allocation3 [shape = 'u8[2048]{0}', space=vmem, size = 0x800, scoped, tag = 'output window, operand 0, single buffered']
    #allocation4 [shape = 's32[1]{0}', space=sflag, size = 0x4, scoped, tag = 'scoped memory for tpu_custom_call.1']
    %16 = vsyncpa [#allocation4], 0
    // Predicated region
    $region2: #{tpu_custom_call.1} parent=1 // pred_check
      _
    $region3: #{tpu_custom_call.1} parent=1 // pred_check_branch
      %18 = sbr.rel (0) target = $region5
    $region4: #{tpu_custom_call.1} parent=1 // pred_region
      _
    $region5: #{tpu_custom_call.1} parent=1 // pred_fallthru
      _
    // Predicated region
    $region6: #{tpu_custom_call.1} parent=1 // pred_check
      _
    $region7: #{tpu_custom_call.1} parent=1 // pred_check_branch
      %20 = sbr.rel (0) target = $region9
    $region8: #{tpu_custom_call.1} parent=1 // pred_region
      _
    $region9: #{tpu_custom_call.1} parent=1 // pred_fallthru
      _
    // Predicated region
    $region10: #{tpu_custom_call.1} parent=1 // pred_check
      _
    $region11: #{tpu_custom_call.1} parent=1 // pred_check_branch
      %22 = sbr.rel (0) target = $region13
    $region12: #{tpu_custom_call.1} parent=1 // pred_region
      _
    $region13: #{tpu_custom_call.1} parent=1 // pred_fallthru
      _
    // Predicated region
    $region14: #{tpu_custom_call.1} parent=1 // pred_check
      _
    $region15: #{tpu_custom_call.1} parent=1 // pred_check_branch
      %24 = sbr.rel (0) target = $region17
    $region16: #{tpu_custom_call.1} parent=1 // pred_region
      _
    $region17: #{tpu_custom_call.1} parent=1 // pred_fallthru
      _
    // Predicated region
    $region18: #{tpu_custom_call.1} parent=1 // pred_check
      _
    $region19: #{tpu_custom_call.1} parent=1 // pred_check_branch
      %26 = sbr.rel (0) target = $region21
    $region20: #{tpu_custom_call.1} parent=1 // pred_region
      _
    $region21: #{tpu_custom_call.1} parent=1 // pred_fallthru
      _
    // Predicated region
    $region22: #{tpu_custom_call.1} parent=1 // pred_check
      _
    $region23: #{tpu_custom_call.1} parent=1 // pred_check_branch
      %28 = sbr.rel (0) target = $region25
    $region24: #{tpu_custom_call.1} parent=1 // pred_region
      _
    $region25: #{tpu_custom_call.1} parent=1 // pred_fallthru
      _
    // Predicated region
    $region26: #{tpu_custom_call.1} parent=1 // pred_check
      _
    $region27: #{tpu_custom_call.1} parent=1 // pred_check_branch
      %30 = sbr.rel (0) target = $region29
    $region28: #{tpu_custom_call.1} parent=1 // pred_region
      _
    $region29: #{tpu_custom_call.1} parent=1 // pred_fallthru
      _
    // Predicated region
    $region30: #{tpu_custom_call.1} parent=1 // pred_check
      _
    $region31: #{tpu_custom_call.1} parent=1 // pred_check_branch
      %32 = sbr.rel (0) target = $region33
    $region32: #{tpu_custom_call.1} parent=1 // pred_region
      _
    $region33: #{tpu_custom_call.1} parent=1 // pred_fallthru
      _
    // Predicated region
    $region34: #{tpu_custom_call.1} parent=1 // pred_check
      _
    $region35: #{tpu_custom_call.1} parent=1 // pred_check_branch
      %34 = sbr.rel (0) target = $region37
    $region36: #{tpu_custom_call.1} parent=1 // pred_region
      _
    $region37: #{tpu_custom_call.1} parent=1 // pred_fallthru
      _
    %v35 = vld [vmem:[%s1] sm:$0xff]
    %v36 = vld [vmem:[%s1 + $0x8] sm:$0xff]
    %v37 = vld [vmem:[%s1 + $0x10] sm:$0xff]
    %v38 = vld [vmem:[%s1 + $0x18] sm:$0xff]
    %v39 = vld [vmem:[%s1 + $0x20] sm:$0xff]
    %v40 = vld [vmem:[%s1 + $0x28] sm:$0xff]
    %v41 = vld [vmem:[%s1 + $0x30] sm:$0xff]
    %v42 = vld [vmem:[%s1 + $0x38] sm:$0xff]
    %v43 = vld [vmem:[%s1 + $0x40] sm:$0xff]
    %v44 = vld [vmem:[%s1 + $0x48] sm:$0xff]
    %v45 = vld [vmem:[%s1 + $0x50] sm:$0xff]
    %v46 = vld [vmem:[%s1 + $0x58] sm:$0xff]
    %v47 = vld [vmem:[%s1 + $0x60] sm:$0xff]
    %v48 = vld [vmem:[%s1 + $0x68] sm:$0xff]
    %v49 = vld [vmem:[%s1 + $0x70] sm:$0xff]
    %v50 = vld [vmem:[%s1 + $0x78] sm:$0xff]
    %v51 = vld [vmem:[%s1 + $0x80] sm:$0xff]
    %v52 = vld [vmem:[%s1 + $0x88] sm:$0xff]
    %v53 = vld [vmem:[%s1 + $0x90] sm:$0xff]
    %v54 = vld [vmem:[%s1 + $0x98] sm:$0xff]
    %v55 = vld [vmem:[%s1 + $0xa0] sm:$0xff]
    %v56 = vld [vmem:[%s1 + $0xa8] sm:$0xff]
    %v57 = vld [vmem:[%s1 + $0xb0] sm:$0xff]
    %v58 = vld [vmem:[%s1 + $0xb8] sm:$0xff]
    %v59 = vld [vmem:[%s1 + $0xc0] sm:$0xff]
    %v60 = vld [vmem:[%s1 + $0xc8] sm:$0xff]
    %v61 = vld [vmem:[%s1 + $0xd0] sm:$0xff]
    %v62 = vld [vmem:[%s1 + $0xd8] sm:$0xff]
    %v63 = vld [vmem:[%s1 + $0xe0] sm:$0xff]
    %v64 = vld [vmem:[%s1 + $0xe8] sm:$0xff]
    %v65 = vld [vmem:[%s1 + $0xf0] sm:$0xff]
    %v66 = vld [vmem:[%s1 + $0xf8] sm:$0xff]
    %v67 = vld [vmem:[%s2] sm:$0x1]
    %v68 = vld [vmem:[%s3] sm:$0xff]
    %v69 = vld [vmem:[%s3 + $0x8] sm:$0xff]
    %v70 = vld [vmem:[%s3 + $0x10] sm:$0xff]
    %v71 = vld [vmem:[%s3 + $0x18] sm:$0xff]
    %v72 = vld [vmem:[%s5] sm:$0xff]
    %v73 = vld [vmem:[%s5 + $0x8] sm:$0xff]
    %v74 = vld [vmem:[%s5 + $0x10] sm:$0xff]
    %v75 = vld [vmem:[%s5 + $0x18] sm:$0xff]
    %v76 = vld [vmem:[%s4] sm:$0x1]
    %v77 = vld [vmem:[%s6] sm:$0x1]
    %v78 = vld [vmem:[%s7] sm:$0x1]
    %v79 = vld [vmem:[#allocation2] sm:$0x1]
    %v80 = vld [vmem:[%s0] sm:$0xf]
    %v81 = vld [vmem:[%s0 + $0x4] sm:$0xf]
    %v82 = vld [vmem:[%s0 + $0x8] sm:$0xf]
    %v83 = vld [vmem:[%s0 + $0xc] sm:$0xf]
    %v84 = vld [vmem:[%s0 + $0x10] sm:$0xf]
    %v85 = vld [vmem:[%s0 + $0x14] sm:$0xf]
    %v86 = vld [vmem:[%s0 + $0x18] sm:$0xf]
    %v87 = vld [vmem:[%s0 + $0x1c] sm:$0xf]
    %v88 = vld [vmem:[%s0 + $0x20] sm:$0xf]
    %v89 = vld [vmem:[%s0 + $0x24] sm:$0xf]
    %v90 = vld [vmem:[%s0 + $0x28] sm:$0xf]
    %v91 = vld [vmem:[%s0 + $0x2c] sm:$0xf]
    %v92 = vld [vmem:[%s0 + $0x30] sm:$0xf]
    %v93 = vld [vmem:[%s0 + $0x34] sm:$0xf]
    %v94 = vld [vmem:[%s0 + $0x38] sm:$0xf]
    %v95 = vld [vmem:[%s0 + $0x3c] sm:$0xf]
    %v96 = vld [vmem:[%s0 + $0x40] sm:$0xf]
    %v97 = vld [vmem:[%s0 + $0x44] sm:$0xf]
    %v98 = vld [vmem:[%s0 + $0x48] sm:$0xf]
    %v99 = vld [vmem:[%s0 + $0x4c] sm:$0xf]
    %v100 = vld [vmem:[%s0 + $0x50] sm:$0xf]
    %v101 = vld [vmem:[%s0 + $0x54] sm:$0xf]
    %v102 = vld [vmem:[%s0 + $0x58] sm:$0xf]
    %v103 = vld [vmem:[%s0 + $0x5c] sm:$0xf]
    %v104 = vld [vmem:[%s0 + $0x60] sm:$0xf]
    %v105 = vld [vmem:[%s0 + $0x64] sm:$0xf]
    %v106 = vld [vmem:[%s0 + $0x68] sm:$0xf]
    %v107 = vld [vmem:[%s0 + $0x6c] sm:$0xf]
    %v108 = vld [vmem:[%s0 + $0x70] sm:$0xf]
    %v109 = vld [vmem:[%s0 + $0x74] sm:$0xf]
    %v110 = vld [vmem:[%s0 + $0x78] sm:$0xf]
    %v111 = vld [vmem:[%s0 + $0x7c] sm:$0xf]
    %v112 = vld [vmem:[%s0 + $0x80] sm:$0xf]
    %v113 = vld [vmem:[%s0 + $0x84] sm:$0xf]
    %v114 = vld [vmem:[%s0 + $0x88] sm:$0xf]
    %v115 = vld [vmem:[%s0 + $0x8c] sm:$0xf]
    %v116 = vld [vmem:[%s0 + $0x90] sm:$0xf]
    %v117 = vld [vmem:[%s0 + $0x94] sm:$0xf]
    %v118 = vld [vmem:[%s0 + $0x98] sm:$0xf]
    %v119 = vld [vmem:[%s0 + $0x9c] sm:$0xf]
    %v120 = vld [vmem:[%s0 + $0xa0] sm:$0xf]
    %v121 = vld [vmem:[%s0 + $0xa4] sm:$0xf]
    %v122 = vld [vmem:[%s0 + $0xa8] sm:$0xf]
    %v123 = vld [vmem:[%s0 + $0xac] sm:$0xf]
    %v124 = vld [vmem:[%s0 + $0xb0] sm:$0xf]
    %v125 = vld [vmem:[%s0 + $0xb4] sm:$0xf]
    %v126 = vld [vmem:[%s0 + $0xb8] sm:$0xf]
    %v127 = vld [vmem:[%s0 + $0xbc] sm:$0xf]
    %v128 = vld [vmem:[%s0 + $0xc0] sm:$0xf]
    %v129 = vld [vmem:[%s0 + $0xc4] sm:$0xf]
    %v130 = vld [vmem:[%s0 + $0xc8] sm:$0xf]
    %v131 = vld [vmem:[%s0 + $0xcc] sm:$0xf]
    %v132 = vld [vmem:[%s0 + $0xd0] sm:$0xf]
    %v133 = vld [vmem:[%s0 + $0xd4] sm:$0xf]
    %v134 = vld [vmem:[%s0 + $0xd8] sm:$0xf]
    %v135 = vld [vmem:[%s0 + $0xdc] sm:$0xf]
    %v136 = vld [vmem:[%s0 + $0xe0] sm:$0xf]
    %v137 = vld [vmem:[%s0 + $0xe4] sm:$0xf]
    %v138 = vld [vmem:[%s0 + $0xe8] sm:$0xf]
    %v139 = vld [vmem:[%s0 + $0xec] sm:$0xf]
    %v140 = vld [vmem:[%s0 + $0xf0] sm:$0xf]
    %v141 = vld [vmem:[%s0 + $0xf4] sm:$0xf]
    %v142 = vld [vmem:[%s0 + $0xf8] sm:$0xf]
    %v143 = vld [vmem:[%s0 + $0xfc] sm:$0xf]
    %v144 = vld [vmem:[%s0 + $0x100] sm:$0xf]
    %v145 = vld [vmem:[%s0 + $0x104] sm:$0xf]
    %v146 = vld [vmem:[%s0 + $0x108] sm:$0xf]
    %v147 = vld [vmem:[%s0 + $0x10c] sm:$0xf]
    %v148 = vld [vmem:[%s0 + $0x110] sm:$0xf]
    %v149 = vld [vmem:[%s0 + $0x114] sm:$0xf]
    %v150 = vld [vmem:[%s0 + $0x118] sm:$0xf]
    %v151 = vld [vmem:[%s0 + $0x11c] sm:$0xf]
    %v152 = vld [vmem:[%s0 + $0x120] sm:$0xf]
    %v153 = vld [vmem:[%s0 + $0x124] sm:$0xf]
    %v154 = vld [vmem:[%s0 + $0x128] sm:$0xf]
    %v155 = vld [vmem:[%s0 + $0x12c] sm:$0xf]
    %v156 = vld [vmem:[%s0 + $0x130] sm:$0xf]
    %v157 = vld [vmem:[%s0 + $0x134] sm:$0xf]
    %v158 = vld [vmem:[%s0 + $0x138] sm:$0xf]
    %v159 = vld [vmem:[%s0 + $0x13c] sm:$0xf]
    %v160 = vld [vmem:[%s0 + $0x140] sm:$0xf]
    %v161 = vld [vmem:[%s0 + $0x144] sm:$0xf]
    %v162 = vld [vmem:[%s0 + $0x148] sm:$0xf]
    %v163 = vld [vmem:[%s0 + $0x14c] sm:$0xf]
    %v164 = vld [vmem:[%s0 + $0x150] sm:$0xf]
    %v165 = vld [vmem:[%s0 + $0x154] sm:$0xf]
    %v166 = vld [vmem:[%s0 + $0x158] sm:$0xf]
    %v167 = vld [vmem:[%s0 + $0x15c] sm:$0xf]
    %v168 = vld [vmem:[%s0 + $0x160] sm:$0xf]
    %v169 = vld [vmem:[%s0 + $0x164] sm:$0xf]
    %v170 = vld [vmem:[%s0 + $0x168] sm:$0xf]
    %v171 = vld [vmem:[%s0 + $0x16c] sm:$0xf]
    %v172 = vld [vmem:[%s0 + $0x170] sm:$0xf]
    %v173 = vld [vmem:[%s0 + $0x174] sm:$0xf]
    %v174 = vld [vmem:[%s0 + $0x178] sm:$0xf]
    %v175 = vld [vmem:[%s0 + $0x17c] sm:$0xf]
    %v176 = vld [vmem:[%s0 + $0x180] sm:$0xf]
    %v177 = vld [vmem:[%s0 + $0x184] sm:$0xf]
    %v178 = vld [vmem:[%s0 + $0x188] sm:$0xf]
    %v179 = vld [vmem:[%s0 + $0x18c] sm:$0xf]
    %v180 = vld [vmem:[%s0 + $0x190] sm:$0xf]
    %v181 = vld [vmem:[%s0 + $0x194] sm:$0xf]
    %v182 = vld [vmem:[%s0 + $0x198] sm:$0xf]
    %v183 = vld [vmem:[%s0 + $0x19c] sm:$0xf]
    %v184 = vld [vmem:[%s0 + $0x1a0] sm:$0xf]
    %v185 = vld [vmem:[%s0 + $0x1a4] sm:$0xf]
    %v186 = vld [vmem:[%s0 + $0x1a8] sm:$0xf]
    %v187 = vld [vmem:[%s0 + $0x1ac] sm:$0xf]
    %v188 = vld [vmem:[%s0 + $0x1b0] sm:$0xf]
    %v189 = vld [vmem:[%s0 + $0x1b4] sm:$0xf]
    %v190 = vld [vmem:[%s0 + $0x1b8] sm:$0xf]
    %v191 = vld [vmem:[%s0 + $0x1bc] sm:$0xf]
    %v192 = vld [vmem:[%s0 + $0x1c0] sm:$0xf]
    %v193 = vld [vmem:[%s0 + $0x1c4] sm:$0xf]
    %v194 = vld [vmem:[%s0 + $0x1c8] sm:$0xf]
    %v195 = vld [vmem:[%s0 + $0x1cc] sm:$0xf]
    %v196 = vld [vmem:[%s0 + $0x1d0] sm:$0xf]
    %v197 = vld [vmem:[%s0 + $0x1d4] sm:$0xf]
    %v198 = vld [vmem:[%s0 + $0x1d8] sm:$0xf]
    %v199 = vld [vmem:[%s0 + $0x1dc] sm:$0xf]
    %v200 = vld [vmem:[%s0 + $0x1e0] sm:$0xf]
    %v201 = vld [vmem:[%s0 + $0x1e4] sm:$0xf]
    %v202 = vld [vmem:[%s0 + $0x1e8] sm:$0xf]
    %v203 = vld [vmem:[%s0 + $0x1ec] sm:$0xf]
    %v204 = vld [vmem:[%s0 + $0x1f0] sm:$0xf]
    %v205 = vld [vmem:[%s0 + $0x1f4] sm:$0xf]
    %v206 = vld [vmem:[%s0 + $0x1f8] sm:$0xf]
    %v207 = vld [vmem:[%s0 + $0x1fc] sm:$0xf]
    %v208 = vld [vmem:[%s0 + $0x200] sm:$0xf]
    %v209 = vld [vmem:[%s0 + $0x204] sm:$0xf]
    %v210 = vld [vmem:[%s0 + $0x208] sm:$0xf]
    %v211 = vld [vmem:[%s0 + $0x20c] sm:$0xf]
    %v212 = vld [vmem:[%s0 + $0x210] sm:$0xf]
    %v213 = vld [vmem:[%s0 + $0x214] sm:$0xf]
    %v214 = vld [vmem:[%s0 + $0x218] sm:$0xf]
    %v215 = vld [vmem:[%s0 + $0x21c] sm:$0xf]
    %v216 = vld [vmem:[%s0 + $0x220] sm:$0xf]
    %v217 = vld [vmem:[%s0 + $0x224] sm:$0xf]
    %v218 = vld [vmem:[%s0 + $0x228] sm:$0xf]
    %v219 = vld [vmem:[%s0 + $0x22c] sm:$0xf]
    %v220 = vld [vmem:[%s0 + $0x230] sm:$0xf]
    %v221 = vld [vmem:[%s0 + $0x234] sm:$0xf]
    %v222 = vld [vmem:[%s0 + $0x238] sm:$0xf]
    %v223 = vld [vmem:[%s0 + $0x23c] sm:$0xf]
    %v224 = vld [vmem:[%s0 + $0x240] sm:$0xf]
    %v225 = vld [vmem:[%s0 + $0x244] sm:$0xf]
    %v226 = vld [vmem:[%s0 + $0x248] sm:$0xf]
    %v227 = vld [vmem:[%s0 + $0x24c] sm:$0xf]
    %v228 = vld [vmem:[%s0 + $0x250] sm:$0xf]
    %v229 = vld [vmem:[%s0 + $0x254] sm:$0xf]
    %v230 = vld [vmem:[%s0 + $0x258] sm:$0xf]
    %v231 = vld [vmem:[%s0 + $0x25c] sm:$0xf]
    %v232 = vld [vmem:[%s0 + $0x260] sm:$0xf]
    %v233 = vld [vmem:[%s0 + $0x264] sm:$0xf]
    %v234 = vld [vmem:[%s0 + $0x268] sm:$0xf]
    %v235 = vld [vmem:[%s0 + $0x26c] sm:$0xf]
    %v236 = vld [vmem:[%s0 + $0x270] sm:$0xf]
    %v237 = vld [vmem:[%s0 + $0x274] sm:$0xf]
    %v238 = vld [vmem:[%s0 + $0x278] sm:$0xf]
    %v239 = vld [vmem:[%s0 + $0x27c] sm:$0xf]
    %v240 = vld [vmem:[%s0 + $0x280] sm:$0xf]
    %v241 = vld [vmem:[%s0 + $0x284] sm:$0xf]
    %v242 = vld [vmem:[%s0 + $0x288] sm:$0xf]
    %v243 = vld [vmem:[%s0 + $0x28c] sm:$0xf]
    %v244 = vld [vmem:[%s0 + $0x290] sm:$0xf]
    %v245 = vld [vmem:[%s0 + $0x294] sm:$0xf]
    %v246 = vld [vmem:[%s0 + $0x298] sm:$0xf]
    %v247 = vld [vmem:[%s0 + $0x29c] sm:$0xf]
    %v248 = vld [vmem:[%s0 + $0x2a0] sm:$0xf]
    %v249 = vld [vmem:[%s0 + $0x2a4] sm:$0xf]
    %v250 = vld [vmem:[%s0 + $0x2a8] sm:$0xf]
    %v251 = vld [vmem:[%s0 + $0x2ac] sm:$0xf]
    %v252 = vld [vmem:[%s0 + $0x2b0] sm:$0xf]
    %v253 = vld [vmem:[%s0 + $0x2b4] sm:$0xf]
    %v254 = vld [vmem:[%s0 + $0x2b8] sm:$0xf]
    %v255 = vld [vmem:[%s0 + $0x2bc] sm:$0xf]
    %v256 = vld [vmem:[%s0 + $0x2c0] sm:$0xf]
    %v257 = vld [vmem:[%s0 + $0x2c4] sm:$0xf]
    %v258 = vld [vmem:[%s0 + $0x2c8] sm:$0xf]
    %v259 = vld [vmem:[%s0 + $0x2cc] sm:$0xf]
    %v260 = vld [vmem:[%s0 + $0x2d0] sm:$0xf]
    %v261 = vld [vmem:[%s0 + $0x2d4] sm:$0xf]
    %v262 = vld [vmem:[%s0 + $0x2d8] sm:$0xf]
    %v263 = vld [vmem:[%s0 + $0x2dc] sm:$0xf]
    %v264 = vld [vmem:[%s0 + $0x2e0] sm:$0xf]
    %v265 = vld [vmem:[%s0 + $0x2e4] sm:$0xf]
    %v266 = vld [vmem:[%s0 + $0x2e8] sm:$0xf]
    %v267 = vld [vmem:[%s0 + $0x2ec] sm:$0xf]
    %v268 = vld [vmem:[%s0 + $0x2f0] sm:$0xf]
    %v269 = vld [vmem:[%s0 + $0x2f4] sm:$0xf]
    %v270 = vld [vmem:[%s0 + $0x2f8] sm:$0xf]
    %v271 = vld [vmem:[%s0 + $0x2fc] sm:$0xf]
    %v272 = vld [vmem:[%s0 + $0x300] sm:$0xf]
    %v273 = vld [vmem:[%s0 + $0x304] sm:$0xf]
    %v274 = vld [vmem:[%s0 + $0x308] sm:$0xf]
    %v275 = vld [vmem:[%s0 + $0x30c] sm:$0xf]
    %v276 = vld [vmem:[%s0 + $0x310] sm:$0xf]
    %v277 = vld [vmem:[%s0 + $0x314] sm:$0xf]
    %v278 = vld [vmem:[%s0 + $0x318] sm:$0xf]
    %v279 = vld [vmem:[%s0 + $0x31c] sm:$0xf]
    %v280 = vld [vmem:[%s0 + $0x320] sm:$0xf]
    %v281 = vld [vmem:[%s0 + $0x324] sm:$0xf]
    %v282 = vld [vmem:[%s0 + $0x328] sm:$0xf]
    %v283 = vld [vmem:[%s0 + $0x32c] sm:$0xf]
    %v284 = vld [vmem:[%s0 + $0x330] sm:$0xf]
    %v285 = vld [vmem:[%s0 + $0x334] sm:$0xf]
    %v286 = vld [vmem:[%s0 + $0x338] sm:$0xf]
    %v287 = vld [vmem:[%s0 + $0x33c] sm:$0xf]
    %v288 = vld [vmem:[%s0 + $0x340] sm:$0xf]
    %v289 = vld [vmem:[%s0 + $0x344] sm:$0xf]
    %v290 = vld [vmem:[%s0 + $0x348] sm:$0xf]
    %v291 = vld [vmem:[%s0 + $0x34c] sm:$0xf]
    %v292 = vld [vmem:[%s0 + $0x350] sm:$0xf]
    %v293 = vld [vmem:[%s0 + $0x354] sm:$0xf]
    %v294 = vld [vmem:[%s0 + $0x358] sm:$0xf]
    %v295 = vld [vmem:[%s0 + $0x35c] sm:$0xf]
    %v296 = vld [vmem:[%s0 + $0x360] sm:$0xf]
    %v297 = vld [vmem:[%s0 + $0x364] sm:$0xf]
    %v298 = vld [vmem:[%s0 + $0x368] sm:$0xf]
    %v299 = vld [vmem:[%s0 + $0x36c] sm:$0xf]
    %v300 = vld [vmem:[%s0 + $0x370] sm:$0xf]
    %v301 = vld [vmem:[%s0 + $0x374] sm:$0xf]
    %v302 = vld [vmem:[%s0 + $0x378] sm:$0xf]
    %v303 = vld [vmem:[%s0 + $0x37c] sm:$0xf]
    %v304 = vld [vmem:[%s0 + $0x380] sm:$0xf]
    %v305 = vld [vmem:[%s0 + $0x384] sm:$0xf]
    %v306 = vld [vmem:[%s0 + $0x388] sm:$0xf]
    %v307 = vld [vmem:[%s0 + $0x38c] sm:$0xf]
    %v308 = vld [vmem:[%s0 + $0x390] sm:$0xf]
    %v309 = vld [vmem:[%s0 + $0x394] sm:$0xf]
    %v310 = vld [vmem:[%s0 + $0x398] sm:$0xf]
    %v311 = vld [vmem:[%s0 + $0x39c] sm:$0xf]
    %v312 = vld [vmem:[%s0 + $0x3a0] sm:$0xf]
    %v313 = vld [vmem:[%s0 + $0x3a4] sm:$0xf]
    %v314 = vld [vmem:[%s0 + $0x3a8] sm:$0xf]
    %v315 = vld [vmem:[%s0 + $0x3ac] sm:$0xf]
    %v316 = vld [vmem:[%s0 + $0x3b0] sm:$0xf]
    %v317 = vld [vmem:[%s0 + $0x3b4] sm:$0xf]
    %v318 = vld [vmem:[%s0 + $0x3b8] sm:$0xf]
    %v319 = vld [vmem:[%s0 + $0x3bc] sm:$0xf]
    %v320 = vld [vmem:[%s0 + $0x3c0] sm:$0xf]
    %v321 = vld [vmem:[%s0 + $0x3c4] sm:$0xf]
    %v322 = vld [vmem:[%s0 + $0x3c8] sm:$0xf]
    %v323 = vld [vmem:[%s0 + $0x3cc] sm:$0xf]
    %v324 = vld [vmem:[%s0 + $0x3d0] sm:$0xf]
    %v325 = vld [vmem:[%s0 + $0x3d4] sm:$0xf]
    %v326 = vld [vmem:[%s0 + $0x3d8] sm:$0xf]
    %v327 = vld [vmem:[%s0 + $0x3dc] sm:$0xf]
    %v328 = vld [vmem:[%s0 + $0x3e0] sm:$0xf]
    %v329 = vld [vmem:[%s0 + $0x3e4] sm:$0xf]
    %v330 = vld [vmem:[%s0 + $0x3e8] sm:$0xf]
    %v331 = vld [vmem:[%s0 + $0x3ec] sm:$0xf]
    %v332 = vld [vmem:[%s0 + $0x3f0] sm:$0xf]
    %v333 = vld [vmem:[%s0 + $0x3f4] sm:$0xf]
    %v334 = vld [vmem:[%s0 + $0x3f8] sm:$0xf]
    %v335 = vld [vmem:[%s0 + $0x3fc] sm:$0xf]
    %v337 = vlaneseq
    %v338 = vshrl.u32 %v337, 7
    %v339 = vsub.s32 0, %v338
    %v340 = vrot.slane %v67, %v339
    %v598 = vcombine.low %v80, %v81
    %v599 = vcombine.low %v82, %v83
    %v601 = vunpack.c.l.s4 1983009808
    %v602 = vunpack.c.0.s8 %v601
    %v603 = vlaneseq
    %v604 = vshrl.u32 %v603, 7
    %v605 = vsub.s32 %v602, %v604
    %v606 = vrot.slane %v598, %v605
    %v608 = vunpack.c.l.s4 1983009808
    %v609 = vunpack.c.0.s8 %v608
    %v610 = vlaneseq
    %v611 = vshrl.u32 %v610, 7
    %v612 = vsub.s32 %v609, %v611
    %v613 = vrot.slane %v599, %v612
    %v614 = vcombine.low %v606, %v613
    %v615 = vcombine.high %v606, %v613
    %v616 = vcombine.low %v84, %v85
    %v617 = vcombine.low %v86, %v87
    %v619 = vunpack.c.l.s4 1983009808
    %v620 = vunpack.c.0.s8 %v619
    %v621 = vlaneseq
    %v622 = vshrl.u32 %v621, 7
    %v623 = vsub.s32 %v620, %v622
    %v624 = vrot.slane %v616, %v623
    %v626 = vunpack.c.l.s4 1983009808
    %v627 = vunpack.c.0.s8 %v626
    %v628 = vlaneseq
    %v629 = vshrl.u32 %v628, 7
    %v630 = vsub.s32 %v627, %v629
    %v631 = vrot.slane %v617, %v630
    %v632 = vcombine.low %v624, %v631
    %v633 = vcombine.high %v624, %v631
    %v634 = vcombine.low %v88, %v89
    %v635 = vcombine.low %v90, %v91
    %v637 = vunpack.c.l.s4 1983009808
    %v638 = vunpack.c.0.s8 %v637
    %v639 = vlaneseq
    %v640 = vshrl.u32 %v639, 7
    %v641 = vsub.s32 %v638, %v640
    %v642 = vrot.slane %v634, %v641
    %v644 = vunpack.c.l.s4 1983009808
    %v645 = vunpack.c.0.s8 %v644
    %v646 = vlaneseq
    %v647 = vshrl.u32 %v646, 7
    %v648 = vsub.s32 %v645, %v647
    %v649 = vrot.slane %v635, %v648
    %v650 = vcombine.low %v642, %v649
    %v651 = vcombine.high %v642, %v649
    %v652 = vcombine.low %v92, %v93
    %v653 = vcombine.low %v94, %v95
    %v655 = vunpack.c.l.s4 1983009808
    %v656 = vunpack.c.0.s8 %v655
    %v657 = vlaneseq
    %v658 = vshrl.u32 %v657, 7
    %v659 = vsub.s32 %v656, %v658
    %v660 = vrot.slane %v652, %v659
    %v662 = vunpack.c.l.s4 1983009808
    %v663 = vunpack.c.0.s8 %v662
    %v664 = vlaneseq
    %v665 = vshrl.u32 %v664, 7
    %v666 = vsub.s32 %v663, %v665
    %v667 = vrot.slane %v653, %v666
    %v668 = vcombine.low %v660, %v667
    %v669 = vcombine.high %v660, %v667
    %v670 = vcombine.low %v96, %v97
    %v671 = vcombine.low %v98, %v99
    %v673 = vunpack.c.l.s4 1983009808
    %v674 = vunpack.c.0.s8 %v673
    %v675 = vlaneseq
    %v676 = vshrl.u32 %v675, 7
    %v677 = vsub.s32 %v674, %v676
    %v678 = vrot.slane %v670, %v677
    %v680 = vunpack.c.l.s4 1983009808
    %v681 = vunpack.c.0.s8 %v680
    %v682 = vlaneseq
    %v683 = vshrl.u32 %v682, 7
    %v684 = vsub.s32 %v681, %v683
    %v685 = vrot.slane %v671, %v684
    %v686 = vcombine.low %v678, %v685
    %v687 = vcombine.high %v678, %v685
    %v688 = vcombine.low %v100, %v101
    %v689 = vcombine.low %v102, %v103
    %v691 = vunpack.c.l.s4 1983009808
    %v692 = vunpack.c.0.s8 %v691
    %v693 = vlaneseq
    %v694 = vshrl.u32 %v693, 7
    %v695 = vsub.s32 %v692, %v694
    %v696 = vrot.slane %v688, %v695
    %v698 = vunpack.c.l.s4 1983009808
    %v699 = vunpack.c.0.s8 %v698
    %v700 = vlaneseq
    %v701 = vshrl.u32 %v700, 7
    %v702 = vsub.s32 %v699, %v701
    %v703 = vrot.slane %v689, %v702
    %v704 = vcombine.low %v696, %v703
    %v705 = vcombine.high %v696, %v703
    %v706 = vcombine.low %v104, %v105
    %v707 = vcombine.low %v106, %v107
    %v709 = vunpack.c.l.s4 1983009808
    %v710 = vunpack.c.0.s8 %v709
    %v711 = vlaneseq
    %v712 = vshrl.u32 %v711, 7
    %v713 = vsub.s32 %v710, %v712
    %v714 = vrot.slane %v706, %v713
    %v716 = vunpack.c.l.s4 1983009808
    %v717 = vunpack.c.0.s8 %v716
    %v718 = vlaneseq
    %v719 = vshrl.u32 %v718, 7
    %v720 = vsub.s32 %v717, %v719
    %v721 = vrot.slane %v707, %v720
    %v722 = vcombine.low %v714, %v721
    %v723 = vcombine.high %v714, %v721
    %v724 = vcombine.low %v108, %v109
    %v725 = vcombine.low %v110, %v111
    %v727 = vunpack.c.l.s4 1983009808
    %v728 = vunpack.c.0.s8 %v727
    %v729 = vlaneseq
    %v730 = vshrl.u32 %v729, 7
    %v731 = vsub.s32 %v728, %v730
    %v732 = vrot.slane %v724, %v731
    %v734 = vunpack.c.l.s4 1983009808
    %v735 = vunpack.c.0.s8 %v734
    %v736 = vlaneseq
    %v737 = vshrl.u32 %v736, 7
    %v738 = vsub.s32 %v735, %v737
    %v739 = vrot.slane %v725, %v738
    %v740 = vcombine.low %v732, %v739
    %v741 = vcombine.high %v732, %v739
    %v742 = vcombine.low %v112, %v113
    %v743 = vcombine.low %v114, %v115
    %v745 = vunpack.c.l.s4 1983009808
    %v746 = vunpack.c.0.s8 %v745
    %v747 = vlaneseq
    %v748 = vshrl.u32 %v747, 7
    %v749 = vsub.s32 %v746, %v748
    %v750 = vrot.slane %v742, %v749
    %v752 = vunpack.c.l.s4 1983009808
    %v753 = vunpack.c.0.s8 %v752
    %v754 = vlaneseq
    %v755 = vshrl.u32 %v754, 7
    %v756 = vsub.s32 %v753, %v755
    %v757 = vrot.slane %v743, %v756
    %v758 = vcombine.low %v750, %v757
    %v759 = vcombine.high %v750, %v757
    %v760 = vcombine.low %v116, %v117
    %v761 = vcombine.low %v118, %v119
    %v763 = vunpack.c.l.s4 1983009808
    %v764 = vunpack.c.0.s8 %v763
    %v765 = vlaneseq
    %v766 = vshrl.u32 %v765, 7
    %v767 = vsub.s32 %v764, %v766
    %v768 = vrot.slane %v760, %v767
    %v770 = vunpack.c.l.s4 1983009808
    %v771 = vunpack.c.0.s8 %v770
    %v772 = vlaneseq
    %v773 = vshrl.u32 %v772, 7
    %v774 = vsub.s32 %v771, %v773
    %v775 = vrot.slane %v761, %v774
    %v776 = vcombine.low %v768, %v775
    %v777 = vcombine.high %v768, %v775
    %v778 = vcombine.low %v120, %v121
    %v779 = vcombine.low %v122, %v123
    %v781 = vunpack.c.l.s4 1983009808
    %v782 = vunpack.c.0.s8 %v781
    %v783 = vlaneseq
    %v784 = vshrl.u32 %v783, 7
    %v785 = vsub.s32 %v782, %v784
    %v786 = vrot.slane %v778, %v785
    %v788 = vunpack.c.l.s4 1983009808
    %v789 = vunpack.c.0.s8 %v788
    %v790 = vlaneseq
    %v791 = vshrl.u32 %v790, 7
    %v792 = vsub.s32 %v789, %v791
    %v793 = vrot.slane %v779, %v792
    %v794 = vcombine.low %v786, %v793
    %v795 = vcombine.high %v786, %v793
    %v796 = vcombine.low %v124, %v125
    %v797 = vcombine.low %v126, %v127
    %v799 = vunpack.c.l.s4 1983009808
    %v800 = vunpack.c.0.s8 %v799
    %v801 = vlaneseq
    %v802 = vshrl.u32 %v801, 7
    %v803 = vsub.s32 %v800, %v802
    %v804 = vrot.slane %v796, %v803
    %v806 = vunpack.c.l.s4 1983009808
    %v807 = vunpack.c.0.s8 %v806
    %v808 = vlaneseq
    %v809 = vshrl.u32 %v808, 7
    %v810 = vsub.s32 %v807, %v809
    %v811 = vrot.slane %v797, %v810
    %v812 = vcombine.low %v804, %v811
    %v813 = vcombine.high %v804, %v811
    %v814 = vcombine.low %v128, %v129
    %v815 = vcombine.low %v130, %v131
    %v817 = vunpack.c.l.s4 1983009808
    %v818 = vunpack.c.0.s8 %v817
    %v819 = vlaneseq
    %v820 = vshrl.u32 %v819, 7
    %v821 = vsub.s32 %v818, %v820
    %v822 = vrot.slane %v814, %v821
    %v824 = vunpack.c.l.s4 1983009808
    %v825 = vunpack.c.0.s8 %v824
    %v826 = vlaneseq
    %v827 = vshrl.u32 %v826, 7
    %v828 = vsub.s32 %v825, %v827
    %v829 = vrot.slane %v815, %v828
    %v830 = vcombine.low %v822, %v829
    %v831 = vcombine.high %v822, %v829
    %v832 = vcombine.low %v132, %v133
    %v833 = vcombine.low %v134, %v135
    %v835 = vunpack.c.l.s4 1983009808
    %v836 = vunpack.c.0.s8 %v835
    %v837 = vlaneseq
    %v838 = vshrl.u32 %v837, 7
    %v839 = vsub.s32 %v836, %v838
    %v840 = vrot.slane %v832, %v839
    %v842 = vunpack.c.l.s4 1983009808
    %v843 = vunpack.c.0.s8 %v842
    %v844 = vlaneseq
    %v845 = vshrl.u32 %v844, 7
    %v846 = vsub.s32 %v843, %v845
    %v847 = vrot.slane %v833, %v846
    %v848 = vcombine.low %v840, %v847
    %v849 = vcombine.high %v840, %v847
    %v850 = vcombine.low %v136, %v137
    %v851 = vcombine.low %v138, %v139
    %v853 = vunpack.c.l.s4 1983009808
    %v854 = vunpack.c.0.s8 %v853
    %v855 = vlaneseq
    %v856 = vshrl.u32 %v855, 7
    %v857 = vsub.s32 %v854, %v856
    %v858 = vrot.slane %v850, %v857
    %v860 = vunpack.c.l.s4 1983009808
    %v861 = vunpack.c.0.s8 %v860
    %v862 = vlaneseq
    %v863 = vshrl.u32 %v862, 7
    %v864 = vsub.s32 %v861, %v863
    %v865 = vrot.slane %v851, %v864
    %v866 = vcombine.low %v858, %v865
    %v867 = vcombine.high %v858, %v865
    %v868 = vcombine.low %v140, %v141
    %v869 = vcombine.low %v142, %v143
    %v871 = vunpack.c.l.s4 1983009808
    %v872 = vunpack.c.0.s8 %v871
    %v873 = vlaneseq
    %v874 = vshrl.u32 %v873, 7
    %v875 = vsub.s32 %v872, %v874
    %v876 = vrot.slane %v868, %v875
    %v878 = vunpack.c.l.s4 1983009808
    %v879 = vunpack.c.0.s8 %v878
    %v880 = vlaneseq
    %v881 = vshrl.u32 %v880, 7
    %v882 = vsub.s32 %v879, %v881
    %v883 = vrot.slane %v869, %v882
    %v884 = vcombine.low %v876, %v883
    %v885 = vcombine.high %v876, %v883
    %v886 = vcombine.low %v144, %v145
    %v887 = vcombine.low %v146, %v147
    %v889 = vunpack.c.l.s4 1983009808
    %v890 = vunpack.c.0.s8 %v889
    %v891 = vlaneseq
    %v892 = vshrl.u32 %v891, 7
    %v893 = vsub.s32 %v890, %v892
    %v894 = vrot.slane %v886, %v893
    %v896 = vunpack.c.l.s4 1983009808
    %v897 = vunpack.c.0.s8 %v896
    %v898 = vlaneseq
    %v899 = vshrl.u32 %v898, 7
    %v900 = vsub.s32 %v897, %v899
    %v901 = vrot.slane %v887, %v900
    %v902 = vcombine.low %v894, %v901
    %v903 = vcombine.high %v894, %v901
    %v904 = vcombine.low %v148, %v149
    %v905 = vcombine.low %v150, %v151
    %v907 = vunpack.c.l.s4 1983009808
    %v908 = vunpack.c.0.s8 %v907
    %v909 = vlaneseq
    %v910 = vshrl.u32 %v909, 7
    %v911 = vsub.s32 %v908, %v910
    %v912 = vrot.slane %v904, %v911
    %v914 = vunpack.c.l.s4 1983009808
    %v915 = vunpack.c.0.s8 %v914
    %v916 = vlaneseq
    %v917 = vshrl.u32 %v916, 7
    %v918 = vsub.s32 %v915, %v917
    %v919 = vrot.slane %v905, %v918
    %v920 = vcombine.low %v912, %v919
    %v921 = vcombine.high %v912, %v919
    %v922 = vcombine.low %v152, %v153
    %v923 = vcombine.low %v154, %v155
    %v925 = vunpack.c.l.s4 1983009808
    %v926 = vunpack.c.0.s8 %v925
    %v927 = vlaneseq
    %v928 = vshrl.u32 %v927, 7
    %v929 = vsub.s32 %v926, %v928
    %v930 = vrot.slane %v922, %v929
    %v932 = vunpack.c.l.s4 1983009808
    %v933 = vunpack.c.0.s8 %v932
    %v934 = vlaneseq
    %v935 = vshrl.u32 %v934, 7
    %v936 = vsub.s32 %v933, %v935
    %v937 = vrot.slane %v923, %v936
    %v938 = vcombine.low %v930, %v937
    %v939 = vcombine.high %v930, %v937
    %v940 = vcombine.low %v156, %v157
    %v941 = vcombine.low %v158, %v159
    %v943 = vunpack.c.l.s4 1983009808
    %v944 = vunpack.c.0.s8 %v943
    %v945 = vlaneseq
    %v946 = vshrl.u32 %v945, 7
    %v947 = vsub.s32 %v944, %v946
    %v948 = vrot.slane %v940, %v947
    %v950 = vunpack.c.l.s4 1983009808
    %v951 = vunpack.c.0.s8 %v950
    %v952 = vlaneseq
    %v953 = vshrl.u32 %v952, 7
    %v954 = vsub.s32 %v951, %v953
    %v955 = vrot.slane %v941, %v954
    %v956 = vcombine.low %v948, %v955
    %v957 = vcombine.high %v948, %v955
    %v958 = vcombine.low %v160, %v161
    %v959 = vcombine.low %v162, %v163
    %v961 = vunpack.c.l.s4 1983009808
    %v962 = vunpack.c.0.s8 %v961
    %v963 = vlaneseq
    %v964 = vshrl.u32 %v963, 7
    %v965 = vsub.s32 %v962, %v964
    %v966 = vrot.slane %v958, %v965
    %v968 = vunpack.c.l.s4 1983009808
    %v969 = vunpack.c.0.s8 %v968
    %v970 = vlaneseq
    %v971 = vshrl.u32 %v970, 7
    %v972 = vsub.s32 %v969, %v971
    %v973 = vrot.slane %v959, %v972
    %v974 = vcombine.low %v966, %v973
    %v975 = vcombine.high %v966, %v973
    %v976 = vcombine.low %v164, %v165
    %v977 = vcombine.low %v166, %v167
    %v979 = vunpack.c.l.s4 1983009808
    %v980 = vunpack.c.0.s8 %v979
    %v981 = vlaneseq
    %v982 = vshrl.u32 %v981, 7
    %v983 = vsub.s32 %v980, %v982
    %v984 = vrot.slane %v976, %v983
    %v986 = vunpack.c.l.s4 1983009808
    %v987 = vunpack.c.0.s8 %v986
    %v988 = vlaneseq
    %v989 = vshrl.u32 %v988, 7
    %v990 = vsub.s32 %v987, %v989
    %v991 = vrot.slane %v977, %v990
    %v992 = vcombine.low %v984, %v991
    %v993 = vcombine.high %v984, %v991
    %v994 = vcombine.low %v168, %v169
    %v995 = vcombine.low %v170, %v171
    %v997 = vunpack.c.l.s4 1983009808
    %v998 = vunpack.c.0.s8 %v997
    %v999 = vlaneseq
    %v1000 = vshrl.u32 %v999, 7
    %v1001 = vsub.s32 %v998, %v1000
    %v1002 = vrot.slane %v994, %v1001
    %v1004 = vunpack.c.l.s4 1983009808
    %v1005 = vunpack.c.0.s8 %v1004
    %v1006 = vlaneseq
    %v1007 = vshrl.u32 %v1006, 7
    %v1008 = vsub.s32 %v1005, %v1007
    %v1009 = vrot.slane %v995, %v1008
    %v1010 = vcombine.low %v1002, %v1009
    %v1011 = vcombine.high %v1002, %v1009
    %v1012 = vcombine.low %v172, %v173
    %v1013 = vcombine.low %v174, %v175
    %v1015 = vunpack.c.l.s4 1983009808
    %v1016 = vunpack.c.0.s8 %v1015
    %v1017 = vlaneseq
    %v1018 = vshrl.u32 %v1017, 7
    %v1019 = vsub.s32 %v1016, %v1018
    %v1020 = vrot.slane %v1012, %v1019
    %v1022 = vunpack.c.l.s4 1983009808
    %v1023 = vunpack.c.0.s8 %v1022
    %v1024 = vlaneseq
    %v1025 = vshrl.u32 %v1024, 7
    %v1026 = vsub.s32 %v1023, %v1025
    %v1027 = vrot.slane %v1013, %v1026
    %v1028 = vcombine.low %v1020, %v1027
    %v1029 = vcombine.high %v1020, %v1027
    %v1030 = vcombine.low %v176, %v177
    %v1031 = vcombine.low %v178, %v179
    %v1033 = vunpack.c.l.s4 1983009808
    %v1034 = vunpack.c.0.s8 %v1033
    %v1035 = vlaneseq
    %v1036 = vshrl.u32 %v1035, 7
    %v1037 = vsub.s32 %v1034, %v1036
    %v1038 = vrot.slane %v1030, %v1037
    %v1040 = vunpack.c.l.s4 1983009808
    %v1041 = vunpack.c.0.s8 %v1040
    %v1042 = vlaneseq
    %v1043 = vshrl.u32 %v1042, 7
    %v1044 = vsub.s32 %v1041, %v1043
    %v1045 = vrot.slane %v1031, %v1044
    %v1046 = vcombine.low %v1038, %v1045
    %v1047 = vcombine.high %v1038, %v1045
    %v1048 = vcombine.low %v180, %v181
    %v1049 = vcombine.low %v182, %v183
    %v1051 = vunpack.c.l.s4 1983009808
    %v1052 = vunpack.c.0.s8 %v1051
    %v1053 = vlaneseq
    %v1054 = vshrl.u32 %v1053, 7
    %v1055 = vsub.s32 %v1052, %v1054
    %v1056 = vrot.slane %v1048, %v1055
    %v1058 = vunpack.c.l.s4 1983009808
    %v1059 = vunpack.c.0.s8 %v1058
    %v1060 = vlaneseq
    %v1061 = vshrl.u32 %v1060, 7
    %v1062 = vsub.s32 %v1059, %v1061
    %v1063 = vrot.slane %v1049, %v1062
    %v1064 = vcombine.low %v1056, %v1063
    %v1065 = vcombine.high %v1056, %v1063
    %v1066 = vcombine.low %v184, %v185
    %v1067 = vcombine.low %v186, %v187
    %v1069 = vunpack.c.l.s4 1983009808
    %v1070 = vunpack.c.0.s8 %v1069
    %v1071 = vlaneseq
    %v1072 = vshrl.u32 %v1071, 7
    %v1073 = vsub.s32 %v1070, %v1072
    %v1074 = vrot.slane %v1066, %v1073
    %v1076 = vunpack.c.l.s4 1983009808
    %v1077 = vunpack.c.0.s8 %v1076
    %v1078 = vlaneseq
    %v1079 = vshrl.u32 %v1078, 7
    %v1080 = vsub.s32 %v1077, %v1079
    %v1081 = vrot.slane %v1067, %v1080
    %v1082 = vcombine.low %v1074, %v1081
    %v1083 = vcombine.high %v1074, %v1081
    %v1084 = vcombine.low %v188, %v189
    %v1085 = vcombine.low %v190, %v191
    %v1087 = vunpack.c.l.s4 1983009808
    %v1088 = vunpack.c.0.s8 %v1087
    %v1089 = vlaneseq
    %v1090 = vshrl.u32 %v1089, 7
    %v1091 = vsub.s32 %v1088, %v1090
    %v1092 = vrot.slane %v1084, %v1091
    %v1094 = vunpack.c.l.s4 1983009808
    %v1095 = vunpack.c.0.s8 %v1094
    %v1096 = vlaneseq
    %v1097 = vshrl.u32 %v1096, 7
    %v1098 = vsub.s32 %v1095, %v1097
    %v1099 = vrot.slane %v1085, %v1098
    %v1100 = vcombine.low %v1092, %v1099
    %v1101 = vcombine.high %v1092, %v1099
    %v1102 = vcombine.low %v192, %v193
    %v1103 = vcombine.low %v194, %v195
    %v1105 = vunpack.c.l.s4 1983009808
    %v1106 = vunpack.c.0.s8 %v1105
    %v1107 = vlaneseq
    %v1108 = vshrl.u32 %v1107, 7
    %v1109 = vsub.s32 %v1106, %v1108
    %v1110 = vrot.slane %v1102, %v1109
    %v1112 = vunpack.c.l.s4 1983009808
    %v1113 = vunpack.c.0.s8 %v1112
    %v1114 = vlaneseq
    %v1115 = vshrl.u32 %v1114, 7
    %v1116 = vsub.s32 %v1113, %v1115
    %v1117 = vrot.slane %v1103, %v1116
    %v1118 = vcombine.low %v1110, %v1117
    %v1119 = vcombine.high %v1110, %v1117
    %v1120 = vcombine.low %v196, %v197
    %v1121 = vcombine.low %v198, %v199
    %v1123 = vunpack.c.l.s4 1983009808
    %v1124 = vunpack.c.0.s8 %v1123
    %v1125 = vlaneseq
    %v1126 = vshrl.u32 %v1125, 7
    %v1127 = vsub.s32 %v1124, %v1126
    %v1128 = vrot.slane %v1120, %v1127
    %v1130 = vunpack.c.l.s4 1983009808
    %v1131 = vunpack.c.0.s8 %v1130
    %v1132 = vlaneseq
    %v1133 = vshrl.u32 %v1132, 7
    %v1134 = vsub.s32 %v1131, %v1133
    %v1135 = vrot.slane %v1121, %v1134
    %v1136 = vcombine.low %v1128, %v1135
    %v1137 = vcombine.high %v1128, %v1135
    %v1138 = vcombine.low %v200, %v201
    %v1139 = vcombine.low %v202, %v203
    %v1141 = vunpack.c.l.s4 1983009808
    %v1142 = vunpack.c.0.s8 %v1141
    %v1143 = vlaneseq
    %v1144 = vshrl.u32 %v1143, 7
    %v1145 = vsub.s32 %v1142, %v1144
    %v1146 = vrot.slane %v1138, %v1145
    %v1148 = vunpack.c.l.s4 1983009808
    %v1149 = vunpack.c.0.s8 %v1148
    %v1150 = vlaneseq
    %v1151 = vshrl.u32 %v1150, 7
    %v1152 = vsub.s32 %v1149, %v1151
    %v1153 = vrot.slane %v1139, %v1152
    %v1154 = vcombine.low %v1146, %v1153
    %v1155 = vcombine.high %v1146, %v1153
    %v1156 = vcombine.low %v204, %v205
    %v1157 = vcombine.low %v206, %v207
    %v1159 = vunpack.c.l.s4 1983009808
    %v1160 = vunpack.c.0.s8 %v1159
    %v1161 = vlaneseq
    %v1162 = vshrl.u32 %v1161, 7
    %v1163 = vsub.s32 %v1160, %v1162
    %v1164 = vrot.slane %v1156, %v1163
    %v1166 = vunpack.c.l.s4 1983009808
    %v1167 = vunpack.c.0.s8 %v1166
    %v1168 = vlaneseq
    %v1169 = vshrl.u32 %v1168, 7
    %v1170 = vsub.s32 %v1167, %v1169
    %v1171 = vrot.slane %v1157, %v1170
    %v1172 = vcombine.low %v1164, %v1171
    %v1173 = vcombine.high %v1164, %v1171
    %v1174 = vcombine.low %v208, %v209
    %v1175 = vcombine.low %v210, %v211
    %v1177 = vunpack.c.l.s4 1983009808
    %v1178 = vunpack.c.0.s8 %v1177
    %v1179 = vlaneseq
    %v1180 = vshrl.u32 %v1179, 7
    %v1181 = vsub.s32 %v1178, %v1180
    %v1182 = vrot.slane %v1174, %v1181
    %v1184 = vunpack.c.l.s4 1983009808
    %v1185 = vunpack.c.0.s8 %v1184
    %v1186 = vlaneseq
    %v1187 = vshrl.u32 %v1186, 7
    %v1188 = vsub.s32 %v1185, %v1187
    %v1189 = vrot.slane %v1175, %v1188
    %v1190 = vcombine.low %v1182, %v1189
    %v1191 = vcombine.high %v1182, %v1189
    %v1192 = vcombine.low %v212, %v213
    %v1193 = vcombine.low %v214, %v215
    %v1195 = vunpack.c.l.s4 1983009808
    %v1196 = vunpack.c.0.s8 %v1195
    %v1197 = vlaneseq
    %v1198 = vshrl.u32 %v1197, 7
    %v1199 = vsub.s32 %v1196, %v1198
    %v1200 = vrot.slane %v1192, %v1199
    %v1202 = vunpack.c.l.s4 1983009808
    %v1203 = vunpack.c.0.s8 %v1202
    %v1204 = vlaneseq
    %v1205 = vshrl.u32 %v1204, 7
    %v1206 = vsub.s32 %v1203, %v1205
    %v1207 = vrot.slane %v1193, %v1206
    %v1208 = vcombine.low %v1200, %v1207
    %v1209 = vcombine.high %v1200, %v1207
    %v1210 = vcombine.low %v216, %v217
    %v1211 = vcombine.low %v218, %v219
    %v1213 = vunpack.c.l.s4 1983009808
    %v1214 = vunpack.c.0.s8 %v1213
    %v1215 = vlaneseq
    %v1216 = vshrl.u32 %v1215, 7
    %v1217 = vsub.s32 %v1214, %v1216
    %v1218 = vrot.slane %v1210, %v1217
    %v1220 = vunpack.c.l.s4 1983009808
    %v1221 = vunpack.c.0.s8 %v1220
    %v1222 = vlaneseq
    %v1223 = vshrl.u32 %v1222, 7
    %v1224 = vsub.s32 %v1221, %v1223
    %v1225 = vrot.slane %v1211, %v1224
    %v1226 = vcombine.low %v1218, %v1225
    %v1227 = vcombine.high %v1218, %v1225
    %v1228 = vcombine.low %v220, %v221
    %v1229 = vcombine.low %v222, %v223
    %v1231 = vunpack.c.l.s4 1983009808
    %v1232 = vunpack.c.0.s8 %v1231
    %v1233 = vlaneseq
    %v1234 = vshrl.u32 %v1233, 7
    %v1235 = vsub.s32 %v1232, %v1234
    %v1236 = vrot.slane %v1228, %v1235
    %v1238 = vunpack.c.l.s4 1983009808
    %v1239 = vunpack.c.0.s8 %v1238
    %v1240 = vlaneseq
    %v1241 = vshrl.u32 %v1240, 7
    %v1242 = vsub.s32 %v1239, %v1241
    %v1243 = vrot.slane %v1229, %v1242
    %v1244 = vcombine.low %v1236, %v1243
    %v1245 = vcombine.high %v1236, %v1243
    %v1246 = vcombine.low %v224, %v225
    %v1247 = vcombine.low %v226, %v227
    %v1249 = vunpack.c.l.s4 1983009808
    %v1250 = vunpack.c.0.s8 %v1249
    %v1251 = vlaneseq
    %v1252 = vshrl.u32 %v1251, 7
    %v1253 = vsub.s32 %v1250, %v1252
    %v1254 = vrot.slane %v1246, %v1253
    %v1256 = vunpack.c.l.s4 1983009808
    %v1257 = vunpack.c.0.s8 %v1256
    %v1258 = vlaneseq
    %v1259 = vshrl.u32 %v1258, 7
    %v1260 = vsub.s32 %v1257, %v1259
    %v1261 = vrot.slane %v1247, %v1260
    %v1262 = vcombine.low %v1254, %v1261
    %v1263 = vcombine.high %v1254, %v1261
    %v1264 = vcombine.low %v228, %v229
    %v1265 = vcombine.low %v230, %v231
    %v1267 = vunpack.c.l.s4 1983009808
    %v1268 = vunpack.c.0.s8 %v1267
    %v1269 = vlaneseq
    %v1270 = vshrl.u32 %v1269, 7
    %v1271 = vsub.s32 %v1268, %v1270
    %v1272 = vrot.slane %v1264, %v1271
    %v1274 = vunpack.c.l.s4 1983009808
    %v1275 = vunpack.c.0.s8 %v1274
    %v1276 = vlaneseq
    %v1277 = vshrl.u32 %v1276, 7
    %v1278 = vsub.s32 %v1275, %v1277
    %v1279 = vrot.slane %v1265, %v1278
    %v1280 = vcombine.low %v1272, %v1279
    %v1281 = vcombine.high %v1272, %v1279
    %v1282 = vcombine.low %v232, %v233
    %v1283 = vcombine.low %v234, %v235
    %v1285 = vunpack.c.l.s4 1983009808
    %v1286 = vunpack.c.0.s8 %v1285
    %v1287 = vlaneseq
    %v1288 = vshrl.u32 %v1287, 7
    %v1289 = vsub.s32 %v1286, %v1288
    %v1290 = vrot.slane %v1282, %v1289
    %v1292 = vunpack.c.l.s4 1983009808
    %v1293 = vunpack.c.0.s8 %v1292
    %v1294 = vlaneseq
    %v1295 = vshrl.u32 %v1294, 7
    %v1296 = vsub.s32 %v1293, %v1295
    %v1297 = vrot.slane %v1283, %v1296
    %v1298 = vcombine.low %v1290, %v1297
    %v1299 = vcombine.high %v1290, %v1297
    %v1300 = vcombine.low %v236, %v237
    %v1301 = vcombine.low %v238, %v239
    %v1303 = vunpack.c.l.s4 1983009808
    %v1304 = vunpack.c.0.s8 %v1303
    %v1305 = vlaneseq
    %v1306 = vshrl.u32 %v1305, 7
    %v1307 = vsub.s32 %v1304, %v1306
    %v1308 = vrot.slane %v1300, %v1307
    %v1310 = vunpack.c.l.s4 1983009808
    %v1311 = vunpack.c.0.s8 %v1310
    %v1312 = vlaneseq
    %v1313 = vshrl.u32 %v1312, 7
    %v1314 = vsub.s32 %v1311, %v1313
    %v1315 = vrot.slane %v1301, %v1314
    %v1316 = vcombine.low %v1308, %v1315
    %v1317 = vcombine.high %v1308, %v1315
    %v1318 = vcombine.low %v240, %v241
    %v1319 = vcombine.low %v242, %v243
    %v1321 = vunpack.c.l.s4 1983009808
    %v1322 = vunpack.c.0.s8 %v1321
    %v1323 = vlaneseq
    %v1324 = vshrl.u32 %v1323, 7
    %v1325 = vsub.s32 %v1322, %v1324
    %v1326 = vrot.slane %v1318, %v1325
    %v1328 = vunpack.c.l.s4 1983009808
    %v1329 = vunpack.c.0.s8 %v1328
    %v1330 = vlaneseq
    %v1331 = vshrl.u32 %v1330, 7
    %v1332 = vsub.s32 %v1329, %v1331
    %v1333 = vrot.slane %v1319, %v1332
    %v1334 = vcombine.low %v1326, %v1333
    %v1335 = vcombine.high %v1326, %v1333
    %v1336 = vcombine.low %v244, %v245
    %v1337 = vcombine.low %v246, %v247
    %v1339 = vunpack.c.l.s4 1983009808
    %v1340 = vunpack.c.0.s8 %v1339
    %v1341 = vlaneseq
    %v1342 = vshrl.u32 %v1341, 7
    %v1343 = vsub.s32 %v1340, %v1342
    %v1344 = vrot.slane %v1336, %v1343
    %v1346 = vunpack.c.l.s4 1983009808
    %v1347 = vunpack.c.0.s8 %v1346
    %v1348 = vlaneseq
    %v1349 = vshrl.u32 %v1348, 7
    %v1350 = vsub.s32 %v1347, %v1349
    %v1351 = vrot.slane %v1337, %v1350
    %v1352 = vcombine.low %v1344, %v1351
    %v1353 = vcombine.high %v1344, %v1351
    %v1354 = vcombine.low %v248, %v249
    %v1355 = vcombine.low %v250, %v251
    %v1357 = vunpack.c.l.s4 1983009808
    %v1358 = vunpack.c.0.s8 %v1357
    %v1359 = vlaneseq
    %v1360 = vshrl.u32 %v1359, 7
    %v1361 = vsub.s32 %v1358, %v1360
    %v1362 = vrot.slane %v1354, %v1361
    %v1364 = vunpack.c.l.s4 1983009808
    %v1365 = vunpack.c.0.s8 %v1364
    %v1366 = vlaneseq
    %v1367 = vshrl.u32 %v1366, 7
    %v1368 = vsub.s32 %v1365, %v1367
    %v1369 = vrot.slane %v1355, %v1368
    %v1370 = vcombine.low %v1362, %v1369
    %v1371 = vcombine.high %v1362, %v1369
    %v1372 = vcombine.low %v252, %v253
    %v1373 = vcombine.low %v254, %v255
    %v1375 = vunpack.c.l.s4 1983009808
    %v1376 = vunpack.c.0.s8 %v1375
    %v1377 = vlaneseq
    %v1378 = vshrl.u32 %v1377, 7
    %v1379 = vsub.s32 %v1376, %v1378
    %v1380 = vrot.slane %v1372, %v1379
    %v1382 = vunpack.c.l.s4 1983009808
    %v1383 = vunpack.c.0.s8 %v1382
    %v1384 = vlaneseq
    %v1385 = vshrl.u32 %v1384, 7
    %v1386 = vsub.s32 %v1383, %v1385
    %v1387 = vrot.slane %v1373, %v1386
    %v1388 = vcombine.low %v1380, %v1387
    %v1389 = vcombine.high %v1380, %v1387
    %v1390 = vcombine.low %v256, %v257
    %v1391 = vcombine.low %v258, %v259
    %v1393 = vunpack.c.l.s4 1983009808
    %v1394 = vunpack.c.0.s8 %v1393
    %v1395 = vlaneseq
    %v1396 = vshrl.u32 %v1395, 7
    %v1397 = vsub.s32 %v1394, %v1396
    %v1398 = vrot.slane %v1390, %v1397
    %v1400 = vunpack.c.l.s4 1983009808
    %v1401 = vunpack.c.0.s8 %v1400
    %v1402 = vlaneseq
    %v1403 = vshrl.u32 %v1402, 7
    %v1404 = vsub.s32 %v1401, %v1403
    %v1405 = vrot.slane %v1391, %v1404
    %v1406 = vcombine.low %v1398, %v1405
    %v1407 = vcombine.high %v1398, %v1405
    %v1408 = vcombine.low %v260, %v261
    %v1409 = vcombine.low %v262, %v263
    %v1411 = vunpack.c.l.s4 1983009808
    %v1412 = vunpack.c.0.s8 %v1411
    %v1413 = vlaneseq
    %v1414 = vshrl.u32 %v1413, 7
    %v1415 = vsub.s32 %v1412, %v1414
    %v1416 = vrot.slane %v1408, %v1415
    %v1418 = vunpack.c.l.s4 1983009808
    %v1419 = vunpack.c.0.s8 %v1418
    %v1420 = vlaneseq
    %v1421 = vshrl.u32 %v1420, 7
    %v1422 = vsub.s32 %v1419, %v1421
    %v1423 = vrot.slane %v1409, %v1422
    %v1424 = vcombine.low %v1416, %v1423
    %v1425 = vcombine.high %v1416, %v1423
    %v1426 = vcombine.low %v264, %v265
    %v1427 = vcombine.low %v266, %v267
    %v1429 = vunpack.c.l.s4 1983009808
    %v1430 = vunpack.c.0.s8 %v1429
    %v1431 = vlaneseq
    %v1432 = vshrl.u32 %v1431, 7
    %v1433 = vsub.s32 %v1430, %v1432
    %v1434 = vrot.slane %v1426, %v1433
    %v1436 = vunpack.c.l.s4 1983009808
    %v1437 = vunpack.c.0.s8 %v1436
    %v1438 = vlaneseq
    %v1439 = vshrl.u32 %v1438, 7
    %v1440 = vsub.s32 %v1437, %v1439
    %v1441 = vrot.slane %v1427, %v1440
    %v1442 = vcombine.low %v1434, %v1441
    %v1443 = vcombine.high %v1434, %v1441
    %v1444 = vcombine.low %v268, %v269
    %v1445 = vcombine.low %v270, %v271
    %v1447 = vunpack.c.l.s4 1983009808
    %v1448 = vunpack.c.0.s8 %v1447
    %v1449 = vlaneseq
    %v1450 = vshrl.u32 %v1449, 7
    %v1451 = vsub.s32 %v1448, %v1450
    %v1452 = vrot.slane %v1444, %v1451
    %v1454 = vunpack.c.l.s4 1983009808
    %v1455 = vunpack.c.0.s8 %v1454
    %v1456 = vlaneseq
    %v1457 = vshrl.u32 %v1456, 7
    %v1458 = vsub.s32 %v1455, %v1457
    %v1459 = vrot.slane %v1445, %v1458
    %v1460 = vcombine.low %v1452, %v1459
    %v1461 = vcombine.high %v1452, %v1459
    %v1462 = vcombine.low %v272, %v273
    %v1463 = vcombine.low %v274, %v275
    %v1465 = vunpack.c.l.s4 1983009808
    %v1466 = vunpack.c.0.s8 %v1465
    %v1467 = vlaneseq
    %v1468 = vshrl.u32 %v1467, 7
    %v1469 = vsub.s32 %v1466, %v1468
    %v1470 = vrot.slane %v1462, %v1469
    %v1472 = vunpack.c.l.s4 1983009808
    %v1473 = vunpack.c.0.s8 %v1472
    %v1474 = vlaneseq
    %v1475 = vshrl.u32 %v1474, 7
    %v1476 = vsub.s32 %v1473, %v1475
    %v1477 = vrot.slane %v1463, %v1476
    %v1478 = vcombine.low %v1470, %v1477
    %v1479 = vcombine.high %v1470, %v1477
    %v1480 = vcombine.low %v276, %v277
    %v1481 = vcombine.low %v278, %v279
    %v1483 = vunpack.c.l.s4 1983009808
    %v1484 = vunpack.c.0.s8 %v1483
    %v1485 = vlaneseq
    %v1486 = vshrl.u32 %v1485, 7
    %v1487 = vsub.s32 %v1484, %v1486
    %v1488 = vrot.slane %v1480, %v1487
    %v1490 = vunpack.c.l.s4 1983009808
    %v1491 = vunpack.c.0.s8 %v1490
    %v1492 = vlaneseq
    %v1493 = vshrl.u32 %v1492, 7
    %v1494 = vsub.s32 %v1491, %v1493
    %v1495 = vrot.slane %v1481, %v1494
    %v1496 = vcombine.low %v1488, %v1495
    %v1497 = vcombine.high %v1488, %v1495
    %v1498 = vcombine.low %v280, %v281
    %v1499 = vcombine.low %v282, %v283
    %v1501 = vunpack.c.l.s4 1983009808
    %v1502 = vunpack.c.0.s8 %v1501
    %v1503 = vlaneseq
    %v1504 = vshrl.u32 %v1503, 7
    %v1505 = vsub.s32 %v1502, %v1504
    %v1506 = vrot.slane %v1498, %v1505
    %v1508 = vunpack.c.l.s4 1983009808
    %v1509 = vunpack.c.0.s8 %v1508
    %v1510 = vlaneseq
    %v1511 = vshrl.u32 %v1510, 7
    %v1512 = vsub.s32 %v1509, %v1511
    %v1513 = vrot.slane %v1499, %v1512
    %v1514 = vcombine.low %v1506, %v1513
    %v1515 = vcombine.high %v1506, %v1513
    %v1516 = vcombine.low %v284, %v285
    %v1517 = vcombine.low %v286, %v287
    %v1519 = vunpack.c.l.s4 1983009808
    %v1520 = vunpack.c.0.s8 %v1519
    %v1521 = vlaneseq
    %v1522 = vshrl.u32 %v1521, 7
    %v1523 = vsub.s32 %v1520, %v1522
    %v1524 = vrot.slane %v1516, %v1523
    %v1526 = vunpack.c.l.s4 1983009808
    %v1527 = vunpack.c.0.s8 %v1526
    %v1528 = vlaneseq
    %v1529 = vshrl.u32 %v1528, 7
    %v1530 = vsub.s32 %v1527, %v1529
    %v1531 = vrot.slane %v1517, %v1530
    %v1532 = vcombine.low %v1524, %v1531
    %v1533 = vcombine.high %v1524, %v1531
    %v1534 = vcombine.low %v288, %v289
    %v1535 = vcombine.low %v290, %v291
    %v1537 = vunpack.c.l.s4 1983009808
    %v1538 = vunpack.c.0.s8 %v1537
    %v1539 = vlaneseq
    %v1540 = vshrl.u32 %v1539, 7
    %v1541 = vsub.s32 %v1538, %v1540
    %v1542 = vrot.slane %v1534, %v1541
    %v1544 = vunpack.c.l.s4 1983009808
    %v1545 = vunpack.c.0.s8 %v1544
    %v1546 = vlaneseq
    %v1547 = vshrl.u32 %v1546, 7
    %v1548 = vsub.s32 %v1545, %v1547
    %v1549 = vrot.slane %v1535, %v1548
    %v1550 = vcombine.low %v1542, %v1549
    %v1551 = vcombine.high %v1542, %v1549
    %v1552 = vcombine.low %v292, %v293
    %v1553 = vcombine.low %v294, %v295
    %v1555 = vunpack.c.l.s4 1983009808
    %v1556 = vunpack.c.0.s8 %v1555
    %v1557 = vlaneseq
    %v1558 = vshrl.u32 %v1557, 7
    %v1559 = vsub.s32 %v1556, %v1558
    %v1560 = vrot.slane %v1552, %v1559
    %v1562 = vunpack.c.l.s4 1983009808
    %v1563 = vunpack.c.0.s8 %v1562
    %v1564 = vlaneseq
    %v1565 = vshrl.u32 %v1564, 7
    %v1566 = vsub.s32 %v1563, %v1565
    %v1567 = vrot.slane %v1553, %v1566
    %v1568 = vcombine.low %v1560, %v1567
    %v1569 = vcombine.high %v1560, %v1567
    %v1570 = vcombine.low %v296, %v297
    %v1571 = vcombine.low %v298, %v299
    %v1573 = vunpack.c.l.s4 1983009808
    %v1574 = vunpack.c.0.s8 %v1573
    %v1575 = vlaneseq
    %v1576 = vshrl.u32 %v1575, 7
    %v1577 = vsub.s32 %v1574, %v1576
    %v1578 = vrot.slane %v1570, %v1577
    %v1580 = vunpack.c.l.s4 1983009808
    %v1581 = vunpack.c.0.s8 %v1580
    %v1582 = vlaneseq
    %v1583 = vshrl.u32 %v1582, 7
    %v1584 = vsub.s32 %v1581, %v1583
    %v1585 = vrot.slane %v1571, %v1584
    %v1586 = vcombine.low %v1578, %v1585
    %v1587 = vcombine.high %v1578, %v1585
    %v1588 = vcombine.low %v300, %v301
    %v1589 = vcombine.low %v302, %v303
    %v1591 = vunpack.c.l.s4 1983009808
    %v1592 = vunpack.c.0.s8 %v1591
    %v1593 = vlaneseq
    %v1594 = vshrl.u32 %v1593, 7
    %v1595 = vsub.s32 %v1592, %v1594
    %v1596 = vrot.slane %v1588, %v1595
    %v1598 = vunpack.c.l.s4 1983009808
    %v1599 = vunpack.c.0.s8 %v1598
    %v1600 = vlaneseq
    %v1601 = vshrl.u32 %v1600, 7
    %v1602 = vsub.s32 %v1599, %v1601
    %v1603 = vrot.slane %v1589, %v1602
    %v1604 = vcombine.low %v1596, %v1603
    %v1605 = vcombine.high %v1596, %v1603
    %v1606 = vcombine.low %v304, %v305
    %v1607 = vcombine.low %v306, %v307
    %v1609 = vunpack.c.l.s4 1983009808
    %v1610 = vunpack.c.0.s8 %v1609
    %v1611 = vlaneseq
    %v1612 = vshrl.u32 %v1611, 7
    %v1613 = vsub.s32 %v1610, %v1612
    %v1614 = vrot.slane %v1606, %v1613
    %v1616 = vunpack.c.l.s4 1983009808
    %v1617 = vunpack.c.0.s8 %v1616
    %v1618 = vlaneseq
    %v1619 = vshrl.u32 %v1618, 7
    %v1620 = vsub.s32 %v1617, %v1619
    %v1621 = vrot.slane %v1607, %v1620
    %v1622 = vcombine.low %v1614, %v1621
    %v1623 = vcombine.high %v1614, %v1621
    %v1624 = vcombine.low %v308, %v309
    %v1625 = vcombine.low %v310, %v311
    %v1627 = vunpack.c.l.s4 1983009808
    %v1628 = vunpack.c.0.s8 %v1627
    %v1629 = vlaneseq
    %v1630 = vshrl.u32 %v1629, 7
    %v1631 = vsub.s32 %v1628, %v1630
    %v1632 = vrot.slane %v1624, %v1631
    %v1634 = vunpack.c.l.s4 1983009808
    %v1635 = vunpack.c.0.s8 %v1634
    %v1636 = vlaneseq
    %v1637 = vshrl.u32 %v1636, 7
    %v1638 = vsub.s32 %v1635, %v1637
    %v1639 = vrot.slane %v1625, %v1638
    %v1640 = vcombine.low %v1632, %v1639
    %v1641 = vcombine.high %v1632, %v1639
    %v1642 = vcombine.low %v312, %v313
    %v1643 = vcombine.low %v314, %v315
    %v1645 = vunpack.c.l.s4 1983009808
    %v1646 = vunpack.c.0.s8 %v1645
    %v1647 = vlaneseq
    %v1648 = vshrl.u32 %v1647, 7
    %v1649 = vsub.s32 %v1646, %v1648
    %v1650 = vrot.slane %v1642, %v1649
    %v1652 = vunpack.c.l.s4 1983009808
    %v1653 = vunpack.c.0.s8 %v1652
    %v1654 = vlaneseq
    %v1655 = vshrl.u32 %v1654, 7
    %v1656 = vsub.s32 %v1653, %v1655
    %v1657 = vrot.slane %v1643, %v1656
    %v1658 = vcombine.low %v1650, %v1657
    %v1659 = vcombine.high %v1650, %v1657
    %v1660 = vcombine.low %v316, %v317
    %v1661 = vcombine.low %v318, %v319
    %v1663 = vunpack.c.l.s4 1983009808
    %v1664 = vunpack.c.0.s8 %v1663
    %v1665 = vlaneseq
    %v1666 = vshrl.u32 %v1665, 7
    %v1667 = vsub.s32 %v1664, %v1666
    %v1668 = vrot.slane %v1660, %v1667
    %v1670 = vunpack.c.l.s4 1983009808
    %v1671 = vunpack.c.0.s8 %v1670
    %v1672 = vlaneseq
    %v1673 = vshrl.u32 %v1672, 7
    %v1674 = vsub.s32 %v1671, %v1673
    %v1675 = vrot.slane %v1661, %v1674
    %v1676 = vcombine.low %v1668, %v1675
    %v1677 = vcombine.high %v1668, %v1675
    %v1678 = vcombine.low %v320, %v321
    %v1679 = vcombine.low %v322, %v323
    %v1681 = vunpack.c.l.s4 1983009808
    %v1682 = vunpack.c.0.s8 %v1681
    %v1683 = vlaneseq
    %v1684 = vshrl.u32 %v1683, 7
    %v1685 = vsub.s32 %v1682, %v1684
    %v1686 = vrot.slane %v1678, %v1685
    %v1688 = vunpack.c.l.s4 1983009808
    %v1689 = vunpack.c.0.s8 %v1688
    %v1690 = vlaneseq
    %v1691 = vshrl.u32 %v1690, 7
    %v1692 = vsub.s32 %v1689, %v1691
    %v1693 = vrot.slane %v1679, %v1692
    %v1694 = vcombine.low %v1686, %v1693
    %v1695 = vcombine.high %v1686, %v1693
    %v1696 = vcombine.low %v324, %v325
    %v1697 = vcombine.low %v326, %v327
    %v1699 = vunpack.c.l.s4 1983009808
    %v1700 = vunpack.c.0.s8 %v1699
    %v1701 = vlaneseq
    %v1702 = vshrl.u32 %v1701, 7
    %v1703 = vsub.s32 %v1700, %v1702
    %v1704 = vrot.slane %v1696, %v1703
    %v1706 = vunpack.c.l.s4 1983009808
    %v1707 = vunpack.c.0.s8 %v1706
    %v1708 = vlaneseq
    %v1709 = vshrl.u32 %v1708, 7
    %v1710 = vsub.s32 %v1707, %v1709
    %v1711 = vrot.slane %v1697, %v1710
    %v1712 = vcombine.low %v1704, %v1711
    %v1713 = vcombine.high %v1704, %v1711
    %v1714 = vcombine.low %v328, %v329
    %v1715 = vcombine.low %v330, %v331
    %v1717 = vunpack.c.l.s4 1983009808
    %v1718 = vunpack.c.0.s8 %v1717
    %v1719 = vlaneseq
    %v1720 = vshrl.u32 %v1719, 7
    %v1721 = vsub.s32 %v1718, %v1720
    %v1722 = vrot.slane %v1714, %v1721
    %v1724 = vunpack.c.l.s4 1983009808
    %v1725 = vunpack.c.0.s8 %v1724
    %v1726 = vlaneseq
    %v1727 = vshrl.u32 %v1726, 7
    %v1728 = vsub.s32 %v1725, %v1727
    %v1729 = vrot.slane %v1715, %v1728
    %v1730 = vcombine.low %v1722, %v1729
    %v1731 = vcombine.high %v1722, %v1729
    %v1732 = vcombine.low %v332, %v333
    %v1733 = vcombine.low %v334, %v335
    %v1735 = vunpack.c.l.s4 1983009808
    %v1736 = vunpack.c.0.s8 %v1735
    %v1737 = vlaneseq
    %v1738 = vshrl.u32 %v1737, 7
    %v1739 = vsub.s32 %v1736, %v1738
    %v1740 = vrot.slane %v1732, %v1739
    %v1742 = vunpack.c.l.s4 1983009808
    %v1743 = vunpack.c.0.s8 %v1742
    %v1744 = vlaneseq
    %v1745 = vshrl.u32 %v1744, 7
    %v1746 = vsub.s32 %v1743, %v1745
    %v1747 = vrot.slane %v1733, %v1746
    %v1748 = vcombine.low %v1740, %v1747
    %v1749 = vcombine.high %v1740, %v1747
    %1878 = vmatprep.subr.mxu0 0.0
    %1879 = vmatpush1.msra.mxu0 %v35
    %1880 = vmatprep.subr.mxu0 0.0
    %1881 = vmatpush1.msra.mxu0 %v36
    %1882 = vmatprep.subr.mxu0 0.0
    %1883 = vmatpush1.msra.mxu0 %v37
    %1884 = vmatprep.subr.mxu0 0.0
    %1885 = vmatpush1.msra.mxu0 %v38
    %1886 = vmatprep.subr.mxu0 0.0
    %1887 = vmatpush1.msra.mxu0 %v39
    %1888 = vmatprep.subr.mxu0 0.0
    %1889 = vmatpush1.msra.mxu0 %v40
    %1890 = vmatprep.subr.mxu0 0.0
    %1891 = vmatpush1.msra.mxu0 %v41
    %1892 = vmatprep.subr.mxu0 0.0
    %1893 = vmatpush1.msra.mxu0 %v42
    %1894 = vmatprep.subr.mxu0 0.0
    %1895 = vmatpush1.msra.mxu0 %v43
    %1896 = vmatprep.subr.mxu0 0.0
    %1897 = vmatpush1.msra.mxu0 %v44
    %1898 = vmatprep.subr.mxu0 0.0
    %1899 = vmatpush1.msra.mxu0 %v45
    %1900 = vmatprep.subr.mxu0 0.0
    %1901 = vmatpush1.msra.mxu0 %v46
    %1902 = vmatprep.subr.mxu0 0.0
    %1903 = vmatpush1.msra.mxu0 %v47
    %1904 = vmatprep.subr.mxu0 0.0
    %1905 = vmatpush1.msra.mxu0 %v48
    %1906 = vmatprep.subr.mxu0 0.0
    %1907 = vmatpush1.msra.mxu0 %v49
    %1908 = vmatprep.subr.mxu0 0.0
    %1909 = vmatpush1.msra.mxu0 %v50
    %1910 = vmatprep.subr.mxu0 0.0
    %1911 = vmatpush1.msra.mxu0 %v51
    %1912 = vmatprep.subr.mxu0 0.0
    %1913 = vmatpush1.msra.mxu0 %v52
    %1914 = vmatprep.subr.mxu0 0.0
    %1915 = vmatpush1.msra.mxu0 %v53
    %1916 = vmatprep.subr.mxu0 0.0
    %1917 = vmatpush1.msra.mxu0 %v54
    %1918 = vmatprep.subr.mxu0 0.0
    %1919 = vmatpush1.msra.mxu0 %v55
    %1920 = vmatprep.subr.mxu0 0.0
    %1921 = vmatpush1.msra.mxu0 %v56
    %1922 = vmatprep.subr.mxu0 0.0
    %1923 = vmatpush1.msra.mxu0 %v57
    %1924 = vmatprep.subr.mxu0 0.0
    %1925 = vmatpush1.msra.mxu0 %v58
    %1926 = vmatprep.subr.mxu0 0.0
    %1927 = vmatpush1.msra.mxu0 %v59
    %1928 = vmatprep.subr.mxu0 0.0
    %1929 = vmatpush1.msra.mxu0 %v60
    %1930 = vmatprep.subr.mxu0 0.0
    %1931 = vmatpush1.msra.mxu0 %v61
    %1932 = vmatprep.subr.mxu0 0.0
    %1933 = vmatpush1.msra.mxu0 %v62
    %1934 = vmatprep.subr.mxu0 0.0
    %1935 = vmatpush1.msra.mxu0 %v63
    %1936 = vmatprep.subr.mxu0 0.0
    %1937 = vmatpush1.msra.mxu0 %v64
    %1938 = vmatprep.subr.mxu0 0.0
    %1939 = vmatpush1.msra.mxu0 %v65
    %1940 = vmatprep.subr.mxu0 0.0
    %1941 = vmatpush1.msra.mxu0 %v66
    %1942 = vmatprep.mubr.f32.mxu0 %v615
    %1943 = vmatmul.mubr.f32.gmra.mrb[0].mxu0 %v614
    %v1944 = vpop.f32.mrb[0].mxu0
    %v1945 = vadd.f32 %v340, %v1944
    %v1946 = vpop.f32.mrb[0].mxu0
    %1947 = vmatprep.mubr.f32.mxu0 %v633
    %1948 = vmatmul.mubr.f32.gmra.mrb[0].mxu0 %v632
    %v1949 = vpop.f32.mrb[0].mxu0
    %v1950 = vadd.f32 %v340, %v1949
    %v1951 = vpop.f32.mrb[0].mxu0
    %1952 = vmatprep.mubr.f32.mxu0 %v651
    %1953 = vmatmul.mubr.f32.gmra.mrb[0].mxu0 %v650
    %v1954 = vpop.f32.mrb[0].mxu0
    %v1955 = vadd.f32 %v340, %v1954
    %v1956 = vpop.f32.mrb[0].mxu0
    %1957 = vmatprep.mubr.f32.mxu0 %v669
    %1958 = vmatmul.mubr.f32.gmra.mrb[0].mxu0 %v668
    %v1959 = vpop.f32.mrb[0].mxu0
    %v1960 = vadd.f32 %v340, %v1959
    %v1961 = vpop.f32.mrb[0].mxu0
    %1962 = vmatprep.mubr.f32.mxu0 %v687
    %1963 = vmatmul.mubr.f32.gmra.mrb[0].mxu0 %v686
    %v1964 = vpop.f32.mrb[0].mxu0
    %v1965 = vadd.f32 %v340, %v1964
    %v1966 = vpop.f32.mrb[0].mxu0
    %1967 = vmatprep.mubr.f32.mxu0 %v705
    %1968 = vmatmul.mubr.f32.gmra.mrb[0].mxu0 %v704
    %v1969 = vpop.f32.mrb[0].mxu0
    %v1970 = vadd.f32 %v340, %v1969
    %v1971 = vpop.f32.mrb[0].mxu0
    %1972 = vmatprep.mubr.f32.mxu0 %v723
    %1973 = vmatmul.mubr.f32.gmra.mrb[0].mxu0 %v722
    %v1974 = vpop.f32.mrb[0].mxu0
    %v1975 = vadd.f32 %v340, %v1974
    %v1976 = vpop.f32.mrb[0].mxu0
    %1977 = vmatprep.mubr.f32.mxu0 %v741
    %1978 = vmatmul.mubr.f32.gmra.mrb[0].mxu0 %v740
    %v1979 = vpop.f32.mrb[0].mxu0
    %v1980 = vadd.f32 %v340, %v1979
    %v1981 = vpop.f32.mrb[0].mxu0
    %1982 = vmatprep.mubr.f32.mxu0 %v759
    %1983 = vmatmul.mubr.f32.gmra.mrb[0].mxu0 %v758
    %v1984 = vpop.f32.mrb[0].mxu0
    %v1985 = vadd.f32 %v340, %v1984
    %v1986 = vpop.f32.mrb[0].mxu0
    %1987 = vmatprep.mubr.f32.mxu0 %v777
    %1988 = vmatmul.mubr.f32.gmra.mrb[0].mxu0 %v776
    %v1989 = vpop.f32.mrb[0].mxu0
    %v1990 = vadd.f32 %v340, %v1989
    %v1991 = vpop.f32.mrb[0].mxu0
    %1992 = vmatprep.mubr.f32.mxu0 %v795
    %1993 = vmatmul.mubr.f32.gmra.mrb[0].mxu0 %v794
    %v1994 = vpop.f32.mrb[0].mxu0
    %v1995 = vadd.f32 %v340, %v1994
    %v1996 = vpop.f32.mrb[0].mxu0
    %1997 = vmatprep.mubr.f32.mxu0 %v813
    %1998 = vmatmul.mubr.f32.gmra.mrb[0].mxu0 %v812
    %v1999 = vpop.f32.mrb[0].mxu0
    %v2000 = vadd.f32 %v340, %v1999
    %v2001 = vpop.f32.mrb[0].mxu0
    %2002 = vmatprep.mubr.f32.mxu0 %v831
    %2003 = vmatmul.mubr.f32.gmra.mrb[0].mxu0 %v830
    %v2004 = vpop.f32.mrb[0].mxu0
    %v2005 = vadd.f32 %v340, %v2004
    %v2006 = vpop.f32.mrb[0].mxu0
    %2007 = vmatprep.mubr.f32.mxu0 %v849
    %2008 = vmatmul.mubr.f32.gmra.mrb[0].mxu0 %v848
    %v2009 = vpop.f32.mrb[0].mxu0
    %v2010 = vadd.f32 %v340, %v2009
    %v2011 = vpop.f32.mrb[0].mxu0
    %2012 = vmatprep.mubr.f32.mxu0 %v867
    %2013 = vmatmul.mubr.f32.gmra.mrb[0].mxu0 %v866
    %v2014 = vpop.f32.mrb[0].mxu0
    %v2015 = vadd.f32 %v340, %v2014
    %v2016 = vpop.f32.mrb[0].mxu0
    %2017 = vmatprep.mubr.f32.mxu0 %v885
    %2018 = vmatmul.mubr.f32.gmra.mrb[0].mxu0 %v884
    %v2019 = vpop.f32.mrb[0].mxu0
    %v2020 = vadd.f32 %v340, %v2019
    %v2021 = vpop.f32.mrb[0].mxu0
    %2022 = vmatprep.mubr.f32.mxu0 %v903
    %2023 = vmatmul.mubr.f32.gmra.mrb[0].mxu0 %v902
    %v2024 = vpop.f32.mrb[0].mxu0
    %v2025 = vadd.f32 %v340, %v2024
    %v2026 = vpop.f32.mrb[0].mxu0
    %2027 = vmatprep.mubr.f32.mxu0 %v921
    %2028 = vmatmul.mubr.f32.gmra.mrb[0].mxu0 %v920
    %v2029 = vpop.f32.mrb[0].mxu0
    %v2030 = vadd.f32 %v340, %v2029
    %v2031 = vpop.f32.mrb[0].mxu0
    %2032 = vmatprep.mubr.f32.mxu0 %v939
    %2033 = vmatmul.mubr.f32.gmra.mrb[0].mxu0 %v938
    %v2034 = vpop.f32.mrb[0].mxu0
    %v2035 = vadd.f32 %v340, %v2034
    %v2036 = vpop.f32.mrb[0].mxu0
    %2037 = vmatprep.mubr.f32.mxu0 %v957
    %2038 = vmatmul.mubr.f32.gmra.mrb[0].mxu0 %v956
    %v2039 = vpop.f32.mrb[0].mxu0
    %v2040 = vadd.f32 %v340, %v2039
    %v2041 = vpop.f32.mrb[0].mxu0
    %2042 = vmatprep.mubr.f32.mxu0 %v975
    %2043 = vmatmul.mubr.f32.gmra.mrb[0].mxu0 %v974
    %v2044 = vpop.f32.mrb[0].mxu0
    %v2045 = vadd.f32 %v340, %v2044
    %v2046 = vpop.f32.mrb[0].mxu0
    %2047 = vmatprep.mubr.f32.mxu0 %v993
    %2048 = vmatmul.mubr.f32.gmra.mrb[0].mxu0 %v992
    %v2049 = vpop.f32.mrb[0].mxu0
    %v2050 = vadd.f32 %v340, %v2049
    %v2051 = vpop.f32.mrb[0].mxu0
    %2052 = vmatprep.mubr.f32.mxu0 %v1011
    %2053 = vmatmul.mubr.f32.gmra.mrb[0].mxu0 %v1010
    %v2054 = vpop.f32.mrb[0].mxu0
    %v2055 = vadd.f32 %v340, %v2054
    %v2056 = vpop.f32.mrb[0].mxu0
    %2057 = vmatprep.mubr.f32.mxu0 %v1029
    %2058 = vmatmul.mubr.f32.gmra.mrb[0].mxu0 %v1028
    %v2059 = vpop.f32.mrb[0].mxu0
    %v2060 = vadd.f32 %v340, %v2059
    %v2061 = vpop.f32.mrb[0].mxu0
    %2062 = vmatprep.mubr.f32.mxu0 %v1047
    %2063 = vmatmul.mubr.f32.gmra.mrb[0].mxu0 %v1046
    %v2064 = vpop.f32.mrb[0].mxu0
    %v2065 = vadd.f32 %v340, %v2064
    %v2066 = vpop.f32.mrb[0].mxu0
    %2067 = vmatprep.mubr.f32.mxu0 %v1065
    %2068 = vmatmul.mubr.f32.gmra.mrb[0].mxu0 %v1064
    %v2069 = vpop.f32.mrb[0].mxu0
    %v2070 = vadd.f32 %v340, %v2069
    %v2071 = vpop.f32.mrb[0].mxu0
    %2072 = vmatprep.mubr.f32.mxu0 %v1083
    %2073 = vmatmul.mubr.f32.gmra.mrb[0].mxu0 %v1082
    %v2074 = vpop.f32.mrb[0].mxu0
    %v2075 = vadd.f32 %v340, %v2074
    %v2076 = vpop.f32.mrb[0].mxu0
    %2077 = vmatprep.mubr.f32.mxu0 %v1101
    %2078 = vmatmul.mubr.f32.gmra.mrb[0].mxu0 %v1100
    %v2079 = vpop.f32.mrb[0].mxu0
    %v2080 = vadd.f32 %v340, %v2079
    %v2081 = vpop.f32.mrb[0].mxu0
    %2082 = vmatprep.mubr.f32.mxu0 %v1119
    %2083 = vmatmul.mubr.f32.gmra.mrb[0].mxu0 %v1118
    %v2084 = vpop.f32.mrb[0].mxu0
    %v2085 = vadd.f32 %v340, %v2084
    %v2086 = vpop.f32.mrb[0].mxu0
    %2087 = vmatprep.mubr.f32.mxu0 %v1137
    %2088 = vmatmul.mubr.f32.gmra.mrb[0].mxu0 %v1136
    %v2089 = vpop.f32.mrb[0].mxu0
    %v2090 = vadd.f32 %v340, %v2089
    %v2091 = vpop.f32.mrb[0].mxu0
    %2092 = vmatprep.mubr.f32.mxu0 %v1155
    %2093 = vmatmul.mubr.f32.gmra.mrb[0].mxu0 %v1154
    %v2094 = vpop.f32.mrb[0].mxu0
    %v2095 = vadd.f32 %v340, %v2094
    %v2096 = vpop.f32.mrb[0].mxu0
    %2097 = vmatprep.mubr.f32.mxu0 %v1173
    %2098 = vmatmul.mubr.f32.gmra.mrb[0].mxu0 %v1172
    %v2099 = vpop.f32.mrb[0].mxu0
    %v2100 = vadd.f32 %v340, %v2099
    %v2101 = vpop.f32.mrb[0].mxu0
    %2102 = vmatprep.mubr.f32.mxu0 %v1191
    %2103 = vmatmul.mubr.f32.gmra.mrb[0].mxu0 %v1190
    %v2104 = vpop.f32.mrb[0].mxu0
    %v2105 = vadd.f32 %v340, %v2104
    %v2106 = vpop.f32.mrb[0].mxu0
    %2107 = vmatprep.mubr.f32.mxu0 %v1209
    %2108 = vmatmul.mubr.f32.gmra.mrb[0].mxu0 %v1208
    %v2109 = vpop.f32.mrb[0].mxu0
    %v2110 = vadd.f32 %v340, %v2109
    %v2111 = vpop.f32.mrb[0].mxu0
    %2112 = vmatprep.mubr.f32.mxu0 %v1227
    %2113 = vmatmul.mubr.f32.gmra.mrb[0].mxu0 %v1226
    %v2114 = vpop.f32.mrb[0].mxu0
    %v2115 = vadd.f32 %v340, %v2114
    %v2116 = vpop.f32.mrb[0].mxu0
    %2117 = vmatprep.mubr.f32.mxu0 %v1245
    %2118 = vmatmul.mubr.f32.gmra.mrb[0].mxu0 %v1244
    %v2119 = vpop.f32.mrb[0].mxu0
    %v2120 = vadd.f32 %v340, %v2119
    %v2121 = vpop.f32.mrb[0].mxu0
    %2122 = vmatprep.mubr.f32.mxu0 %v1263
    %2123 = vmatmul.mubr.f32.gmra.mrb[0].mxu0 %v1262
    %v2124 = vpop.f32.mrb[0].mxu0
    %v2125 = vadd.f32 %v340, %v2124
    %v2126 = vpop.f32.mrb[0].mxu0
    %2127 = vmatprep.mubr.f32.mxu0 %v1281
    %2128 = vmatmul.mubr.f32.gmra.mrb[0].mxu0 %v1280
    %v2129 = vpop.f32.mrb[0].mxu0
    %v2130 = vadd.f32 %v340, %v2129
    %v2131 = vpop.f32.mrb[0].mxu0
    %2132 = vmatprep.mubr.f32.mxu0 %v1299
    %2133 = vmatmul.mubr.f32.gmra.mrb[0].mxu0 %v1298
    %v2134 = vpop.f32.mrb[0].mxu0
    %v2135 = vadd.f32 %v340, %v2134
    %v2136 = vpop.f32.mrb[0].mxu0
    %2137 = vmatprep.mubr.f32.mxu0 %v1317
    %2138 = vmatmul.mubr.f32.gmra.mrb[0].mxu0 %v1316
    %v2139 = vpop.f32.mrb[0].mxu0
    %v2140 = vadd.f32 %v340, %v2139
    %v2141 = vpop.f32.mrb[0].mxu0
    %2142 = vmatprep.mubr.f32.mxu0 %v1335
    %2143 = vmatmul.mubr.f32.gmra.mrb[0].mxu0 %v1334
    %v2144 = vpop.f32.mrb[0].mxu0
    %v2145 = vadd.f32 %v340, %v2144
    %v2146 = vpop.f32.mrb[0].mxu0
    %2147 = vmatprep.mubr.f32.mxu0 %v1353
    %2148 = vmatmul.mubr.f32.gmra.mrb[0].mxu0 %v1352
    %v2149 = vpop.f32.mrb[0].mxu0
    %v2150 = vadd.f32 %v340, %v2149
    %v2151 = vpop.f32.mrb[0].mxu0
    %2152 = vmatprep.mubr.f32.mxu0 %v1371
    %2153 = vmatmul.mubr.f32.gmra.mrb[0].mxu0 %v1370
    %v2154 = vpop.f32.mrb[0].mxu0
    %v2155 = vadd.f32 %v340, %v2154
    %v2156 = vpop.f32.mrb[0].mxu0
    %2157 = vmatprep.mubr.f32.mxu0 %v1389
    %2158 = vmatmul.mubr.f32.gmra.mrb[0].mxu0 %v1388
    %v2159 = vpop.f32.mrb[0].mxu0
    %v2160 = vadd.f32 %v340, %v2159
    %v2161 = vpop.f32.mrb[0].mxu0
    %2162 = vmatprep.mubr.f32.mxu0 %v1407
    %2163 = vmatmul.mubr.f32.gmra.mrb[0].mxu0 %v1406
    %v2164 = vpop.f32.mrb[0].mxu0
    %v2165 = vadd.f32 %v340, %v2164
    %v2166 = vpop.f32.mrb[0].mxu0
    %2167 = vmatprep.mubr.f32.mxu0 %v1425
    %2168 = vmatmul.mubr.f32.gmra.mrb[0].mxu0 %v1424
    %v2169 = vpop.f32.mrb[0].mxu0
    %v2170 = vadd.f32 %v340, %v2169
    %v2171 = vpop.f32.mrb[0].mxu0
    %2172 = vmatprep.mubr.f32.mxu0 %v1443
    %2173 = vmatmul.mubr.f32.gmra.mrb[0].mxu0 %v1442
    %v2174 = vpop.f32.mrb[0].mxu0
    %v2175 = vadd.f32 %v340, %v2174
    %v2176 = vpop.f32.mrb[0].mxu0
    %2177 = vmatprep.mubr.f32.mxu0 %v1461
    %2178 = vmatmul.mubr.f32.gmra.mrb[0].mxu0 %v1460
    %v2179 = vpop.f32.mrb[0].mxu0
    %v2180 = vadd.f32 %v340, %v2179
    %v2181 = vpop.f32.mrb[0].mxu0
    %2182 = vmatprep.mubr.f32.mxu0 %v1479
    %2183 = vmatmul.mubr.f32.gmra.mrb[0].mxu0 %v1478
    %v2184 = vpop.f32.mrb[0].mxu0
    %v2185 = vadd.f32 %v340, %v2184
    %v2186 = vpop.f32.mrb[0].mxu0
    %2187 = vmatprep.mubr.f32.mxu0 %v1497
    %2188 = vmatmul.mubr.f32.gmra.mrb[0].mxu0 %v1496
    %v2189 = vpop.f32.mrb[0].mxu0
    %v2190 = vadd.f32 %v340, %v2189
    %v2191 = vpop.f32.mrb[0].mxu0
    %2192 = vmatprep.mubr.f32.mxu0 %v1515
    %2193 = vmatmul.mubr.f32.gmra.mrb[0].mxu0 %v1514
    %v2194 = vpop.f32.mrb[0].mxu0
    %v2195 = vadd.f32 %v340, %v2194
    %v2196 = vpop.f32.mrb[0].mxu0
    %2197 = vmatprep.mubr.f32.mxu0 %v1533
    %2198 = vmatmul.mubr.f32.gmra.mrb[0].mxu0 %v1532
    %v2199 = vpop.f32.mrb[0].mxu0
    %v2200 = vadd.f32 %v340, %v2199
    %v2201 = vpop.f32.mrb[0].mxu0
    %2202 = vmatprep.mubr.f32.mxu0 %v1551
    %2203 = vmatmul.mubr.f32.gmra.mrb[0].mxu0 %v1550
    %v2204 = vpop.f32.mrb[0].mxu0
    %v2205 = vadd.f32 %v340, %v2204
    %v2206 = vpop.f32.mrb[0].mxu0
    %2207 = vmatprep.mubr.f32.mxu0 %v1569
    %2208 = vmatmul.mubr.f32.gmra.mrb[0].mxu0 %v1568
    %v2209 = vpop.f32.mrb[0].mxu0
    %v2210 = vadd.f32 %v340, %v2209
    %v2211 = vpop.f32.mrb[0].mxu0
    %2212 = vmatprep.mubr.f32.mxu0 %v1587
    %2213 = vmatmul.mubr.f32.gmra.mrb[0].mxu0 %v1586
    %v2214 = vpop.f32.mrb[0].mxu0
    %v2215 = vadd.f32 %v340, %v2214
    %v2216 = vpop.f32.mrb[0].mxu0
    %2217 = vmatprep.mubr.f32.mxu0 %v1605
    %2218 = vmatmul.mubr.f32.gmra.mrb[0].mxu0 %v1604
    %v2219 = vpop.f32.mrb[0].mxu0
    %v2220 = vadd.f32 %v340, %v2219
    %v2221 = vpop.f32.mrb[0].mxu0
    %2222 = vmatprep.mubr.f32.mxu0 %v1623
    %2223 = vmatmul.mubr.f32.gmra.mrb[0].mxu0 %v1622
    %v2224 = vpop.f32.mrb[0].mxu0
    %v2225 = vadd.f32 %v340, %v2224
    %v2226 = vpop.f32.mrb[0].mxu0
    %2227 = vmatprep.mubr.f32.mxu0 %v1641
    %2228 = vmatmul.mubr.f32.gmra.mrb[0].mxu0 %v1640
    %v2229 = vpop.f32.mrb[0].mxu0
    %v2230 = vadd.f32 %v340, %v2229
    %v2231 = vpop.f32.mrb[0].mxu0
    %2232 = vmatprep.mubr.f32.mxu0 %v1659
    %2233 = vmatmul.mubr.f32.gmra.mrb[0].mxu0 %v1658
    %v2234 = vpop.f32.mrb[0].mxu0
    %v2235 = vadd.f32 %v340, %v2234
    %v2236 = vpop.f32.mrb[0].mxu0
    %2237 = vmatprep.mubr.f32.mxu0 %v1677
    %2238 = vmatmul.mubr.f32.gmra.mrb[0].mxu0 %v1676
    %v2239 = vpop.f32.mrb[0].mxu0
    %v2240 = vadd.f32 %v340, %v2239
    %v2241 = vpop.f32.mrb[0].mxu0
    %2242 = vmatprep.mubr.f32.mxu0 %v1695
    %2243 = vmatmul.mubr.f32.gmra.mrb[0].mxu0 %v1694
    %v2244 = vpop.f32.mrb[0].mxu0
    %v2245 = vadd.f32 %v340, %v2244
    %v2246 = vpop.f32.mrb[0].mxu0
    %2247 = vmatprep.mubr.f32.mxu0 %v1713
    %2248 = vmatmul.mubr.f32.gmra.mrb[0].mxu0 %v1712
    %v2249 = vpop.f32.mrb[0].mxu0
    %v2250 = vadd.f32 %v340, %v2249
    %v2251 = vpop.f32.mrb[0].mxu0
    %2252 = vmatprep.mubr.f32.mxu0 %v1731
    %2253 = vmatmul.mubr.f32.gmra.mrb[0].mxu0 %v1730
    %v2254 = vpop.f32.mrb[0].mxu0
    %v2255 = vadd.f32 %v340, %v2254
    %v2256 = vpop.f32.mrb[0].mxu0
    %2257 = vmatprep.mubr.f32.mxu0 %v1749
    %2258 = vmatmul.mubr.f32.gmra.mrb[0].mxu0 %v1748
    %v2259 = vpop.f32.mrb[0].mxu0
    %v2260 = vadd.f32 %v340, %v2259
    %v2261 = vpop.f32.mrb[0].mxu0
    %2262 = vdwg.mxu0
    %v2263 = vmax.f32 %v1945, 0.0
    %v2264 = vmax.f32 %v1950, 0.0
    %v2265 = vmax.f32 %v1955, 0.0
    %v2266 = vmax.f32 %v1960, 0.0
    %v2267 = vmax.f32 %v1965, 0.0
    %v2268 = vmax.f32 %v1970, 0.0
    %v2269 = vmax.f32 %v1975, 0.0
    %v2270 = vmax.f32 %v1980, 0.0
    %v2271 = vmax.f32 %v1985, 0.0
    %v2272 = vmax.f32 %v1990, 0.0
    %v2273 = vmax.f32 %v1995, 0.0
    %v2274 = vmax.f32 %v2000, 0.0
    %v2275 = vmax.f32 %v2005, 0.0
    %v2276 = vmax.f32 %v2010, 0.0
    %v2277 = vmax.f32 %v2015, 0.0
    %v2278 = vmax.f32 %v2020, 0.0
    %v2279 = vmax.f32 %v2025, 0.0
    %v2280 = vmax.f32 %v2030, 0.0
    %v2281 = vmax.f32 %v2035, 0.0
    %v2282 = vmax.f32 %v2040, 0.0
    %v2283 = vmax.f32 %v2045, 0.0
    %v2284 = vmax.f32 %v2050, 0.0
    %v2285 = vmax.f32 %v2055, 0.0
    %v2286 = vmax.f32 %v2060, 0.0
    %v2287 = vmax.f32 %v2065, 0.0
    %v2288 = vmax.f32 %v2070, 0.0
    %v2289 = vmax.f32 %v2075, 0.0
    %v2290 = vmax.f32 %v2080, 0.0
    %v2291 = vmax.f32 %v2085, 0.0
    %v2292 = vmax.f32 %v2090, 0.0
    %v2293 = vmax.f32 %v2095, 0.0
    %v2294 = vmax.f32 %v2100, 0.0
    %v2295 = vmax.f32 %v2105, 0.0
    %v2296 = vmax.f32 %v2110, 0.0
    %v2297 = vmax.f32 %v2115, 0.0
    %v2298 = vmax.f32 %v2120, 0.0
    %v2299 = vmax.f32 %v2125, 0.0
    %v2300 = vmax.f32 %v2130, 0.0
    %v2301 = vmax.f32 %v2135, 0.0
    %v2302 = vmax.f32 %v2140, 0.0
    %v2303 = vmax.f32 %v2145, 0.0
    %v2304 = vmax.f32 %v2150, 0.0
    %v2305 = vmax.f32 %v2155, 0.0
    %v2306 = vmax.f32 %v2160, 0.0
    %v2307 = vmax.f32 %v2165, 0.0
    %v2308 = vmax.f32 %v2170, 0.0
    %v2309 = vmax.f32 %v2175, 0.0
    %v2310 = vmax.f32 %v2180, 0.0
    %v2311 = vmax.f32 %v2185, 0.0
    %v2312 = vmax.f32 %v2190, 0.0
    %v2313 = vmax.f32 %v2195, 0.0
    %v2314 = vmax.f32 %v2200, 0.0
    %v2315 = vmax.f32 %v2205, 0.0
    %v2316 = vmax.f32 %v2210, 0.0
    %v2317 = vmax.f32 %v2215, 0.0
    %v2318 = vmax.f32 %v2220, 0.0
    %v2319 = vmax.f32 %v2225, 0.0
    %v2320 = vmax.f32 %v2230, 0.0
    %v2321 = vmax.f32 %v2235, 0.0
    %v2322 = vmax.f32 %v2240, 0.0
    %v2323 = vmax.f32 %v2245, 0.0
    %v2324 = vmax.f32 %v2250, 0.0
    %v2325 = vmax.f32 %v2255, 0.0
    %v2326 = vmax.f32 %v2260, 0.0
    %v2328 = vlaneseq
    %v2329 = vshrl.u32 %v2328, 7
    %v2330 = vsub.s32 0, %v2329
    %v2331 = vrot.slane %v76, %v2330
    %vm2333 = vcmask 261120
    %v2335 = vsel %vm2333, %v2263, 0
    %v2338 = vsel %vm2333, %v2264, 0
    %v2341 = vsel %vm2333, %v2265, 0
    %v2344 = vsel %vm2333, %v2266, 0
    %v2347 = vsel %vm2333, %v2267, 0
    %v2350 = vsel %vm2333, %v2268, 0
    %v2353 = vsel %vm2333, %v2269, 0
    %v2356 = vsel %vm2333, %v2270, 0
    %v2359 = vsel %vm2333, %v2271, 0
    %v2362 = vsel %vm2333, %v2272, 0
    %v2365 = vsel %vm2333, %v2273, 0
    %v2368 = vsel %vm2333, %v2274, 0
    %v2371 = vsel %vm2333, %v2275, 0
    %v2374 = vsel %vm2333, %v2276, 0
    %v2377 = vsel %vm2333, %v2277, 0
    %v2380 = vsel %vm2333, %v2278, 0
    %v2383 = vsel %vm2333, %v2279, 0
    %v2386 = vsel %vm2333, %v2280, 0
    %v2389 = vsel %vm2333, %v2281, 0
    %v2392 = vsel %vm2333, %v2282, 0
    %v2395 = vsel %vm2333, %v2283, 0
    %v2398 = vsel %vm2333, %v2284, 0
    %v2401 = vsel %vm2333, %v2285, 0
    %v2404 = vsel %vm2333, %v2286, 0
    %v2407 = vsel %vm2333, %v2287, 0
    %v2410 = vsel %vm2333, %v2288, 0
    %v2413 = vsel %vm2333, %v2289, 0
    %v2416 = vsel %vm2333, %v2290, 0
    %v2419 = vsel %vm2333, %v2291, 0
    %v2422 = vsel %vm2333, %v2292, 0
    %v2425 = vsel %vm2333, %v2293, 0
    %v2428 = vsel %vm2333, %v2294, 0
    %v2431 = vsel %vm2333, %v2295, 0
    %v2434 = vsel %vm2333, %v2296, 0
    %v2437 = vsel %vm2333, %v2297, 0
    %v2440 = vsel %vm2333, %v2298, 0
    %v2443 = vsel %vm2333, %v2299, 0
    %v2446 = vsel %vm2333, %v2300, 0
    %v2449 = vsel %vm2333, %v2301, 0
    %v2452 = vsel %vm2333, %v2302, 0
    %v2455 = vsel %vm2333, %v2303, 0
    %v2458 = vsel %vm2333, %v2304, 0
    %v2461 = vsel %vm2333, %v2305, 0
    %v2464 = vsel %vm2333, %v2306, 0
    %v2467 = vsel %vm2333, %v2307, 0
    %v2470 = vsel %vm2333, %v2308, 0
    %v2473 = vsel %vm2333, %v2309, 0
    %v2476 = vsel %vm2333, %v2310, 0
    %v2479 = vsel %vm2333, %v2311, 0
    %v2482 = vsel %vm2333, %v2312, 0
    %v2485 = vsel %vm2333, %v2313, 0
    %v2488 = vsel %vm2333, %v2314, 0
    %v2491 = vsel %vm2333, %v2315, 0
    %v2494 = vsel %vm2333, %v2316, 0
    %v2497 = vsel %vm2333, %v2317, 0
    %v2500 = vsel %vm2333, %v2318, 0
    %v2503 = vsel %vm2333, %v2319, 0
    %v2506 = vsel %vm2333, %v2320, 0
    %v2509 = vsel %vm2333, %v2321, 0
    %v2512 = vsel %vm2333, %v2322, 0
    %v2515 = vsel %vm2333, %v2323, 0
    %v2518 = vsel %vm2333, %v2324, 0
    %v2521 = vsel %vm2333, %v2325, 0
    %v2524 = vsel %vm2333, %v2326, 0
    %2526 = vmatprep.subr.mxu0 0.0
    %2527 = vmatpush1.msra.mxu0 %v68
    %2528 = vmatprep.subr.mxu0 0.0
    %2529 = vmatpush1.msra.mxu0 %v69
    %2530 = vmatprep.subr.mxu0 0.0
    %2531 = vmatpush1.msra.mxu0 %v70
    %2532 = vmatprep.subr.mxu0 0.0
    %2533 = vmatpush1.msra.mxu0 %v71
    %2534 = vmatprep.subr.mxu0 0.0
    %2535 = vmatpush1.msra.mxu0 0.0
    %2536 = vmatprep.subr.mxu0 0.0
    %2537 = vmatpush1.msra.mxu0 0.0
    %2538 = vmatprep.subr.mxu0 0.0
    %2539 = vmatpush1.msra.mxu0 0.0
    %2540 = vmatprep.subr.mxu0 0.0
    %2541 = vmatpush1.msra.mxu0 0.0
    %2542 = vmatprep.subr.mxu0 0.0
    %2543 = vmatpush1.msra.mxu0 0.0
    %2544 = vmatprep.subr.mxu0 0.0
    %2545 = vmatpush1.msra.mxu0 0.0
    %2546 = vmatprep.subr.mxu0 0.0
    %2547 = vmatpush1.msra.mxu0 0.0
    %2548 = vmatprep.subr.mxu0 0.0
    %2549 = vmatpush1.msra.mxu0 0.0
    %2550 = vmatprep.subr.mxu0 0.0
    %2551 = vmatpush1.msra.mxu0 0.0
    %2552 = vmatprep.subr.mxu0 0.0
    %2553 = vmatpush1.msra.mxu0 0.0
    %2554 = vmatprep.subr.mxu0 0.0
    %2555 = vmatpush1.msra.mxu0 0.0
    %2556 = vmatprep.subr.mxu0 0.0
    %2557 = vmatpush1.msra.mxu0 0.0
    %2558 = vmatprep.subr.mxu0 0.0
    %2559 = vmatpush1.msra.mxu0 0.0
    %2560 = vmatprep.subr.mxu0 0.0
    %2561 = vmatpush1.msra.mxu0 0.0
    %2562 = vmatprep.subr.mxu0 0.0
    %2563 = vmatpush1.msra.mxu0 0.0
    %2564 = vmatprep.subr.mxu0 0.0
    %2565 = vmatpush1.msra.mxu0 0.0
    %2566 = vmatprep.subr.mxu0 0.0
    %2567 = vmatpush1.msra.mxu0 0.0
    %2568 = vmatprep.subr.mxu0 0.0
    %2569 = vmatpush1.msra.mxu0 0.0
    %2570 = vmatprep.subr.mxu0 0.0
    %2571 = vmatpush1.msra.mxu0 0.0
    %2572 = vmatprep.subr.mxu0 0.0
    %2573 = vmatpush1.msra.mxu0 0.0
    %2574 = vmatprep.subr.mxu0 0.0
    %2575 = vmatpush1.msra.mxu0 0.0
    %2576 = vmatprep.subr.mxu0 0.0
    %2577 = vmatpush1.msra.mxu0 0.0
    %2578 = vmatprep.subr.mxu0 0.0
    %2579 = vmatpush1.msra.mxu0 0.0
    %2580 = vmatprep.subr.mxu0 0.0
    %2581 = vmatpush1.msra.mxu0 0.0
    %2582 = vmatprep.subr.mxu0 0.0
    %2583 = vmatpush1.msra.mxu0 0.0
    %2584 = vmatprep.subr.mxu0 0.0
    %2585 = vmatpush1.msra.mxu0 0.0
    %2586 = vmatprep.subr.mxu0 0.0
    %2587 = vmatpush1.msra.mxu0 0.0
    %2588 = vmatprep.subr.mxu0 0.0
    %2589 = vmatpush1.msra.mxu0 0.0
    %2590 = vmatprep.mubr.f32.mxu0 0.0
    %2591 = vmatmul.mubr.f32.gmra.mrb[0].mxu0 %v2335
    %v2592 = vpop.f32.mrb[0].mxu0
    %v2593 = vadd.f32 %v2331, %v2592
    %v2594 = vpop.f32.mrb[0].mxu0
    %2595 = vmatprep.mubr.f32.mxu0 0.0
    %2596 = vmatmul.mubr.f32.gmra.mrb[0].mxu0 %v2338
    %v2597 = vpop.f32.mrb[0].mxu0
    %v2598 = vadd.f32 %v2331, %v2597
    %v2599 = vpop.f32.mrb[0].mxu0
    %2600 = vmatprep.mubr.f32.mxu0 0.0
    %2601 = vmatmul.mubr.f32.gmra.mrb[0].mxu0 %v2341
    %v2602 = vpop.f32.mrb[0].mxu0
    %v2603 = vadd.f32 %v2331, %v2602
    %v2604 = vpop.f32.mrb[0].mxu0
    %2605 = vmatprep.mubr.f32.mxu0 0.0
    %2606 = vmatmul.mubr.f32.gmra.mrb[0].mxu0 %v2344
    %v2607 = vpop.f32.mrb[0].mxu0
    %v2608 = vadd.f32 %v2331, %v2607
    %v2609 = vpop.f32.mrb[0].mxu0
    %2610 = vmatprep.mubr.f32.mxu0 0.0
    %2611 = vmatmul.mubr.f32.gmra.mrb[0].mxu0 %v2347
    %v2612 = vpop.f32.mrb[0].mxu0
    %v2613 = vadd.f32 %v2331, %v2612
    %v2614 = vpop.f32.mrb[0].mxu0
    %2615 = vmatprep.mubr.f32.mxu0 0.0
    %2616 = vmatmul.mubr.f32.gmra.mrb[0].mxu0 %v2350
    %v2617 = vpop.f32.mrb[0].mxu0
    %v2618 = vadd.f32 %v2331, %v2617
    %v2619 = vpop.f32.mrb[0].mxu0
    %2620 = vmatprep.mubr.f32.mxu0 0.0
    %2621 = vmatmul.mubr.f32.gmra.mrb[0].mxu0 %v2353
    %v2622 = vpop.f32.mrb[0].mxu0
    %v2623 = vadd.f32 %v2331, %v2622
    %v2624 = vpop.f32.mrb[0].mxu0
    %2625 = vmatprep.mubr.f32.mxu0 0.0
    %2626 = vmatmul.mubr.f32.gmra.mrb[0].mxu0 %v2356
    %v2627 = vpop.f32.mrb[0].mxu0
    %v2628 = vadd.f32 %v2331, %v2627
    %v2629 = vpop.f32.mrb[0].mxu0
    %2630 = vmatprep.mubr.f32.mxu0 0.0
    %2631 = vmatmul.mubr.f32.gmra.mrb[0].mxu0 %v2359
    %v2632 = vpop.f32.mrb[0].mxu0
    %v2633 = vadd.f32 %v2331, %v2632
    %v2634 = vpop.f32.mrb[0].mxu0
    %2635 = vmatprep.mubr.f32.mxu0 0.0
    %2636 = vmatmul.mubr.f32.gmra.mrb[0].mxu0 %v2362
    %v2637 = vpop.f32.mrb[0].mxu0
    %v2638 = vadd.f32 %v2331, %v2637
    %v2639 = vpop.f32.mrb[0].mxu0
    %2640 = vmatprep.mubr.f32.mxu0 0.0
    %2641 = vmatmul.mubr.f32.gmra.mrb[0].mxu0 %v2365
    %v2642 = vpop.f32.mrb[0].mxu0
    %v2643 = vadd.f32 %v2331, %v2642
    %v2644 = vpop.f32.mrb[0].mxu0
    %2645 = vmatprep.mubr.f32.mxu0 0.0
    %2646 = vmatmul.mubr.f32.gmra.mrb[0].mxu0 %v2368
    %v2647 = vpop.f32.mrb[0].mxu0
    %v2648 = vadd.f32 %v2331, %v2647
    %v2649 = vpop.f32.mrb[0].mxu0
    %2650 = vmatprep.mubr.f32.mxu0 0.0
    %2651 = vmatmul.mubr.f32.gmra.mrb[0].mxu0 %v2371
    %v2652 = vpop.f32.mrb[0].mxu0
    %v2653 = vadd.f32 %v2331, %v2652
    %v2654 = vpop.f32.mrb[0].mxu0
    %2655 = vmatprep.mubr.f32.mxu0 0.0
    %2656 = vmatmul.mubr.f32.gmra.mrb[0].mxu0 %v2374
    %v2657 = vpop.f32.mrb[0].mxu0
    %v2658 = vadd.f32 %v2331, %v2657
    %v2659 = vpop.f32.mrb[0].mxu0
    %2660 = vmatprep.mubr.f32.mxu0 0.0
    %2661 = vmatmul.mubr.f32.gmra.mrb[0].mxu0 %v2377
    %v2662 = vpop.f32.mrb[0].mxu0
    %v2663 = vadd.f32 %v2331, %v2662
    %v2664 = vpop.f32.mrb[0].mxu0
    %2665 = vmatprep.mubr.f32.mxu0 0.0
    %2666 = vmatmul.mubr.f32.gmra.mrb[0].mxu0 %v2380
    %v2667 = vpop.f32.mrb[0].mxu0
    %v2668 = vadd.f32 %v2331, %v2667
    %v2669 = vpop.f32.mrb[0].mxu0
    %2670 = vmatprep.mubr.f32.mxu0 0.0
    %2671 = vmatmul.mubr.f32.gmra.mrb[0].mxu0 %v2383
    %v2672 = vpop.f32.mrb[0].mxu0
    %v2673 = vadd.f32 %v2331, %v2672
    %v2674 = vpop.f32.mrb[0].mxu0
    %2675 = vmatprep.mubr.f32.mxu0 0.0
    %2676 = vmatmul.mubr.f32.gmra.mrb[0].mxu0 %v2386
    %v2677 = vpop.f32.mrb[0].mxu0
    %v2678 = vadd.f32 %v2331, %v2677
    %v2679 = vpop.f32.mrb[0].mxu0
    %2680 = vmatprep.mubr.f32.mxu0 0.0
    %2681 = vmatmul.mubr.f32.gmra.mrb[0].mxu0 %v2389
    %v2682 = vpop.f32.mrb[0].mxu0
    %v2683 = vadd.f32 %v2331, %v2682
    %v2684 = vpop.f32.mrb[0].mxu0
    %2685 = vmatprep.mubr.f32.mxu0 0.0
    %2686 = vmatmul.mubr.f32.gmra.mrb[0].mxu0 %v2392
    %v2687 = vpop.f32.mrb[0].mxu0
    %v2688 = vadd.f32 %v2331, %v2687
    %v2689 = vpop.f32.mrb[0].mxu0
    %2690 = vmatprep.mubr.f32.mxu0 0.0
    %2691 = vmatmul.mubr.f32.gmra.mrb[0].mxu0 %v2395
    %v2692 = vpop.f32.mrb[0].mxu0
    %v2693 = vadd.f32 %v2331, %v2692
    %v2694 = vpop.f32.mrb[0].mxu0
    %2695 = vmatprep.mubr.f32.mxu0 0.0
    %2696 = vmatmul.mubr.f32.gmra.mrb[0].mxu0 %v2398
    %v2697 = vpop.f32.mrb[0].mxu0
    %v2698 = vadd.f32 %v2331, %v2697
    %v2699 = vpop.f32.mrb[0].mxu0
    %2700 = vmatprep.mubr.f32.mxu0 0.0
    %2701 = vmatmul.mubr.f32.gmra.mrb[0].mxu0 %v2401
    %v2702 = vpop.f32.mrb[0].mxu0
    %v2703 = vadd.f32 %v2331, %v2702
    %v2704 = vpop.f32.mrb[0].mxu0
    %2705 = vmatprep.mubr.f32.mxu0 0.0
    %2706 = vmatmul.mubr.f32.gmra.mrb[0].mxu0 %v2404
    %v2707 = vpop.f32.mrb[0].mxu0
    %v2708 = vadd.f32 %v2331, %v2707
    %v2709 = vpop.f32.mrb[0].mxu0
    %2710 = vmatprep.mubr.f32.mxu0 0.0
    %2711 = vmatmul.mubr.f32.gmra.mrb[0].mxu0 %v2407
    %v2712 = vpop.f32.mrb[0].mxu0
    %v2713 = vadd.f32 %v2331, %v2712
    %v2714 = vpop.f32.mrb[0].mxu0
    %2715 = vmatprep.mubr.f32.mxu0 0.0
    %2716 = vmatmul.mubr.f32.gmra.mrb[0].mxu0 %v2410
    %v2717 = vpop.f32.mrb[0].mxu0
    %v2718 = vadd.f32 %v2331, %v2717
    %v2719 = vpop.f32.mrb[0].mxu0
    %2720 = vmatprep.mubr.f32.mxu0 0.0
    %2721 = vmatmul.mubr.f32.gmra.mrb[0].mxu0 %v2413
    %v2722 = vpop.f32.mrb[0].mxu0
    %v2723 = vadd.f32 %v2331, %v2722
    %v2724 = vpop.f32.mrb[0].mxu0
    %2725 = vmatprep.mubr.f32.mxu0 0.0
    %2726 = vmatmul.mubr.f32.gmra.mrb[0].mxu0 %v2416
    %v2727 = vpop.f32.mrb[0].mxu0
    %v2728 = vadd.f32 %v2331, %v2727
    %v2729 = vpop.f32.mrb[0].mxu0
    %2730 = vmatprep.mubr.f32.mxu0 0.0
    %2731 = vmatmul.mubr.f32.gmra.mrb[0].mxu0 %v2419
    %v2732 = vpop.f32.mrb[0].mxu0
    %v2733 = vadd.f32 %v2331, %v2732
    %v2734 = vpop.f32.mrb[0].mxu0
    %2735 = vmatprep.mubr.f32.mxu0 0.0
    %2736 = vmatmul.mubr.f32.gmra.mrb[0].mxu0 %v2422
    %v2737 = vpop.f32.mrb[0].mxu0
    %v2738 = vadd.f32 %v2331, %v2737
    %v2739 = vpop.f32.mrb[0].mxu0
    %2740 = vmatprep.mubr.f32.mxu0 0.0
    %2741 = vmatmul.mubr.f32.gmra.mrb[0].mxu0 %v2425
    %v2742 = vpop.f32.mrb[0].mxu0
    %v2743 = vadd.f32 %v2331, %v2742
    %v2744 = vpop.f32.mrb[0].mxu0
    %2745 = vmatprep.mubr.f32.mxu0 0.0
    %2746 = vmatmul.mubr.f32.gmra.mrb[0].mxu0 %v2428
    %v2747 = vpop.f32.mrb[0].mxu0
    %v2748 = vadd.f32 %v2331, %v2747
    %v2749 = vpop.f32.mrb[0].mxu0
    %2750 = vmatprep.mubr.f32.mxu0 0.0
    %2751 = vmatmul.mubr.f32.gmra.mrb[0].mxu0 %v2431
    %v2752 = vpop.f32.mrb[0].mxu0
    %v2753 = vadd.f32 %v2331, %v2752
    %v2754 = vpop.f32.mrb[0].mxu0
    %2755 = vmatprep.mubr.f32.mxu0 0.0
    %2756 = vmatmul.mubr.f32.gmra.mrb[0].mxu0 %v2434
    %v2757 = vpop.f32.mrb[0].mxu0
    %v2758 = vadd.f32 %v2331, %v2757
    %v2759 = vpop.f32.mrb[0].mxu0
    %2760 = vmatprep.mubr.f32.mxu0 0.0
    %2761 = vmatmul.mubr.f32.gmra.mrb[0].mxu0 %v2437
    %v2762 = vpop.f32.mrb[0].mxu0
    %v2763 = vadd.f32 %v2331, %v2762
    %v2764 = vpop.f32.mrb[0].mxu0
    %2765 = vmatprep.mubr.f32.mxu0 0.0
    %2766 = vmatmul.mubr.f32.gmra.mrb[0].mxu0 %v2440
    %v2767 = vpop.f32.mrb[0].mxu0
    %v2768 = vadd.f32 %v2331, %v2767
    %v2769 = vpop.f32.mrb[0].mxu0
    %2770 = vmatprep.mubr.f32.mxu0 0.0
    %2771 = vmatmul.mubr.f32.gmra.mrb[0].mxu0 %v2443
    %v2772 = vpop.f32.mrb[0].mxu0
    %v2773 = vadd.f32 %v2331, %v2772
    %v2774 = vpop.f32.mrb[0].mxu0
    %2775 = vmatprep.mubr.f32.mxu0 0.0
    %2776 = vmatmul.mubr.f32.gmra.mrb[0].mxu0 %v2446
    %v2777 = vpop.f32.mrb[0].mxu0
    %v2778 = vadd.f32 %v2331, %v2777
    %v2779 = vpop.f32.mrb[0].mxu0
    %2780 = vmatprep.mubr.f32.mxu0 0.0
    %2781 = vmatmul.mubr.f32.gmra.mrb[0].mxu0 %v2449
    %v2782 = vpop.f32.mrb[0].mxu0
    %v2783 = vadd.f32 %v2331, %v2782
    %v2784 = vpop.f32.mrb[0].mxu0
    %2785 = vmatprep.mubr.f32.mxu0 0.0
    %2786 = vmatmul.mubr.f32.gmra.mrb[0].mxu0 %v2452
    %v2787 = vpop.f32.mrb[0].mxu0
    %v2788 = vadd.f32 %v2331, %v2787
    %v2789 = vpop.f32.mrb[0].mxu0
    %2790 = vmatprep.mubr.f32.mxu0 0.0
    %2791 = vmatmul.mubr.f32.gmra.mrb[0].mxu0 %v2455
    %v2792 = vpop.f32.mrb[0].mxu0
    %v2793 = vadd.f32 %v2331, %v2792
    %v2794 = vpop.f32.mrb[0].mxu0
    %2795 = vmatprep.mubr.f32.mxu0 0.0
    %2796 = vmatmul.mubr.f32.gmra.mrb[0].mxu0 %v2458
    %v2797 = vpop.f32.mrb[0].mxu0
    %v2798 = vadd.f32 %v2331, %v2797
    %v2799 = vpop.f32.mrb[0].mxu0
    %2800 = vmatprep.mubr.f32.mxu0 0.0
    %2801 = vmatmul.mubr.f32.gmra.mrb[0].mxu0 %v2461
    %v2802 = vpop.f32.mrb[0].mxu0
    %v2803 = vadd.f32 %v2331, %v2802
    %v2804 = vpop.f32.mrb[0].mxu0
    %2805 = vmatprep.mubr.f32.mxu0 0.0
    %2806 = vmatmul.mubr.f32.gmra.mrb[0].mxu0 %v2464
    %v2807 = vpop.f32.mrb[0].mxu0
    %v2808 = vadd.f32 %v2331, %v2807
    %v2809 = vpop.f32.mrb[0].mxu0
    %2810 = vmatprep.mubr.f32.mxu0 0.0
    %2811 = vmatmul.mubr.f32.gmra.mrb[0].mxu0 %v2467
    %v2812 = vpop.f32.mrb[0].mxu0
    %v2813 = vadd.f32 %v2331, %v2812
    %v2814 = vpop.f32.mrb[0].mxu0
    %2815 = vmatprep.mubr.f32.mxu0 0.0
    %2816 = vmatmul.mubr.f32.gmra.mrb[0].mxu0 %v2470
    %v2817 = vpop.f32.mrb[0].mxu0
    %v2818 = vadd.f32 %v2331, %v2817
    %v2819 = vpop.f32.mrb[0].mxu0
    %2820 = vmatprep.mubr.f32.mxu0 0.0
    %2821 = vmatmul.mubr.f32.gmra.mrb[0].mxu0 %v2473
    %v2822 = vpop.f32.mrb[0].mxu0
    %v2823 = vadd.f32 %v2331, %v2822
    %v2824 = vpop.f32.mrb[0].mxu0
    %2825 = vmatprep.mubr.f32.mxu0 0.0
    %2826 = vmatmul.mubr.f32.gmra.mrb[0].mxu0 %v2476
    %v2827 = vpop.f32.mrb[0].mxu0
    %v2828 = vadd.f32 %v2331, %v2827
    %v2829 = vpop.f32.mrb[0].mxu0
    %2830 = vmatprep.mubr.f32.mxu0 0.0
    %2831 = vmatmul.mubr.f32.gmra.mrb[0].mxu0 %v2479
    %v2832 = vpop.f32.mrb[0].mxu0
    %v2833 = vadd.f32 %v2331, %v2832
    %v2834 = vpop.f32.mrb[0].mxu0
    %2835 = vmatprep.mubr.f32.mxu0 0.0
    %2836 = vmatmul.mubr.f32.gmra.mrb[0].mxu0 %v2482
    %v2837 = vpop.f32.mrb[0].mxu0
    %v2838 = vadd.f32 %v2331, %v2837
    %v2839 = vpop.f32.mrb[0].mxu0
    %2840 = vmatprep.mubr.f32.mxu0 0.0
    %2841 = vmatmul.mubr.f32.gmra.mrb[0].mxu0 %v2485
    %v2842 = vpop.f32.mrb[0].mxu0
    %v2843 = vadd.f32 %v2331, %v2842
    %v2844 = vpop.f32.mrb[0].mxu0
    %2845 = vmatprep.mubr.f32.mxu0 0.0
    %2846 = vmatmul.mubr.f32.gmra.mrb[0].mxu0 %v2488
    %v2847 = vpop.f32.mrb[0].mxu0
    %v2848 = vadd.f32 %v2331, %v2847
    %v2849 = vpop.f32.mrb[0].mxu0
    %2850 = vmatprep.mubr.f32.mxu0 0.0
    %2851 = vmatmul.mubr.f32.gmra.mrb[0].mxu0 %v2491
    %v2852 = vpop.f32.mrb[0].mxu0
    %v2853 = vadd.f32 %v2331, %v2852
    %v2854 = vpop.f32.mrb[0].mxu0
    %2855 = vmatprep.mubr.f32.mxu0 0.0
    %2856 = vmatmul.mubr.f32.gmra.mrb[0].mxu0 %v2494
    %v2857 = vpop.f32.mrb[0].mxu0
    %v2858 = vadd.f32 %v2331, %v2857
    %v2859 = vpop.f32.mrb[0].mxu0
    %2860 = vmatprep.mubr.f32.mxu0 0.0
    %2861 = vmatmul.mubr.f32.gmra.mrb[0].mxu0 %v2497
    %v2862 = vpop.f32.mrb[0].mxu0
    %v2863 = vadd.f32 %v2331, %v2862
    %v2864 = vpop.f32.mrb[0].mxu0
    %2865 = vmatprep.mubr.f32.mxu0 0.0
    %2866 = vmatmul.mubr.f32.gmra.mrb[0].mxu0 %v2500
    %v2867 = vpop.f32.mrb[0].mxu0
    %v2868 = vadd.f32 %v2331, %v2867
    %v2869 = vpop.f32.mrb[0].mxu0
    %2870 = vmatprep.mubr.f32.mxu0 0.0
    %2871 = vmatmul.mubr.f32.gmra.mrb[0].mxu0 %v2503
    %v2872 = vpop.f32.mrb[0].mxu0
    %v2873 = vadd.f32 %v2331, %v2872
    %v2874 = vpop.f32.mrb[0].mxu0
    %2875 = vmatprep.mubr.f32.mxu0 0.0
    %2876 = vmatmul.mubr.f32.gmra.mrb[0].mxu0 %v2506
    %v2877 = vpop.f32.mrb[0].mxu0
    %v2878 = vadd.f32 %v2331, %v2877
    %v2879 = vpop.f32.mrb[0].mxu0
    %2880 = vmatprep.mubr.f32.mxu0 0.0
    %2881 = vmatmul.mubr.f32.gmra.mrb[0].mxu0 %v2509
    %v2882 = vpop.f32.mrb[0].mxu0
    %v2883 = vadd.f32 %v2331, %v2882
    %v2884 = vpop.f32.mrb[0].mxu0
    %2885 = vmatprep.mubr.f32.mxu0 0.0
    %2886 = vmatmul.mubr.f32.gmra.mrb[0].mxu0 %v2512
    %v2887 = vpop.f32.mrb[0].mxu0
    %v2888 = vadd.f32 %v2331, %v2887
    %v2889 = vpop.f32.mrb[0].mxu0
    %2890 = vmatprep.mubr.f32.mxu0 0.0
    %2891 = vmatmul.mubr.f32.gmra.mrb[0].mxu0 %v2515
    %v2892 = vpop.f32.mrb[0].mxu0
    %v2893 = vadd.f32 %v2331, %v2892
    %v2894 = vpop.f32.mrb[0].mxu0
    %2895 = vmatprep.mubr.f32.mxu0 0.0
    %2896 = vmatmul.mubr.f32.gmra.mrb[0].mxu0 %v2518
    %v2897 = vpop.f32.mrb[0].mxu0
    %v2898 = vadd.f32 %v2331, %v2897
    %v2899 = vpop.f32.mrb[0].mxu0
    %2900 = vmatprep.mubr.f32.mxu0 0.0
    %2901 = vmatmul.mubr.f32.gmra.mrb[0].mxu0 %v2521
    %v2902 = vpop.f32.mrb[0].mxu0
    %v2903 = vadd.f32 %v2331, %v2902
    %v2904 = vpop.f32.mrb[0].mxu0
    %2905 = vmatprep.mubr.f32.mxu0 0.0
    %2906 = vmatmul.mubr.f32.gmra.mrb[0].mxu0 %v2524
    %v2907 = vpop.f32.mrb[0].mxu0
    %v2908 = vadd.f32 %v2331, %v2907
    %v2909 = vpop.f32.mrb[0].mxu0
    %2910 = vdwg.mxu0
    %v2911 = vmax.f32 %v2593, 0.0
    %v2912 = vmax.f32 %v2598, 0.0
    %v2913 = vmax.f32 %v2603, 0.0
    %v2914 = vmax.f32 %v2608, 0.0
    %v2915 = vmax.f32 %v2613, 0.0
    %v2916 = vmax.f32 %v2618, 0.0
    %v2917 = vmax.f32 %v2623, 0.0
    %v2918 = vmax.f32 %v2628, 0.0
    %v2919 = vmax.f32 %v2633, 0.0
    %v2920 = vmax.f32 %v2638, 0.0
    %v2921 = vmax.f32 %v2643, 0.0
    %v2922 = vmax.f32 %v2648, 0.0
    %v2923 = vmax.f32 %v2653, 0.0
    %v2924 = vmax.f32 %v2658, 0.0
    %v2925 = vmax.f32 %v2663, 0.0
    %v2926 = vmax.f32 %v2668, 0.0
    %v2927 = vmax.f32 %v2673, 0.0
    %v2928 = vmax.f32 %v2678, 0.0
    %v2929 = vmax.f32 %v2683, 0.0
    %v2930 = vmax.f32 %v2688, 0.0
    %v2931 = vmax.f32 %v2693, 0.0
    %v2932 = vmax.f32 %v2698, 0.0
    %v2933 = vmax.f32 %v2703, 0.0
    %v2934 = vmax.f32 %v2708, 0.0
    %v2935 = vmax.f32 %v2713, 0.0
    %v2936 = vmax.f32 %v2718, 0.0
    %v2937 = vmax.f32 %v2723, 0.0
    %v2938 = vmax.f32 %v2728, 0.0
    %v2939 = vmax.f32 %v2733, 0.0
    %v2940 = vmax.f32 %v2738, 0.0
    %v2941 = vmax.f32 %v2743, 0.0
    %v2942 = vmax.f32 %v2748, 0.0
    %v2943 = vmax.f32 %v2753, 0.0
    %v2944 = vmax.f32 %v2758, 0.0
    %v2945 = vmax.f32 %v2763, 0.0
    %v2946 = vmax.f32 %v2768, 0.0
    %v2947 = vmax.f32 %v2773, 0.0
    %v2948 = vmax.f32 %v2778, 0.0
    %v2949 = vmax.f32 %v2783, 0.0
    %v2950 = vmax.f32 %v2788, 0.0
    %v2951 = vmax.f32 %v2793, 0.0
    %v2952 = vmax.f32 %v2798, 0.0
    %v2953 = vmax.f32 %v2803, 0.0
    %v2954 = vmax.f32 %v2808, 0.0
    %v2955 = vmax.f32 %v2813, 0.0
    %v2956 = vmax.f32 %v2818, 0.0
    %v2957 = vmax.f32 %v2823, 0.0
    %v2958 = vmax.f32 %v2828, 0.0
    %v2959 = vmax.f32 %v2833, 0.0
    %v2960 = vmax.f32 %v2838, 0.0
    %v2961 = vmax.f32 %v2843, 0.0
    %v2962 = vmax.f32 %v2848, 0.0
    %v2963 = vmax.f32 %v2853, 0.0
    %v2964 = vmax.f32 %v2858, 0.0
    %v2965 = vmax.f32 %v2863, 0.0
    %v2966 = vmax.f32 %v2868, 0.0
    %v2967 = vmax.f32 %v2873, 0.0
    %v2968 = vmax.f32 %v2878, 0.0
    %v2969 = vmax.f32 %v2883, 0.0
    %v2970 = vmax.f32 %v2888, 0.0
    %v2971 = vmax.f32 %v2893, 0.0
    %v2972 = vmax.f32 %v2898, 0.0
    %v2973 = vmax.f32 %v2903, 0.0
    %v2974 = vmax.f32 %v2908, 0.0
    %v2976 = vlaneseq
    %v2977 = vshrl.u32 %v2976, 7
    %v2978 = vsub.s32 0, %v2977
    %v2979 = vrot.slane %v77, %v2978
    %v2982 = vsel %vm2333, %v2911, 0
    %v2985 = vsel %vm2333, %v2912, 0
    %v2988 = vsel %vm2333, %v2913, 0
    %v2991 = vsel %vm2333, %v2914, 0
    %v2994 = vsel %vm2333, %v2915, 0
    %v2997 = vsel %vm2333, %v2916, 0
    %v3000 = vsel %vm2333, %v2917, 0
    %v3003 = vsel %vm2333, %v2918, 0
    %v3006 = vsel %vm2333, %v2919, 0
    %v3009 = vsel %vm2333, %v2920, 0
    %v3012 = vsel %vm2333, %v2921, 0
    %v3015 = vsel %vm2333, %v2922, 0
    %v3018 = vsel %vm2333, %v2923, 0
    %v3021 = vsel %vm2333, %v2924, 0
    %v3024 = vsel %vm2333, %v2925, 0
    %v3027 = vsel %vm2333, %v2926, 0
    %v3030 = vsel %vm2333, %v2927, 0
    %v3033 = vsel %vm2333, %v2928, 0
    %v3036 = vsel %vm2333, %v2929, 0
    %v3039 = vsel %vm2333, %v2930, 0
    %v3042 = vsel %vm2333, %v2931, 0
    %v3045 = vsel %vm2333, %v2932, 0
    %v3048 = vsel %vm2333, %v2933, 0
    %v3051 = vsel %vm2333, %v2934, 0
    %v3054 = vsel %vm2333, %v2935, 0
    %v3057 = vsel %vm2333, %v2936, 0
    %v3060 = vsel %vm2333, %v2937, 0
    %v3063 = vsel %vm2333, %v2938, 0
    %v3066 = vsel %vm2333, %v2939, 0
    %v3069 = vsel %vm2333, %v2940, 0
    %v3072 = vsel %vm2333, %v2941, 0
    %v3075 = vsel %vm2333, %v2942, 0
    %v3078 = vsel %vm2333, %v2943, 0
    %v3081 = vsel %vm2333, %v2944, 0
    %v3084 = vsel %vm2333, %v2945, 0
    %v3087 = vsel %vm2333, %v2946, 0
    %v3090 = vsel %vm2333, %v2947, 0
    %v3093 = vsel %vm2333, %v2948, 0
    %v3096 = vsel %vm2333, %v2949, 0
    %v3099 = vsel %vm2333, %v2950, 0
    %v3102 = vsel %vm2333, %v2951, 0
    %v3105 = vsel %vm2333, %v2952, 0
    %v3108 = vsel %vm2333, %v2953, 0
    %v3111 = vsel %vm2333, %v2954, 0
    %v3114 = vsel %vm2333, %v2955, 0
    %v3117 = vsel %vm2333, %v2956, 0
    %v3120 = vsel %vm2333, %v2957, 0
    %v3123 = vsel %vm2333, %v2958, 0
    %v3126 = vsel %vm2333, %v2959, 0
    %v3129 = vsel %vm2333, %v2960, 0
    %v3132 = vsel %vm2333, %v2961, 0
    %v3135 = vsel %vm2333, %v2962, 0
    %v3138 = vsel %vm2333, %v2963, 0
    %v3141 = vsel %vm2333, %v2964, 0
    %v3144 = vsel %vm2333, %v2965, 0
    %v3147 = vsel %vm2333, %v2966, 0
    %v3150 = vsel %vm2333, %v2967, 0
    %v3153 = vsel %vm2333, %v2968, 0
    %v3156 = vsel %vm2333, %v2969, 0
    %v3159 = vsel %vm2333, %v2970, 0
    %v3162 = vsel %vm2333, %v2971, 0
    %v3165 = vsel %vm2333, %v2972, 0
    %v3168 = vsel %vm2333, %v2973, 0
    %v3171 = vsel %vm2333, %v2974, 0
    %3173 = vmatprep.subr.mxu0 0.0
    %3174 = vmatpush1.msra.mxu0 %v72
    %3175 = vmatprep.subr.mxu0 0.0
    %3176 = vmatpush1.msra.mxu0 %v73
    %3177 = vmatprep.subr.mxu0 0.0
    %3178 = vmatpush1.msra.mxu0 %v74
    %3179 = vmatprep.subr.mxu0 0.0
    %3180 = vmatpush1.msra.mxu0 %v75
    %3181 = vmatprep.subr.mxu0 0.0
    %3182 = vmatpush1.msra.mxu0 0.0
    %3183 = vmatprep.subr.mxu0 0.0
    %3184 = vmatpush1.msra.mxu0 0.0
    %3185 = vmatprep.subr.mxu0 0.0
    %3186 = vmatpush1.msra.mxu0 0.0
    %3187 = vmatprep.subr.mxu0 0.0
    %3188 = vmatpush1.msra.mxu0 0.0
    %3189 = vmatprep.subr.mxu0 0.0
    %3190 = vmatpush1.msra.mxu0 0.0
    %3191 = vmatprep.subr.mxu0 0.0
    %3192 = vmatpush1.msra.mxu0 0.0
    %3193 = vmatprep.subr.mxu0 0.0
    %3194 = vmatpush1.msra.mxu0 0.0
    %3195 = vmatprep.subr.mxu0 0.0
    %3196 = vmatpush1.msra.mxu0 0.0
    %3197 = vmatprep.subr.mxu0 0.0
    %3198 = vmatpush1.msra.mxu0 0.0
    %3199 = vmatprep.subr.mxu0 0.0
    %3200 = vmatpush1.msra.mxu0 0.0
    %3201 = vmatprep.subr.mxu0 0.0
    %3202 = vmatpush1.msra.mxu0 0.0
    %3203 = vmatprep.subr.mxu0 0.0
    %3204 = vmatpush1.msra.mxu0 0.0
    %3205 = vmatprep.subr.mxu0 0.0
    %3206 = vmatpush1.msra.mxu0 0.0
    %3207 = vmatprep.subr.mxu0 0.0
    %3208 = vmatpush1.msra.mxu0 0.0
    %3209 = vmatprep.subr.mxu0 0.0
    %3210 = vmatpush1.msra.mxu0 0.0
    %3211 = vmatprep.subr.mxu0 0.0
    %3212 = vmatpush1.msra.mxu0 0.0
    %3213 = vmatprep.subr.mxu0 0.0
    %3214 = vmatpush1.msra.mxu0 0.0
    %3215 = vmatprep.subr.mxu0 0.0
    %3216 = vmatpush1.msra.mxu0 0.0
    %3217 = vmatprep.subr.mxu0 0.0
    %3218 = vmatpush1.msra.mxu0 0.0
    %3219 = vmatprep.subr.mxu0 0.0
    %3220 = vmatpush1.msra.mxu0 0.0
    %3221 = vmatprep.subr.mxu0 0.0
    %3222 = vmatpush1.msra.mxu0 0.0
    %3223 = vmatprep.subr.mxu0 0.0
    %3224 = vmatpush1.msra.mxu0 0.0
    %3225 = vmatprep.subr.mxu0 0.0
    %3226 = vmatpush1.msra.mxu0 0.0
    %3227 = vmatprep.subr.mxu0 0.0
    %3228 = vmatpush1.msra.mxu0 0.0
    %3229 = vmatprep.subr.mxu0 0.0
    %3230 = vmatpush1.msra.mxu0 0.0
    %3231 = vmatprep.subr.mxu0 0.0
    %3232 = vmatpush1.msra.mxu0 0.0
    %3233 = vmatprep.subr.mxu0 0.0
    %3234 = vmatpush1.msra.mxu0 0.0
    %3235 = vmatprep.subr.mxu0 0.0
    %3236 = vmatpush1.msra.mxu0 0.0
    %3237 = vmatprep.mubr.f32.mxu0 0.0
    %3238 = vmatmul.mubr.f32.gmra.mrb[0].mxu0 %v2982
    %v3239 = vpop.f32.mrb[0].mxu0
    %v3240 = vadd.f32 %v2979, %v3239
    %v3241 = vpop.f32.mrb[0].mxu0
    %3242 = vmatprep.mubr.f32.mxu0 0.0
    %3243 = vmatmul.mubr.f32.gmra.mrb[0].mxu0 %v2985
    %v3244 = vpop.f32.mrb[0].mxu0
    %v3245 = vadd.f32 %v2979, %v3244
    %v3246 = vpop.f32.mrb[0].mxu0
    %3247 = vmatprep.mubr.f32.mxu0 0.0
    %3248 = vmatmul.mubr.f32.gmra.mrb[0].mxu0 %v2988
    %v3249 = vpop.f32.mrb[0].mxu0
    %v3250 = vadd.f32 %v2979, %v3249
    %v3251 = vpop.f32.mrb[0].mxu0
    %3252 = vmatprep.mubr.f32.mxu0 0.0
    %3253 = vmatmul.mubr.f32.gmra.mrb[0].mxu0 %v2991
    %v3254 = vpop.f32.mrb[0].mxu0
    %v3255 = vadd.f32 %v2979, %v3254
    %v3256 = vpop.f32.mrb[0].mxu0
    %3257 = vmatprep.mubr.f32.mxu0 0.0
    %3258 = vmatmul.mubr.f32.gmra.mrb[0].mxu0 %v2994
    %v3259 = vpop.f32.mrb[0].mxu0
    %v3260 = vadd.f32 %v2979, %v3259
    %v3261 = vpop.f32.mrb[0].mxu0
    %3262 = vmatprep.mubr.f32.mxu0 0.0
    %3263 = vmatmul.mubr.f32.gmra.mrb[0].mxu0 %v2997
    %v3264 = vpop.f32.mrb[0].mxu0
    %v3265 = vadd.f32 %v2979, %v3264
    %v3266 = vpop.f32.mrb[0].mxu0
    %3267 = vmatprep.mubr.f32.mxu0 0.0
    %3268 = vmatmul.mubr.f32.gmra.mrb[0].mxu0 %v3000
    %v3269 = vpop.f32.mrb[0].mxu0
    %v3270 = vadd.f32 %v2979, %v3269
    %v3271 = vpop.f32.mrb[0].mxu0
    %3272 = vmatprep.mubr.f32.mxu0 0.0
    %3273 = vmatmul.mubr.f32.gmra.mrb[0].mxu0 %v3003
    %v3274 = vpop.f32.mrb[0].mxu0
    %v3275 = vadd.f32 %v2979, %v3274
    %v3276 = vpop.f32.mrb[0].mxu0
    %3277 = vmatprep.mubr.f32.mxu0 0.0
    %3278 = vmatmul.mubr.f32.gmra.mrb[0].mxu0 %v3006
    %v3279 = vpop.f32.mrb[0].mxu0
    %v3280 = vadd.f32 %v2979, %v3279
    %v3281 = vpop.f32.mrb[0].mxu0
    %3282 = vmatprep.mubr.f32.mxu0 0.0
    %3283 = vmatmul.mubr.f32.gmra.mrb[0].mxu0 %v3009
    %v3284 = vpop.f32.mrb[0].mxu0
    %v3285 = vadd.f32 %v2979, %v3284
    %v3286 = vpop.f32.mrb[0].mxu0
    %3287 = vmatprep.mubr.f32.mxu0 0.0
    %3288 = vmatmul.mubr.f32.gmra.mrb[0].mxu0 %v3012
    %v3289 = vpop.f32.mrb[0].mxu0
    %v3290 = vadd.f32 %v2979, %v3289
    %v3291 = vpop.f32.mrb[0].mxu0
    %3292 = vmatprep.mubr.f32.mxu0 0.0
    %3293 = vmatmul.mubr.f32.gmra.mrb[0].mxu0 %v3015
    %v3294 = vpop.f32.mrb[0].mxu0
    %v3295 = vadd.f32 %v2979, %v3294
    %v3296 = vpop.f32.mrb[0].mxu0
    %3297 = vmatprep.mubr.f32.mxu0 0.0
    %3298 = vmatmul.mubr.f32.gmra.mrb[0].mxu0 %v3018
    %v3299 = vpop.f32.mrb[0].mxu0
    %v3300 = vadd.f32 %v2979, %v3299
    %v3301 = vpop.f32.mrb[0].mxu0
    %3302 = vmatprep.mubr.f32.mxu0 0.0
    %3303 = vmatmul.mubr.f32.gmra.mrb[0].mxu0 %v3021
    %v3304 = vpop.f32.mrb[0].mxu0
    %v3305 = vadd.f32 %v2979, %v3304
    %v3306 = vpop.f32.mrb[0].mxu0
    %3307 = vmatprep.mubr.f32.mxu0 0.0
    %3308 = vmatmul.mubr.f32.gmra.mrb[0].mxu0 %v3024
    %v3309 = vpop.f32.mrb[0].mxu0
    %v3310 = vadd.f32 %v2979, %v3309
    %v3311 = vpop.f32.mrb[0].mxu0
    %3312 = vmatprep.mubr.f32.mxu0 0.0
    %3313 = vmatmul.mubr.f32.gmra.mrb[0].mxu0 %v3027
    %v3314 = vpop.f32.mrb[0].mxu0
    %v3315 = vadd.f32 %v2979, %v3314
    %v3316 = vpop.f32.mrb[0].mxu0
    %3317 = vmatprep.mubr.f32.mxu0 0.0
    %3318 = vmatmul.mubr.f32.gmra.mrb[0].mxu0 %v3030
    %v3319 = vpop.f32.mrb[0].mxu0
    %v3320 = vadd.f32 %v2979, %v3319
    %v3321 = vpop.f32.mrb[0].mxu0
    %3322 = vmatprep.mubr.f32.mxu0 0.0
    %3323 = vmatmul.mubr.f32.gmra.mrb[0].mxu0 %v3033
    %v3324 = vpop.f32.mrb[0].mxu0
    %v3325 = vadd.f32 %v2979, %v3324
    %v3326 = vpop.f32.mrb[0].mxu0
    %3327 = vmatprep.mubr.f32.mxu0 0.0
    %3328 = vmatmul.mubr.f32.gmra.mrb[0].mxu0 %v3036
    %v3329 = vpop.f32.mrb[0].mxu0
    %v3330 = vadd.f32 %v2979, %v3329
    %v3331 = vpop.f32.mrb[0].mxu0
    %3332 = vmatprep.mubr.f32.mxu0 0.0
    %3333 = vmatmul.mubr.f32.gmra.mrb[0].mxu0 %v3039
    %v3334 = vpop.f32.mrb[0].mxu0
    %v3335 = vadd.f32 %v2979, %v3334
    %v3336 = vpop.f32.mrb[0].mxu0
    %3337 = vmatprep.mubr.f32.mxu0 0.0
    %3338 = vmatmul.mubr.f32.gmra.mrb[0].mxu0 %v3042
    %v3339 = vpop.f32.mrb[0].mxu0
    %v3340 = vadd.f32 %v2979, %v3339
    %v3341 = vpop.f32.mrb[0].mxu0
    %3342 = vmatprep.mubr.f32.mxu0 0.0
    %3343 = vmatmul.mubr.f32.gmra.mrb[0].mxu0 %v3045
    %v3344 = vpop.f32.mrb[0].mxu0
    %v3345 = vadd.f32 %v2979, %v3344
    %v3346 = vpop.f32.mrb[0].mxu0
    %3347 = vmatprep.mubr.f32.mxu0 0.0
    %3348 = vmatmul.mubr.f32.gmra.mrb[0].mxu0 %v3048
    %v3349 = vpop.f32.mrb[0].mxu0
    %v3350 = vadd.f32 %v2979, %v3349
    %v3351 = vpop.f32.mrb[0].mxu0
    %3352 = vmatprep.mubr.f32.mxu0 0.0
    %3353 = vmatmul.mubr.f32.gmra.mrb[0].mxu0 %v3051
    %v3354 = vpop.f32.mrb[0].mxu0
    %v3355 = vadd.f32 %v2979, %v3354
    %v3356 = vpop.f32.mrb[0].mxu0
    %3357 = vmatprep.mubr.f32.mxu0 0.0
    %3358 = vmatmul.mubr.f32.gmra.mrb[0].mxu0 %v3054
    %v3359 = vpop.f32.mrb[0].mxu0
    %v3360 = vadd.f32 %v2979, %v3359
    %v3361 = vpop.f32.mrb[0].mxu0
    %3362 = vmatprep.mubr.f32.mxu0 0.0
    %3363 = vmatmul.mubr.f32.gmra.mrb[0].mxu0 %v3057
    %v3364 = vpop.f32.mrb[0].mxu0
    %v3365 = vadd.f32 %v2979, %v3364
    %v3366 = vpop.f32.mrb[0].mxu0
    %3367 = vmatprep.mubr.f32.mxu0 0.0
    %3368 = vmatmul.mubr.f32.gmra.mrb[0].mxu0 %v3060
    %v3369 = vpop.f32.mrb[0].mxu0
    %v3370 = vadd.f32 %v2979, %v3369
    %v3371 = vpop.f32.mrb[0].mxu0
    %3372 = vmatprep.mubr.f32.mxu0 0.0
    %3373 = vmatmul.mubr.f32.gmra.mrb[0].mxu0 %v3063
    %v3374 = vpop.f32.mrb[0].mxu0
    %v3375 = vadd.f32 %v2979, %v3374
    %v3376 = vpop.f32.mrb[0].mxu0
    %3377 = vmatprep.mubr.f32.mxu0 0.0
    %3378 = vmatmul.mubr.f32.gmra.mrb[0].mxu0 %v3066
    %v3379 = vpop.f32.mrb[0].mxu0
    %v3380 = vadd.f32 %v2979, %v3379
    %v3381 = vpop.f32.mrb[0].mxu0
    %3382 = vmatprep.mubr.f32.mxu0 0.0
    %3383 = vmatmul.mubr.f32.gmra.mrb[0].mxu0 %v3069
    %v3384 = vpop.f32.mrb[0].mxu0
    %v3385 = vadd.f32 %v2979, %v3384
    %v3386 = vpop.f32.mrb[0].mxu0
    %3387 = vmatprep.mubr.f32.mxu0 0.0
    %3388 = vmatmul.mubr.f32.gmra.mrb[0].mxu0 %v3072
    %v3389 = vpop.f32.mrb[0].mxu0
    %v3390 = vadd.f32 %v2979, %v3389
    %v3391 = vpop.f32.mrb[0].mxu0
    %3392 = vmatprep.mubr.f32.mxu0 0.0
    %3393 = vmatmul.mubr.f32.gmra.mrb[0].mxu0 %v3075
    %v3394 = vpop.f32.mrb[0].mxu0
    %v3395 = vadd.f32 %v2979, %v3394
    %v3396 = vpop.f32.mrb[0].mxu0
    %3397 = vmatprep.mubr.f32.mxu0 0.0
    %3398 = vmatmul.mubr.f32.gmra.mrb[0].mxu0 %v3078
    %v3399 = vpop.f32.mrb[0].mxu0
    %v3400 = vadd.f32 %v2979, %v3399
    %v3401 = vpop.f32.mrb[0].mxu0
    %3402 = vmatprep.mubr.f32.mxu0 0.0
    %3403 = vmatmul.mubr.f32.gmra.mrb[0].mxu0 %v3081
    %v3404 = vpop.f32.mrb[0].mxu0
    %v3405 = vadd.f32 %v2979, %v3404
    %v3406 = vpop.f32.mrb[0].mxu0
    %3407 = vmatprep.mubr.f32.mxu0 0.0
    %3408 = vmatmul.mubr.f32.gmra.mrb[0].mxu0 %v3084
    %v3409 = vpop.f32.mrb[0].mxu0
    %v3410 = vadd.f32 %v2979, %v3409
    %v3411 = vpop.f32.mrb[0].mxu0
    %3412 = vmatprep.mubr.f32.mxu0 0.0
    %3413 = vmatmul.mubr.f32.gmra.mrb[0].mxu0 %v3087
    %v3414 = vpop.f32.mrb[0].mxu0
    %v3415 = vadd.f32 %v2979, %v3414
    %v3416 = vpop.f32.mrb[0].mxu0
    %3417 = vmatprep.mubr.f32.mxu0 0.0
    %3418 = vmatmul.mubr.f32.gmra.mrb[0].mxu0 %v3090
    %v3419 = vpop.f32.mrb[0].mxu0
    %v3420 = vadd.f32 %v2979, %v3419
    %v3421 = vpop.f32.mrb[0].mxu0
    %3422 = vmatprep.mubr.f32.mxu0 0.0
    %3423 = vmatmul.mubr.f32.gmra.mrb[0].mxu0 %v3093
    %v3424 = vpop.f32.mrb[0].mxu0
    %v3425 = vadd.f32 %v2979, %v3424
    %v3426 = vpop.f32.mrb[0].mxu0
    %3427 = vmatprep.mubr.f32.mxu0 0.0
    %3428 = vmatmul.mubr.f32.gmra.mrb[0].mxu0 %v3096
    %v3429 = vpop.f32.mrb[0].mxu0
    %v3430 = vadd.f32 %v2979, %v3429
    %v3431 = vpop.f32.mrb[0].mxu0
    %3432 = vmatprep.mubr.f32.mxu0 0.0
    %3433 = vmatmul.mubr.f32.gmra.mrb[0].mxu0 %v3099
    %v3434 = vpop.f32.mrb[0].mxu0
    %v3435 = vadd.f32 %v2979, %v3434
    %v3436 = vpop.f32.mrb[0].mxu0
    %3437 = vmatprep.mubr.f32.mxu0 0.0
    %3438 = vmatmul.mubr.f32.gmra.mrb[0].mxu0 %v3102
    %v3439 = vpop.f32.mrb[0].mxu0
    %v3440 = vadd.f32 %v2979, %v3439
    %v3441 = vpop.f32.mrb[0].mxu0
    %3442 = vmatprep.mubr.f32.mxu0 0.0
    %3443 = vmatmul.mubr.f32.gmra.mrb[0].mxu0 %v3105
    %v3444 = vpop.f32.mrb[0].mxu0
    %v3445 = vadd.f32 %v2979, %v3444
    %v3446 = vpop.f32.mrb[0].mxu0
    %3447 = vmatprep.mubr.f32.mxu0 0.0
    %3448 = vmatmul.mubr.f32.gmra.mrb[0].mxu0 %v3108
    %v3449 = vpop.f32.mrb[0].mxu0
    %v3450 = vadd.f32 %v2979, %v3449
    %v3451 = vpop.f32.mrb[0].mxu0
    %3452 = vmatprep.mubr.f32.mxu0 0.0
    %3453 = vmatmul.mubr.f32.gmra.mrb[0].mxu0 %v3111
    %v3454 = vpop.f32.mrb[0].mxu0
    %v3455 = vadd.f32 %v2979, %v3454
    %v3456 = vpop.f32.mrb[0].mxu0
    %3457 = vmatprep.mubr.f32.mxu0 0.0
    %3458 = vmatmul.mubr.f32.gmra.mrb[0].mxu0 %v3114
    %v3459 = vpop.f32.mrb[0].mxu0
    %v3460 = vadd.f32 %v2979, %v3459
    %v3461 = vpop.f32.mrb[0].mxu0
    %3462 = vmatprep.mubr.f32.mxu0 0.0
    %3463 = vmatmul.mubr.f32.gmra.mrb[0].mxu0 %v3117
    %v3464 = vpop.f32.mrb[0].mxu0
    %v3465 = vadd.f32 %v2979, %v3464
    %v3466 = vpop.f32.mrb[0].mxu0
    %3467 = vmatprep.mubr.f32.mxu0 0.0
    %3468 = vmatmul.mubr.f32.gmra.mrb[0].mxu0 %v3120
    %v3469 = vpop.f32.mrb[0].mxu0
    %v3470 = vadd.f32 %v2979, %v3469
    %v3471 = vpop.f32.mrb[0].mxu0
    %3472 = vmatprep.mubr.f32.mxu0 0.0
    %3473 = vmatmul.mubr.f32.gmra.mrb[0].mxu0 %v3123
    %v3474 = vpop.f32.mrb[0].mxu0
    %v3475 = vadd.f32 %v2979, %v3474
    %v3476 = vpop.f32.mrb[0].mxu0
    %3477 = vmatprep.mubr.f32.mxu0 0.0
    %3478 = vmatmul.mubr.f32.gmra.mrb[0].mxu0 %v3126
    %v3479 = vpop.f32.mrb[0].mxu0
    %v3480 = vadd.f32 %v2979, %v3479
    %v3481 = vpop.f32.mrb[0].mxu0
    %3482 = vmatprep.mubr.f32.mxu0 0.0
    %3483 = vmatmul.mubr.f32.gmra.mrb[0].mxu0 %v3129
    %v3484 = vpop.f32.mrb[0].mxu0
    %v3485 = vadd.f32 %v2979, %v3484
    %v3486 = vpop.f32.mrb[0].mxu0
    %3487 = vmatprep.mubr.f32.mxu0 0.0
    %3488 = vmatmul.mubr.f32.gmra.mrb[0].mxu0 %v3132
    %v3489 = vpop.f32.mrb[0].mxu0
    %v3490 = vadd.f32 %v2979, %v3489
    %v3491 = vpop.f32.mrb[0].mxu0
    %3492 = vmatprep.mubr.f32.mxu0 0.0
    %3493 = vmatmul.mubr.f32.gmra.mrb[0].mxu0 %v3135
    %v3494 = vpop.f32.mrb[0].mxu0
    %v3495 = vadd.f32 %v2979, %v3494
    %v3496 = vpop.f32.mrb[0].mxu0
    %3497 = vmatprep.mubr.f32.mxu0 0.0
    %3498 = vmatmul.mubr.f32.gmra.mrb[0].mxu0 %v3138
    %v3499 = vpop.f32.mrb[0].mxu0
    %v3500 = vadd.f32 %v2979, %v3499
    %v3501 = vpop.f32.mrb[0].mxu0
    %3502 = vmatprep.mubr.f32.mxu0 0.0
    %3503 = vmatmul.mubr.f32.gmra.mrb[0].mxu0 %v3141
    %v3504 = vpop.f32.mrb[0].mxu0
    %v3505 = vadd.f32 %v2979, %v3504
    %v3506 = vpop.f32.mrb[0].mxu0
    %3507 = vmatprep.mubr.f32.mxu0 0.0
    %3508 = vmatmul.mubr.f32.gmra.mrb[0].mxu0 %v3144
    %v3509 = vpop.f32.mrb[0].mxu0
    %v3510 = vadd.f32 %v2979, %v3509
    %v3511 = vpop.f32.mrb[0].mxu0
    %3512 = vmatprep.mubr.f32.mxu0 0.0
    %3513 = vmatmul.mubr.f32.gmra.mrb[0].mxu0 %v3147
    %v3514 = vpop.f32.mrb[0].mxu0
    %v3515 = vadd.f32 %v2979, %v3514
    %v3516 = vpop.f32.mrb[0].mxu0
    %3517 = vmatprep.mubr.f32.mxu0 0.0
    %3518 = vmatmul.mubr.f32.gmra.mrb[0].mxu0 %v3150
    %v3519 = vpop.f32.mrb[0].mxu0
    %v3520 = vadd.f32 %v2979, %v3519
    %v3521 = vpop.f32.mrb[0].mxu0
    %3522 = vmatprep.mubr.f32.mxu0 0.0
    %3523 = vmatmul.mubr.f32.gmra.mrb[0].mxu0 %v3153
    %v3524 = vpop.f32.mrb[0].mxu0
    %v3525 = vadd.f32 %v2979, %v3524
    %v3526 = vpop.f32.mrb[0].mxu0
    %3527 = vmatprep.mubr.f32.mxu0 0.0
    %3528 = vmatmul.mubr.f32.gmra.mrb[0].mxu0 %v3156
    %v3529 = vpop.f32.mrb[0].mxu0
    %v3530 = vadd.f32 %v2979, %v3529
    %v3531 = vpop.f32.mrb[0].mxu0
    %3532 = vmatprep.mubr.f32.mxu0 0.0
    %3533 = vmatmul.mubr.f32.gmra.mrb[0].mxu0 %v3159
    %v3534 = vpop.f32.mrb[0].mxu0
    %v3535 = vadd.f32 %v2979, %v3534
    %v3536 = vpop.f32.mrb[0].mxu0
    %3537 = vmatprep.mubr.f32.mxu0 0.0
    %3538 = vmatmul.mubr.f32.gmra.mrb[0].mxu0 %v3162
    %v3539 = vpop.f32.mrb[0].mxu0
    %v3540 = vadd.f32 %v2979, %v3539
    %v3541 = vpop.f32.mrb[0].mxu0
    %3542 = vmatprep.mubr.f32.mxu0 0.0
    %3543 = vmatmul.mubr.f32.gmra.mrb[0].mxu0 %v3165
    %v3544 = vpop.f32.mrb[0].mxu0
    %v3545 = vadd.f32 %v2979, %v3544
    %v3546 = vpop.f32.mrb[0].mxu0
    %3547 = vmatprep.mubr.f32.mxu0 0.0
    %3548 = vmatmul.mubr.f32.gmra.mrb[0].mxu0 %v3168
    %v3549 = vpop.f32.mrb[0].mxu0
    %v3550 = vadd.f32 %v2979, %v3549
    %v3551 = vpop.f32.mrb[0].mxu0
    %3552 = vmatprep.mubr.f32.mxu0 0.0
    %3553 = vmatmul.mubr.f32.gmra.mrb[0].mxu0 %v3171
    %v3554 = vpop.f32.mrb[0].mxu0
    %v3555 = vadd.f32 %v2979, %v3554
    %v3556 = vpop.f32.mrb[0].mxu0
    %3557 = vdwg.mxu0
    %v3558 = vmax.f32 %v3240, 0.0
    %v3559 = vmax.f32 %v3245, 0.0
    %v3560 = vmax.f32 %v3250, 0.0
    %v3561 = vmax.f32 %v3255, 0.0
    %v3562 = vmax.f32 %v3260, 0.0
    %v3563 = vmax.f32 %v3265, 0.0
    %v3564 = vmax.f32 %v3270, 0.0
    %v3565 = vmax.f32 %v3275, 0.0
    %v3566 = vmax.f32 %v3280, 0.0
    %v3567 = vmax.f32 %v3285, 0.0
    %v3568 = vmax.f32 %v3290, 0.0
    %v3569 = vmax.f32 %v3295, 0.0
    %v3570 = vmax.f32 %v3300, 0.0
    %v3571 = vmax.f32 %v3305, 0.0
    %v3572 = vmax.f32 %v3310, 0.0
    %v3573 = vmax.f32 %v3315, 0.0
    %v3574 = vmax.f32 %v3320, 0.0
    %v3575 = vmax.f32 %v3325, 0.0
    %v3576 = vmax.f32 %v3330, 0.0
    %v3577 = vmax.f32 %v3335, 0.0
    %v3578 = vmax.f32 %v3340, 0.0
    %v3579 = vmax.f32 %v3345, 0.0
    %v3580 = vmax.f32 %v3350, 0.0
    %v3581 = vmax.f32 %v3355, 0.0
    %v3582 = vmax.f32 %v3360, 0.0
    %v3583 = vmax.f32 %v3365, 0.0
    %v3584 = vmax.f32 %v3370, 0.0
    %v3585 = vmax.f32 %v3375, 0.0
    %v3586 = vmax.f32 %v3380, 0.0
    %v3587 = vmax.f32 %v3385, 0.0
    %v3588 = vmax.f32 %v3390, 0.0
    %v3589 = vmax.f32 %v3395, 0.0
    %v3590 = vmax.f32 %v3400, 0.0
    %v3591 = vmax.f32 %v3405, 0.0
    %v3592 = vmax.f32 %v3410, 0.0
    %v3593 = vmax.f32 %v3415, 0.0
    %v3594 = vmax.f32 %v3420, 0.0
    %v3595 = vmax.f32 %v3425, 0.0
    %v3596 = vmax.f32 %v3430, 0.0
    %v3597 = vmax.f32 %v3435, 0.0
    %v3598 = vmax.f32 %v3440, 0.0
    %v3599 = vmax.f32 %v3445, 0.0
    %v3600 = vmax.f32 %v3450, 0.0
    %v3601 = vmax.f32 %v3455, 0.0
    %v3602 = vmax.f32 %v3460, 0.0
    %v3603 = vmax.f32 %v3465, 0.0
    %v3604 = vmax.f32 %v3470, 0.0
    %v3605 = vmax.f32 %v3475, 0.0
    %v3606 = vmax.f32 %v3480, 0.0
    %v3607 = vmax.f32 %v3485, 0.0
    %v3608 = vmax.f32 %v3490, 0.0
    %v3609 = vmax.f32 %v3495, 0.0
    %v3610 = vmax.f32 %v3500, 0.0
    %v3611 = vmax.f32 %v3505, 0.0
    %v3612 = vmax.f32 %v3510, 0.0
    %v3613 = vmax.f32 %v3515, 0.0
    %v3614 = vmax.f32 %v3520, 0.0
    %v3615 = vmax.f32 %v3525, 0.0
    %v3616 = vmax.f32 %v3530, 0.0
    %v3617 = vmax.f32 %v3535, 0.0
    %v3618 = vmax.f32 %v3540, 0.0
    %v3619 = vmax.f32 %v3545, 0.0
    %v3620 = vmax.f32 %v3550, 0.0
    %v3621 = vmax.f32 %v3555, 0.0
    %v3623 = vlaneseq
    %v3624 = vshrl.u32 %v3623, 7
    %v3625 = vsub.s32 0, %v3624
    %v3626 = vrot.slane %v78, %v3625
    %v3628 = vmul.f32 %v3558, %v3626
    %v3629 = vmul.f32 %v3559, %v3626
    %v3630 = vmul.f32 %v3560, %v3626
    %v3631 = vmul.f32 %v3561, %v3626
    %v3632 = vmul.f32 %v3562, %v3626
    %v3633 = vmul.f32 %v3563, %v3626
    %v3634 = vmul.f32 %v3564, %v3626
    %v3635 = vmul.f32 %v3565, %v3626
    %v3636 = vmul.f32 %v3566, %v3626
    %v3637 = vmul.f32 %v3567, %v3626
    %v3638 = vmul.f32 %v3568, %v3626
    %v3639 = vmul.f32 %v3569, %v3626
    %v3640 = vmul.f32 %v3570, %v3626
    %v3641 = vmul.f32 %v3571, %v3626
    %v3642 = vmul.f32 %v3572, %v3626
    %v3643 = vmul.f32 %v3573, %v3626
    %v3644 = vmul.f32 %v3574, %v3626
    %v3645 = vmul.f32 %v3575, %v3626
    %v3646 = vmul.f32 %v3576, %v3626
    %v3647 = vmul.f32 %v3577, %v3626
    %v3648 = vmul.f32 %v3578, %v3626
    %v3649 = vmul.f32 %v3579, %v3626
    %v3650 = vmul.f32 %v3580, %v3626
    %v3651 = vmul.f32 %v3581, %v3626
    %v3652 = vmul.f32 %v3582, %v3626
    %v3653 = vmul.f32 %v3583, %v3626
    %v3654 = vmul.f32 %v3584, %v3626
    %v3655 = vmul.f32 %v3585, %v3626
    %v3656 = vmul.f32 %v3586, %v3626
    %v3657 = vmul.f32 %v3587, %v3626
    %v3658 = vmul.f32 %v3588, %v3626
    %v3659 = vmul.f32 %v3589, %v3626
    %v3660 = vmul.f32 %v3590, %v3626
    %v3661 = vmul.f32 %v3591, %v3626
    %v3662 = vmul.f32 %v3592, %v3626
    %v3663 = vmul.f32 %v3593, %v3626
    %v3664 = vmul.f32 %v3594, %v3626
    %v3665 = vmul.f32 %v3595, %v3626
    %v3666 = vmul.f32 %v3596, %v3626
    %v3667 = vmul.f32 %v3597, %v3626
    %v3668 = vmul.f32 %v3598, %v3626
    %v3669 = vmul.f32 %v3599, %v3626
    %v3670 = vmul.f32 %v3600, %v3626
    %v3671 = vmul.f32 %v3601, %v3626
    %v3672 = vmul.f32 %v3602, %v3626
    %v3673 = vmul.f32 %v3603, %v3626
    %v3674 = vmul.f32 %v3604, %v3626
    %v3675 = vmul.f32 %v3605, %v3626
    %v3676 = vmul.f32 %v3606, %v3626
    %v3677 = vmul.f32 %v3607, %v3626
    %v3678 = vmul.f32 %v3608, %v3626
    %v3679 = vmul.f32 %v3609, %v3626
    %v3680 = vmul.f32 %v3610, %v3626
    %v3681 = vmul.f32 %v3611, %v3626
    %v3682 = vmul.f32 %v3612, %v3626
    %v3683 = vmul.f32 %v3613, %v3626
    %v3684 = vmul.f32 %v3614, %v3626
    %v3685 = vmul.f32 %v3615, %v3626
    %v3686 = vmul.f32 %v3616, %v3626
    %v3687 = vmul.f32 %v3617, %v3626
    %v3688 = vmul.f32 %v3618, %v3626
    %v3689 = vmul.f32 %v3619, %v3626
    %v3690 = vmul.f32 %v3620, %v3626
    %v3691 = vmul.f32 %v3621, %v3626
    %v3692 = vsel %vm2333, %v3628, 0.0
    %3693 = vadd.xlane.f32.xlu0 %v3692
    %v3694 = vpop.xlane.xlu0 %3693
    %v3695 = vsel %vm2333, %v3629, 0.0
    %3696 = vadd.xlane.f32.xlu0 %v3695
    %v3697 = vpop.xlane.xlu0 %3696
    %v3698 = vsel %vm2333, %v3630, 0.0
    %3699 = vadd.xlane.f32.xlu0 %v3698
    %v3700 = vpop.xlane.xlu0 %3699
    %v3701 = vsel %vm2333, %v3631, 0.0
    %3702 = vadd.xlane.f32.xlu0 %v3701
    %v3703 = vpop.xlane.xlu0 %3702
    %v3704 = vsel %vm2333, %v3632, 0.0
    %3705 = vadd.xlane.f32.xlu0 %v3704
    %v3706 = vpop.xlane.xlu0 %3705
    %v3707 = vsel %vm2333, %v3633, 0.0
    %3708 = vadd.xlane.f32.xlu0 %v3707
    %v3709 = vpop.xlane.xlu0 %3708
    %v3710 = vsel %vm2333, %v3634, 0.0
    %3711 = vadd.xlane.f32.xlu0 %v3710
    %v3712 = vpop.xlane.xlu0 %3711
    %v3713 = vsel %vm2333, %v3635, 0.0
    %3714 = vadd.xlane.f32.xlu0 %v3713
    %v3715 = vpop.xlane.xlu0 %3714
    %v3716 = vsel %vm2333, %v3636, 0.0
    %3717 = vadd.xlane.f32.xlu0 %v3716
    %v3718 = vpop.xlane.xlu0 %3717
    %v3719 = vsel %vm2333, %v3637, 0.0
    %3720 = vadd.xlane.f32.xlu0 %v3719
    %v3721 = vpop.xlane.xlu0 %3720
    %v3722 = vsel %vm2333, %v3638, 0.0
    %3723 = vadd.xlane.f32.xlu0 %v3722
    %v3724 = vpop.xlane.xlu0 %3723
    %v3725 = vsel %vm2333, %v3639, 0.0
    %3726 = vadd.xlane.f32.xlu0 %v3725
    %v3727 = vpop.xlane.xlu0 %3726
    %v3728 = vsel %vm2333, %v3640, 0.0
    %3729 = vadd.xlane.f32.xlu0 %v3728
    %v3730 = vpop.xlane.xlu0 %3729
    %v3731 = vsel %vm2333, %v3641, 0.0
    %3732 = vadd.xlane.f32.xlu0 %v3731
    %v3733 = vpop.xlane.xlu0 %3732
    %v3734 = vsel %vm2333, %v3642, 0.0
    %3735 = vadd.xlane.f32.xlu0 %v3734
    %v3736 = vpop.xlane.xlu0 %3735
    %v3737 = vsel %vm2333, %v3643, 0.0
    %3738 = vadd.xlane.f32.xlu0 %v3737
    %v3739 = vpop.xlane.xlu0 %3738
    %v3740 = vsel %vm2333, %v3644, 0.0
    %3741 = vadd.xlane.f32.xlu0 %v3740
    %v3742 = vpop.xlane.xlu0 %3741
    %v3743 = vsel %vm2333, %v3645, 0.0
    %3744 = vadd.xlane.f32.xlu0 %v3743
    %v3745 = vpop.xlane.xlu0 %3744
    %v3746 = vsel %vm2333, %v3646, 0.0
    %3747 = vadd.xlane.f32.xlu0 %v3746
    %v3748 = vpop.xlane.xlu0 %3747
    %v3749 = vsel %vm2333, %v3647, 0.0
    %3750 = vadd.xlane.f32.xlu0 %v3749
    %v3751 = vpop.xlane.xlu0 %3750
    %v3752 = vsel %vm2333, %v3648, 0.0
    %3753 = vadd.xlane.f32.xlu0 %v3752
    %v3754 = vpop.xlane.xlu0 %3753
    %v3755 = vsel %vm2333, %v3649, 0.0
    %3756 = vadd.xlane.f32.xlu0 %v3755
    %v3757 = vpop.xlane.xlu0 %3756
    %v3758 = vsel %vm2333, %v3650, 0.0
    %3759 = vadd.xlane.f32.xlu0 %v3758
    %v3760 = vpop.xlane.xlu0 %3759
    %v3761 = vsel %vm2333, %v3651, 0.0
    %3762 = vadd.xlane.f32.xlu0 %v3761
    %v3763 = vpop.xlane.xlu0 %3762
    %v3764 = vsel %vm2333, %v3652, 0.0
    %3765 = vadd.xlane.f32.xlu0 %v3764
    %v3766 = vpop.xlane.xlu0 %3765
    %v3767 = vsel %vm2333, %v3653, 0.0
    %3768 = vadd.xlane.f32.xlu0 %v3767
    %v3769 = vpop.xlane.xlu0 %3768
    %v3770 = vsel %vm2333, %v3654, 0.0
    %3771 = vadd.xlane.f32.xlu0 %v3770
    %v3772 = vpop.xlane.xlu0 %3771
    %v3773 = vsel %vm2333, %v3655, 0.0
    %3774 = vadd.xlane.f32.xlu0 %v3773
    %v3775 = vpop.xlane.xlu0 %3774
    %v3776 = vsel %vm2333, %v3656, 0.0
    %3777 = vadd.xlane.f32.xlu0 %v3776
    %v3778 = vpop.xlane.xlu0 %3777
    %v3779 = vsel %vm2333, %v3657, 0.0
    %3780 = vadd.xlane.f32.xlu0 %v3779
    %v3781 = vpop.xlane.xlu0 %3780
    %v3782 = vsel %vm2333, %v3658, 0.0
    %3783 = vadd.xlane.f32.xlu0 %v3782
    %v3784 = vpop.xlane.xlu0 %3783
    %v3785 = vsel %vm2333, %v3659, 0.0
    %3786 = vadd.xlane.f32.xlu0 %v3785
    %v3787 = vpop.xlane.xlu0 %3786
    %v3788 = vsel %vm2333, %v3660, 0.0
    %3789 = vadd.xlane.f32.xlu0 %v3788
    %v3790 = vpop.xlane.xlu0 %3789
    %v3791 = vsel %vm2333, %v3661, 0.0
    %3792 = vadd.xlane.f32.xlu0 %v3791
    %v3793 = vpop.xlane.xlu0 %3792
    %v3794 = vsel %vm2333, %v3662, 0.0
    %3795 = vadd.xlane.f32.xlu0 %v3794
    %v3796 = vpop.xlane.xlu0 %3795
    %v3797 = vsel %vm2333, %v3663, 0.0
    %3798 = vadd.xlane.f32.xlu0 %v3797
    %v3799 = vpop.xlane.xlu0 %3798
    %v3800 = vsel %vm2333, %v3664, 0.0
    %3801 = vadd.xlane.f32.xlu0 %v3800
    %v3802 = vpop.xlane.xlu0 %3801
    %v3803 = vsel %vm2333, %v3665, 0.0
    %3804 = vadd.xlane.f32.xlu0 %v3803
    %v3805 = vpop.xlane.xlu0 %3804
    %v3806 = vsel %vm2333, %v3666, 0.0
    %3807 = vadd.xlane.f32.xlu0 %v3806
    %v3808 = vpop.xlane.xlu0 %3807
    %v3809 = vsel %vm2333, %v3667, 0.0
    %3810 = vadd.xlane.f32.xlu0 %v3809
    %v3811 = vpop.xlane.xlu0 %3810
    %v3812 = vsel %vm2333, %v3668, 0.0
    %3813 = vadd.xlane.f32.xlu0 %v3812
    %v3814 = vpop.xlane.xlu0 %3813
    %v3815 = vsel %vm2333, %v3669, 0.0
    %3816 = vadd.xlane.f32.xlu0 %v3815
    %v3817 = vpop.xlane.xlu0 %3816
    %v3818 = vsel %vm2333, %v3670, 0.0
    %3819 = vadd.xlane.f32.xlu0 %v3818
    %v3820 = vpop.xlane.xlu0 %3819
    %v3821 = vsel %vm2333, %v3671, 0.0
    %3822 = vadd.xlane.f32.xlu0 %v3821
    %v3823 = vpop.xlane.xlu0 %3822
    %v3824 = vsel %vm2333, %v3672, 0.0
    %3825 = vadd.xlane.f32.xlu0 %v3824
    %v3826 = vpop.xlane.xlu0 %3825
    %v3827 = vsel %vm2333, %v3673, 0.0
    %3828 = vadd.xlane.f32.xlu0 %v3827
    %v3829 = vpop.xlane.xlu0 %3828
    %v3830 = vsel %vm2333, %v3674, 0.0
    %3831 = vadd.xlane.f32.xlu0 %v3830
    %v3832 = vpop.xlane.xlu0 %3831
    %v3833 = vsel %vm2333, %v3675, 0.0
    %3834 = vadd.xlane.f32.xlu0 %v3833
    %v3835 = vpop.xlane.xlu0 %3834
    %v3836 = vsel %vm2333, %v3676, 0.0
    %3837 = vadd.xlane.f32.xlu0 %v3836
    %v3838 = vpop.xlane.xlu0 %3837
    %v3839 = vsel %vm2333, %v3677, 0.0
    %3840 = vadd.xlane.f32.xlu0 %v3839
    %v3841 = vpop.xlane.xlu0 %3840
    %v3842 = vsel %vm2333, %v3678, 0.0
    %3843 = vadd.xlane.f32.xlu0 %v3842
    %v3844 = vpop.xlane.xlu0 %3843
    %v3845 = vsel %vm2333, %v3679, 0.0
    %3846 = vadd.xlane.f32.xlu0 %v3845
    %v3847 = vpop.xlane.xlu0 %3846
    %v3848 = vsel %vm2333, %v3680, 0.0
    %3849 = vadd.xlane.f32.xlu0 %v3848
    %v3850 = vpop.xlane.xlu0 %3849
    %v3851 = vsel %vm2333, %v3681, 0.0
    %3852 = vadd.xlane.f32.xlu0 %v3851
    %v3853 = vpop.xlane.xlu0 %3852
    %v3854 = vsel %vm2333, %v3682, 0.0
    %3855 = vadd.xlane.f32.xlu0 %v3854
    %v3856 = vpop.xlane.xlu0 %3855
    %v3857 = vsel %vm2333, %v3683, 0.0
    %3858 = vadd.xlane.f32.xlu0 %v3857
    %v3859 = vpop.xlane.xlu0 %3858
    %v3860 = vsel %vm2333, %v3684, 0.0
    %3861 = vadd.xlane.f32.xlu0 %v3860
    %v3862 = vpop.xlane.xlu0 %3861
    %v3863 = vsel %vm2333, %v3685, 0.0
    %3864 = vadd.xlane.f32.xlu0 %v3863
    %v3865 = vpop.xlane.xlu0 %3864
    %v3866 = vsel %vm2333, %v3686, 0.0
    %3867 = vadd.xlane.f32.xlu0 %v3866
    %v3868 = vpop.xlane.xlu0 %3867
    %v3869 = vsel %vm2333, %v3687, 0.0
    %3870 = vadd.xlane.f32.xlu0 %v3869
    %v3871 = vpop.xlane.xlu0 %3870
    %v3872 = vsel %vm2333, %v3688, 0.0
    %3873 = vadd.xlane.f32.xlu0 %v3872
    %v3874 = vpop.xlane.xlu0 %3873
    %v3875 = vsel %vm2333, %v3689, 0.0
    %3876 = vadd.xlane.f32.xlu0 %v3875
    %v3877 = vpop.xlane.xlu0 %3876
    %v3878 = vsel %vm2333, %v3690, 0.0
    %3879 = vadd.xlane.f32.xlu0 %v3878
    %v3880 = vpop.xlane.xlu0 %3879
    %v3881 = vsel %vm2333, %v3691, 0.0
    %3882 = vadd.xlane.f32.xlu0 %v3881
    %v3883 = vpop.xlane.xlu0 %3882
    %3885 = vset.pattern.permute.xlu0 0
    %3886 = vperm.xlu0 %3885, %v79
    %v3887 = vpop.permute.xlu0 %3886
    %v3889 = vlaneseq
    %v3890 = vshrl.u32 %v3889, 7
    %v3891 = vsub.s32 0, %v3890
    %v3892 = vrot.slane %v3887, %v3891
    %v3893 = vadd.f32 %v3694, %v3892
    %v3894 = vadd.f32 %v3697, %v3892
    %v3895 = vadd.f32 %v3700, %v3892
    %v3896 = vadd.f32 %v3703, %v3892
    %v3897 = vadd.f32 %v3706, %v3892
    %v3898 = vadd.f32 %v3709, %v3892
    %v3899 = vadd.f32 %v3712, %v3892
    %v3900 = vadd.f32 %v3715, %v3892
    %v3901 = vadd.f32 %v3718, %v3892
    %v3902 = vadd.f32 %v3721, %v3892
    %v3903 = vadd.f32 %v3724, %v3892
    %v3904 = vadd.f32 %v3727, %v3892
    %v3905 = vadd.f32 %v3730, %v3892
    %v3906 = vadd.f32 %v3733, %v3892
    %v3907 = vadd.f32 %v3736, %v3892
    %v3908 = vadd.f32 %v3739, %v3892
    %v3909 = vadd.f32 %v3742, %v3892
    %v3910 = vadd.f32 %v3745, %v3892
    %v3911 = vadd.f32 %v3748, %v3892
    %v3912 = vadd.f32 %v3751, %v3892
    %v3913 = vadd.f32 %v3754, %v3892
    %v3914 = vadd.f32 %v3757, %v3892
    %v3915 = vadd.f32 %v3760, %v3892
    %v3916 = vadd.f32 %v3763, %v3892
    %v3917 = vadd.f32 %v3766, %v3892
    %v3918 = vadd.f32 %v3769, %v3892
    %v3919 = vadd.f32 %v3772, %v3892
    %v3920 = vadd.f32 %v3775, %v3892
    %v3921 = vadd.f32 %v3778, %v3892
    %v3922 = vadd.f32 %v3781, %v3892
    %v3923 = vadd.f32 %v3784, %v3892
    %v3924 = vadd.f32 %v3787, %v3892
    %v3925 = vadd.f32 %v3790, %v3892
    %v3926 = vadd.f32 %v3793, %v3892
    %v3927 = vadd.f32 %v3796, %v3892
    %v3928 = vadd.f32 %v3799, %v3892
    %v3929 = vadd.f32 %v3802, %v3892
    %v3930 = vadd.f32 %v3805, %v3892
    %v3931 = vadd.f32 %v3808, %v3892
    %v3932 = vadd.f32 %v3811, %v3892
    %v3933 = vadd.f32 %v3814, %v3892
    %v3934 = vadd.f32 %v3817, %v3892
    %v3935 = vadd.f32 %v3820, %v3892
    %v3936 = vadd.f32 %v3823, %v3892
    %v3937 = vadd.f32 %v3826, %v3892
    %v3938 = vadd.f32 %v3829, %v3892
    %v3939 = vadd.f32 %v3832, %v3892
    %v3940 = vadd.f32 %v3835, %v3892
    %v3941 = vadd.f32 %v3838, %v3892
    %v3942 = vadd.f32 %v3841, %v3892
    %v3943 = vadd.f32 %v3844, %v3892
    %v3944 = vadd.f32 %v3847, %v3892
    %v3945 = vadd.f32 %v3850, %v3892
    %v3946 = vadd.f32 %v3853, %v3892
    %v3947 = vadd.f32 %v3856, %v3892
    %v3948 = vadd.f32 %v3859, %v3892
    %v3949 = vadd.f32 %v3862, %v3892
    %v3950 = vadd.f32 %v3865, %v3892
    %v3951 = vadd.f32 %v3868, %v3892
    %v3952 = vadd.f32 %v3871, %v3892
    %v3953 = vadd.f32 %v3874, %v3892
    %v3954 = vadd.f32 %v3877, %v3892
    %v3955 = vadd.f32 %v3880, %v3892
    %v3956 = vadd.f32 %v3883, %v3892
    %v4021 = vlaneseq
    %v4022 = vshrl.u32 %v4021, 7
    %v4023 = vsub.s32 0, %v4022
    %v4024 = vrot.slane %v3893, %v4023
    %v4025 = vlaneseq
    %v4026 = vshrl.u32 %v4025, 7
    %v4027 = vsub.s32 1, %v4026
    %v4028 = vrot.slane %v3893, %v4027
    %v4029 = vlaneseq
    %v4030 = vshrl.u32 %v4029, 7
    %v4031 = vsub.s32 2, %v4030
    %v4032 = vrot.slane %v3893, %v4031
    %v4033 = vlaneseq
    %v4034 = vshrl.u32 %v4033, 7
    %v4035 = vsub.s32 3, %v4034
    %v4036 = vrot.slane %v3893, %v4035
    %v4037 = vlaneseq
    %v4038 = vshrl.u32 %v4037, 7
    %v4039 = vsub.s32 4, %v4038
    %v4040 = vrot.slane %v3893, %v4039
    %v4041 = vlaneseq
    %v4042 = vshrl.u32 %v4041, 7
    %v4043 = vsub.s32 5, %v4042
    %v4044 = vrot.slane %v3893, %v4043
    %v4045 = vlaneseq
    %v4046 = vshrl.u32 %v4045, 7
    %v4047 = vsub.s32 6, %v4046
    %v4048 = vrot.slane %v3893, %v4047
    %v4049 = vlaneseq
    %v4050 = vshrl.u32 %v4049, 7
    %v4051 = vsub.s32 7, %v4050
    %v4052 = vrot.slane %v3893, %v4051
    %v4053 = vlaneseq
    %v4054 = vshrl.u32 %v4053, 7
    %v4055 = vsub.s32 0, %v4054
    %v4056 = vrot.slane %v3894, %v4055
    %v4057 = vlaneseq
    %v4058 = vshrl.u32 %v4057, 7
    %v4059 = vsub.s32 1, %v4058
    %v4060 = vrot.slane %v3894, %v4059
    %v4061 = vlaneseq
    %v4062 = vshrl.u32 %v4061, 7
    %v4063 = vsub.s32 2, %v4062
    %v4064 = vrot.slane %v3894, %v4063
    %v4065 = vlaneseq
    %v4066 = vshrl.u32 %v4065, 7
    %v4067 = vsub.s32 3, %v4066
    %v4068 = vrot.slane %v3894, %v4067
    %v4069 = vlaneseq
    %v4070 = vshrl.u32 %v4069, 7
    %v4071 = vsub.s32 4, %v4070
    %v4072 = vrot.slane %v3894, %v4071
    %v4073 = vlaneseq
    %v4074 = vshrl.u32 %v4073, 7
    %v4075 = vsub.s32 5, %v4074
    %v4076 = vrot.slane %v3894, %v4075
    %v4077 = vlaneseq
    %v4078 = vshrl.u32 %v4077, 7
    %v4079 = vsub.s32 6, %v4078
    %v4080 = vrot.slane %v3894, %v4079
    %v4081 = vlaneseq
    %v4082 = vshrl.u32 %v4081, 7
    %v4083 = vsub.s32 7, %v4082
    %v4084 = vrot.slane %v3894, %v4083
    %v4085 = vlaneseq
    %v4086 = vshrl.u32 %v4085, 7
    %v4087 = vsub.s32 0, %v4086
    %v4088 = vrot.slane %v3895, %v4087
    %v4089 = vlaneseq
    %v4090 = vshrl.u32 %v4089, 7
    %v4091 = vsub.s32 1, %v4090
    %v4092 = vrot.slane %v3895, %v4091
    %v4093 = vlaneseq
    %v4094 = vshrl.u32 %v4093, 7
    %v4095 = vsub.s32 2, %v4094
    %v4096 = vrot.slane %v3895, %v4095
    %v4097 = vlaneseq
    %v4098 = vshrl.u32 %v4097, 7
    %v4099 = vsub.s32 3, %v4098
    %v4100 = vrot.slane %v3895, %v4099
    %v4101 = vlaneseq
    %v4102 = vshrl.u32 %v4101, 7
    %v4103 = vsub.s32 4, %v4102
    %v4104 = vrot.slane %v3895, %v4103
    %v4105 = vlaneseq
    %v4106 = vshrl.u32 %v4105, 7
    %v4107 = vsub.s32 5, %v4106
    %v4108 = vrot.slane %v3895, %v4107
    %v4109 = vlaneseq
    %v4110 = vshrl.u32 %v4109, 7
    %v4111 = vsub.s32 6, %v4110
    %v4112 = vrot.slane %v3895, %v4111
    %v4113 = vlaneseq
    %v4114 = vshrl.u32 %v4113, 7
    %v4115 = vsub.s32 7, %v4114
    %v4116 = vrot.slane %v3895, %v4115
    %v4117 = vlaneseq
    %v4118 = vshrl.u32 %v4117, 7
    %v4119 = vsub.s32 0, %v4118
    %v4120 = vrot.slane %v3896, %v4119
    %v4121 = vlaneseq
    %v4122 = vshrl.u32 %v4121, 7
    %v4123 = vsub.s32 1, %v4122
    %v4124 = vrot.slane %v3896, %v4123
    %v4125 = vlaneseq
    %v4126 = vshrl.u32 %v4125, 7
    %v4127 = vsub.s32 2, %v4126
    %v4128 = vrot.slane %v3896, %v4127
    %v4129 = vlaneseq
    %v4130 = vshrl.u32 %v4129, 7
    %v4131 = vsub.s32 3, %v4130
    %v4132 = vrot.slane %v3896, %v4131
    %v4133 = vlaneseq
    %v4134 = vshrl.u32 %v4133, 7
    %v4135 = vsub.s32 4, %v4134
    %v4136 = vrot.slane %v3896, %v4135
    %v4137 = vlaneseq
    %v4138 = vshrl.u32 %v4137, 7
    %v4139 = vsub.s32 5, %v4138
    %v4140 = vrot.slane %v3896, %v4139
    %v4141 = vlaneseq
    %v4142 = vshrl.u32 %v4141, 7
    %v4143 = vsub.s32 6, %v4142
    %v4144 = vrot.slane %v3896, %v4143
    %v4145 = vlaneseq
    %v4146 = vshrl.u32 %v4145, 7
    %v4147 = vsub.s32 7, %v4146
    %v4148 = vrot.slane %v3896, %v4147
    %v4149 = vlaneseq
    %v4150 = vshrl.u32 %v4149, 7
    %v4151 = vsub.s32 0, %v4150
    %v4152 = vrot.slane %v3897, %v4151
    %v4153 = vlaneseq
    %v4154 = vshrl.u32 %v4153, 7
    %v4155 = vsub.s32 1, %v4154
    %v4156 = vrot.slane %v3897, %v4155
    %v4157 = vlaneseq
    %v4158 = vshrl.u32 %v4157, 7
    %v4159 = vsub.s32 2, %v4158
    %v4160 = vrot.slane %v3897, %v4159
    %v4161 = vlaneseq
    %v4162 = vshrl.u32 %v4161, 7
    %v4163 = vsub.s32 3, %v4162
    %v4164 = vrot.slane %v3897, %v4163
    %v4165 = vlaneseq
    %v4166 = vshrl.u32 %v4165, 7
    %v4167 = vsub.s32 4, %v4166
    %v4168 = vrot.slane %v3897, %v4167
    %v4169 = vlaneseq
    %v4170 = vshrl.u32 %v4169, 7
    %v4171 = vsub.s32 5, %v4170
    %v4172 = vrot.slane %v3897, %v4171
    %v4173 = vlaneseq
    %v4174 = vshrl.u32 %v4173, 7
    %v4175 = vsub.s32 6, %v4174
    %v4176 = vrot.slane %v3897, %v4175
    %v4177 = vlaneseq
    %v4178 = vshrl.u32 %v4177, 7
    %v4179 = vsub.s32 7, %v4178
    %v4180 = vrot.slane %v3897, %v4179
    %v4181 = vlaneseq
    %v4182 = vshrl.u32 %v4181, 7
    %v4183 = vsub.s32 0, %v4182
    %v4184 = vrot.slane %v3898, %v4183
    %v4185 = vlaneseq
    %v4186 = vshrl.u32 %v4185, 7
    %v4187 = vsub.s32 1, %v4186
    %v4188 = vrot.slane %v3898, %v4187
    %v4189 = vlaneseq
    %v4190 = vshrl.u32 %v4189, 7
    %v4191 = vsub.s32 2, %v4190
    %v4192 = vrot.slane %v3898, %v4191
    %v4193 = vlaneseq
    %v4194 = vshrl.u32 %v4193, 7
    %v4195 = vsub.s32 3, %v4194
    %v4196 = vrot.slane %v3898, %v4195
    %v4197 = vlaneseq
    %v4198 = vshrl.u32 %v4197, 7
    %v4199 = vsub.s32 4, %v4198
    %v4200 = vrot.slane %v3898, %v4199
    %v4201 = vlaneseq
    %v4202 = vshrl.u32 %v4201, 7
    %v4203 = vsub.s32 5, %v4202
    %v4204 = vrot.slane %v3898, %v4203
    %v4205 = vlaneseq
    %v4206 = vshrl.u32 %v4205, 7
    %v4207 = vsub.s32 6, %v4206
    %v4208 = vrot.slane %v3898, %v4207
    %v4209 = vlaneseq
    %v4210 = vshrl.u32 %v4209, 7
    %v4211 = vsub.s32 7, %v4210
    %v4212 = vrot.slane %v3898, %v4211
    %v4213 = vlaneseq
    %v4214 = vshrl.u32 %v4213, 7
    %v4215 = vsub.s32 0, %v4214
    %v4216 = vrot.slane %v3899, %v4215
    %v4217 = vlaneseq
    %v4218 = vshrl.u32 %v4217, 7
    %v4219 = vsub.s32 1, %v4218
    %v4220 = vrot.slane %v3899, %v4219
    %v4221 = vlaneseq
    %v4222 = vshrl.u32 %v4221, 7
    %v4223 = vsub.s32 2, %v4222
    %v4224 = vrot.slane %v3899, %v4223
    %v4225 = vlaneseq
    %v4226 = vshrl.u32 %v4225, 7
    %v4227 = vsub.s32 3, %v4226
    %v4228 = vrot.slane %v3899, %v4227
    %v4229 = vlaneseq
    %v4230 = vshrl.u32 %v4229, 7
    %v4231 = vsub.s32 4, %v4230
    %v4232 = vrot.slane %v3899, %v4231
    %v4233 = vlaneseq
    %v4234 = vshrl.u32 %v4233, 7
    %v4235 = vsub.s32 5, %v4234
    %v4236 = vrot.slane %v3899, %v4235
    %v4237 = vlaneseq
    %v4238 = vshrl.u32 %v4237, 7
    %v4239 = vsub.s32 6, %v4238
    %v4240 = vrot.slane %v3899, %v4239
    %v4241 = vlaneseq
    %v4242 = vshrl.u32 %v4241, 7
    %v4243 = vsub.s32 7, %v4242
    %v4244 = vrot.slane %v3899, %v4243
    %v4245 = vlaneseq
    %v4246 = vshrl.u32 %v4245, 7
    %v4247 = vsub.s32 0, %v4246
    %v4248 = vrot.slane %v3900, %v4247
    %v4249 = vlaneseq
    %v4250 = vshrl.u32 %v4249, 7
    %v4251 = vsub.s32 1, %v4250
    %v4252 = vrot.slane %v3900, %v4251
    %v4253 = vlaneseq
    %v4254 = vshrl.u32 %v4253, 7
    %v4255 = vsub.s32 2, %v4254
    %v4256 = vrot.slane %v3900, %v4255
    %v4257 = vlaneseq
    %v4258 = vshrl.u32 %v4257, 7
    %v4259 = vsub.s32 3, %v4258
    %v4260 = vrot.slane %v3900, %v4259
    %v4261 = vlaneseq
    %v4262 = vshrl.u32 %v4261, 7
    %v4263 = vsub.s32 4, %v4262
    %v4264 = vrot.slane %v3900, %v4263
    %v4265 = vlaneseq
    %v4266 = vshrl.u32 %v4265, 7
    %v4267 = vsub.s32 5, %v4266
    %v4268 = vrot.slane %v3900, %v4267
    %v4269 = vlaneseq
    %v4270 = vshrl.u32 %v4269, 7
    %v4271 = vsub.s32 6, %v4270
    %v4272 = vrot.slane %v3900, %v4271
    %v4273 = vlaneseq
    %v4274 = vshrl.u32 %v4273, 7
    %v4275 = vsub.s32 7, %v4274
    %v4276 = vrot.slane %v3900, %v4275
    %v4277 = vlaneseq
    %v4278 = vshrl.u32 %v4277, 7
    %v4279 = vsub.s32 0, %v4278
    %v4280 = vrot.slane %v3901, %v4279
    %v4281 = vlaneseq
    %v4282 = vshrl.u32 %v4281, 7
    %v4283 = vsub.s32 1, %v4282
    %v4284 = vrot.slane %v3901, %v4283
    %v4285 = vlaneseq
    %v4286 = vshrl.u32 %v4285, 7
    %v4287 = vsub.s32 2, %v4286
    %v4288 = vrot.slane %v3901, %v4287
    %v4289 = vlaneseq
    %v4290 = vshrl.u32 %v4289, 7
    %v4291 = vsub.s32 3, %v4290
    %v4292 = vrot.slane %v3901, %v4291
    %v4293 = vlaneseq
    %v4294 = vshrl.u32 %v4293, 7
    %v4295 = vsub.s32 4, %v4294
    %v4296 = vrot.slane %v3901, %v4295
    %v4297 = vlaneseq
    %v4298 = vshrl.u32 %v4297, 7
    %v4299 = vsub.s32 5, %v4298
    %v4300 = vrot.slane %v3901, %v4299
    %v4301 = vlaneseq
    %v4302 = vshrl.u32 %v4301, 7
    %v4303 = vsub.s32 6, %v4302
    %v4304 = vrot.slane %v3901, %v4303
    %v4305 = vlaneseq
    %v4306 = vshrl.u32 %v4305, 7
    %v4307 = vsub.s32 7, %v4306
    %v4308 = vrot.slane %v3901, %v4307
    %v4309 = vlaneseq
    %v4310 = vshrl.u32 %v4309, 7
    %v4311 = vsub.s32 0, %v4310
    %v4312 = vrot.slane %v3902, %v4311
    %v4313 = vlaneseq
    %v4314 = vshrl.u32 %v4313, 7
    %v4315 = vsub.s32 1, %v4314
    %v4316 = vrot.slane %v3902, %v4315
    %v4317 = vlaneseq
    %v4318 = vshrl.u32 %v4317, 7
    %v4319 = vsub.s32 2, %v4318
    %v4320 = vrot.slane %v3902, %v4319
    %v4321 = vlaneseq
    %v4322 = vshrl.u32 %v4321, 7
    %v4323 = vsub.s32 3, %v4322
    %v4324 = vrot.slane %v3902, %v4323
    %v4325 = vlaneseq
    %v4326 = vshrl.u32 %v4325, 7
    %v4327 = vsub.s32 4, %v4326
    %v4328 = vrot.slane %v3902, %v4327
    %v4329 = vlaneseq
    %v4330 = vshrl.u32 %v4329, 7
    %v4331 = vsub.s32 5, %v4330
    %v4332 = vrot.slane %v3902, %v4331
    %v4333 = vlaneseq
    %v4334 = vshrl.u32 %v4333, 7
    %v4335 = vsub.s32 6, %v4334
    %v4336 = vrot.slane %v3902, %v4335
    %v4337 = vlaneseq
    %v4338 = vshrl.u32 %v4337, 7
    %v4339 = vsub.s32 7, %v4338
    %v4340 = vrot.slane %v3902, %v4339
    %v4341 = vlaneseq
    %v4342 = vshrl.u32 %v4341, 7
    %v4343 = vsub.s32 0, %v4342
    %v4344 = vrot.slane %v3903, %v4343
    %v4345 = vlaneseq
    %v4346 = vshrl.u32 %v4345, 7
    %v4347 = vsub.s32 1, %v4346
    %v4348 = vrot.slane %v3903, %v4347
    %v4349 = vlaneseq
    %v4350 = vshrl.u32 %v4349, 7
    %v4351 = vsub.s32 2, %v4350
    %v4352 = vrot.slane %v3903, %v4351
    %v4353 = vlaneseq
    %v4354 = vshrl.u32 %v4353, 7
    %v4355 = vsub.s32 3, %v4354
    %v4356 = vrot.slane %v3903, %v4355
    %v4357 = vlaneseq
    %v4358 = vshrl.u32 %v4357, 7
    %v4359 = vsub.s32 4, %v4358
    %v4360 = vrot.slane %v3903, %v4359
    %v4361 = vlaneseq
    %v4362 = vshrl.u32 %v4361, 7
    %v4363 = vsub.s32 5, %v4362
    %v4364 = vrot.slane %v3903, %v4363
    %v4365 = vlaneseq
    %v4366 = vshrl.u32 %v4365, 7
    %v4367 = vsub.s32 6, %v4366
    %v4368 = vrot.slane %v3903, %v4367
    %v4369 = vlaneseq
    %v4370 = vshrl.u32 %v4369, 7
    %v4371 = vsub.s32 7, %v4370
    %v4372 = vrot.slane %v3903, %v4371
    %v4373 = vlaneseq
    %v4374 = vshrl.u32 %v4373, 7
    %v4375 = vsub.s32 0, %v4374
    %v4376 = vrot.slane %v3904, %v4375
    %v4377 = vlaneseq
    %v4378 = vshrl.u32 %v4377, 7
    %v4379 = vsub.s32 1, %v4378
    %v4380 = vrot.slane %v3904, %v4379
    %v4381 = vlaneseq
    %v4382 = vshrl.u32 %v4381, 7
    %v4383 = vsub.s32 2, %v4382
    %v4384 = vrot.slane %v3904, %v4383
    %v4385 = vlaneseq
    %v4386 = vshrl.u32 %v4385, 7
    %v4387 = vsub.s32 3, %v4386
    %v4388 = vrot.slane %v3904, %v4387
    %v4389 = vlaneseq
    %v4390 = vshrl.u32 %v4389, 7
    %v4391 = vsub.s32 4, %v4390
    %v4392 = vrot.slane %v3904, %v4391
    %v4393 = vlaneseq
    %v4394 = vshrl.u32 %v4393, 7
    %v4395 = vsub.s32 5, %v4394
    %v4396 = vrot.slane %v3904, %v4395
    %v4397 = vlaneseq
    %v4398 = vshrl.u32 %v4397, 7
    %v4399 = vsub.s32 6, %v4398
    %v4400 = vrot.slane %v3904, %v4399
    %v4401 = vlaneseq
    %v4402 = vshrl.u32 %v4401, 7
    %v4403 = vsub.s32 7, %v4402
    %v4404 = vrot.slane %v3904, %v4403
    %v4405 = vlaneseq
    %v4406 = vshrl.u32 %v4405, 7
    %v4407 = vsub.s32 0, %v4406
    %v4408 = vrot.slane %v3905, %v4407
    %v4409 = vlaneseq
    %v4410 = vshrl.u32 %v4409, 7
    %v4411 = vsub.s32 1, %v4410
    %v4412 = vrot.slane %v3905, %v4411
    %v4413 = vlaneseq
    %v4414 = vshrl.u32 %v4413, 7
    %v4415 = vsub.s32 2, %v4414
    %v4416 = vrot.slane %v3905, %v4415
    %v4417 = vlaneseq
    %v4418 = vshrl.u32 %v4417, 7
    %v4419 = vsub.s32 3, %v4418
    %v4420 = vrot.slane %v3905, %v4419
    %v4421 = vlaneseq
    %v4422 = vshrl.u32 %v4421, 7
    %v4423 = vsub.s32 4, %v4422
    %v4424 = vrot.slane %v3905, %v4423
    %v4425 = vlaneseq
    %v4426 = vshrl.u32 %v4425, 7
    %v4427 = vsub.s32 5, %v4426
    %v4428 = vrot.slane %v3905, %v4427
    %v4429 = vlaneseq
    %v4430 = vshrl.u32 %v4429, 7
    %v4431 = vsub.s32 6, %v4430
    %v4432 = vrot.slane %v3905, %v4431
    %v4433 = vlaneseq
    %v4434 = vshrl.u32 %v4433, 7
    %v4435 = vsub.s32 7, %v4434
    %v4436 = vrot.slane %v3905, %v4435
    %v4437 = vlaneseq
    %v4438 = vshrl.u32 %v4437, 7
    %v4439 = vsub.s32 0, %v4438
    %v4440 = vrot.slane %v3906, %v4439
    %v4441 = vlaneseq
    %v4442 = vshrl.u32 %v4441, 7
    %v4443 = vsub.s32 1, %v4442
    %v4444 = vrot.slane %v3906, %v4443
    %v4445 = vlaneseq
    %v4446 = vshrl.u32 %v4445, 7
    %v4447 = vsub.s32 2, %v4446
    %v4448 = vrot.slane %v3906, %v4447
    %v4449 = vlaneseq
    %v4450 = vshrl.u32 %v4449, 7
    %v4451 = vsub.s32 3, %v4450
    %v4452 = vrot.slane %v3906, %v4451
    %v4453 = vlaneseq
    %v4454 = vshrl.u32 %v4453, 7
    %v4455 = vsub.s32 4, %v4454
    %v4456 = vrot.slane %v3906, %v4455
    %v4457 = vlaneseq
    %v4458 = vshrl.u32 %v4457, 7
    %v4459 = vsub.s32 5, %v4458
    %v4460 = vrot.slane %v3906, %v4459
    %v4461 = vlaneseq
    %v4462 = vshrl.u32 %v4461, 7
    %v4463 = vsub.s32 6, %v4462
    %v4464 = vrot.slane %v3906, %v4463
    %v4465 = vlaneseq
    %v4466 = vshrl.u32 %v4465, 7
    %v4467 = vsub.s32 7, %v4466
    %v4468 = vrot.slane %v3906, %v4467
    %v4469 = vlaneseq
    %v4470 = vshrl.u32 %v4469, 7
    %v4471 = vsub.s32 0, %v4470
    %v4472 = vrot.slane %v3907, %v4471
    %v4473 = vlaneseq
    %v4474 = vshrl.u32 %v4473, 7
    %v4475 = vsub.s32 1, %v4474
    %v4476 = vrot.slane %v3907, %v4475
    %v4477 = vlaneseq
    %v4478 = vshrl.u32 %v4477, 7
    %v4479 = vsub.s32 2, %v4478
    %v4480 = vrot.slane %v3907, %v4479
    %v4481 = vlaneseq
    %v4482 = vshrl.u32 %v4481, 7
    %v4483 = vsub.s32 3, %v4482
    %v4484 = vrot.slane %v3907, %v4483
    %v4485 = vlaneseq
    %v4486 = vshrl.u32 %v4485, 7
    %v4487 = vsub.s32 4, %v4486
    %v4488 = vrot.slane %v3907, %v4487
    %v4489 = vlaneseq
    %v4490 = vshrl.u32 %v4489, 7
    %v4491 = vsub.s32 5, %v4490
    %v4492 = vrot.slane %v3907, %v4491
    %v4493 = vlaneseq
    %v4494 = vshrl.u32 %v4493, 7
    %v4495 = vsub.s32 6, %v4494
    %v4496 = vrot.slane %v3907, %v4495
    %v4497 = vlaneseq
    %v4498 = vshrl.u32 %v4497, 7
    %v4499 = vsub.s32 7, %v4498
    %v4500 = vrot.slane %v3907, %v4499
    %v4501 = vlaneseq
    %v4502 = vshrl.u32 %v4501, 7
    %v4503 = vsub.s32 0, %v4502
    %v4504 = vrot.slane %v3908, %v4503
    %v4505 = vlaneseq
    %v4506 = vshrl.u32 %v4505, 7
    %v4507 = vsub.s32 1, %v4506
    %v4508 = vrot.slane %v3908, %v4507
    %v4509 = vlaneseq
    %v4510 = vshrl.u32 %v4509, 7
    %v4511 = vsub.s32 2, %v4510
    %v4512 = vrot.slane %v3908, %v4511
    %v4513 = vlaneseq
    %v4514 = vshrl.u32 %v4513, 7
    %v4515 = vsub.s32 3, %v4514
    %v4516 = vrot.slane %v3908, %v4515
    %v4517 = vlaneseq
    %v4518 = vshrl.u32 %v4517, 7
    %v4519 = vsub.s32 4, %v4518
    %v4520 = vrot.slane %v3908, %v4519
    %v4521 = vlaneseq
    %v4522 = vshrl.u32 %v4521, 7
    %v4523 = vsub.s32 5, %v4522
    %v4524 = vrot.slane %v3908, %v4523
    %v4525 = vlaneseq
    %v4526 = vshrl.u32 %v4525, 7
    %v4527 = vsub.s32 6, %v4526
    %v4528 = vrot.slane %v3908, %v4527
    %v4529 = vlaneseq
    %v4530 = vshrl.u32 %v4529, 7
    %v4531 = vsub.s32 7, %v4530
    %v4532 = vrot.slane %v3908, %v4531
    %v4533 = vlaneseq
    %v4534 = vshrl.u32 %v4533, 7
    %v4535 = vsub.s32 0, %v4534
    %v4536 = vrot.slane %v3909, %v4535
    %v4537 = vlaneseq
    %v4538 = vshrl.u32 %v4537, 7
    %v4539 = vsub.s32 1, %v4538
    %v4540 = vrot.slane %v3909, %v4539
    %v4541 = vlaneseq
    %v4542 = vshrl.u32 %v4541, 7
    %v4543 = vsub.s32 2, %v4542
    %v4544 = vrot.slane %v3909, %v4543
    %v4545 = vlaneseq
    %v4546 = vshrl.u32 %v4545, 7
    %v4547 = vsub.s32 3, %v4546
    %v4548 = vrot.slane %v3909, %v4547
    %v4549 = vlaneseq
    %v4550 = vshrl.u32 %v4549, 7
    %v4551 = vsub.s32 4, %v4550
    %v4552 = vrot.slane %v3909, %v4551
    %v4553 = vlaneseq
    %v4554 = vshrl.u32 %v4553, 7
    %v4555 = vsub.s32 5, %v4554
    %v4556 = vrot.slane %v3909, %v4555
    %v4557 = vlaneseq
    %v4558 = vshrl.u32 %v4557, 7
    %v4559 = vsub.s32 6, %v4558
    %v4560 = vrot.slane %v3909, %v4559
    %v4561 = vlaneseq
    %v4562 = vshrl.u32 %v4561, 7
    %v4563 = vsub.s32 7, %v4562
    %v4564 = vrot.slane %v3909, %v4563
    %v4565 = vlaneseq
    %v4566 = vshrl.u32 %v4565, 7
    %v4567 = vsub.s32 0, %v4566
    %v4568 = vrot.slane %v3910, %v4567
    %v4569 = vlaneseq
    %v4570 = vshrl.u32 %v4569, 7
    %v4571 = vsub.s32 1, %v4570
    %v4572 = vrot.slane %v3910, %v4571
    %v4573 = vlaneseq
    %v4574 = vshrl.u32 %v4573, 7
    %v4575 = vsub.s32 2, %v4574
    %v4576 = vrot.slane %v3910, %v4575
    %v4577 = vlaneseq
    %v4578 = vshrl.u32 %v4577, 7
    %v4579 = vsub.s32 3, %v4578
    %v4580 = vrot.slane %v3910, %v4579
    %v4581 = vlaneseq
    %v4582 = vshrl.u32 %v4581, 7
    %v4583 = vsub.s32 4, %v4582
    %v4584 = vrot.slane %v3910, %v4583
    %v4585 = vlaneseq
    %v4586 = vshrl.u32 %v4585, 7
    %v4587 = vsub.s32 5, %v4586
    %v4588 = vrot.slane %v3910, %v4587
    %v4589 = vlaneseq
    %v4590 = vshrl.u32 %v4589, 7
    %v4591 = vsub.s32 6, %v4590
    %v4592 = vrot.slane %v3910, %v4591
    %v4593 = vlaneseq
    %v4594 = vshrl.u32 %v4593, 7
    %v4595 = vsub.s32 7, %v4594
    %v4596 = vrot.slane %v3910, %v4595
    %v4597 = vlaneseq
    %v4598 = vshrl.u32 %v4597, 7
    %v4599 = vsub.s32 0, %v4598
    %v4600 = vrot.slane %v3911, %v4599
    %v4601 = vlaneseq
    %v4602 = vshrl.u32 %v4601, 7
    %v4603 = vsub.s32 1, %v4602
    %v4604 = vrot.slane %v3911, %v4603
    %v4605 = vlaneseq
    %v4606 = vshrl.u32 %v4605, 7
    %v4607 = vsub.s32 2, %v4606
    %v4608 = vrot.slane %v3911, %v4607
    %v4609 = vlaneseq
    %v4610 = vshrl.u32 %v4609, 7
    %v4611 = vsub.s32 3, %v4610
    %v4612 = vrot.slane %v3911, %v4611
    %v4613 = vlaneseq
    %v4614 = vshrl.u32 %v4613, 7
    %v4615 = vsub.s32 4, %v4614
    %v4616 = vrot.slane %v3911, %v4615
    %v4617 = vlaneseq
    %v4618 = vshrl.u32 %v4617, 7
    %v4619 = vsub.s32 5, %v4618
    %v4620 = vrot.slane %v3911, %v4619
    %v4621 = vlaneseq
    %v4622 = vshrl.u32 %v4621, 7
    %v4623 = vsub.s32 6, %v4622
    %v4624 = vrot.slane %v3911, %v4623
    %v4625 = vlaneseq
    %v4626 = vshrl.u32 %v4625, 7
    %v4627 = vsub.s32 7, %v4626
    %v4628 = vrot.slane %v3911, %v4627
    %v4629 = vlaneseq
    %v4630 = vshrl.u32 %v4629, 7
    %v4631 = vsub.s32 0, %v4630
    %v4632 = vrot.slane %v3912, %v4631
    %v4633 = vlaneseq
    %v4634 = vshrl.u32 %v4633, 7
    %v4635 = vsub.s32 1, %v4634
    %v4636 = vrot.slane %v3912, %v4635
    %v4637 = vlaneseq
    %v4638 = vshrl.u32 %v4637, 7
    %v4639 = vsub.s32 2, %v4638
    %v4640 = vrot.slane %v3912, %v4639
    %v4641 = vlaneseq
    %v4642 = vshrl.u32 %v4641, 7
    %v4643 = vsub.s32 3, %v4642
    %v4644 = vrot.slane %v3912, %v4643
    %v4645 = vlaneseq
    %v4646 = vshrl.u32 %v4645, 7
    %v4647 = vsub.s32 4, %v4646
    %v4648 = vrot.slane %v3912, %v4647
    %v4649 = vlaneseq
    %v4650 = vshrl.u32 %v4649, 7
    %v4651 = vsub.s32 5, %v4650
    %v4652 = vrot.slane %v3912, %v4651
    %v4653 = vlaneseq
    %v4654 = vshrl.u32 %v4653, 7
    %v4655 = vsub.s32 6, %v4654
    %v4656 = vrot.slane %v3912, %v4655
    %v4657 = vlaneseq
    %v4658 = vshrl.u32 %v4657, 7
    %v4659 = vsub.s32 7, %v4658
    %v4660 = vrot.slane %v3912, %v4659
    %v4661 = vlaneseq
    %v4662 = vshrl.u32 %v4661, 7
    %v4663 = vsub.s32 0, %v4662
    %v4664 = vrot.slane %v3913, %v4663
    %v4665 = vlaneseq
    %v4666 = vshrl.u32 %v4665, 7
    %v4667 = vsub.s32 1, %v4666
    %v4668 = vrot.slane %v3913, %v4667
    %v4669 = vlaneseq
    %v4670 = vshrl.u32 %v4669, 7
    %v4671 = vsub.s32 2, %v4670
    %v4672 = vrot.slane %v3913, %v4671
    %v4673 = vlaneseq
    %v4674 = vshrl.u32 %v4673, 7
    %v4675 = vsub.s32 3, %v4674
    %v4676 = vrot.slane %v3913, %v4675
    %v4677 = vlaneseq
    %v4678 = vshrl.u32 %v4677, 7
    %v4679 = vsub.s32 4, %v4678
    %v4680 = vrot.slane %v3913, %v4679
    %v4681 = vlaneseq
    %v4682 = vshrl.u32 %v4681, 7
    %v4683 = vsub.s32 5, %v4682
    %v4684 = vrot.slane %v3913, %v4683
    %v4685 = vlaneseq
    %v4686 = vshrl.u32 %v4685, 7
    %v4687 = vsub.s32 6, %v4686
    %v4688 = vrot.slane %v3913, %v4687
    %v4689 = vlaneseq
    %v4690 = vshrl.u32 %v4689, 7
    %v4691 = vsub.s32 7, %v4690
    %v4692 = vrot.slane %v3913, %v4691
    %v4693 = vlaneseq
    %v4694 = vshrl.u32 %v4693, 7
    %v4695 = vsub.s32 0, %v4694
    %v4696 = vrot.slane %v3914, %v4695
    %v4697 = vlaneseq
    %v4698 = vshrl.u32 %v4697, 7
    %v4699 = vsub.s32 1, %v4698
    %v4700 = vrot.slane %v3914, %v4699
    %v4701 = vlaneseq
    %v4702 = vshrl.u32 %v4701, 7
    %v4703 = vsub.s32 2, %v4702
    %v4704 = vrot.slane %v3914, %v4703
    %v4705 = vlaneseq
    %v4706 = vshrl.u32 %v4705, 7
    %v4707 = vsub.s32 3, %v4706
    %v4708 = vrot.slane %v3914, %v4707
    %v4709 = vlaneseq
    %v4710 = vshrl.u32 %v4709, 7
    %v4711 = vsub.s32 4, %v4710
    %v4712 = vrot.slane %v3914, %v4711
    %v4713 = vlaneseq
    %v4714 = vshrl.u32 %v4713, 7
    %v4715 = vsub.s32 5, %v4714
    %v4716 = vrot.slane %v3914, %v4715
    %v4717 = vlaneseq
    %v4718 = vshrl.u32 %v4717, 7
    %v4719 = vsub.s32 6, %v4718
    %v4720 = vrot.slane %v3914, %v4719
    %v4721 = vlaneseq
    %v4722 = vshrl.u32 %v4721, 7
    %v4723 = vsub.s32 7, %v4722
    %v4724 = vrot.slane %v3914, %v4723
    %v4725 = vlaneseq
    %v4726 = vshrl.u32 %v4725, 7
    %v4727 = vsub.s32 0, %v4726
    %v4728 = vrot.slane %v3915, %v4727
    %v4729 = vlaneseq
    %v4730 = vshrl.u32 %v4729, 7
    %v4731 = vsub.s32 1, %v4730
    %v4732 = vrot.slane %v3915, %v4731
    %v4733 = vlaneseq
    %v4734 = vshrl.u32 %v4733, 7
    %v4735 = vsub.s32 2, %v4734
    %v4736 = vrot.slane %v3915, %v4735
    %v4737 = vlaneseq
    %v4738 = vshrl.u32 %v4737, 7
    %v4739 = vsub.s32 3, %v4738
    %v4740 = vrot.slane %v3915, %v4739
    %v4741 = vlaneseq
    %v4742 = vshrl.u32 %v4741, 7
    %v4743 = vsub.s32 4, %v4742
    %v4744 = vrot.slane %v3915, %v4743
    %v4745 = vlaneseq
    %v4746 = vshrl.u32 %v4745, 7
    %v4747 = vsub.s32 5, %v4746
    %v4748 = vrot.slane %v3915, %v4747
    %v4749 = vlaneseq
    %v4750 = vshrl.u32 %v4749, 7
    %v4751 = vsub.s32 6, %v4750
    %v4752 = vrot.slane %v3915, %v4751
    %v4753 = vlaneseq
    %v4754 = vshrl.u32 %v4753, 7
    %v4755 = vsub.s32 7, %v4754
    %v4756 = vrot.slane %v3915, %v4755
    %v4757 = vlaneseq
    %v4758 = vshrl.u32 %v4757, 7
    %v4759 = vsub.s32 0, %v4758
    %v4760 = vrot.slane %v3916, %v4759
    %v4761 = vlaneseq
    %v4762 = vshrl.u32 %v4761, 7
    %v4763 = vsub.s32 1, %v4762
    %v4764 = vrot.slane %v3916, %v4763
    %v4765 = vlaneseq
    %v4766 = vshrl.u32 %v4765, 7
    %v4767 = vsub.s32 2, %v4766
    %v4768 = vrot.slane %v3916, %v4767
    %v4769 = vlaneseq
    %v4770 = vshrl.u32 %v4769, 7
    %v4771 = vsub.s32 3, %v4770
    %v4772 = vrot.slane %v3916, %v4771
    %v4773 = vlaneseq
    %v4774 = vshrl.u32 %v4773, 7
    %v4775 = vsub.s32 4, %v4774
    %v4776 = vrot.slane %v3916, %v4775
    %v4777 = vlaneseq
    %v4778 = vshrl.u32 %v4777, 7
    %v4779 = vsub.s32 5, %v4778
    %v4780 = vrot.slane %v3916, %v4779
    %v4781 = vlaneseq
    %v4782 = vshrl.u32 %v4781, 7
    %v4783 = vsub.s32 6, %v4782
    %v4784 = vrot.slane %v3916, %v4783
    %v4785 = vlaneseq
    %v4786 = vshrl.u32 %v4785, 7
    %v4787 = vsub.s32 7, %v4786
    %v4788 = vrot.slane %v3916, %v4787
    %v4789 = vlaneseq
    %v4790 = vshrl.u32 %v4789, 7
    %v4791 = vsub.s32 0, %v4790
    %v4792 = vrot.slane %v3917, %v4791
    %v4793 = vlaneseq
    %v4794 = vshrl.u32 %v4793, 7
    %v4795 = vsub.s32 1, %v4794
    %v4796 = vrot.slane %v3917, %v4795
    %v4797 = vlaneseq
    %v4798 = vshrl.u32 %v4797, 7
    %v4799 = vsub.s32 2, %v4798
    %v4800 = vrot.slane %v3917, %v4799
    %v4801 = vlaneseq
    %v4802 = vshrl.u32 %v4801, 7
    %v4803 = vsub.s32 3, %v4802
    %v4804 = vrot.slane %v3917, %v4803
    %v4805 = vlaneseq
    %v4806 = vshrl.u32 %v4805, 7
    %v4807 = vsub.s32 4, %v4806
    %v4808 = vrot.slane %v3917, %v4807
    %v4809 = vlaneseq
    %v4810 = vshrl.u32 %v4809, 7
    %v4811 = vsub.s32 5, %v4810
    %v4812 = vrot.slane %v3917, %v4811
    %v4813 = vlaneseq
    %v4814 = vshrl.u32 %v4813, 7
    %v4815 = vsub.s32 6, %v4814
    %v4816 = vrot.slane %v3917, %v4815
    %v4817 = vlaneseq
    %v4818 = vshrl.u32 %v4817, 7
    %v4819 = vsub.s32 7, %v4818
    %v4820 = vrot.slane %v3917, %v4819
    %v4821 = vlaneseq
    %v4822 = vshrl.u32 %v4821, 7
    %v4823 = vsub.s32 0, %v4822
    %v4824 = vrot.slane %v3918, %v4823
    %v4825 = vlaneseq
    %v4826 = vshrl.u32 %v4825, 7
    %v4827 = vsub.s32 1, %v4826
    %v4828 = vrot.slane %v3918, %v4827
    %v4829 = vlaneseq
    %v4830 = vshrl.u32 %v4829, 7
    %v4831 = vsub.s32 2, %v4830
    %v4832 = vrot.slane %v3918, %v4831
    %v4833 = vlaneseq
    %v4834 = vshrl.u32 %v4833, 7
    %v4835 = vsub.s32 3, %v4834
    %v4836 = vrot.slane %v3918, %v4835
    %v4837 = vlaneseq
    %v4838 = vshrl.u32 %v4837, 7
    %v4839 = vsub.s32 4, %v4838
    %v4840 = vrot.slane %v3918, %v4839
    %v4841 = vlaneseq
    %v4842 = vshrl.u32 %v4841, 7
    %v4843 = vsub.s32 5, %v4842
    %v4844 = vrot.slane %v3918, %v4843
    %v4845 = vlaneseq
    %v4846 = vshrl.u32 %v4845, 7
    %v4847 = vsub.s32 6, %v4846
    %v4848 = vrot.slane %v3918, %v4847
    %v4849 = vlaneseq
    %v4850 = vshrl.u32 %v4849, 7
    %v4851 = vsub.s32 7, %v4850
    %v4852 = vrot.slane %v3918, %v4851
    %v4853 = vlaneseq
    %v4854 = vshrl.u32 %v4853, 7
    %v4855 = vsub.s32 0, %v4854
    %v4856 = vrot.slane %v3919, %v4855
    %v4857 = vlaneseq
    %v4858 = vshrl.u32 %v4857, 7
    %v4859 = vsub.s32 1, %v4858
    %v4860 = vrot.slane %v3919, %v4859
    %v4861 = vlaneseq
    %v4862 = vshrl.u32 %v4861, 7
    %v4863 = vsub.s32 2, %v4862
    %v4864 = vrot.slane %v3919, %v4863
    %v4865 = vlaneseq
    %v4866 = vshrl.u32 %v4865, 7
    %v4867 = vsub.s32 3, %v4866
    %v4868 = vrot.slane %v3919, %v4867
    %v4869 = vlaneseq
    %v4870 = vshrl.u32 %v4869, 7
    %v4871 = vsub.s32 4, %v4870
    %v4872 = vrot.slane %v3919, %v4871
    %v4873 = vlaneseq
    %v4874 = vshrl.u32 %v4873, 7
    %v4875 = vsub.s32 5, %v4874
    %v4876 = vrot.slane %v3919, %v4875
    %v4877 = vlaneseq
    %v4878 = vshrl.u32 %v4877, 7
    %v4879 = vsub.s32 6, %v4878
    %v4880 = vrot.slane %v3919, %v4879
    %v4881 = vlaneseq
    %v4882 = vshrl.u32 %v4881, 7
    %v4883 = vsub.s32 7, %v4882
    %v4884 = vrot.slane %v3919, %v4883
    %v4885 = vlaneseq
    %v4886 = vshrl.u32 %v4885, 7
    %v4887 = vsub.s32 0, %v4886
    %v4888 = vrot.slane %v3920, %v4887
    %v4889 = vlaneseq
    %v4890 = vshrl.u32 %v4889, 7
    %v4891 = vsub.s32 1, %v4890
    %v4892 = vrot.slane %v3920, %v4891
    %v4893 = vlaneseq
    %v4894 = vshrl.u32 %v4893, 7
    %v4895 = vsub.s32 2, %v4894
    %v4896 = vrot.slane %v3920, %v4895
    %v4897 = vlaneseq
    %v4898 = vshrl.u32 %v4897, 7
    %v4899 = vsub.s32 3, %v4898
    %v4900 = vrot.slane %v3920, %v4899
    %v4901 = vlaneseq
    %v4902 = vshrl.u32 %v4901, 7
    %v4903 = vsub.s32 4, %v4902
    %v4904 = vrot.slane %v3920, %v4903
    %v4905 = vlaneseq
    %v4906 = vshrl.u32 %v4905, 7
    %v4907 = vsub.s32 5, %v4906
    %v4908 = vrot.slane %v3920, %v4907
    %v4909 = vlaneseq
    %v4910 = vshrl.u32 %v4909, 7
    %v4911 = vsub.s32 6, %v4910
    %v4912 = vrot.slane %v3920, %v4911
    %v4913 = vlaneseq
    %v4914 = vshrl.u32 %v4913, 7
    %v4915 = vsub.s32 7, %v4914
    %v4916 = vrot.slane %v3920, %v4915
    %v4917 = vlaneseq
    %v4918 = vshrl.u32 %v4917, 7
    %v4919 = vsub.s32 0, %v4918
    %v4920 = vrot.slane %v3921, %v4919
    %v4921 = vlaneseq
    %v4922 = vshrl.u32 %v4921, 7
    %v4923 = vsub.s32 1, %v4922
    %v4924 = vrot.slane %v3921, %v4923
    %v4925 = vlaneseq
    %v4926 = vshrl.u32 %v4925, 7
    %v4927 = vsub.s32 2, %v4926
    %v4928 = vrot.slane %v3921, %v4927
    %v4929 = vlaneseq
    %v4930 = vshrl.u32 %v4929, 7
    %v4931 = vsub.s32 3, %v4930
    %v4932 = vrot.slane %v3921, %v4931
    %v4933 = vlaneseq
    %v4934 = vshrl.u32 %v4933, 7
    %v4935 = vsub.s32 4, %v4934
    %v4936 = vrot.slane %v3921, %v4935
    %v4937 = vlaneseq
    %v4938 = vshrl.u32 %v4937, 7
    %v4939 = vsub.s32 5, %v4938
    %v4940 = vrot.slane %v3921, %v4939
    %v4941 = vlaneseq
    %v4942 = vshrl.u32 %v4941, 7
    %v4943 = vsub.s32 6, %v4942
    %v4944 = vrot.slane %v3921, %v4943
    %v4945 = vlaneseq
    %v4946 = vshrl.u32 %v4945, 7
    %v4947 = vsub.s32 7, %v4946
    %v4948 = vrot.slane %v3921, %v4947
    %v4949 = vlaneseq
    %v4950 = vshrl.u32 %v4949, 7
    %v4951 = vsub.s32 0, %v4950
    %v4952 = vrot.slane %v3922, %v4951
    %v4953 = vlaneseq
    %v4954 = vshrl.u32 %v4953, 7
    %v4955 = vsub.s32 1, %v4954
    %v4956 = vrot.slane %v3922, %v4955
    %v4957 = vlaneseq
    %v4958 = vshrl.u32 %v4957, 7
    %v4959 = vsub.s32 2, %v4958
    %v4960 = vrot.slane %v3922, %v4959
    %v4961 = vlaneseq
    %v4962 = vshrl.u32 %v4961, 7
    %v4963 = vsub.s32 3, %v4962
    %v4964 = vrot.slane %v3922, %v4963
    %v4965 = vlaneseq
    %v4966 = vshrl.u32 %v4965, 7
    %v4967 = vsub.s32 4, %v4966
    %v4968 = vrot.slane %v3922, %v4967
    %v4969 = vlaneseq
    %v4970 = vshrl.u32 %v4969, 7
    %v4971 = vsub.s32 5, %v4970
    %v4972 = vrot.slane %v3922, %v4971
    %v4973 = vlaneseq
    %v4974 = vshrl.u32 %v4973, 7
    %v4975 = vsub.s32 6, %v4974
    %v4976 = vrot.slane %v3922, %v4975
    %v4977 = vlaneseq
    %v4978 = vshrl.u32 %v4977, 7
    %v4979 = vsub.s32 7, %v4978
    %v4980 = vrot.slane %v3922, %v4979
    %v4981 = vlaneseq
    %v4982 = vshrl.u32 %v4981, 7
    %v4983 = vsub.s32 0, %v4982
    %v4984 = vrot.slane %v3923, %v4983
    %v4985 = vlaneseq
    %v4986 = vshrl.u32 %v4985, 7
    %v4987 = vsub.s32 1, %v4986
    %v4988 = vrot.slane %v3923, %v4987
    %v4989 = vlaneseq
    %v4990 = vshrl.u32 %v4989, 7
    %v4991 = vsub.s32 2, %v4990
    %v4992 = vrot.slane %v3923, %v4991
    %v4993 = vlaneseq
    %v4994 = vshrl.u32 %v4993, 7
    %v4995 = vsub.s32 3, %v4994
    %v4996 = vrot.slane %v3923, %v4995
    %v4997 = vlaneseq
    %v4998 = vshrl.u32 %v4997, 7
    %v4999 = vsub.s32 4, %v4998
    %v5000 = vrot.slane %v3923, %v4999
    %v5001 = vlaneseq
    %v5002 = vshrl.u32 %v5001, 7
    %v5003 = vsub.s32 5, %v5002
    %v5004 = vrot.slane %v3923, %v5003
    %v5005 = vlaneseq
    %v5006 = vshrl.u32 %v5005, 7
    %v5007 = vsub.s32 6, %v5006
    %v5008 = vrot.slane %v3923, %v5007
    %v5009 = vlaneseq
    %v5010 = vshrl.u32 %v5009, 7
    %v5011 = vsub.s32 7, %v5010
    %v5012 = vrot.slane %v3923, %v5011
    %v5013 = vlaneseq
    %v5014 = vshrl.u32 %v5013, 7
    %v5015 = vsub.s32 0, %v5014
    %v5016 = vrot.slane %v3924, %v5015
    %v5017 = vlaneseq
    %v5018 = vshrl.u32 %v5017, 7
    %v5019 = vsub.s32 1, %v5018
    %v5020 = vrot.slane %v3924, %v5019
    %v5021 = vlaneseq
    %v5022 = vshrl.u32 %v5021, 7
    %v5023 = vsub.s32 2, %v5022
    %v5024 = vrot.slane %v3924, %v5023
    %v5025 = vlaneseq
    %v5026 = vshrl.u32 %v5025, 7
    %v5027 = vsub.s32 3, %v5026
    %v5028 = vrot.slane %v3924, %v5027
    %v5029 = vlaneseq
    %v5030 = vshrl.u32 %v5029, 7
    %v5031 = vsub.s32 4, %v5030
    %v5032 = vrot.slane %v3924, %v5031
    %v5033 = vlaneseq
    %v5034 = vshrl.u32 %v5033, 7
    %v5035 = vsub.s32 5, %v5034
    %v5036 = vrot.slane %v3924, %v5035
    %v5037 = vlaneseq
    %v5038 = vshrl.u32 %v5037, 7
    %v5039 = vsub.s32 6, %v5038
    %v5040 = vrot.slane %v3924, %v5039
    %v5041 = vlaneseq
    %v5042 = vshrl.u32 %v5041, 7
    %v5043 = vsub.s32 7, %v5042
    %v5044 = vrot.slane %v3924, %v5043
    %v5045 = vlaneseq
    %v5046 = vshrl.u32 %v5045, 7
    %v5047 = vsub.s32 0, %v5046
    %v5048 = vrot.slane %v3925, %v5047
    %v5049 = vlaneseq
    %v5050 = vshrl.u32 %v5049, 7
    %v5051 = vsub.s32 1, %v5050
    %v5052 = vrot.slane %v3925, %v5051
    %v5053 = vlaneseq
    %v5054 = vshrl.u32 %v5053, 7
    %v5055 = vsub.s32 2, %v5054
    %v5056 = vrot.slane %v3925, %v5055
    %v5057 = vlaneseq
    %v5058 = vshrl.u32 %v5057, 7
    %v5059 = vsub.s32 3, %v5058
    %v5060 = vrot.slane %v3925, %v5059
    %v5061 = vlaneseq
    %v5062 = vshrl.u32 %v5061, 7
    %v5063 = vsub.s32 4, %v5062
    %v5064 = vrot.slane %v3925, %v5063
    %v5065 = vlaneseq
    %v5066 = vshrl.u32 %v5065, 7
    %v5067 = vsub.s32 5, %v5066
    %v5068 = vrot.slane %v3925, %v5067
    %v5069 = vlaneseq
    %v5070 = vshrl.u32 %v5069, 7
    %v5071 = vsub.s32 6, %v5070
    %v5072 = vrot.slane %v3925, %v5071
    %v5073 = vlaneseq
    %v5074 = vshrl.u32 %v5073, 7
    %v5075 = vsub.s32 7, %v5074
    %v5076 = vrot.slane %v3925, %v5075
    %v5077 = vlaneseq
    %v5078 = vshrl.u32 %v5077, 7
    %v5079 = vsub.s32 0, %v5078
    %v5080 = vrot.slane %v3926, %v5079
    %v5081 = vlaneseq
    %v5082 = vshrl.u32 %v5081, 7
    %v5083 = vsub.s32 1, %v5082
    %v5084 = vrot.slane %v3926, %v5083
    %v5085 = vlaneseq
    %v5086 = vshrl.u32 %v5085, 7
    %v5087 = vsub.s32 2, %v5086
    %v5088 = vrot.slane %v3926, %v5087
    %v5089 = vlaneseq
    %v5090 = vshrl.u32 %v5089, 7
    %v5091 = vsub.s32 3, %v5090
    %v5092 = vrot.slane %v3926, %v5091
    %v5093 = vlaneseq
    %v5094 = vshrl.u32 %v5093, 7
    %v5095 = vsub.s32 4, %v5094
    %v5096 = vrot.slane %v3926, %v5095
    %v5097 = vlaneseq
    %v5098 = vshrl.u32 %v5097, 7
    %v5099 = vsub.s32 5, %v5098
    %v5100 = vrot.slane %v3926, %v5099
    %v5101 = vlaneseq
    %v5102 = vshrl.u32 %v5101, 7
    %v5103 = vsub.s32 6, %v5102
    %v5104 = vrot.slane %v3926, %v5103
    %v5105 = vlaneseq
    %v5106 = vshrl.u32 %v5105, 7
    %v5107 = vsub.s32 7, %v5106
    %v5108 = vrot.slane %v3926, %v5107
    %v5109 = vlaneseq
    %v5110 = vshrl.u32 %v5109, 7
    %v5111 = vsub.s32 0, %v5110
    %v5112 = vrot.slane %v3927, %v5111
    %v5113 = vlaneseq
    %v5114 = vshrl.u32 %v5113, 7
    %v5115 = vsub.s32 1, %v5114
    %v5116 = vrot.slane %v3927, %v5115
    %v5117 = vlaneseq
    %v5118 = vshrl.u32 %v5117, 7
    %v5119 = vsub.s32 2, %v5118
    %v5120 = vrot.slane %v3927, %v5119
    %v5121 = vlaneseq
    %v5122 = vshrl.u32 %v5121, 7
    %v5123 = vsub.s32 3, %v5122
    %v5124 = vrot.slane %v3927, %v5123
    %v5125 = vlaneseq
    %v5126 = vshrl.u32 %v5125, 7
    %v5127 = vsub.s32 4, %v5126
    %v5128 = vrot.slane %v3927, %v5127
    %v5129 = vlaneseq
    %v5130 = vshrl.u32 %v5129, 7
    %v5131 = vsub.s32 5, %v5130
    %v5132 = vrot.slane %v3927, %v5131
    %v5133 = vlaneseq
    %v5134 = vshrl.u32 %v5133, 7
    %v5135 = vsub.s32 6, %v5134
    %v5136 = vrot.slane %v3927, %v5135
    %v5137 = vlaneseq
    %v5138 = vshrl.u32 %v5137, 7
    %v5139 = vsub.s32 7, %v5138
    %v5140 = vrot.slane %v3927, %v5139
    %v5141 = vlaneseq
    %v5142 = vshrl.u32 %v5141, 7
    %v5143 = vsub.s32 0, %v5142
    %v5144 = vrot.slane %v3928, %v5143
    %v5145 = vlaneseq
    %v5146 = vshrl.u32 %v5145, 7
    %v5147 = vsub.s32 1, %v5146
    %v5148 = vrot.slane %v3928, %v5147
    %v5149 = vlaneseq
    %v5150 = vshrl.u32 %v5149, 7
    %v5151 = vsub.s32 2, %v5150
    %v5152 = vrot.slane %v3928, %v5151
    %v5153 = vlaneseq
    %v5154 = vshrl.u32 %v5153, 7
    %v5155 = vsub.s32 3, %v5154
    %v5156 = vrot.slane %v3928, %v5155
    %v5157 = vlaneseq
    %v5158 = vshrl.u32 %v5157, 7
    %v5159 = vsub.s32 4, %v5158
    %v5160 = vrot.slane %v3928, %v5159
    %v5161 = vlaneseq
    %v5162 = vshrl.u32 %v5161, 7
    %v5163 = vsub.s32 5, %v5162
    %v5164 = vrot.slane %v3928, %v5163
    %v5165 = vlaneseq
    %v5166 = vshrl.u32 %v5165, 7
    %v5167 = vsub.s32 6, %v5166
    %v5168 = vrot.slane %v3928, %v5167
    %v5169 = vlaneseq
    %v5170 = vshrl.u32 %v5169, 7
    %v5171 = vsub.s32 7, %v5170
    %v5172 = vrot.slane %v3928, %v5171
    %v5173 = vlaneseq
    %v5174 = vshrl.u32 %v5173, 7
    %v5175 = vsub.s32 0, %v5174
    %v5176 = vrot.slane %v3929, %v5175
    %v5177 = vlaneseq
    %v5178 = vshrl.u32 %v5177, 7
    %v5179 = vsub.s32 1, %v5178
    %v5180 = vrot.slane %v3929, %v5179
    %v5181 = vlaneseq
    %v5182 = vshrl.u32 %v5181, 7
    %v5183 = vsub.s32 2, %v5182
    %v5184 = vrot.slane %v3929, %v5183
    %v5185 = vlaneseq
    %v5186 = vshrl.u32 %v5185, 7
    %v5187 = vsub.s32 3, %v5186
    %v5188 = vrot.slane %v3929, %v5187
    %v5189 = vlaneseq
    %v5190 = vshrl.u32 %v5189, 7
    %v5191 = vsub.s32 4, %v5190
    %v5192 = vrot.slane %v3929, %v5191
    %v5193 = vlaneseq
    %v5194 = vshrl.u32 %v5193, 7
    %v5195 = vsub.s32 5, %v5194
    %v5196 = vrot.slane %v3929, %v5195
    %v5197 = vlaneseq
    %v5198 = vshrl.u32 %v5197, 7
    %v5199 = vsub.s32 6, %v5198
    %v5200 = vrot.slane %v3929, %v5199
    %v5201 = vlaneseq
    %v5202 = vshrl.u32 %v5201, 7
    %v5203 = vsub.s32 7, %v5202
    %v5204 = vrot.slane %v3929, %v5203
    %v5205 = vlaneseq
    %v5206 = vshrl.u32 %v5205, 7
    %v5207 = vsub.s32 0, %v5206
    %v5208 = vrot.slane %v3930, %v5207
    %v5209 = vlaneseq
    %v5210 = vshrl.u32 %v5209, 7
    %v5211 = vsub.s32 1, %v5210
    %v5212 = vrot.slane %v3930, %v5211
    %v5213 = vlaneseq
    %v5214 = vshrl.u32 %v5213, 7
    %v5215 = vsub.s32 2, %v5214
    %v5216 = vrot.slane %v3930, %v5215
    %v5217 = vlaneseq
    %v5218 = vshrl.u32 %v5217, 7
    %v5219 = vsub.s32 3, %v5218
    %v5220 = vrot.slane %v3930, %v5219
    %v5221 = vlaneseq
    %v5222 = vshrl.u32 %v5221, 7
    %v5223 = vsub.s32 4, %v5222
    %v5224 = vrot.slane %v3930, %v5223
    %v5225 = vlaneseq
    %v5226 = vshrl.u32 %v5225, 7
    %v5227 = vsub.s32 5, %v5226
    %v5228 = vrot.slane %v3930, %v5227
    %v5229 = vlaneseq
    %v5230 = vshrl.u32 %v5229, 7
    %v5231 = vsub.s32 6, %v5230
    %v5232 = vrot.slane %v3930, %v5231
    %v5233 = vlaneseq
    %v5234 = vshrl.u32 %v5233, 7
    %v5235 = vsub.s32 7, %v5234
    %v5236 = vrot.slane %v3930, %v5235
    %v5237 = vlaneseq
    %v5238 = vshrl.u32 %v5237, 7
    %v5239 = vsub.s32 0, %v5238
    %v5240 = vrot.slane %v3931, %v5239
    %v5241 = vlaneseq
    %v5242 = vshrl.u32 %v5241, 7
    %v5243 = vsub.s32 1, %v5242
    %v5244 = vrot.slane %v3931, %v5243
    %v5245 = vlaneseq
    %v5246 = vshrl.u32 %v5245, 7
    %v5247 = vsub.s32 2, %v5246
    %v5248 = vrot.slane %v3931, %v5247
    %v5249 = vlaneseq
    %v5250 = vshrl.u32 %v5249, 7
    %v5251 = vsub.s32 3, %v5250
    %v5252 = vrot.slane %v3931, %v5251
    %v5253 = vlaneseq
    %v5254 = vshrl.u32 %v5253, 7
    %v5255 = vsub.s32 4, %v5254
    %v5256 = vrot.slane %v3931, %v5255
    %v5257 = vlaneseq
    %v5258 = vshrl.u32 %v5257, 7
    %v5259 = vsub.s32 5, %v5258
    %v5260 = vrot.slane %v3931, %v5259
    %v5261 = vlaneseq
    %v5262 = vshrl.u32 %v5261, 7
    %v5263 = vsub.s32 6, %v5262
    %v5264 = vrot.slane %v3931, %v5263
    %v5265 = vlaneseq
    %v5266 = vshrl.u32 %v5265, 7
    %v5267 = vsub.s32 7, %v5266
    %v5268 = vrot.slane %v3931, %v5267
    %v5269 = vlaneseq
    %v5270 = vshrl.u32 %v5269, 7
    %v5271 = vsub.s32 0, %v5270
    %v5272 = vrot.slane %v3932, %v5271
    %v5273 = vlaneseq
    %v5274 = vshrl.u32 %v5273, 7
    %v5275 = vsub.s32 1, %v5274
    %v5276 = vrot.slane %v3932, %v5275
    %v5277 = vlaneseq
    %v5278 = vshrl.u32 %v5277, 7
    %v5279 = vsub.s32 2, %v5278
    %v5280 = vrot.slane %v3932, %v5279
    %v5281 = vlaneseq
    %v5282 = vshrl.u32 %v5281, 7
    %v5283 = vsub.s32 3, %v5282
    %v5284 = vrot.slane %v3932, %v5283
    %v5285 = vlaneseq
    %v5286 = vshrl.u32 %v5285, 7
    %v5287 = vsub.s32 4, %v5286
    %v5288 = vrot.slane %v3932, %v5287
    %v5289 = vlaneseq
    %v5290 = vshrl.u32 %v5289, 7
    %v5291 = vsub.s32 5, %v5290
    %v5292 = vrot.slane %v3932, %v5291
    %v5293 = vlaneseq
    %v5294 = vshrl.u32 %v5293, 7
    %v5295 = vsub.s32 6, %v5294
    %v5296 = vrot.slane %v3932, %v5295
    %v5297 = vlaneseq
    %v5298 = vshrl.u32 %v5297, 7
    %v5299 = vsub.s32 7, %v5298
    %v5300 = vrot.slane %v3932, %v5299
    %v5301 = vlaneseq
    %v5302 = vshrl.u32 %v5301, 7
    %v5303 = vsub.s32 0, %v5302
    %v5304 = vrot.slane %v3933, %v5303
    %v5305 = vlaneseq
    %v5306 = vshrl.u32 %v5305, 7
    %v5307 = vsub.s32 1, %v5306
    %v5308 = vrot.slane %v3933, %v5307
    %v5309 = vlaneseq
    %v5310 = vshrl.u32 %v5309, 7
    %v5311 = vsub.s32 2, %v5310
    %v5312 = vrot.slane %v3933, %v5311
    %v5313 = vlaneseq
    %v5314 = vshrl.u32 %v5313, 7
    %v5315 = vsub.s32 3, %v5314
    %v5316 = vrot.slane %v3933, %v5315
    %v5317 = vlaneseq
    %v5318 = vshrl.u32 %v5317, 7
    %v5319 = vsub.s32 4, %v5318
    %v5320 = vrot.slane %v3933, %v5319
    %v5321 = vlaneseq
    %v5322 = vshrl.u32 %v5321, 7
    %v5323 = vsub.s32 5, %v5322
    %v5324 = vrot.slane %v3933, %v5323
    %v5325 = vlaneseq
    %v5326 = vshrl.u32 %v5325, 7
    %v5327 = vsub.s32 6, %v5326
    %v5328 = vrot.slane %v3933, %v5327
    %v5329 = vlaneseq
    %v5330 = vshrl.u32 %v5329, 7
    %v5331 = vsub.s32 7, %v5330
    %v5332 = vrot.slane %v3933, %v5331
    %v5333 = vlaneseq
    %v5334 = vshrl.u32 %v5333, 7
    %v5335 = vsub.s32 0, %v5334
    %v5336 = vrot.slane %v3934, %v5335
    %v5337 = vlaneseq
    %v5338 = vshrl.u32 %v5337, 7
    %v5339 = vsub.s32 1, %v5338
    %v5340 = vrot.slane %v3934, %v5339
    %v5341 = vlaneseq
    %v5342 = vshrl.u32 %v5341, 7
    %v5343 = vsub.s32 2, %v5342
    %v5344 = vrot.slane %v3934, %v5343
    %v5345 = vlaneseq
    %v5346 = vshrl.u32 %v5345, 7
    %v5347 = vsub.s32 3, %v5346
    %v5348 = vrot.slane %v3934, %v5347
    %v5349 = vlaneseq
    %v5350 = vshrl.u32 %v5349, 7
    %v5351 = vsub.s32 4, %v5350
    %v5352 = vrot.slane %v3934, %v5351
    %v5353 = vlaneseq
    %v5354 = vshrl.u32 %v5353, 7
    %v5355 = vsub.s32 5, %v5354
    %v5356 = vrot.slane %v3934, %v5355
    %v5357 = vlaneseq
    %v5358 = vshrl.u32 %v5357, 7
    %v5359 = vsub.s32 6, %v5358
    %v5360 = vrot.slane %v3934, %v5359
    %v5361 = vlaneseq
    %v5362 = vshrl.u32 %v5361, 7
    %v5363 = vsub.s32 7, %v5362
    %v5364 = vrot.slane %v3934, %v5363
    %v5365 = vlaneseq
    %v5366 = vshrl.u32 %v5365, 7
    %v5367 = vsub.s32 0, %v5366
    %v5368 = vrot.slane %v3935, %v5367
    %v5369 = vlaneseq
    %v5370 = vshrl.u32 %v5369, 7
    %v5371 = vsub.s32 1, %v5370
    %v5372 = vrot.slane %v3935, %v5371
    %v5373 = vlaneseq
    %v5374 = vshrl.u32 %v5373, 7
    %v5375 = vsub.s32 2, %v5374
    %v5376 = vrot.slane %v3935, %v5375
    %v5377 = vlaneseq
    %v5378 = vshrl.u32 %v5377, 7
    %v5379 = vsub.s32 3, %v5378
    %v5380 = vrot.slane %v3935, %v5379
    %v5381 = vlaneseq
    %v5382 = vshrl.u32 %v5381, 7
    %v5383 = vsub.s32 4, %v5382
    %v5384 = vrot.slane %v3935, %v5383
    %v5385 = vlaneseq
    %v5386 = vshrl.u32 %v5385, 7
    %v5387 = vsub.s32 5, %v5386
    %v5388 = vrot.slane %v3935, %v5387
    %v5389 = vlaneseq
    %v5390 = vshrl.u32 %v5389, 7
    %v5391 = vsub.s32 6, %v5390
    %v5392 = vrot.slane %v3935, %v5391
    %v5393 = vlaneseq
    %v5394 = vshrl.u32 %v5393, 7
    %v5395 = vsub.s32 7, %v5394
    %v5396 = vrot.slane %v3935, %v5395
    %v5397 = vlaneseq
    %v5398 = vshrl.u32 %v5397, 7
    %v5399 = vsub.s32 0, %v5398
    %v5400 = vrot.slane %v3936, %v5399
    %v5401 = vlaneseq
    %v5402 = vshrl.u32 %v5401, 7
    %v5403 = vsub.s32 1, %v5402
    %v5404 = vrot.slane %v3936, %v5403
    %v5405 = vlaneseq
    %v5406 = vshrl.u32 %v5405, 7
    %v5407 = vsub.s32 2, %v5406
    %v5408 = vrot.slane %v3936, %v5407
    %v5409 = vlaneseq
    %v5410 = vshrl.u32 %v5409, 7
    %v5411 = vsub.s32 3, %v5410
    %v5412 = vrot.slane %v3936, %v5411
    %v5413 = vlaneseq
    %v5414 = vshrl.u32 %v5413, 7
    %v5415 = vsub.s32 4, %v5414
    %v5416 = vrot.slane %v3936, %v5415
    %v5417 = vlaneseq
    %v5418 = vshrl.u32 %v5417, 7
    %v5419 = vsub.s32 5, %v5418
    %v5420 = vrot.slane %v3936, %v5419
    %v5421 = vlaneseq
    %v5422 = vshrl.u32 %v5421, 7
    %v5423 = vsub.s32 6, %v5422
    %v5424 = vrot.slane %v3936, %v5423
    %v5425 = vlaneseq
    %v5426 = vshrl.u32 %v5425, 7
    %v5427 = vsub.s32 7, %v5426
    %v5428 = vrot.slane %v3936, %v5427
    %v5429 = vlaneseq
    %v5430 = vshrl.u32 %v5429, 7
    %v5431 = vsub.s32 0, %v5430
    %v5432 = vrot.slane %v3937, %v5431
    %v5433 = vlaneseq
    %v5434 = vshrl.u32 %v5433, 7
    %v5435 = vsub.s32 1, %v5434
    %v5436 = vrot.slane %v3937, %v5435
    %v5437 = vlaneseq
    %v5438 = vshrl.u32 %v5437, 7
    %v5439 = vsub.s32 2, %v5438
    %v5440 = vrot.slane %v3937, %v5439
    %v5441 = vlaneseq
    %v5442 = vshrl.u32 %v5441, 7
    %v5443 = vsub.s32 3, %v5442
    %v5444 = vrot.slane %v3937, %v5443
    %v5445 = vlaneseq
    %v5446 = vshrl.u32 %v5445, 7
    %v5447 = vsub.s32 4, %v5446
    %v5448 = vrot.slane %v3937, %v5447
    %v5449 = vlaneseq
    %v5450 = vshrl.u32 %v5449, 7
    %v5451 = vsub.s32 5, %v5450
    %v5452 = vrot.slane %v3937, %v5451
    %v5453 = vlaneseq
    %v5454 = vshrl.u32 %v5453, 7
    %v5455 = vsub.s32 6, %v5454
    %v5456 = vrot.slane %v3937, %v5455
    %v5457 = vlaneseq
    %v5458 = vshrl.u32 %v5457, 7
    %v5459 = vsub.s32 7, %v5458
    %v5460 = vrot.slane %v3937, %v5459
    %v5461 = vlaneseq
    %v5462 = vshrl.u32 %v5461, 7
    %v5463 = vsub.s32 0, %v5462
    %v5464 = vrot.slane %v3938, %v5463
    %v5465 = vlaneseq
    %v5466 = vshrl.u32 %v5465, 7
    %v5467 = vsub.s32 1, %v5466
    %v5468 = vrot.slane %v3938, %v5467
    %v5469 = vlaneseq
    %v5470 = vshrl.u32 %v5469, 7
    %v5471 = vsub.s32 2, %v5470
    %v5472 = vrot.slane %v3938, %v5471
    %v5473 = vlaneseq
    %v5474 = vshrl.u32 %v5473, 7
    %v5475 = vsub.s32 3, %v5474
    %v5476 = vrot.slane %v3938, %v5475
    %v5477 = vlaneseq
    %v5478 = vshrl.u32 %v5477, 7
    %v5479 = vsub.s32 4, %v5478
    %v5480 = vrot.slane %v3938, %v5479
    %v5481 = vlaneseq
    %v5482 = vshrl.u32 %v5481, 7
    %v5483 = vsub.s32 5, %v5482
    %v5484 = vrot.slane %v3938, %v5483
    %v5485 = vlaneseq
    %v5486 = vshrl.u32 %v5485, 7
    %v5487 = vsub.s32 6, %v5486
    %v5488 = vrot.slane %v3938, %v5487
    %v5489 = vlaneseq
    %v5490 = vshrl.u32 %v5489, 7
    %v5491 = vsub.s32 7, %v5490
    %v5492 = vrot.slane %v3938, %v5491
    %v5493 = vlaneseq
    %v5494 = vshrl.u32 %v5493, 7
    %v5495 = vsub.s32 0, %v5494
    %v5496 = vrot.slane %v3939, %v5495
    %v5497 = vlaneseq
    %v5498 = vshrl.u32 %v5497, 7
    %v5499 = vsub.s32 1, %v5498
    %v5500 = vrot.slane %v3939, %v5499
    %v5501 = vlaneseq
    %v5502 = vshrl.u32 %v5501, 7
    %v5503 = vsub.s32 2, %v5502
    %v5504 = vrot.slane %v3939, %v5503
    %v5505 = vlaneseq
    %v5506 = vshrl.u32 %v5505, 7
    %v5507 = vsub.s32 3, %v5506
    %v5508 = vrot.slane %v3939, %v5507
    %v5509 = vlaneseq
    %v5510 = vshrl.u32 %v5509, 7
    %v5511 = vsub.s32 4, %v5510
    %v5512 = vrot.slane %v3939, %v5511
    %v5513 = vlaneseq
    %v5514 = vshrl.u32 %v5513, 7
    %v5515 = vsub.s32 5, %v5514
    %v5516 = vrot.slane %v3939, %v5515
    %v5517 = vlaneseq
    %v5518 = vshrl.u32 %v5517, 7
    %v5519 = vsub.s32 6, %v5518
    %v5520 = vrot.slane %v3939, %v5519
    %v5521 = vlaneseq
    %v5522 = vshrl.u32 %v5521, 7
    %v5523 = vsub.s32 7, %v5522
    %v5524 = vrot.slane %v3939, %v5523
    %v5525 = vlaneseq
    %v5526 = vshrl.u32 %v5525, 7
    %v5527 = vsub.s32 0, %v5526
    %v5528 = vrot.slane %v3940, %v5527
    %v5529 = vlaneseq
    %v5530 = vshrl.u32 %v5529, 7
    %v5531 = vsub.s32 1, %v5530
    %v5532 = vrot.slane %v3940, %v5531
    %v5533 = vlaneseq
    %v5534 = vshrl.u32 %v5533, 7
    %v5535 = vsub.s32 2, %v5534
    %v5536 = vrot.slane %v3940, %v5535
    %v5537 = vlaneseq
    %v5538 = vshrl.u32 %v5537, 7
    %v5539 = vsub.s32 3, %v5538
    %v5540 = vrot.slane %v3940, %v5539
    %v5541 = vlaneseq
    %v5542 = vshrl.u32 %v5541, 7
    %v5543 = vsub.s32 4, %v5542
    %v5544 = vrot.slane %v3940, %v5543
    %v5545 = vlaneseq
    %v5546 = vshrl.u32 %v5545, 7
    %v5547 = vsub.s32 5, %v5546
    %v5548 = vrot.slane %v3940, %v5547
    %v5549 = vlaneseq
    %v5550 = vshrl.u32 %v5549, 7
    %v5551 = vsub.s32 6, %v5550
    %v5552 = vrot.slane %v3940, %v5551
    %v5553 = vlaneseq
    %v5554 = vshrl.u32 %v5553, 7
    %v5555 = vsub.s32 7, %v5554
    %v5556 = vrot.slane %v3940, %v5555
    %v5557 = vlaneseq
    %v5558 = vshrl.u32 %v5557, 7
    %v5559 = vsub.s32 0, %v5558
    %v5560 = vrot.slane %v3941, %v5559
    %v5561 = vlaneseq
    %v5562 = vshrl.u32 %v5561, 7
    %v5563 = vsub.s32 1, %v5562
    %v5564 = vrot.slane %v3941, %v5563
    %v5565 = vlaneseq
    %v5566 = vshrl.u32 %v5565, 7
    %v5567 = vsub.s32 2, %v5566
    %v5568 = vrot.slane %v3941, %v5567
    %v5569 = vlaneseq
    %v5570 = vshrl.u32 %v5569, 7
    %v5571 = vsub.s32 3, %v5570
    %v5572 = vrot.slane %v3941, %v5571
    %v5573 = vlaneseq
    %v5574 = vshrl.u32 %v5573, 7
    %v5575 = vsub.s32 4, %v5574
    %v5576 = vrot.slane %v3941, %v5575
    %v5577 = vlaneseq
    %v5578 = vshrl.u32 %v5577, 7
    %v5579 = vsub.s32 5, %v5578
    %v5580 = vrot.slane %v3941, %v5579
    %v5581 = vlaneseq
    %v5582 = vshrl.u32 %v5581, 7
    %v5583 = vsub.s32 6, %v5582
    %v5584 = vrot.slane %v3941, %v5583
    %v5585 = vlaneseq
    %v5586 = vshrl.u32 %v5585, 7
    %v5587 = vsub.s32 7, %v5586
    %v5588 = vrot.slane %v3941, %v5587
    %v5589 = vlaneseq
    %v5590 = vshrl.u32 %v5589, 7
    %v5591 = vsub.s32 0, %v5590
    %v5592 = vrot.slane %v3942, %v5591
    %v5593 = vlaneseq
    %v5594 = vshrl.u32 %v5593, 7
    %v5595 = vsub.s32 1, %v5594
    %v5596 = vrot.slane %v3942, %v5595
    %v5597 = vlaneseq
    %v5598 = vshrl.u32 %v5597, 7
    %v5599 = vsub.s32 2, %v5598
    %v5600 = vrot.slane %v3942, %v5599
    %v5601 = vlaneseq
    %v5602 = vshrl.u32 %v5601, 7
    %v5603 = vsub.s32 3, %v5602
    %v5604 = vrot.slane %v3942, %v5603
    %v5605 = vlaneseq
    %v5606 = vshrl.u32 %v5605, 7
    %v5607 = vsub.s32 4, %v5606
    %v5608 = vrot.slane %v3942, %v5607
    %v5609 = vlaneseq
    %v5610 = vshrl.u32 %v5609, 7
    %v5611 = vsub.s32 5, %v5610
    %v5612 = vrot.slane %v3942, %v5611
    %v5613 = vlaneseq
    %v5614 = vshrl.u32 %v5613, 7
    %v5615 = vsub.s32 6, %v5614
    %v5616 = vrot.slane %v3942, %v5615
    %v5617 = vlaneseq
    %v5618 = vshrl.u32 %v5617, 7
    %v5619 = vsub.s32 7, %v5618
    %v5620 = vrot.slane %v3942, %v5619
    %v5621 = vlaneseq
    %v5622 = vshrl.u32 %v5621, 7
    %v5623 = vsub.s32 0, %v5622
    %v5624 = vrot.slane %v3943, %v5623
    %v5625 = vlaneseq
    %v5626 = vshrl.u32 %v5625, 7
    %v5627 = vsub.s32 1, %v5626
    %v5628 = vrot.slane %v3943, %v5627
    %v5629 = vlaneseq
    %v5630 = vshrl.u32 %v5629, 7
    %v5631 = vsub.s32 2, %v5630
    %v5632 = vrot.slane %v3943, %v5631
    %v5633 = vlaneseq
    %v5634 = vshrl.u32 %v5633, 7
    %v5635 = vsub.s32 3, %v5634
    %v5636 = vrot.slane %v3943, %v5635
    %v5637 = vlaneseq
    %v5638 = vshrl.u32 %v5637, 7
    %v5639 = vsub.s32 4, %v5638
    %v5640 = vrot.slane %v3943, %v5639
    %v5641 = vlaneseq
    %v5642 = vshrl.u32 %v5641, 7
    %v5643 = vsub.s32 5, %v5642
    %v5644 = vrot.slane %v3943, %v5643
    %v5645 = vlaneseq
    %v5646 = vshrl.u32 %v5645, 7
    %v5647 = vsub.s32 6, %v5646
    %v5648 = vrot.slane %v3943, %v5647
    %v5649 = vlaneseq
    %v5650 = vshrl.u32 %v5649, 7
    %v5651 = vsub.s32 7, %v5650
    %v5652 = vrot.slane %v3943, %v5651
    %v5653 = vlaneseq
    %v5654 = vshrl.u32 %v5653, 7
    %v5655 = vsub.s32 0, %v5654
    %v5656 = vrot.slane %v3944, %v5655
    %v5657 = vlaneseq
    %v5658 = vshrl.u32 %v5657, 7
    %v5659 = vsub.s32 1, %v5658
    %v5660 = vrot.slane %v3944, %v5659
    %v5661 = vlaneseq
    %v5662 = vshrl.u32 %v5661, 7
    %v5663 = vsub.s32 2, %v5662
    %v5664 = vrot.slane %v3944, %v5663
    %v5665 = vlaneseq
    %v5666 = vshrl.u32 %v5665, 7
    %v5667 = vsub.s32 3, %v5666
    %v5668 = vrot.slane %v3944, %v5667
    %v5669 = vlaneseq
    %v5670 = vshrl.u32 %v5669, 7
    %v5671 = vsub.s32 4, %v5670
    %v5672 = vrot.slane %v3944, %v5671
    %v5673 = vlaneseq
    %v5674 = vshrl.u32 %v5673, 7
    %v5675 = vsub.s32 5, %v5674
    %v5676 = vrot.slane %v3944, %v5675
    %v5677 = vlaneseq
    %v5678 = vshrl.u32 %v5677, 7
    %v5679 = vsub.s32 6, %v5678
    %v5680 = vrot.slane %v3944, %v5679
    %v5681 = vlaneseq
    %v5682 = vshrl.u32 %v5681, 7
    %v5683 = vsub.s32 7, %v5682
    %v5684 = vrot.slane %v3944, %v5683
    %v5685 = vlaneseq
    %v5686 = vshrl.u32 %v5685, 7
    %v5687 = vsub.s32 0, %v5686
    %v5688 = vrot.slane %v3945, %v5687
    %v5689 = vlaneseq
    %v5690 = vshrl.u32 %v5689, 7
    %v5691 = vsub.s32 1, %v5690
    %v5692 = vrot.slane %v3945, %v5691
    %v5693 = vlaneseq
    %v5694 = vshrl.u32 %v5693, 7
    %v5695 = vsub.s32 2, %v5694
    %v5696 = vrot.slane %v3945, %v5695
    %v5697 = vlaneseq
    %v5698 = vshrl.u32 %v5697, 7
    %v5699 = vsub.s32 3, %v5698
    %v5700 = vrot.slane %v3945, %v5699
    %v5701 = vlaneseq
    %v5702 = vshrl.u32 %v5701, 7
    %v5703 = vsub.s32 4, %v5702
    %v5704 = vrot.slane %v3945, %v5703
    %v5705 = vlaneseq
    %v5706 = vshrl.u32 %v5705, 7
    %v5707 = vsub.s32 5, %v5706
    %v5708 = vrot.slane %v3945, %v5707
    %v5709 = vlaneseq
    %v5710 = vshrl.u32 %v5709, 7
    %v5711 = vsub.s32 6, %v5710
    %v5712 = vrot.slane %v3945, %v5711
    %v5713 = vlaneseq
    %v5714 = vshrl.u32 %v5713, 7
    %v5715 = vsub.s32 7, %v5714
    %v5716 = vrot.slane %v3945, %v5715
    %v5717 = vlaneseq
    %v5718 = vshrl.u32 %v5717, 7
    %v5719 = vsub.s32 0, %v5718
    %v5720 = vrot.slane %v3946, %v5719
    %v5721 = vlaneseq
    %v5722 = vshrl.u32 %v5721, 7
    %v5723 = vsub.s32 1, %v5722
    %v5724 = vrot.slane %v3946, %v5723
    %v5725 = vlaneseq
    %v5726 = vshrl.u32 %v5725, 7
    %v5727 = vsub.s32 2, %v5726
    %v5728 = vrot.slane %v3946, %v5727
    %v5729 = vlaneseq
    %v5730 = vshrl.u32 %v5729, 7
    %v5731 = vsub.s32 3, %v5730
    %v5732 = vrot.slane %v3946, %v5731
    %v5733 = vlaneseq
    %v5734 = vshrl.u32 %v5733, 7
    %v5735 = vsub.s32 4, %v5734
    %v5736 = vrot.slane %v3946, %v5735
    %v5737 = vlaneseq
    %v5738 = vshrl.u32 %v5737, 7
    %v5739 = vsub.s32 5, %v5738
    %v5740 = vrot.slane %v3946, %v5739
    %v5741 = vlaneseq
    %v5742 = vshrl.u32 %v5741, 7
    %v5743 = vsub.s32 6, %v5742
    %v5744 = vrot.slane %v3946, %v5743
    %v5745 = vlaneseq
    %v5746 = vshrl.u32 %v5745, 7
    %v5747 = vsub.s32 7, %v5746
    %v5748 = vrot.slane %v3946, %v5747
    %v5749 = vlaneseq
    %v5750 = vshrl.u32 %v5749, 7
    %v5751 = vsub.s32 0, %v5750
    %v5752 = vrot.slane %v3947, %v5751
    %v5753 = vlaneseq
    %v5754 = vshrl.u32 %v5753, 7
    %v5755 = vsub.s32 1, %v5754
    %v5756 = vrot.slane %v3947, %v5755
    %v5757 = vlaneseq
    %v5758 = vshrl.u32 %v5757, 7
    %v5759 = vsub.s32 2, %v5758
    %v5760 = vrot.slane %v3947, %v5759
    %v5761 = vlaneseq
    %v5762 = vshrl.u32 %v5761, 7
    %v5763 = vsub.s32 3, %v5762
    %v5764 = vrot.slane %v3947, %v5763
    %v5765 = vlaneseq
    %v5766 = vshrl.u32 %v5765, 7
    %v5767 = vsub.s32 4, %v5766
    %v5768 = vrot.slane %v3947, %v5767
    %v5769 = vlaneseq
    %v5770 = vshrl.u32 %v5769, 7
    %v5771 = vsub.s32 5, %v5770
    %v5772 = vrot.slane %v3947, %v5771
    %v5773 = vlaneseq
    %v5774 = vshrl.u32 %v5773, 7
    %v5775 = vsub.s32 6, %v5774
    %v5776 = vrot.slane %v3947, %v5775
    %v5777 = vlaneseq
    %v5778 = vshrl.u32 %v5777, 7
    %v5779 = vsub.s32 7, %v5778
    %v5780 = vrot.slane %v3947, %v5779
    %v5781 = vlaneseq
    %v5782 = vshrl.u32 %v5781, 7
    %v5783 = vsub.s32 0, %v5782
    %v5784 = vrot.slane %v3948, %v5783
    %v5785 = vlaneseq
    %v5786 = vshrl.u32 %v5785, 7
    %v5787 = vsub.s32 1, %v5786
    %v5788 = vrot.slane %v3948, %v5787
    %v5789 = vlaneseq
    %v5790 = vshrl.u32 %v5789, 7
    %v5791 = vsub.s32 2, %v5790
    %v5792 = vrot.slane %v3948, %v5791
    %v5793 = vlaneseq
    %v5794 = vshrl.u32 %v5793, 7
    %v5795 = vsub.s32 3, %v5794
    %v5796 = vrot.slane %v3948, %v5795
    %v5797 = vlaneseq
    %v5798 = vshrl.u32 %v5797, 7
    %v5799 = vsub.s32 4, %v5798
    %v5800 = vrot.slane %v3948, %v5799
    %v5801 = vlaneseq
    %v5802 = vshrl.u32 %v5801, 7
    %v5803 = vsub.s32 5, %v5802
    %v5804 = vrot.slane %v3948, %v5803
    %v5805 = vlaneseq
    %v5806 = vshrl.u32 %v5805, 7
    %v5807 = vsub.s32 6, %v5806
    %v5808 = vrot.slane %v3948, %v5807
    %v5809 = vlaneseq
    %v5810 = vshrl.u32 %v5809, 7
    %v5811 = vsub.s32 7, %v5810
    %v5812 = vrot.slane %v3948, %v5811
    %v5813 = vlaneseq
    %v5814 = vshrl.u32 %v5813, 7
    %v5815 = vsub.s32 0, %v5814
    %v5816 = vrot.slane %v3949, %v5815
    %v5817 = vlaneseq
    %v5818 = vshrl.u32 %v5817, 7
    %v5819 = vsub.s32 1, %v5818
    %v5820 = vrot.slane %v3949, %v5819
    %v5821 = vlaneseq
    %v5822 = vshrl.u32 %v5821, 7
    %v5823 = vsub.s32 2, %v5822
    %v5824 = vrot.slane %v3949, %v5823
    %v5825 = vlaneseq
    %v5826 = vshrl.u32 %v5825, 7
    %v5827 = vsub.s32 3, %v5826
    %v5828 = vrot.slane %v3949, %v5827
    %v5829 = vlaneseq
    %v5830 = vshrl.u32 %v5829, 7
    %v5831 = vsub.s32 4, %v5830
    %v5832 = vrot.slane %v3949, %v5831
    %v5833 = vlaneseq
    %v5834 = vshrl.u32 %v5833, 7
    %v5835 = vsub.s32 5, %v5834
    %v5836 = vrot.slane %v3949, %v5835
    %v5837 = vlaneseq
    %v5838 = vshrl.u32 %v5837, 7
    %v5839 = vsub.s32 6, %v5838
    %v5840 = vrot.slane %v3949, %v5839
    %v5841 = vlaneseq
    %v5842 = vshrl.u32 %v5841, 7
    %v5843 = vsub.s32 7, %v5842
    %v5844 = vrot.slane %v3949, %v5843
    %v5845 = vlaneseq
    %v5846 = vshrl.u32 %v5845, 7
    %v5847 = vsub.s32 0, %v5846
    %v5848 = vrot.slane %v3950, %v5847
    %v5849 = vlaneseq
    %v5850 = vshrl.u32 %v5849, 7
    %v5851 = vsub.s32 1, %v5850
    %v5852 = vrot.slane %v3950, %v5851
    %v5853 = vlaneseq
    %v5854 = vshrl.u32 %v5853, 7
    %v5855 = vsub.s32 2, %v5854
    %v5856 = vrot.slane %v3950, %v5855
    %v5857 = vlaneseq
    %v5858 = vshrl.u32 %v5857, 7
    %v5859 = vsub.s32 3, %v5858
    %v5860 = vrot.slane %v3950, %v5859
    %v5861 = vlaneseq
    %v5862 = vshrl.u32 %v5861, 7
    %v5863 = vsub.s32 4, %v5862
    %v5864 = vrot.slane %v3950, %v5863
    %v5865 = vlaneseq
    %v5866 = vshrl.u32 %v5865, 7
    %v5867 = vsub.s32 5, %v5866
    %v5868 = vrot.slane %v3950, %v5867
    %v5869 = vlaneseq
    %v5870 = vshrl.u32 %v5869, 7
    %v5871 = vsub.s32 6, %v5870
    %v5872 = vrot.slane %v3950, %v5871
    %v5873 = vlaneseq
    %v5874 = vshrl.u32 %v5873, 7
    %v5875 = vsub.s32 7, %v5874
    %v5876 = vrot.slane %v3950, %v5875
    %v5877 = vlaneseq
    %v5878 = vshrl.u32 %v5877, 7
    %v5879 = vsub.s32 0, %v5878
    %v5880 = vrot.slane %v3951, %v5879
    %v5881 = vlaneseq
    %v5882 = vshrl.u32 %v5881, 7
    %v5883 = vsub.s32 1, %v5882
    %v5884 = vrot.slane %v3951, %v5883
    %v5885 = vlaneseq
    %v5886 = vshrl.u32 %v5885, 7
    %v5887 = vsub.s32 2, %v5886
    %v5888 = vrot.slane %v3951, %v5887
    %v5889 = vlaneseq
    %v5890 = vshrl.u32 %v5889, 7
    %v5891 = vsub.s32 3, %v5890
    %v5892 = vrot.slane %v3951, %v5891
    %v5893 = vlaneseq
    %v5894 = vshrl.u32 %v5893, 7
    %v5895 = vsub.s32 4, %v5894
    %v5896 = vrot.slane %v3951, %v5895
    %v5897 = vlaneseq
    %v5898 = vshrl.u32 %v5897, 7
    %v5899 = vsub.s32 5, %v5898
    %v5900 = vrot.slane %v3951, %v5899
    %v5901 = vlaneseq
    %v5902 = vshrl.u32 %v5901, 7
    %v5903 = vsub.s32 6, %v5902
    %v5904 = vrot.slane %v3951, %v5903
    %v5905 = vlaneseq
    %v5906 = vshrl.u32 %v5905, 7
    %v5907 = vsub.s32 7, %v5906
    %v5908 = vrot.slane %v3951, %v5907
    %v5909 = vlaneseq
    %v5910 = vshrl.u32 %v5909, 7
    %v5911 = vsub.s32 0, %v5910
    %v5912 = vrot.slane %v3952, %v5911
    %v5913 = vlaneseq
    %v5914 = vshrl.u32 %v5913, 7
    %v5915 = vsub.s32 1, %v5914
    %v5916 = vrot.slane %v3952, %v5915
    %v5917 = vlaneseq
    %v5918 = vshrl.u32 %v5917, 7
    %v5919 = vsub.s32 2, %v5918
    %v5920 = vrot.slane %v3952, %v5919
    %v5921 = vlaneseq
    %v5922 = vshrl.u32 %v5921, 7
    %v5923 = vsub.s32 3, %v5922
    %v5924 = vrot.slane %v3952, %v5923
    %v5925 = vlaneseq
    %v5926 = vshrl.u32 %v5925, 7
    %v5927 = vsub.s32 4, %v5926
    %v5928 = vrot.slane %v3952, %v5927
    %v5929 = vlaneseq
    %v5930 = vshrl.u32 %v5929, 7
    %v5931 = vsub.s32 5, %v5930
    %v5932 = vrot.slane %v3952, %v5931
    %v5933 = vlaneseq
    %v5934 = vshrl.u32 %v5933, 7
    %v5935 = vsub.s32 6, %v5934
    %v5936 = vrot.slane %v3952, %v5935
    %v5937 = vlaneseq
    %v5938 = vshrl.u32 %v5937, 7
    %v5939 = vsub.s32 7, %v5938
    %v5940 = vrot.slane %v3952, %v5939
    %v5941 = vlaneseq
    %v5942 = vshrl.u32 %v5941, 7
    %v5943 = vsub.s32 0, %v5942
    %v5944 = vrot.slane %v3953, %v5943
    %v5945 = vlaneseq
    %v5946 = vshrl.u32 %v5945, 7
    %v5947 = vsub.s32 1, %v5946
    %v5948 = vrot.slane %v3953, %v5947
    %v5949 = vlaneseq
    %v5950 = vshrl.u32 %v5949, 7
    %v5951 = vsub.s32 2, %v5950
    %v5952 = vrot.slane %v3953, %v5951
    %v5953 = vlaneseq
    %v5954 = vshrl.u32 %v5953, 7
    %v5955 = vsub.s32 3, %v5954
    %v5956 = vrot.slane %v3953, %v5955
    %v5957 = vlaneseq
    %v5958 = vshrl.u32 %v5957, 7
    %v5959 = vsub.s32 4, %v5958
    %v5960 = vrot.slane %v3953, %v5959
    %v5961 = vlaneseq
    %v5962 = vshrl.u32 %v5961, 7
    %v5963 = vsub.s32 5, %v5962
    %v5964 = vrot.slane %v3953, %v5963
    %v5965 = vlaneseq
    %v5966 = vshrl.u32 %v5965, 7
    %v5967 = vsub.s32 6, %v5966
    %v5968 = vrot.slane %v3953, %v5967
    %v5969 = vlaneseq
    %v5970 = vshrl.u32 %v5969, 7
    %v5971 = vsub.s32 7, %v5970
    %v5972 = vrot.slane %v3953, %v5971
    %v5973 = vlaneseq
    %v5974 = vshrl.u32 %v5973, 7
    %v5975 = vsub.s32 0, %v5974
    %v5976 = vrot.slane %v3954, %v5975
    %v5977 = vlaneseq
    %v5978 = vshrl.u32 %v5977, 7
    %v5979 = vsub.s32 1, %v5978
    %v5980 = vrot.slane %v3954, %v5979
    %v5981 = vlaneseq
    %v5982 = vshrl.u32 %v5981, 7
    %v5983 = vsub.s32 2, %v5982
    %v5984 = vrot.slane %v3954, %v5983
    %v5985 = vlaneseq
    %v5986 = vshrl.u32 %v5985, 7
    %v5987 = vsub.s32 3, %v5986
    %v5988 = vrot.slane %v3954, %v5987
    %v5989 = vlaneseq
    %v5990 = vshrl.u32 %v5989, 7
    %v5991 = vsub.s32 4, %v5990
    %v5992 = vrot.slane %v3954, %v5991
    %v5993 = vlaneseq
    %v5994 = vshrl.u32 %v5993, 7
    %v5995 = vsub.s32 5, %v5994
    %v5996 = vrot.slane %v3954, %v5995
    %v5997 = vlaneseq
    %v5998 = vshrl.u32 %v5997, 7
    %v5999 = vsub.s32 6, %v5998
    %v6000 = vrot.slane %v3954, %v5999
    %v6001 = vlaneseq
    %v6002 = vshrl.u32 %v6001, 7
    %v6003 = vsub.s32 7, %v6002
    %v6004 = vrot.slane %v3954, %v6003
    %v6005 = vlaneseq
    %v6006 = vshrl.u32 %v6005, 7
    %v6007 = vsub.s32 0, %v6006
    %v6008 = vrot.slane %v3955, %v6007
    %v6009 = vlaneseq
    %v6010 = vshrl.u32 %v6009, 7
    %v6011 = vsub.s32 1, %v6010
    %v6012 = vrot.slane %v3955, %v6011
    %v6013 = vlaneseq
    %v6014 = vshrl.u32 %v6013, 7
    %v6015 = vsub.s32 2, %v6014
    %v6016 = vrot.slane %v3955, %v6015
    %v6017 = vlaneseq
    %v6018 = vshrl.u32 %v6017, 7
    %v6019 = vsub.s32 3, %v6018
    %v6020 = vrot.slane %v3955, %v6019
    %v6021 = vlaneseq
    %v6022 = vshrl.u32 %v6021, 7
    %v6023 = vsub.s32 4, %v6022
    %v6024 = vrot.slane %v3955, %v6023
    %v6025 = vlaneseq
    %v6026 = vshrl.u32 %v6025, 7
    %v6027 = vsub.s32 5, %v6026
    %v6028 = vrot.slane %v3955, %v6027
    %v6029 = vlaneseq
    %v6030 = vshrl.u32 %v6029, 7
    %v6031 = vsub.s32 6, %v6030
    %v6032 = vrot.slane %v3955, %v6031
    %v6033 = vlaneseq
    %v6034 = vshrl.u32 %v6033, 7
    %v6035 = vsub.s32 7, %v6034
    %v6036 = vrot.slane %v3955, %v6035
    %v6037 = vlaneseq
    %v6038 = vshrl.u32 %v6037, 7
    %v6039 = vsub.s32 0, %v6038
    %v6040 = vrot.slane %v3956, %v6039
    %v6041 = vlaneseq
    %v6042 = vshrl.u32 %v6041, 7
    %v6043 = vsub.s32 1, %v6042
    %v6044 = vrot.slane %v3956, %v6043
    %v6045 = vlaneseq
    %v6046 = vshrl.u32 %v6045, 7
    %v6047 = vsub.s32 2, %v6046
    %v6048 = vrot.slane %v3956, %v6047
    %v6049 = vlaneseq
    %v6050 = vshrl.u32 %v6049, 7
    %v6051 = vsub.s32 3, %v6050
    %v6052 = vrot.slane %v3956, %v6051
    %v6053 = vlaneseq
    %v6054 = vshrl.u32 %v6053, 7
    %v6055 = vsub.s32 4, %v6054
    %v6056 = vrot.slane %v3956, %v6055
    %v6057 = vlaneseq
    %v6058 = vshrl.u32 %v6057, 7
    %v6059 = vsub.s32 5, %v6058
    %v6060 = vrot.slane %v3956, %v6059
    %v6061 = vlaneseq
    %v6062 = vshrl.u32 %v6061, 7
    %v6063 = vsub.s32 6, %v6062
    %v6064 = vrot.slane %v3956, %v6063
    %v6065 = vlaneseq
    %v6066 = vshrl.u32 %v6065, 7
    %v6067 = vsub.s32 7, %v6066
    %v6068 = vrot.slane %v3956, %v6067
    %v6069 = vcombine.low %v4024, %v4028
    %v6070 = vcombine.low %v4032, %v4036
    %v6071 = vcombine.low %v4040, %v4044
    %v6072 = vcombine.low %v4048, %v4052
    %v6074 = vunpack.c.l.s4 1966171168
    %v6075 = vunpack.c.0.s8 %v6074
    %v6076 = vlaneseq
    %v6077 = vshrl.u32 %v6076, 7
    %v6078 = vsub.s32 %v6075, %v6077
    %v6079 = vrot.slane %v6069, %v6078
    %v6081 = vunpack.c.l.s4 1966171168
    %v6082 = vunpack.c.0.s8 %v6081
    %v6083 = vlaneseq
    %v6084 = vshrl.u32 %v6083, 7
    %v6085 = vsub.s32 %v6082, %v6084
    %v6086 = vrot.slane %v6070, %v6085
    %v6088 = vunpack.c.l.s4 1966171168
    %v6089 = vunpack.c.0.s8 %v6088
    %v6090 = vlaneseq
    %v6091 = vshrl.u32 %v6090, 7
    %v6092 = vsub.s32 %v6089, %v6091
    %v6093 = vrot.slane %v6071, %v6092
    %v6095 = vunpack.c.l.s4 1966171168
    %v6096 = vunpack.c.0.s8 %v6095
    %v6097 = vlaneseq
    %v6098 = vshrl.u32 %v6097, 7
    %v6099 = vsub.s32 %v6096, %v6098
    %v6100 = vrot.slane %v6072, %v6099
    %v6101 = vcombine.low %v6079, %v6086
    %v6102 = vcombine.low %v6093, %v6100
    %v6104 = vunpack.c.l.s4 1966171168
    %v6105 = vunpack.c.0.s8 %v6104
    %v6106 = vlaneseq
    %v6107 = vshrl.u32 %v6106, 7
    %v6108 = vsub.s32 %v6105, %v6107
    %v6109 = vrot.slane %v6101, %v6108
    %v6111 = vunpack.c.l.s4 1966171168
    %v6112 = vunpack.c.0.s8 %v6111
    %v6113 = vlaneseq
    %v6114 = vshrl.u32 %v6113, 7
    %v6115 = vsub.s32 %v6112, %v6114
    %v6116 = vrot.slane %v6102, %v6115
    %v6117 = vcombine.low %v6109, %v6116
    %v6118 = vcombine.low %v4056, %v4060
    %v6119 = vcombine.low %v4064, %v4068
    %v6120 = vcombine.low %v4072, %v4076
    %v6121 = vcombine.low %v4080, %v4084
    %v6123 = vunpack.c.l.s4 1966171168
    %v6124 = vunpack.c.0.s8 %v6123
    %v6125 = vlaneseq
    %v6126 = vshrl.u32 %v6125, 7
    %v6127 = vsub.s32 %v6124, %v6126
    %v6128 = vrot.slane %v6118, %v6127
    %v6130 = vunpack.c.l.s4 1966171168
    %v6131 = vunpack.c.0.s8 %v6130
    %v6132 = vlaneseq
    %v6133 = vshrl.u32 %v6132, 7
    %v6134 = vsub.s32 %v6131, %v6133
    %v6135 = vrot.slane %v6119, %v6134
    %v6137 = vunpack.c.l.s4 1966171168
    %v6138 = vunpack.c.0.s8 %v6137
    %v6139 = vlaneseq
    %v6140 = vshrl.u32 %v6139, 7
    %v6141 = vsub.s32 %v6138, %v6140
    %v6142 = vrot.slane %v6120, %v6141
    %v6144 = vunpack.c.l.s4 1966171168
    %v6145 = vunpack.c.0.s8 %v6144
    %v6146 = vlaneseq
    %v6147 = vshrl.u32 %v6146, 7
    %v6148 = vsub.s32 %v6145, %v6147
    %v6149 = vrot.slane %v6121, %v6148
    %v6150 = vcombine.low %v6128, %v6135
    %v6151 = vcombine.low %v6142, %v6149
    %v6153 = vunpack.c.l.s4 1966171168
    %v6154 = vunpack.c.0.s8 %v6153
    %v6155 = vlaneseq
    %v6156 = vshrl.u32 %v6155, 7
    %v6157 = vsub.s32 %v6154, %v6156
    %v6158 = vrot.slane %v6150, %v6157
    %v6160 = vunpack.c.l.s4 1966171168
    %v6161 = vunpack.c.0.s8 %v6160
    %v6162 = vlaneseq
    %v6163 = vshrl.u32 %v6162, 7
    %v6164 = vsub.s32 %v6161, %v6163
    %v6165 = vrot.slane %v6151, %v6164
    %v6166 = vcombine.low %v6158, %v6165
    %v6167 = vcombine.low %v4088, %v4092
    %v6168 = vcombine.low %v4096, %v4100
    %v6169 = vcombine.low %v4104, %v4108
    %v6170 = vcombine.low %v4112, %v4116
    %v6172 = vunpack.c.l.s4 1966171168
    %v6173 = vunpack.c.0.s8 %v6172
    %v6174 = vlaneseq
    %v6175 = vshrl.u32 %v6174, 7
    %v6176 = vsub.s32 %v6173, %v6175
    %v6177 = vrot.slane %v6167, %v6176
    %v6179 = vunpack.c.l.s4 1966171168
    %v6180 = vunpack.c.0.s8 %v6179
    %v6181 = vlaneseq
    %v6182 = vshrl.u32 %v6181, 7
    %v6183 = vsub.s32 %v6180, %v6182
    %v6184 = vrot.slane %v6168, %v6183
    %v6186 = vunpack.c.l.s4 1966171168
    %v6187 = vunpack.c.0.s8 %v6186
    %v6188 = vlaneseq
    %v6189 = vshrl.u32 %v6188, 7
    %v6190 = vsub.s32 %v6187, %v6189
    %v6191 = vrot.slane %v6169, %v6190
    %v6193 = vunpack.c.l.s4 1966171168
    %v6194 = vunpack.c.0.s8 %v6193
    %v6195 = vlaneseq
    %v6196 = vshrl.u32 %v6195, 7
    %v6197 = vsub.s32 %v6194, %v6196
    %v6198 = vrot.slane %v6170, %v6197
    %v6199 = vcombine.low %v6177, %v6184
    %v6200 = vcombine.low %v6191, %v6198
    %v6202 = vunpack.c.l.s4 1966171168
    %v6203 = vunpack.c.0.s8 %v6202
    %v6204 = vlaneseq
    %v6205 = vshrl.u32 %v6204, 7
    %v6206 = vsub.s32 %v6203, %v6205
    %v6207 = vrot.slane %v6199, %v6206
    %v6209 = vunpack.c.l.s4 1966171168
    %v6210 = vunpack.c.0.s8 %v6209
    %v6211 = vlaneseq
    %v6212 = vshrl.u32 %v6211, 7
    %v6213 = vsub.s32 %v6210, %v6212
    %v6214 = vrot.slane %v6200, %v6213
    %v6215 = vcombine.low %v6207, %v6214
    %v6216 = vcombine.low %v4120, %v4124
    %v6217 = vcombine.low %v4128, %v4132
    %v6218 = vcombine.low %v4136, %v4140
    %v6219 = vcombine.low %v4144, %v4148
    %v6221 = vunpack.c.l.s4 1966171168
    %v6222 = vunpack.c.0.s8 %v6221
    %v6223 = vlaneseq
    %v6224 = vshrl.u32 %v6223, 7
    %v6225 = vsub.s32 %v6222, %v6224
    %v6226 = vrot.slane %v6216, %v6225
    %v6228 = vunpack.c.l.s4 1966171168
    %v6229 = vunpack.c.0.s8 %v6228
    %v6230 = vlaneseq
    %v6231 = vshrl.u32 %v6230, 7
    %v6232 = vsub.s32 %v6229, %v6231
    %v6233 = vrot.slane %v6217, %v6232
    %v6235 = vunpack.c.l.s4 1966171168
    %v6236 = vunpack.c.0.s8 %v6235
    %v6237 = vlaneseq
    %v6238 = vshrl.u32 %v6237, 7
    %v6239 = vsub.s32 %v6236, %v6238
    %v6240 = vrot.slane %v6218, %v6239
    %v6242 = vunpack.c.l.s4 1966171168
    %v6243 = vunpack.c.0.s8 %v6242
    %v6244 = vlaneseq
    %v6245 = vshrl.u32 %v6244, 7
    %v6246 = vsub.s32 %v6243, %v6245
    %v6247 = vrot.slane %v6219, %v6246
    %v6248 = vcombine.low %v6226, %v6233
    %v6249 = vcombine.low %v6240, %v6247
    %v6251 = vunpack.c.l.s4 1966171168
    %v6252 = vunpack.c.0.s8 %v6251
    %v6253 = vlaneseq
    %v6254 = vshrl.u32 %v6253, 7
    %v6255 = vsub.s32 %v6252, %v6254
    %v6256 = vrot.slane %v6248, %v6255
    %v6258 = vunpack.c.l.s4 1966171168
    %v6259 = vunpack.c.0.s8 %v6258
    %v6260 = vlaneseq
    %v6261 = vshrl.u32 %v6260, 7
    %v6262 = vsub.s32 %v6259, %v6261
    %v6263 = vrot.slane %v6249, %v6262
    %v6264 = vcombine.low %v6256, %v6263
    %v6265 = vcombine.low %v4152, %v4156
    %v6266 = vcombine.low %v4160, %v4164
    %v6267 = vcombine.low %v4168, %v4172
    %v6268 = vcombine.low %v4176, %v4180
    %v6270 = vunpack.c.l.s4 1966171168
    %v6271 = vunpack.c.0.s8 %v6270
    %v6272 = vlaneseq
    %v6273 = vshrl.u32 %v6272, 7
    %v6274 = vsub.s32 %v6271, %v6273
    %v6275 = vrot.slane %v6265, %v6274
    %v6277 = vunpack.c.l.s4 1966171168
    %v6278 = vunpack.c.0.s8 %v6277
    %v6279 = vlaneseq
    %v6280 = vshrl.u32 %v6279, 7
    %v6281 = vsub.s32 %v6278, %v6280
    %v6282 = vrot.slane %v6266, %v6281
    %v6284 = vunpack.c.l.s4 1966171168
    %v6285 = vunpack.c.0.s8 %v6284
    %v6286 = vlaneseq
    %v6287 = vshrl.u32 %v6286, 7
    %v6288 = vsub.s32 %v6285, %v6287
    %v6289 = vrot.slane %v6267, %v6288
    %v6291 = vunpack.c.l.s4 1966171168
    %v6292 = vunpack.c.0.s8 %v6291
    %v6293 = vlaneseq
    %v6294 = vshrl.u32 %v6293, 7
    %v6295 = vsub.s32 %v6292, %v6294
    %v6296 = vrot.slane %v6268, %v6295
    %v6297 = vcombine.low %v6275, %v6282
    %v6298 = vcombine.low %v6289, %v6296
    %v6300 = vunpack.c.l.s4 1966171168
    %v6301 = vunpack.c.0.s8 %v6300
    %v6302 = vlaneseq
    %v6303 = vshrl.u32 %v6302, 7
    %v6304 = vsub.s32 %v6301, %v6303
    %v6305 = vrot.slane %v6297, %v6304
    %v6307 = vunpack.c.l.s4 1966171168
    %v6308 = vunpack.c.0.s8 %v6307
    %v6309 = vlaneseq
    %v6310 = vshrl.u32 %v6309, 7
    %v6311 = vsub.s32 %v6308, %v6310
    %v6312 = vrot.slane %v6298, %v6311
    %v6313 = vcombine.low %v6305, %v6312
    %v6314 = vcombine.low %v4184, %v4188
    %v6315 = vcombine.low %v4192, %v4196
    %v6316 = vcombine.low %v4200, %v4204
    %v6317 = vcombine.low %v4208, %v4212
    %v6319 = vunpack.c.l.s4 1966171168
    %v6320 = vunpack.c.0.s8 %v6319
    %v6321 = vlaneseq
    %v6322 = vshrl.u32 %v6321, 7
    %v6323 = vsub.s32 %v6320, %v6322
    %v6324 = vrot.slane %v6314, %v6323
    %v6326 = vunpack.c.l.s4 1966171168
    %v6327 = vunpack.c.0.s8 %v6326
    %v6328 = vlaneseq
    %v6329 = vshrl.u32 %v6328, 7
    %v6330 = vsub.s32 %v6327, %v6329
    %v6331 = vrot.slane %v6315, %v6330
    %v6333 = vunpack.c.l.s4 1966171168
    %v6334 = vunpack.c.0.s8 %v6333
    %v6335 = vlaneseq
    %v6336 = vshrl.u32 %v6335, 7
    %v6337 = vsub.s32 %v6334, %v6336
    %v6338 = vrot.slane %v6316, %v6337
    %v6340 = vunpack.c.l.s4 1966171168
    %v6341 = vunpack.c.0.s8 %v6340
    %v6342 = vlaneseq
    %v6343 = vshrl.u32 %v6342, 7
    %v6344 = vsub.s32 %v6341, %v6343
    %v6345 = vrot.slane %v6317, %v6344
    %v6346 = vcombine.low %v6324, %v6331
    %v6347 = vcombine.low %v6338, %v6345
    %v6349 = vunpack.c.l.s4 1966171168
    %v6350 = vunpack.c.0.s8 %v6349
    %v6351 = vlaneseq
    %v6352 = vshrl.u32 %v6351, 7
    %v6353 = vsub.s32 %v6350, %v6352
    %v6354 = vrot.slane %v6346, %v6353
    %v6356 = vunpack.c.l.s4 1966171168
    %v6357 = vunpack.c.0.s8 %v6356
    %v6358 = vlaneseq
    %v6359 = vshrl.u32 %v6358, 7
    %v6360 = vsub.s32 %v6357, %v6359
    %v6361 = vrot.slane %v6347, %v6360
    %v6362 = vcombine.low %v6354, %v6361
    %v6363 = vcombine.low %v4216, %v4220
    %v6364 = vcombine.low %v4224, %v4228
    %v6365 = vcombine.low %v4232, %v4236
    %v6366 = vcombine.low %v4240, %v4244
    %v6368 = vunpack.c.l.s4 1966171168
    %v6369 = vunpack.c.0.s8 %v6368
    %v6370 = vlaneseq
    %v6371 = vshrl.u32 %v6370, 7
    %v6372 = vsub.s32 %v6369, %v6371
    %v6373 = vrot.slane %v6363, %v6372
    %v6375 = vunpack.c.l.s4 1966171168
    %v6376 = vunpack.c.0.s8 %v6375
    %v6377 = vlaneseq
    %v6378 = vshrl.u32 %v6377, 7
    %v6379 = vsub.s32 %v6376, %v6378
    %v6380 = vrot.slane %v6364, %v6379
    %v6382 = vunpack.c.l.s4 1966171168
    %v6383 = vunpack.c.0.s8 %v6382
    %v6384 = vlaneseq
    %v6385 = vshrl.u32 %v6384, 7
    %v6386 = vsub.s32 %v6383, %v6385
    %v6387 = vrot.slane %v6365, %v6386
    %v6389 = vunpack.c.l.s4 1966171168
    %v6390 = vunpack.c.0.s8 %v6389
    %v6391 = vlaneseq
    %v6392 = vshrl.u32 %v6391, 7
    %v6393 = vsub.s32 %v6390, %v6392
    %v6394 = vrot.slane %v6366, %v6393
    %v6395 = vcombine.low %v6373, %v6380
    %v6396 = vcombine.low %v6387, %v6394
    %v6398 = vunpack.c.l.s4 1966171168
    %v6399 = vunpack.c.0.s8 %v6398
    %v6400 = vlaneseq
    %v6401 = vshrl.u32 %v6400, 7
    %v6402 = vsub.s32 %v6399, %v6401
    %v6403 = vrot.slane %v6395, %v6402
    %v6405 = vunpack.c.l.s4 1966171168
    %v6406 = vunpack.c.0.s8 %v6405
    %v6407 = vlaneseq
    %v6408 = vshrl.u32 %v6407, 7
    %v6409 = vsub.s32 %v6406, %v6408
    %v6410 = vrot.slane %v6396, %v6409
    %v6411 = vcombine.low %v6403, %v6410
    %v6412 = vcombine.low %v4248, %v4252
    %v6413 = vcombine.low %v4256, %v4260
    %v6414 = vcombine.low %v4264, %v4268
    %v6415 = vcombine.low %v4272, %v4276
    %v6417 = vunpack.c.l.s4 1966171168
    %v6418 = vunpack.c.0.s8 %v6417
    %v6419 = vlaneseq
    %v6420 = vshrl.u32 %v6419, 7
    %v6421 = vsub.s32 %v6418, %v6420
    %v6422 = vrot.slane %v6412, %v6421
    %v6424 = vunpack.c.l.s4 1966171168
    %v6425 = vunpack.c.0.s8 %v6424
    %v6426 = vlaneseq
    %v6427 = vshrl.u32 %v6426, 7
    %v6428 = vsub.s32 %v6425, %v6427
    %v6429 = vrot.slane %v6413, %v6428
    %v6431 = vunpack.c.l.s4 1966171168
    %v6432 = vunpack.c.0.s8 %v6431
    %v6433 = vlaneseq
    %v6434 = vshrl.u32 %v6433, 7
    %v6435 = vsub.s32 %v6432, %v6434
    %v6436 = vrot.slane %v6414, %v6435
    %v6438 = vunpack.c.l.s4 1966171168
    %v6439 = vunpack.c.0.s8 %v6438
    %v6440 = vlaneseq
    %v6441 = vshrl.u32 %v6440, 7
    %v6442 = vsub.s32 %v6439, %v6441
    %v6443 = vrot.slane %v6415, %v6442
    %v6444 = vcombine.low %v6422, %v6429
    %v6445 = vcombine.low %v6436, %v6443
    %v6447 = vunpack.c.l.s4 1966171168
    %v6448 = vunpack.c.0.s8 %v6447
    %v6449 = vlaneseq
    %v6450 = vshrl.u32 %v6449, 7
    %v6451 = vsub.s32 %v6448, %v6450
    %v6452 = vrot.slane %v6444, %v6451
    %v6454 = vunpack.c.l.s4 1966171168
    %v6455 = vunpack.c.0.s8 %v6454
    %v6456 = vlaneseq
    %v6457 = vshrl.u32 %v6456, 7
    %v6458 = vsub.s32 %v6455, %v6457
    %v6459 = vrot.slane %v6445, %v6458
    %v6460 = vcombine.low %v6452, %v6459
    %v6461 = vcombine.low %v4280, %v4284
    %v6462 = vcombine.low %v4288, %v4292
    %v6463 = vcombine.low %v4296, %v4300
    %v6464 = vcombine.low %v4304, %v4308
    %v6466 = vunpack.c.l.s4 1966171168
    %v6467 = vunpack.c.0.s8 %v6466
    %v6468 = vlaneseq
    %v6469 = vshrl.u32 %v6468, 7
    %v6470 = vsub.s32 %v6467, %v6469
    %v6471 = vrot.slane %v6461, %v6470
    %v6473 = vunpack.c.l.s4 1966171168
    %v6474 = vunpack.c.0.s8 %v6473
    %v6475 = vlaneseq
    %v6476 = vshrl.u32 %v6475, 7
    %v6477 = vsub.s32 %v6474, %v6476
    %v6478 = vrot.slane %v6462, %v6477
    %v6480 = vunpack.c.l.s4 1966171168
    %v6481 = vunpack.c.0.s8 %v6480
    %v6482 = vlaneseq
    %v6483 = vshrl.u32 %v6482, 7
    %v6484 = vsub.s32 %v6481, %v6483
    %v6485 = vrot.slane %v6463, %v6484
    %v6487 = vunpack.c.l.s4 1966171168
    %v6488 = vunpack.c.0.s8 %v6487
    %v6489 = vlaneseq
    %v6490 = vshrl.u32 %v6489, 7
    %v6491 = vsub.s32 %v6488, %v6490
    %v6492 = vrot.slane %v6464, %v6491
    %v6493 = vcombine.low %v6471, %v6478
    %v6494 = vcombine.low %v6485, %v6492
    %v6496 = vunpack.c.l.s4 1966171168
    %v6497 = vunpack.c.0.s8 %v6496
    %v6498 = vlaneseq
    %v6499 = vshrl.u32 %v6498, 7
    %v6500 = vsub.s32 %v6497, %v6499
    %v6501 = vrot.slane %v6493, %v6500
    %v6503 = vunpack.c.l.s4 1966171168
    %v6504 = vunpack.c.0.s8 %v6503
    %v6505 = vlaneseq
    %v6506 = vshrl.u32 %v6505, 7
    %v6507 = vsub.s32 %v6504, %v6506
    %v6508 = vrot.slane %v6494, %v6507
    %v6509 = vcombine.low %v6501, %v6508
    %v6510 = vcombine.low %v4312, %v4316
    %v6511 = vcombine.low %v4320, %v4324
    %v6512 = vcombine.low %v4328, %v4332
    %v6513 = vcombine.low %v4336, %v4340
    %v6515 = vunpack.c.l.s4 1966171168
    %v6516 = vunpack.c.0.s8 %v6515
    %v6517 = vlaneseq
    %v6518 = vshrl.u32 %v6517, 7
    %v6519 = vsub.s32 %v6516, %v6518
    %v6520 = vrot.slane %v6510, %v6519
    %v6522 = vunpack.c.l.s4 1966171168
    %v6523 = vunpack.c.0.s8 %v6522
    %v6524 = vlaneseq
    %v6525 = vshrl.u32 %v6524, 7
    %v6526 = vsub.s32 %v6523, %v6525
    %v6527 = vrot.slane %v6511, %v6526
    %v6529 = vunpack.c.l.s4 1966171168
    %v6530 = vunpack.c.0.s8 %v6529
    %v6531 = vlaneseq
    %v6532 = vshrl.u32 %v6531, 7
    %v6533 = vsub.s32 %v6530, %v6532
    %v6534 = vrot.slane %v6512, %v6533
    %v6536 = vunpack.c.l.s4 1966171168
    %v6537 = vunpack.c.0.s8 %v6536
    %v6538 = vlaneseq
    %v6539 = vshrl.u32 %v6538, 7
    %v6540 = vsub.s32 %v6537, %v6539
    %v6541 = vrot.slane %v6513, %v6540
    %v6542 = vcombine.low %v6520, %v6527
    %v6543 = vcombine.low %v6534, %v6541
    %v6545 = vunpack.c.l.s4 1966171168
    %v6546 = vunpack.c.0.s8 %v6545
    %v6547 = vlaneseq
    %v6548 = vshrl.u32 %v6547, 7
    %v6549 = vsub.s32 %v6546, %v6548
    %v6550 = vrot.slane %v6542, %v6549
    %v6552 = vunpack.c.l.s4 1966171168
    %v6553 = vunpack.c.0.s8 %v6552
    %v6554 = vlaneseq
    %v6555 = vshrl.u32 %v6554, 7
    %v6556 = vsub.s32 %v6553, %v6555
    %v6557 = vrot.slane %v6543, %v6556
    %v6558 = vcombine.low %v6550, %v6557
    %v6559 = vcombine.low %v4344, %v4348
    %v6560 = vcombine.low %v4352, %v4356
    %v6561 = vcombine.low %v4360, %v4364
    %v6562 = vcombine.low %v4368, %v4372
    %v6564 = vunpack.c.l.s4 1966171168
    %v6565 = vunpack.c.0.s8 %v6564
    %v6566 = vlaneseq
    %v6567 = vshrl.u32 %v6566, 7
    %v6568 = vsub.s32 %v6565, %v6567
    %v6569 = vrot.slane %v6559, %v6568
    %v6571 = vunpack.c.l.s4 1966171168
    %v6572 = vunpack.c.0.s8 %v6571
    %v6573 = vlaneseq
    %v6574 = vshrl.u32 %v6573, 7
    %v6575 = vsub.s32 %v6572, %v6574
    %v6576 = vrot.slane %v6560, %v6575
    %v6578 = vunpack.c.l.s4 1966171168
    %v6579 = vunpack.c.0.s8 %v6578
    %v6580 = vlaneseq
    %v6581 = vshrl.u32 %v6580, 7
    %v6582 = vsub.s32 %v6579, %v6581
    %v6583 = vrot.slane %v6561, %v6582
    %v6585 = vunpack.c.l.s4 1966171168
    %v6586 = vunpack.c.0.s8 %v6585
    %v6587 = vlaneseq
    %v6588 = vshrl.u32 %v6587, 7
    %v6589 = vsub.s32 %v6586, %v6588
    %v6590 = vrot.slane %v6562, %v6589
    %v6591 = vcombine.low %v6569, %v6576
    %v6592 = vcombine.low %v6583, %v6590
    %v6594 = vunpack.c.l.s4 1966171168
    %v6595 = vunpack.c.0.s8 %v6594
    %v6596 = vlaneseq
    %v6597 = vshrl.u32 %v6596, 7
    %v6598 = vsub.s32 %v6595, %v6597
    %v6599 = vrot.slane %v6591, %v6598
    %v6601 = vunpack.c.l.s4 1966171168
    %v6602 = vunpack.c.0.s8 %v6601
    %v6603 = vlaneseq
    %v6604 = vshrl.u32 %v6603, 7
    %v6605 = vsub.s32 %v6602, %v6604
    %v6606 = vrot.slane %v6592, %v6605
    %v6607 = vcombine.low %v6599, %v6606
    %v6608 = vcombine.low %v4376, %v4380
    %v6609 = vcombine.low %v4384, %v4388
    %v6610 = vcombine.low %v4392, %v4396
    %v6611 = vcombine.low %v4400, %v4404
    %v6613 = vunpack.c.l.s4 1966171168
    %v6614 = vunpack.c.0.s8 %v6613
    %v6615 = vlaneseq
    %v6616 = vshrl.u32 %v6615, 7
    %v6617 = vsub.s32 %v6614, %v6616
    %v6618 = vrot.slane %v6608, %v6617
    %v6620 = vunpack.c.l.s4 1966171168
    %v6621 = vunpack.c.0.s8 %v6620
    %v6622 = vlaneseq
    %v6623 = vshrl.u32 %v6622, 7
    %v6624 = vsub.s32 %v6621, %v6623
    %v6625 = vrot.slane %v6609, %v6624
    %v6627 = vunpack.c.l.s4 1966171168
    %v6628 = vunpack.c.0.s8 %v6627
    %v6629 = vlaneseq
    %v6630 = vshrl.u32 %v6629, 7
    %v6631 = vsub.s32 %v6628, %v6630
    %v6632 = vrot.slane %v6610, %v6631
    %v6634 = vunpack.c.l.s4 1966171168
    %v6635 = vunpack.c.0.s8 %v6634
    %v6636 = vlaneseq
    %v6637 = vshrl.u32 %v6636, 7
    %v6638 = vsub.s32 %v6635, %v6637
    %v6639 = vrot.slane %v6611, %v6638
    %v6640 = vcombine.low %v6618, %v6625
    %v6641 = vcombine.low %v6632, %v6639
    %v6643 = vunpack.c.l.s4 1966171168
    %v6644 = vunpack.c.0.s8 %v6643
    %v6645 = vlaneseq
    %v6646 = vshrl.u32 %v6645, 7
    %v6647 = vsub.s32 %v6644, %v6646
    %v6648 = vrot.slane %v6640, %v6647
    %v6650 = vunpack.c.l.s4 1966171168
    %v6651 = vunpack.c.0.s8 %v6650
    %v6652 = vlaneseq
    %v6653 = vshrl.u32 %v6652, 7
    %v6654 = vsub.s32 %v6651, %v6653
    %v6655 = vrot.slane %v6641, %v6654
    %v6656 = vcombine.low %v6648, %v6655
    %v6657 = vcombine.low %v4408, %v4412
    %v6658 = vcombine.low %v4416, %v4420
    %v6659 = vcombine.low %v4424, %v4428
    %v6660 = vcombine.low %v4432, %v4436
    %v6662 = vunpack.c.l.s4 1966171168
    %v6663 = vunpack.c.0.s8 %v6662
    %v6664 = vlaneseq
    %v6665 = vshrl.u32 %v6664, 7
    %v6666 = vsub.s32 %v6663, %v6665
    %v6667 = vrot.slane %v6657, %v6666
    %v6669 = vunpack.c.l.s4 1966171168
    %v6670 = vunpack.c.0.s8 %v6669
    %v6671 = vlaneseq
    %v6672 = vshrl.u32 %v6671, 7
    %v6673 = vsub.s32 %v6670, %v6672
    %v6674 = vrot.slane %v6658, %v6673
    %v6676 = vunpack.c.l.s4 1966171168
    %v6677 = vunpack.c.0.s8 %v6676
    %v6678 = vlaneseq
    %v6679 = vshrl.u32 %v6678, 7
    %v6680 = vsub.s32 %v6677, %v6679
    %v6681 = vrot.slane %v6659, %v6680
    %v6683 = vunpack.c.l.s4 1966171168
    %v6684 = vunpack.c.0.s8 %v6683
    %v6685 = vlaneseq
    %v6686 = vshrl.u32 %v6685, 7
    %v6687 = vsub.s32 %v6684, %v6686
    %v6688 = vrot.slane %v6660, %v6687
    %v6689 = vcombine.low %v6667, %v6674
    %v6690 = vcombine.low %v6681, %v6688
    %v6692 = vunpack.c.l.s4 1966171168
    %v6693 = vunpack.c.0.s8 %v6692
    %v6694 = vlaneseq
    %v6695 = vshrl.u32 %v6694, 7
    %v6696 = vsub.s32 %v6693, %v6695
    %v6697 = vrot.slane %v6689, %v6696
    %v6699 = vunpack.c.l.s4 1966171168
    %v6700 = vunpack.c.0.s8 %v6699
    %v6701 = vlaneseq
    %v6702 = vshrl.u32 %v6701, 7
    %v6703 = vsub.s32 %v6700, %v6702
    %v6704 = vrot.slane %v6690, %v6703
    %v6705 = vcombine.low %v6697, %v6704
    %v6706 = vcombine.low %v4440, %v4444
    %v6707 = vcombine.low %v4448, %v4452
    %v6708 = vcombine.low %v4456, %v4460
    %v6709 = vcombine.low %v4464, %v4468
    %v6711 = vunpack.c.l.s4 1966171168
    %v6712 = vunpack.c.0.s8 %v6711
    %v6713 = vlaneseq
    %v6714 = vshrl.u32 %v6713, 7
    %v6715 = vsub.s32 %v6712, %v6714
    %v6716 = vrot.slane %v6706, %v6715
    %v6718 = vunpack.c.l.s4 1966171168
    %v6719 = vunpack.c.0.s8 %v6718
    %v6720 = vlaneseq
    %v6721 = vshrl.u32 %v6720, 7
    %v6722 = vsub.s32 %v6719, %v6721
    %v6723 = vrot.slane %v6707, %v6722
    %v6725 = vunpack.c.l.s4 1966171168
    %v6726 = vunpack.c.0.s8 %v6725
    %v6727 = vlaneseq
    %v6728 = vshrl.u32 %v6727, 7
    %v6729 = vsub.s32 %v6726, %v6728
    %v6730 = vrot.slane %v6708, %v6729
    %v6732 = vunpack.c.l.s4 1966171168
    %v6733 = vunpack.c.0.s8 %v6732
    %v6734 = vlaneseq
    %v6735 = vshrl.u32 %v6734, 7
    %v6736 = vsub.s32 %v6733, %v6735
    %v6737 = vrot.slane %v6709, %v6736
    %v6738 = vcombine.low %v6716, %v6723
    %v6739 = vcombine.low %v6730, %v6737
    %v6741 = vunpack.c.l.s4 1966171168
    %v6742 = vunpack.c.0.s8 %v6741
    %v6743 = vlaneseq
    %v6744 = vshrl.u32 %v6743, 7
    %v6745 = vsub.s32 %v6742, %v6744
    %v6746 = vrot.slane %v6738, %v6745
    %v6748 = vunpack.c.l.s4 1966171168
    %v6749 = vunpack.c.0.s8 %v6748
    %v6750 = vlaneseq
    %v6751 = vshrl.u32 %v6750, 7
    %v6752 = vsub.s32 %v6749, %v6751
    %v6753 = vrot.slane %v6739, %v6752
    %v6754 = vcombine.low %v6746, %v6753
    %v6755 = vcombine.low %v4472, %v4476
    %v6756 = vcombine.low %v4480, %v4484
    %v6757 = vcombine.low %v4488, %v4492
    %v6758 = vcombine.low %v4496, %v4500
    %v6760 = vunpack.c.l.s4 1966171168
    %v6761 = vunpack.c.0.s8 %v6760
    %v6762 = vlaneseq
    %v6763 = vshrl.u32 %v6762, 7
    %v6764 = vsub.s32 %v6761, %v6763
    %v6765 = vrot.slane %v6755, %v6764
    %v6767 = vunpack.c.l.s4 1966171168
    %v6768 = vunpack.c.0.s8 %v6767
    %v6769 = vlaneseq
    %v6770 = vshrl.u32 %v6769, 7
    %v6771 = vsub.s32 %v6768, %v6770
    %v6772 = vrot.slane %v6756, %v6771
    %v6774 = vunpack.c.l.s4 1966171168
    %v6775 = vunpack.c.0.s8 %v6774
    %v6776 = vlaneseq
    %v6777 = vshrl.u32 %v6776, 7
    %v6778 = vsub.s32 %v6775, %v6777
    %v6779 = vrot.slane %v6757, %v6778
    %v6781 = vunpack.c.l.s4 1966171168
    %v6782 = vunpack.c.0.s8 %v6781
    %v6783 = vlaneseq
    %v6784 = vshrl.u32 %v6783, 7
    %v6785 = vsub.s32 %v6782, %v6784
    %v6786 = vrot.slane %v6758, %v6785
    %v6787 = vcombine.low %v6765, %v6772
    %v6788 = vcombine.low %v6779, %v6786
    %v6790 = vunpack.c.l.s4 1966171168
    %v6791 = vunpack.c.0.s8 %v6790
    %v6792 = vlaneseq
    %v6793 = vshrl.u32 %v6792, 7
    %v6794 = vsub.s32 %v6791, %v6793
    %v6795 = vrot.slane %v6787, %v6794
    %v6797 = vunpack.c.l.s4 1966171168
    %v6798 = vunpack.c.0.s8 %v6797
    %v6799 = vlaneseq
    %v6800 = vshrl.u32 %v6799, 7
    %v6801 = vsub.s32 %v6798, %v6800
    %v6802 = vrot.slane %v6788, %v6801
    %v6803 = vcombine.low %v6795, %v6802
    %v6804 = vcombine.low %v4504, %v4508
    %v6805 = vcombine.low %v4512, %v4516
    %v6806 = vcombine.low %v4520, %v4524
    %v6807 = vcombine.low %v4528, %v4532
    %v6809 = vunpack.c.l.s4 1966171168
    %v6810 = vunpack.c.0.s8 %v6809
    %v6811 = vlaneseq
    %v6812 = vshrl.u32 %v6811, 7
    %v6813 = vsub.s32 %v6810, %v6812
    %v6814 = vrot.slane %v6804, %v6813
    %v6816 = vunpack.c.l.s4 1966171168
    %v6817 = vunpack.c.0.s8 %v6816
    %v6818 = vlaneseq
    %v6819 = vshrl.u32 %v6818, 7
    %v6820 = vsub.s32 %v6817, %v6819
    %v6821 = vrot.slane %v6805, %v6820
    %v6823 = vunpack.c.l.s4 1966171168
    %v6824 = vunpack.c.0.s8 %v6823
    %v6825 = vlaneseq
    %v6826 = vshrl.u32 %v6825, 7
    %v6827 = vsub.s32 %v6824, %v6826
    %v6828 = vrot.slane %v6806, %v6827
    %v6830 = vunpack.c.l.s4 1966171168
    %v6831 = vunpack.c.0.s8 %v6830
    %v6832 = vlaneseq
    %v6833 = vshrl.u32 %v6832, 7
    %v6834 = vsub.s32 %v6831, %v6833
    %v6835 = vrot.slane %v6807, %v6834
    %v6836 = vcombine.low %v6814, %v6821
    %v6837 = vcombine.low %v6828, %v6835
    %v6839 = vunpack.c.l.s4 1966171168
    %v6840 = vunpack.c.0.s8 %v6839
    %v6841 = vlaneseq
    %v6842 = vshrl.u32 %v6841, 7
    %v6843 = vsub.s32 %v6840, %v6842
    %v6844 = vrot.slane %v6836, %v6843
    %v6846 = vunpack.c.l.s4 1966171168
    %v6847 = vunpack.c.0.s8 %v6846
    %v6848 = vlaneseq
    %v6849 = vshrl.u32 %v6848, 7
    %v6850 = vsub.s32 %v6847, %v6849
    %v6851 = vrot.slane %v6837, %v6850
    %v6852 = vcombine.low %v6844, %v6851
    %v6853 = vcombine.low %v4536, %v4540
    %v6854 = vcombine.low %v4544, %v4548
    %v6855 = vcombine.low %v4552, %v4556
    %v6856 = vcombine.low %v4560, %v4564
    %v6858 = vunpack.c.l.s4 1966171168
    %v6859 = vunpack.c.0.s8 %v6858
    %v6860 = vlaneseq
    %v6861 = vshrl.u32 %v6860, 7
    %v6862 = vsub.s32 %v6859, %v6861
    %v6863 = vrot.slane %v6853, %v6862
    %v6865 = vunpack.c.l.s4 1966171168
    %v6866 = vunpack.c.0.s8 %v6865
    %v6867 = vlaneseq
    %v6868 = vshrl.u32 %v6867, 7
    %v6869 = vsub.s32 %v6866, %v6868
    %v6870 = vrot.slane %v6854, %v6869
    %v6872 = vunpack.c.l.s4 1966171168
    %v6873 = vunpack.c.0.s8 %v6872
    %v6874 = vlaneseq
    %v6875 = vshrl.u32 %v6874, 7
    %v6876 = vsub.s32 %v6873, %v6875
    %v6877 = vrot.slane %v6855, %v6876
    %v6879 = vunpack.c.l.s4 1966171168
    %v6880 = vunpack.c.0.s8 %v6879
    %v6881 = vlaneseq
    %v6882 = vshrl.u32 %v6881, 7
    %v6883 = vsub.s32 %v6880, %v6882
    %v6884 = vrot.slane %v6856, %v6883
    %v6885 = vcombine.low %v6863, %v6870
    %v6886 = vcombine.low %v6877, %v6884
    %v6888 = vunpack.c.l.s4 1966171168
    %v6889 = vunpack.c.0.s8 %v6888
    %v6890 = vlaneseq
    %v6891 = vshrl.u32 %v6890, 7
    %v6892 = vsub.s32 %v6889, %v6891
    %v6893 = vrot.slane %v6885, %v6892
    %v6895 = vunpack.c.l.s4 1966171168
    %v6896 = vunpack.c.0.s8 %v6895
    %v6897 = vlaneseq
    %v6898 = vshrl.u32 %v6897, 7
    %v6899 = vsub.s32 %v6896, %v6898
    %v6900 = vrot.slane %v6886, %v6899
    %v6901 = vcombine.low %v6893, %v6900
    %v6902 = vcombine.low %v4568, %v4572
    %v6903 = vcombine.low %v4576, %v4580
    %v6904 = vcombine.low %v4584, %v4588
    %v6905 = vcombine.low %v4592, %v4596
    %v6907 = vunpack.c.l.s4 1966171168
    %v6908 = vunpack.c.0.s8 %v6907
    %v6909 = vlaneseq
    %v6910 = vshrl.u32 %v6909, 7
    %v6911 = vsub.s32 %v6908, %v6910
    %v6912 = vrot.slane %v6902, %v6911
    %v6914 = vunpack.c.l.s4 1966171168
    %v6915 = vunpack.c.0.s8 %v6914
    %v6916 = vlaneseq
    %v6917 = vshrl.u32 %v6916, 7
    %v6918 = vsub.s32 %v6915, %v6917
    %v6919 = vrot.slane %v6903, %v6918
    %v6921 = vunpack.c.l.s4 1966171168
    %v6922 = vunpack.c.0.s8 %v6921
    %v6923 = vlaneseq
    %v6924 = vshrl.u32 %v6923, 7
    %v6925 = vsub.s32 %v6922, %v6924
    %v6926 = vrot.slane %v6904, %v6925
    %v6928 = vunpack.c.l.s4 1966171168
    %v6929 = vunpack.c.0.s8 %v6928
    %v6930 = vlaneseq
    %v6931 = vshrl.u32 %v6930, 7
    %v6932 = vsub.s32 %v6929, %v6931
    %v6933 = vrot.slane %v6905, %v6932
    %v6934 = vcombine.low %v6912, %v6919
    %v6935 = vcombine.low %v6926, %v6933
    %v6937 = vunpack.c.l.s4 1966171168
    %v6938 = vunpack.c.0.s8 %v6937
    %v6939 = vlaneseq
    %v6940 = vshrl.u32 %v6939, 7
    %v6941 = vsub.s32 %v6938, %v6940
    %v6942 = vrot.slane %v6934, %v6941
    %v6944 = vunpack.c.l.s4 1966171168
    %v6945 = vunpack.c.0.s8 %v6944
    %v6946 = vlaneseq
    %v6947 = vshrl.u32 %v6946, 7
    %v6948 = vsub.s32 %v6945, %v6947
    %v6949 = vrot.slane %v6935, %v6948
    %v6950 = vcombine.low %v6942, %v6949
    %v6951 = vcombine.low %v4600, %v4604
    %v6952 = vcombine.low %v4608, %v4612
    %v6953 = vcombine.low %v4616, %v4620
    %v6954 = vcombine.low %v4624, %v4628
    %v6956 = vunpack.c.l.s4 1966171168
    %v6957 = vunpack.c.0.s8 %v6956
    %v6958 = vlaneseq
    %v6959 = vshrl.u32 %v6958, 7
    %v6960 = vsub.s32 %v6957, %v6959
    %v6961 = vrot.slane %v6951, %v6960
    %v6963 = vunpack.c.l.s4 1966171168
    %v6964 = vunpack.c.0.s8 %v6963
    %v6965 = vlaneseq
    %v6966 = vshrl.u32 %v6965, 7
    %v6967 = vsub.s32 %v6964, %v6966
    %v6968 = vrot.slane %v6952, %v6967
    %v6970 = vunpack.c.l.s4 1966171168
    %v6971 = vunpack.c.0.s8 %v6970
    %v6972 = vlaneseq
    %v6973 = vshrl.u32 %v6972, 7
    %v6974 = vsub.s32 %v6971, %v6973
    %v6975 = vrot.slane %v6953, %v6974
    %v6977 = vunpack.c.l.s4 1966171168
    %v6978 = vunpack.c.0.s8 %v6977
    %v6979 = vlaneseq
    %v6980 = vshrl.u32 %v6979, 7
    %v6981 = vsub.s32 %v6978, %v6980
    %v6982 = vrot.slane %v6954, %v6981
    %v6983 = vcombine.low %v6961, %v6968
    %v6984 = vcombine.low %v6975, %v6982
    %v6986 = vunpack.c.l.s4 1966171168
    %v6987 = vunpack.c.0.s8 %v6986
    %v6988 = vlaneseq
    %v6989 = vshrl.u32 %v6988, 7
    %v6990 = vsub.s32 %v6987, %v6989
    %v6991 = vrot.slane %v6983, %v6990
    %v6993 = vunpack.c.l.s4 1966171168
    %v6994 = vunpack.c.0.s8 %v6993
    %v6995 = vlaneseq
    %v6996 = vshrl.u32 %v6995, 7
    %v6997 = vsub.s32 %v6994, %v6996
    %v6998 = vrot.slane %v6984, %v6997
    %v6999 = vcombine.low %v6991, %v6998
    %v7000 = vcombine.low %v4632, %v4636
    %v7001 = vcombine.low %v4640, %v4644
    %v7002 = vcombine.low %v4648, %v4652
    %v7003 = vcombine.low %v4656, %v4660
    %v7005 = vunpack.c.l.s4 1966171168
    %v7006 = vunpack.c.0.s8 %v7005
    %v7007 = vlaneseq
    %v7008 = vshrl.u32 %v7007, 7
    %v7009 = vsub.s32 %v7006, %v7008
    %v7010 = vrot.slane %v7000, %v7009
    %v7012 = vunpack.c.l.s4 1966171168
    %v7013 = vunpack.c.0.s8 %v7012
    %v7014 = vlaneseq
    %v7015 = vshrl.u32 %v7014, 7
    %v7016 = vsub.s32 %v7013, %v7015
    %v7017 = vrot.slane %v7001, %v7016
    %v7019 = vunpack.c.l.s4 1966171168
    %v7020 = vunpack.c.0.s8 %v7019
    %v7021 = vlaneseq
    %v7022 = vshrl.u32 %v7021, 7
    %v7023 = vsub.s32 %v7020, %v7022
    %v7024 = vrot.slane %v7002, %v7023
    %v7026 = vunpack.c.l.s4 1966171168
    %v7027 = vunpack.c.0.s8 %v7026
    %v7028 = vlaneseq
    %v7029 = vshrl.u32 %v7028, 7
    %v7030 = vsub.s32 %v7027, %v7029
    %v7031 = vrot.slane %v7003, %v7030
    %v7032 = vcombine.low %v7010, %v7017
    %v7033 = vcombine.low %v7024, %v7031
    %v7035 = vunpack.c.l.s4 1966171168
    %v7036 = vunpack.c.0.s8 %v7035
    %v7037 = vlaneseq
    %v7038 = vshrl.u32 %v7037, 7
    %v7039 = vsub.s32 %v7036, %v7038
    %v7040 = vrot.slane %v7032, %v7039
    %v7042 = vunpack.c.l.s4 1966171168
    %v7043 = vunpack.c.0.s8 %v7042
    %v7044 = vlaneseq
    %v7045 = vshrl.u32 %v7044, 7
    %v7046 = vsub.s32 %v7043, %v7045
    %v7047 = vrot.slane %v7033, %v7046
    %v7048 = vcombine.low %v7040, %v7047
    %v7049 = vcombine.low %v4664, %v4668
    %v7050 = vcombine.low %v4672, %v4676
    %v7051 = vcombine.low %v4680, %v4684
    %v7052 = vcombine.low %v4688, %v4692
    %v7054 = vunpack.c.l.s4 1966171168
    %v7055 = vunpack.c.0.s8 %v7054
    %v7056 = vlaneseq
    %v7057 = vshrl.u32 %v7056, 7
    %v7058 = vsub.s32 %v7055, %v7057
    %v7059 = vrot.slane %v7049, %v7058
    %v7061 = vunpack.c.l.s4 1966171168
    %v7062 = vunpack.c.0.s8 %v7061
    %v7063 = vlaneseq
    %v7064 = vshrl.u32 %v7063, 7
    %v7065 = vsub.s32 %v7062, %v7064
    %v7066 = vrot.slane %v7050, %v7065
    %v7068 = vunpack.c.l.s4 1966171168
    %v7069 = vunpack.c.0.s8 %v7068
    %v7070 = vlaneseq
    %v7071 = vshrl.u32 %v7070, 7
    %v7072 = vsub.s32 %v7069, %v7071
    %v7073 = vrot.slane %v7051, %v7072
    %v7075 = vunpack.c.l.s4 1966171168
    %v7076 = vunpack.c.0.s8 %v7075
    %v7077 = vlaneseq
    %v7078 = vshrl.u32 %v7077, 7
    %v7079 = vsub.s32 %v7076, %v7078
    %v7080 = vrot.slane %v7052, %v7079
    %v7081 = vcombine.low %v7059, %v7066
    %v7082 = vcombine.low %v7073, %v7080
    %v7084 = vunpack.c.l.s4 1966171168
    %v7085 = vunpack.c.0.s8 %v7084
    %v7086 = vlaneseq
    %v7087 = vshrl.u32 %v7086, 7
    %v7088 = vsub.s32 %v7085, %v7087
    %v7089 = vrot.slane %v7081, %v7088
    %v7091 = vunpack.c.l.s4 1966171168
    %v7092 = vunpack.c.0.s8 %v7091
    %v7093 = vlaneseq
    %v7094 = vshrl.u32 %v7093, 7
    %v7095 = vsub.s32 %v7092, %v7094
    %v7096 = vrot.slane %v7082, %v7095
    %v7097 = vcombine.low %v7089, %v7096
    %v7098 = vcombine.low %v4696, %v4700
    %v7099 = vcombine.low %v4704, %v4708
    %v7100 = vcombine.low %v4712, %v4716
    %v7101 = vcombine.low %v4720, %v4724
    %v7103 = vunpack.c.l.s4 1966171168
    %v7104 = vunpack.c.0.s8 %v7103
    %v7105 = vlaneseq
    %v7106 = vshrl.u32 %v7105, 7
    %v7107 = vsub.s32 %v7104, %v7106
    %v7108 = vrot.slane %v7098, %v7107
    %v7110 = vunpack.c.l.s4 1966171168
    %v7111 = vunpack.c.0.s8 %v7110
    %v7112 = vlaneseq
    %v7113 = vshrl.u32 %v7112, 7
    %v7114 = vsub.s32 %v7111, %v7113
    %v7115 = vrot.slane %v7099, %v7114
    %v7117 = vunpack.c.l.s4 1966171168
    %v7118 = vunpack.c.0.s8 %v7117
    %v7119 = vlaneseq
    %v7120 = vshrl.u32 %v7119, 7
    %v7121 = vsub.s32 %v7118, %v7120
    %v7122 = vrot.slane %v7100, %v7121
    %v7124 = vunpack.c.l.s4 1966171168
    %v7125 = vunpack.c.0.s8 %v7124
    %v7126 = vlaneseq
    %v7127 = vshrl.u32 %v7126, 7
    %v7128 = vsub.s32 %v7125, %v7127
    %v7129 = vrot.slane %v7101, %v7128
    %v7130 = vcombine.low %v7108, %v7115
    %v7131 = vcombine.low %v7122, %v7129
    %v7133 = vunpack.c.l.s4 1966171168
    %v7134 = vunpack.c.0.s8 %v7133
    %v7135 = vlaneseq
    %v7136 = vshrl.u32 %v7135, 7
    %v7137 = vsub.s32 %v7134, %v7136
    %v7138 = vrot.slane %v7130, %v7137
    %v7140 = vunpack.c.l.s4 1966171168
    %v7141 = vunpack.c.0.s8 %v7140
    %v7142 = vlaneseq
    %v7143 = vshrl.u32 %v7142, 7
    %v7144 = vsub.s32 %v7141, %v7143
    %v7145 = vrot.slane %v7131, %v7144
    %v7146 = vcombine.low %v7138, %v7145
    %v7147 = vcombine.low %v4728, %v4732
    %v7148 = vcombine.low %v4736, %v4740
    %v7149 = vcombine.low %v4744, %v4748
    %v7150 = vcombine.low %v4752, %v4756
    %v7152 = vunpack.c.l.s4 1966171168
    %v7153 = vunpack.c.0.s8 %v7152
    %v7154 = vlaneseq
    %v7155 = vshrl.u32 %v7154, 7
    %v7156 = vsub.s32 %v7153, %v7155
    %v7157 = vrot.slane %v7147, %v7156
    %v7159 = vunpack.c.l.s4 1966171168
    %v7160 = vunpack.c.0.s8 %v7159
    %v7161 = vlaneseq
    %v7162 = vshrl.u32 %v7161, 7
    %v7163 = vsub.s32 %v7160, %v7162
    %v7164 = vrot.slane %v7148, %v7163
    %v7166 = vunpack.c.l.s4 1966171168
    %v7167 = vunpack.c.0.s8 %v7166
    %v7168 = vlaneseq
    %v7169 = vshrl.u32 %v7168, 7
    %v7170 = vsub.s32 %v7167, %v7169
    %v7171 = vrot.slane %v7149, %v7170
    %v7173 = vunpack.c.l.s4 1966171168
    %v7174 = vunpack.c.0.s8 %v7173
    %v7175 = vlaneseq
    %v7176 = vshrl.u32 %v7175, 7
    %v7177 = vsub.s32 %v7174, %v7176
    %v7178 = vrot.slane %v7150, %v7177
    %v7179 = vcombine.low %v7157, %v7164
    %v7180 = vcombine.low %v7171, %v7178
    %v7182 = vunpack.c.l.s4 1966171168
    %v7183 = vunpack.c.0.s8 %v7182
    %v7184 = vlaneseq
    %v7185 = vshrl.u32 %v7184, 7
    %v7186 = vsub.s32 %v7183, %v7185
    %v7187 = vrot.slane %v7179, %v7186
    %v7189 = vunpack.c.l.s4 1966171168
    %v7190 = vunpack.c.0.s8 %v7189
    %v7191 = vlaneseq
    %v7192 = vshrl.u32 %v7191, 7
    %v7193 = vsub.s32 %v7190, %v7192
    %v7194 = vrot.slane %v7180, %v7193
    %v7195 = vcombine.low %v7187, %v7194
    %v7196 = vcombine.low %v4760, %v4764
    %v7197 = vcombine.low %v4768, %v4772
    %v7198 = vcombine.low %v4776, %v4780
    %v7199 = vcombine.low %v4784, %v4788
    %v7201 = vunpack.c.l.s4 1966171168
    %v7202 = vunpack.c.0.s8 %v7201
    %v7203 = vlaneseq
    %v7204 = vshrl.u32 %v7203, 7
    %v7205 = vsub.s32 %v7202, %v7204
    %v7206 = vrot.slane %v7196, %v7205
    %v7208 = vunpack.c.l.s4 1966171168
    %v7209 = vunpack.c.0.s8 %v7208
    %v7210 = vlaneseq
    %v7211 = vshrl.u32 %v7210, 7
    %v7212 = vsub.s32 %v7209, %v7211
    %v7213 = vrot.slane %v7197, %v7212
    %v7215 = vunpack.c.l.s4 1966171168
    %v7216 = vunpack.c.0.s8 %v7215
    %v7217 = vlaneseq
    %v7218 = vshrl.u32 %v7217, 7
    %v7219 = vsub.s32 %v7216, %v7218
    %v7220 = vrot.slane %v7198, %v7219
    %v7222 = vunpack.c.l.s4 1966171168
    %v7223 = vunpack.c.0.s8 %v7222
    %v7224 = vlaneseq
    %v7225 = vshrl.u32 %v7224, 7
    %v7226 = vsub.s32 %v7223, %v7225
    %v7227 = vrot.slane %v7199, %v7226
    %v7228 = vcombine.low %v7206, %v7213
    %v7229 = vcombine.low %v7220, %v7227
    %v7231 = vunpack.c.l.s4 1966171168
    %v7232 = vunpack.c.0.s8 %v7231
    %v7233 = vlaneseq
    %v7234 = vshrl.u32 %v7233, 7
    %v7235 = vsub.s32 %v7232, %v7234
    %v7236 = vrot.slane %v7228, %v7235
    %v7238 = vunpack.c.l.s4 1966171168
    %v7239 = vunpack.c.0.s8 %v7238
    %v7240 = vlaneseq
    %v7241 = vshrl.u32 %v7240, 7
    %v7242 = vsub.s32 %v7239, %v7241
    %v7243 = vrot.slane %v7229, %v7242
    %v7244 = vcombine.low %v7236, %v7243
    %v7245 = vcombine.low %v4792, %v4796
    %v7246 = vcombine.low %v4800, %v4804
    %v7247 = vcombine.low %v4808, %v4812
    %v7248 = vcombine.low %v4816, %v4820
    %v7250 = vunpack.c.l.s4 1966171168
    %v7251 = vunpack.c.0.s8 %v7250
    %v7252 = vlaneseq
    %v7253 = vshrl.u32 %v7252, 7
    %v7254 = vsub.s32 %v7251, %v7253
    %v7255 = vrot.slane %v7245, %v7254
    %v7257 = vunpack.c.l.s4 1966171168
    %v7258 = vunpack.c.0.s8 %v7257
    %v7259 = vlaneseq
    %v7260 = vshrl.u32 %v7259, 7
    %v7261 = vsub.s32 %v7258, %v7260
    %v7262 = vrot.slane %v7246, %v7261
    %v7264 = vunpack.c.l.s4 1966171168
    %v7265 = vunpack.c.0.s8 %v7264
    %v7266 = vlaneseq
    %v7267 = vshrl.u32 %v7266, 7
    %v7268 = vsub.s32 %v7265, %v7267
    %v7269 = vrot.slane %v7247, %v7268
    %v7271 = vunpack.c.l.s4 1966171168
    %v7272 = vunpack.c.0.s8 %v7271
    %v7273 = vlaneseq
    %v7274 = vshrl.u32 %v7273, 7
    %v7275 = vsub.s32 %v7272, %v7274
    %v7276 = vrot.slane %v7248, %v7275
    %v7277 = vcombine.low %v7255, %v7262
    %v7278 = vcombine.low %v7269, %v7276
    %v7280 = vunpack.c.l.s4 1966171168
    %v7281 = vunpack.c.0.s8 %v7280
    %v7282 = vlaneseq
    %v7283 = vshrl.u32 %v7282, 7
    %v7284 = vsub.s32 %v7281, %v7283
    %v7285 = vrot.slane %v7277, %v7284
    %v7287 = vunpack.c.l.s4 1966171168
    %v7288 = vunpack.c.0.s8 %v7287
    %v7289 = vlaneseq
    %v7290 = vshrl.u32 %v7289, 7
    %v7291 = vsub.s32 %v7288, %v7290
    %v7292 = vrot.slane %v7278, %v7291
    %v7293 = vcombine.low %v7285, %v7292
    %v7294 = vcombine.low %v4824, %v4828
    %v7295 = vcombine.low %v4832, %v4836
    %v7296 = vcombine.low %v4840, %v4844
    %v7297 = vcombine.low %v4848, %v4852
    %v7299 = vunpack.c.l.s4 1966171168
    %v7300 = vunpack.c.0.s8 %v7299
    %v7301 = vlaneseq
    %v7302 = vshrl.u32 %v7301, 7
    %v7303 = vsub.s32 %v7300, %v7302
    %v7304 = vrot.slane %v7294, %v7303
    %v7306 = vunpack.c.l.s4 1966171168
    %v7307 = vunpack.c.0.s8 %v7306
    %v7308 = vlaneseq
    %v7309 = vshrl.u32 %v7308, 7
    %v7310 = vsub.s32 %v7307, %v7309
    %v7311 = vrot.slane %v7295, %v7310
    %v7313 = vunpack.c.l.s4 1966171168
    %v7314 = vunpack.c.0.s8 %v7313
    %v7315 = vlaneseq
    %v7316 = vshrl.u32 %v7315, 7
    %v7317 = vsub.s32 %v7314, %v7316
    %v7318 = vrot.slane %v7296, %v7317
    %v7320 = vunpack.c.l.s4 1966171168
    %v7321 = vunpack.c.0.s8 %v7320
    %v7322 = vlaneseq
    %v7323 = vshrl.u32 %v7322, 7
    %v7324 = vsub.s32 %v7321, %v7323
    %v7325 = vrot.slane %v7297, %v7324
    %v7326 = vcombine.low %v7304, %v7311
    %v7327 = vcombine.low %v7318, %v7325
    %v7329 = vunpack.c.l.s4 1966171168
    %v7330 = vunpack.c.0.s8 %v7329
    %v7331 = vlaneseq
    %v7332 = vshrl.u32 %v7331, 7
    %v7333 = vsub.s32 %v7330, %v7332
    %v7334 = vrot.slane %v7326, %v7333
    %v7336 = vunpack.c.l.s4 1966171168
    %v7337 = vunpack.c.0.s8 %v7336
    %v7338 = vlaneseq
    %v7339 = vshrl.u32 %v7338, 7
    %v7340 = vsub.s32 %v7337, %v7339
    %v7341 = vrot.slane %v7327, %v7340
    %v7342 = vcombine.low %v7334, %v7341
    %v7343 = vcombine.low %v4856, %v4860
    %v7344 = vcombine.low %v4864, %v4868
    %v7345 = vcombine.low %v4872, %v4876
    %v7346 = vcombine.low %v4880, %v4884
    %v7348 = vunpack.c.l.s4 1966171168
    %v7349 = vunpack.c.0.s8 %v7348
    %v7350 = vlaneseq
    %v7351 = vshrl.u32 %v7350, 7
    %v7352 = vsub.s32 %v7349, %v7351
    %v7353 = vrot.slane %v7343, %v7352
    %v7355 = vunpack.c.l.s4 1966171168
    %v7356 = vunpack.c.0.s8 %v7355
    %v7357 = vlaneseq
    %v7358 = vshrl.u32 %v7357, 7
    %v7359 = vsub.s32 %v7356, %v7358
    %v7360 = vrot.slane %v7344, %v7359
    %v7362 = vunpack.c.l.s4 1966171168
    %v7363 = vunpack.c.0.s8 %v7362
    %v7364 = vlaneseq
    %v7365 = vshrl.u32 %v7364, 7
    %v7366 = vsub.s32 %v7363, %v7365
    %v7367 = vrot.slane %v7345, %v7366
    %v7369 = vunpack.c.l.s4 1966171168
    %v7370 = vunpack.c.0.s8 %v7369
    %v7371 = vlaneseq
    %v7372 = vshrl.u32 %v7371, 7
    %v7373 = vsub.s32 %v7370, %v7372
    %v7374 = vrot.slane %v7346, %v7373
    %v7375 = vcombine.low %v7353, %v7360
    %v7376 = vcombine.low %v7367, %v7374
    %v7378 = vunpack.c.l.s4 1966171168
    %v7379 = vunpack.c.0.s8 %v7378
    %v7380 = vlaneseq
    %v7381 = vshrl.u32 %v7380, 7
    %v7382 = vsub.s32 %v7379, %v7381
    %v7383 = vrot.slane %v7375, %v7382
    %v7385 = vunpack.c.l.s4 1966171168
    %v7386 = vunpack.c.0.s8 %v7385
    %v7387 = vlaneseq
    %v7388 = vshrl.u32 %v7387, 7
    %v7389 = vsub.s32 %v7386, %v7388
    %v7390 = vrot.slane %v7376, %v7389
    %v7391 = vcombine.low %v7383, %v7390
    %v7392 = vcombine.low %v4888, %v4892
    %v7393 = vcombine.low %v4896, %v4900
    %v7394 = vcombine.low %v4904, %v4908
    %v7395 = vcombine.low %v4912, %v4916
    %v7397 = vunpack.c.l.s4 1966171168
    %v7398 = vunpack.c.0.s8 %v7397
    %v7399 = vlaneseq
    %v7400 = vshrl.u32 %v7399, 7
    %v7401 = vsub.s32 %v7398, %v7400
    %v7402 = vrot.slane %v7392, %v7401
    %v7404 = vunpack.c.l.s4 1966171168
    %v7405 = vunpack.c.0.s8 %v7404
    %v7406 = vlaneseq
    %v7407 = vshrl.u32 %v7406, 7
    %v7408 = vsub.s32 %v7405, %v7407
    %v7409 = vrot.slane %v7393, %v7408
    %v7411 = vunpack.c.l.s4 1966171168
    %v7412 = vunpack.c.0.s8 %v7411
    %v7413 = vlaneseq
    %v7414 = vshrl.u32 %v7413, 7
    %v7415 = vsub.s32 %v7412, %v7414
    %v7416 = vrot.slane %v7394, %v7415
    %v7418 = vunpack.c.l.s4 1966171168
    %v7419 = vunpack.c.0.s8 %v7418
    %v7420 = vlaneseq
    %v7421 = vshrl.u32 %v7420, 7
    %v7422 = vsub.s32 %v7419, %v7421
    %v7423 = vrot.slane %v7395, %v7422
    %v7424 = vcombine.low %v7402, %v7409
    %v7425 = vcombine.low %v7416, %v7423
    %v7427 = vunpack.c.l.s4 1966171168
    %v7428 = vunpack.c.0.s8 %v7427
    %v7429 = vlaneseq
    %v7430 = vshrl.u32 %v7429, 7
    %v7431 = vsub.s32 %v7428, %v7430
    %v7432 = vrot.slane %v7424, %v7431
    %v7434 = vunpack.c.l.s4 1966171168
    %v7435 = vunpack.c.0.s8 %v7434
    %v7436 = vlaneseq
    %v7437 = vshrl.u32 %v7436, 7
    %v7438 = vsub.s32 %v7435, %v7437
    %v7439 = vrot.slane %v7425, %v7438
    %v7440 = vcombine.low %v7432, %v7439
    %v7441 = vcombine.low %v4920, %v4924
    %v7442 = vcombine.low %v4928, %v4932
    %v7443 = vcombine.low %v4936, %v4940
    %v7444 = vcombine.low %v4944, %v4948
    %v7446 = vunpack.c.l.s4 1966171168
    %v7447 = vunpack.c.0.s8 %v7446
    %v7448 = vlaneseq
    %v7449 = vshrl.u32 %v7448, 7
    %v7450 = vsub.s32 %v7447, %v7449
    %v7451 = vrot.slane %v7441, %v7450
    %v7453 = vunpack.c.l.s4 1966171168
    %v7454 = vunpack.c.0.s8 %v7453
    %v7455 = vlaneseq
    %v7456 = vshrl.u32 %v7455, 7
    %v7457 = vsub.s32 %v7454, %v7456
    %v7458 = vrot.slane %v7442, %v7457
    %v7460 = vunpack.c.l.s4 1966171168
    %v7461 = vunpack.c.0.s8 %v7460
    %v7462 = vlaneseq
    %v7463 = vshrl.u32 %v7462, 7
    %v7464 = vsub.s32 %v7461, %v7463
    %v7465 = vrot.slane %v7443, %v7464
    %v7467 = vunpack.c.l.s4 1966171168
    %v7468 = vunpack.c.0.s8 %v7467
    %v7469 = vlaneseq
    %v7470 = vshrl.u32 %v7469, 7
    %v7471 = vsub.s32 %v7468, %v7470
    %v7472 = vrot.slane %v7444, %v7471
    %v7473 = vcombine.low %v7451, %v7458
    %v7474 = vcombine.low %v7465, %v7472
    %v7476 = vunpack.c.l.s4 1966171168
    %v7477 = vunpack.c.0.s8 %v7476
    %v7478 = vlaneseq
    %v7479 = vshrl.u32 %v7478, 7
    %v7480 = vsub.s32 %v7477, %v7479
    %v7481 = vrot.slane %v7473, %v7480
    %v7483 = vunpack.c.l.s4 1966171168
    %v7484 = vunpack.c.0.s8 %v7483
    %v7485 = vlaneseq
    %v7486 = vshrl.u32 %v7485, 7
    %v7487 = vsub.s32 %v7484, %v7486
    %v7488 = vrot.slane %v7474, %v7487
    %v7489 = vcombine.low %v7481, %v7488
    %v7490 = vcombine.low %v4952, %v4956
    %v7491 = vcombine.low %v4960, %v4964
    %v7492 = vcombine.low %v4968, %v4972
    %v7493 = vcombine.low %v4976, %v4980
    %v7495 = vunpack.c.l.s4 1966171168
    %v7496 = vunpack.c.0.s8 %v7495
    %v7497 = vlaneseq
    %v7498 = vshrl.u32 %v7497, 7
    %v7499 = vsub.s32 %v7496, %v7498
    %v7500 = vrot.slane %v7490, %v7499
    %v7502 = vunpack.c.l.s4 1966171168
    %v7503 = vunpack.c.0.s8 %v7502
    %v7504 = vlaneseq
    %v7505 = vshrl.u32 %v7504, 7
    %v7506 = vsub.s32 %v7503, %v7505
    %v7507 = vrot.slane %v7491, %v7506
    %v7509 = vunpack.c.l.s4 1966171168
    %v7510 = vunpack.c.0.s8 %v7509
    %v7511 = vlaneseq
    %v7512 = vshrl.u32 %v7511, 7
    %v7513 = vsub.s32 %v7510, %v7512
    %v7514 = vrot.slane %v7492, %v7513
    %v7516 = vunpack.c.l.s4 1966171168
    %v7517 = vunpack.c.0.s8 %v7516
    %v7518 = vlaneseq
    %v7519 = vshrl.u32 %v7518, 7
    %v7520 = vsub.s32 %v7517, %v7519
    %v7521 = vrot.slane %v7493, %v7520
    %v7522 = vcombine.low %v7500, %v7507
    %v7523 = vcombine.low %v7514, %v7521
    %v7525 = vunpack.c.l.s4 1966171168
    %v7526 = vunpack.c.0.s8 %v7525
    %v7527 = vlaneseq
    %v7528 = vshrl.u32 %v7527, 7
    %v7529 = vsub.s32 %v7526, %v7528
    %v7530 = vrot.slane %v7522, %v7529
    %v7532 = vunpack.c.l.s4 1966171168
    %v7533 = vunpack.c.0.s8 %v7532
    %v7534 = vlaneseq
    %v7535 = vshrl.u32 %v7534, 7
    %v7536 = vsub.s32 %v7533, %v7535
    %v7537 = vrot.slane %v7523, %v7536
    %v7538 = vcombine.low %v7530, %v7537
    %v7539 = vcombine.low %v4984, %v4988
    %v7540 = vcombine.low %v4992, %v4996
    %v7541 = vcombine.low %v5000, %v5004
    %v7542 = vcombine.low %v5008, %v5012
    %v7544 = vunpack.c.l.s4 1966171168
    %v7545 = vunpack.c.0.s8 %v7544
    %v7546 = vlaneseq
    %v7547 = vshrl.u32 %v7546, 7
    %v7548 = vsub.s32 %v7545, %v7547
    %v7549 = vrot.slane %v7539, %v7548
    %v7551 = vunpack.c.l.s4 1966171168
    %v7552 = vunpack.c.0.s8 %v7551
    %v7553 = vlaneseq
    %v7554 = vshrl.u32 %v7553, 7
    %v7555 = vsub.s32 %v7552, %v7554
    %v7556 = vrot.slane %v7540, %v7555
    %v7558 = vunpack.c.l.s4 1966171168
    %v7559 = vunpack.c.0.s8 %v7558
    %v7560 = vlaneseq
    %v7561 = vshrl.u32 %v7560, 7
    %v7562 = vsub.s32 %v7559, %v7561
    %v7563 = vrot.slane %v7541, %v7562
    %v7565 = vunpack.c.l.s4 1966171168
    %v7566 = vunpack.c.0.s8 %v7565
    %v7567 = vlaneseq
    %v7568 = vshrl.u32 %v7567, 7
    %v7569 = vsub.s32 %v7566, %v7568
    %v7570 = vrot.slane %v7542, %v7569
    %v7571 = vcombine.low %v7549, %v7556
    %v7572 = vcombine.low %v7563, %v7570
    %v7574 = vunpack.c.l.s4 1966171168
    %v7575 = vunpack.c.0.s8 %v7574
    %v7576 = vlaneseq
    %v7577 = vshrl.u32 %v7576, 7
    %v7578 = vsub.s32 %v7575, %v7577
    %v7579 = vrot.slane %v7571, %v7578
    %v7581 = vunpack.c.l.s4 1966171168
    %v7582 = vunpack.c.0.s8 %v7581
    %v7583 = vlaneseq
    %v7584 = vshrl.u32 %v7583, 7
    %v7585 = vsub.s32 %v7582, %v7584
    %v7586 = vrot.slane %v7572, %v7585
    %v7587 = vcombine.low %v7579, %v7586
    %v7588 = vcombine.low %v5016, %v5020
    %v7589 = vcombine.low %v5024, %v5028
    %v7590 = vcombine.low %v5032, %v5036
    %v7591 = vcombine.low %v5040, %v5044
    %v7593 = vunpack.c.l.s4 1966171168
    %v7594 = vunpack.c.0.s8 %v7593
    %v7595 = vlaneseq
    %v7596 = vshrl.u32 %v7595, 7
    %v7597 = vsub.s32 %v7594, %v7596
    %v7598 = vrot.slane %v7588, %v7597
    %v7600 = vunpack.c.l.s4 1966171168
    %v7601 = vunpack.c.0.s8 %v7600
    %v7602 = vlaneseq
    %v7603 = vshrl.u32 %v7602, 7
    %v7604 = vsub.s32 %v7601, %v7603
    %v7605 = vrot.slane %v7589, %v7604
    %v7607 = vunpack.c.l.s4 1966171168
    %v7608 = vunpack.c.0.s8 %v7607
    %v7609 = vlaneseq
    %v7610 = vshrl.u32 %v7609, 7
    %v7611 = vsub.s32 %v7608, %v7610
    %v7612 = vrot.slane %v7590, %v7611
    %v7614 = vunpack.c.l.s4 1966171168
    %v7615 = vunpack.c.0.s8 %v7614
    %v7616 = vlaneseq
    %v7617 = vshrl.u32 %v7616, 7
    %v7618 = vsub.s32 %v7615, %v7617
    %v7619 = vrot.slane %v7591, %v7618
    %v7620 = vcombine.low %v7598, %v7605
    %v7621 = vcombine.low %v7612, %v7619
    %v7623 = vunpack.c.l.s4 1966171168
    %v7624 = vunpack.c.0.s8 %v7623
    %v7625 = vlaneseq
    %v7626 = vshrl.u32 %v7625, 7
    %v7627 = vsub.s32 %v7624, %v7626
    %v7628 = vrot.slane %v7620, %v7627
    %v7630 = vunpack.c.l.s4 1966171168
    %v7631 = vunpack.c.0.s8 %v7630
    %v7632 = vlaneseq
    %v7633 = vshrl.u32 %v7632, 7
    %v7634 = vsub.s32 %v7631, %v7633
    %v7635 = vrot.slane %v7621, %v7634
    %v7636 = vcombine.low %v7628, %v7635
    %v7637 = vcombine.low %v5048, %v5052
    %v7638 = vcombine.low %v5056, %v5060
    %v7639 = vcombine.low %v5064, %v5068
    %v7640 = vcombine.low %v5072, %v5076
    %v7642 = vunpack.c.l.s4 1966171168
    %v7643 = vunpack.c.0.s8 %v7642
    %v7644 = vlaneseq
    %v7645 = vshrl.u32 %v7644, 7
    %v7646 = vsub.s32 %v7643, %v7645
    %v7647 = vrot.slane %v7637, %v7646
    %v7649 = vunpack.c.l.s4 1966171168
    %v7650 = vunpack.c.0.s8 %v7649
    %v7651 = vlaneseq
    %v7652 = vshrl.u32 %v7651, 7
    %v7653 = vsub.s32 %v7650, %v7652
    %v7654 = vrot.slane %v7638, %v7653
    %v7656 = vunpack.c.l.s4 1966171168
    %v7657 = vunpack.c.0.s8 %v7656
    %v7658 = vlaneseq
    %v7659 = vshrl.u32 %v7658, 7
    %v7660 = vsub.s32 %v7657, %v7659
    %v7661 = vrot.slane %v7639, %v7660
    %v7663 = vunpack.c.l.s4 1966171168
    %v7664 = vunpack.c.0.s8 %v7663
    %v7665 = vlaneseq
    %v7666 = vshrl.u32 %v7665, 7
    %v7667 = vsub.s32 %v7664, %v7666
    %v7668 = vrot.slane %v7640, %v7667
    %v7669 = vcombine.low %v7647, %v7654
    %v7670 = vcombine.low %v7661, %v7668
    %v7672 = vunpack.c.l.s4 1966171168
    %v7673 = vunpack.c.0.s8 %v7672
    %v7674 = vlaneseq
    %v7675 = vshrl.u32 %v7674, 7
    %v7676 = vsub.s32 %v7673, %v7675
    %v7677 = vrot.slane %v7669, %v7676
    %v7679 = vunpack.c.l.s4 1966171168
    %v7680 = vunpack.c.0.s8 %v7679
    %v7681 = vlaneseq
    %v7682 = vshrl.u32 %v7681, 7
    %v7683 = vsub.s32 %v7680, %v7682
    %v7684 = vrot.slane %v7670, %v7683
    %v7685 = vcombine.low %v7677, %v7684
    %v7686 = vcombine.low %v5080, %v5084
    %v7687 = vcombine.low %v5088, %v5092
    %v7688 = vcombine.low %v5096, %v5100
    %v7689 = vcombine.low %v5104, %v5108
    %v7691 = vunpack.c.l.s4 1966171168
    %v7692 = vunpack.c.0.s8 %v7691
    %v7693 = vlaneseq
    %v7694 = vshrl.u32 %v7693, 7
    %v7695 = vsub.s32 %v7692, %v7694
    %v7696 = vrot.slane %v7686, %v7695
    %v7698 = vunpack.c.l.s4 1966171168
    %v7699 = vunpack.c.0.s8 %v7698
    %v7700 = vlaneseq
    %v7701 = vshrl.u32 %v7700, 7
    %v7702 = vsub.s32 %v7699, %v7701
    %v7703 = vrot.slane %v7687, %v7702
    %v7705 = vunpack.c.l.s4 1966171168
    %v7706 = vunpack.c.0.s8 %v7705
    %v7707 = vlaneseq
    %v7708 = vshrl.u32 %v7707, 7
    %v7709 = vsub.s32 %v7706, %v7708
    %v7710 = vrot.slane %v7688, %v7709
    %v7712 = vunpack.c.l.s4 1966171168
    %v7713 = vunpack.c.0.s8 %v7712
    %v7714 = vlaneseq
    %v7715 = vshrl.u32 %v7714, 7
    %v7716 = vsub.s32 %v7713, %v7715
    %v7717 = vrot.slane %v7689, %v7716
    %v7718 = vcombine.low %v7696, %v7703
    %v7719 = vcombine.low %v7710, %v7717
    %v7721 = vunpack.c.l.s4 1966171168
    %v7722 = vunpack.c.0.s8 %v7721
    %v7723 = vlaneseq
    %v7724 = vshrl.u32 %v7723, 7
    %v7725 = vsub.s32 %v7722, %v7724
    %v7726 = vrot.slane %v7718, %v7725
    %v7728 = vunpack.c.l.s4 1966171168
    %v7729 = vunpack.c.0.s8 %v7728
    %v7730 = vlaneseq
    %v7731 = vshrl.u32 %v7730, 7
    %v7732 = vsub.s32 %v7729, %v7731
    %v7733 = vrot.slane %v7719, %v7732
    %v7734 = vcombine.low %v7726, %v7733
    %v7735 = vcombine.low %v5112, %v5116
    %v7736 = vcombine.low %v5120, %v5124
    %v7737 = vcombine.low %v5128, %v5132
    %v7738 = vcombine.low %v5136, %v5140
    %v7740 = vunpack.c.l.s4 1966171168
    %v7741 = vunpack.c.0.s8 %v7740
    %v7742 = vlaneseq
    %v7743 = vshrl.u32 %v7742, 7
    %v7744 = vsub.s32 %v7741, %v7743
    %v7745 = vrot.slane %v7735, %v7744
    %v7747 = vunpack.c.l.s4 1966171168
    %v7748 = vunpack.c.0.s8 %v7747
    %v7749 = vlaneseq
    %v7750 = vshrl.u32 %v7749, 7
    %v7751 = vsub.s32 %v7748, %v7750
    %v7752 = vrot.slane %v7736, %v7751
    %v7754 = vunpack.c.l.s4 1966171168
    %v7755 = vunpack.c.0.s8 %v7754
    %v7756 = vlaneseq
    %v7757 = vshrl.u32 %v7756, 7
    %v7758 = vsub.s32 %v7755, %v7757
    %v7759 = vrot.slane %v7737, %v7758
    %v7761 = vunpack.c.l.s4 1966171168
    %v7762 = vunpack.c.0.s8 %v7761
    %v7763 = vlaneseq
    %v7764 = vshrl.u32 %v7763, 7
    %v7765 = vsub.s32 %v7762, %v7764
    %v7766 = vrot.slane %v7738, %v7765
    %v7767 = vcombine.low %v7745, %v7752
    %v7768 = vcombine.low %v7759, %v7766
    %v7770 = vunpack.c.l.s4 1966171168
    %v7771 = vunpack.c.0.s8 %v7770
    %v7772 = vlaneseq
    %v7773 = vshrl.u32 %v7772, 7
    %v7774 = vsub.s32 %v7771, %v7773
    %v7775 = vrot.slane %v7767, %v7774
    %v7777 = vunpack.c.l.s4 1966171168
    %v7778 = vunpack.c.0.s8 %v7777
    %v7779 = vlaneseq
    %v7780 = vshrl.u32 %v7779, 7
    %v7781 = vsub.s32 %v7778, %v7780
    %v7782 = vrot.slane %v7768, %v7781
    %v7783 = vcombine.low %v7775, %v7782
    %v7784 = vcombine.low %v5144, %v5148
    %v7785 = vcombine.low %v5152, %v5156
    %v7786 = vcombine.low %v5160, %v5164
    %v7787 = vcombine.low %v5168, %v5172
    %v7789 = vunpack.c.l.s4 1966171168
    %v7790 = vunpack.c.0.s8 %v7789
    %v7791 = vlaneseq
    %v7792 = vshrl.u32 %v7791, 7
    %v7793 = vsub.s32 %v7790, %v7792
    %v7794 = vrot.slane %v7784, %v7793
    %v7796 = vunpack.c.l.s4 1966171168
    %v7797 = vunpack.c.0.s8 %v7796
    %v7798 = vlaneseq
    %v7799 = vshrl.u32 %v7798, 7
    %v7800 = vsub.s32 %v7797, %v7799
    %v7801 = vrot.slane %v7785, %v7800
    %v7803 = vunpack.c.l.s4 1966171168
    %v7804 = vunpack.c.0.s8 %v7803
    %v7805 = vlaneseq
    %v7806 = vshrl.u32 %v7805, 7
    %v7807 = vsub.s32 %v7804, %v7806
    %v7808 = vrot.slane %v7786, %v7807
    %v7810 = vunpack.c.l.s4 1966171168
    %v7811 = vunpack.c.0.s8 %v7810
    %v7812 = vlaneseq
    %v7813 = vshrl.u32 %v7812, 7
    %v7814 = vsub.s32 %v7811, %v7813
    %v7815 = vrot.slane %v7787, %v7814
    %v7816 = vcombine.low %v7794, %v7801
    %v7817 = vcombine.low %v7808, %v7815
    %v7819 = vunpack.c.l.s4 1966171168
    %v7820 = vunpack.c.0.s8 %v7819
    %v7821 = vlaneseq
    %v7822 = vshrl.u32 %v7821, 7
    %v7823 = vsub.s32 %v7820, %v7822
    %v7824 = vrot.slane %v7816, %v7823
    %v7826 = vunpack.c.l.s4 1966171168
    %v7827 = vunpack.c.0.s8 %v7826
    %v7828 = vlaneseq
    %v7829 = vshrl.u32 %v7828, 7
    %v7830 = vsub.s32 %v7827, %v7829
    %v7831 = vrot.slane %v7817, %v7830
    %v7832 = vcombine.low %v7824, %v7831
    %v7833 = vcombine.low %v5176, %v5180
    %v7834 = vcombine.low %v5184, %v5188
    %v7835 = vcombine.low %v5192, %v5196
    %v7836 = vcombine.low %v5200, %v5204
    %v7838 = vunpack.c.l.s4 1966171168
    %v7839 = vunpack.c.0.s8 %v7838
    %v7840 = vlaneseq
    %v7841 = vshrl.u32 %v7840, 7
    %v7842 = vsub.s32 %v7839, %v7841
    %v7843 = vrot.slane %v7833, %v7842
    %v7845 = vunpack.c.l.s4 1966171168
    %v7846 = vunpack.c.0.s8 %v7845
    %v7847 = vlaneseq
    %v7848 = vshrl.u32 %v7847, 7
    %v7849 = vsub.s32 %v7846, %v7848
    %v7850 = vrot.slane %v7834, %v7849
    %v7852 = vunpack.c.l.s4 1966171168
    %v7853 = vunpack.c.0.s8 %v7852
    %v7854 = vlaneseq
    %v7855 = vshrl.u32 %v7854, 7
    %v7856 = vsub.s32 %v7853, %v7855
    %v7857 = vrot.slane %v7835, %v7856
    %v7859 = vunpack.c.l.s4 1966171168
    %v7860 = vunpack.c.0.s8 %v7859
    %v7861 = vlaneseq
    %v7862 = vshrl.u32 %v7861, 7
    %v7863 = vsub.s32 %v7860, %v7862
    %v7864 = vrot.slane %v7836, %v7863
    %v7865 = vcombine.low %v7843, %v7850
    %v7866 = vcombine.low %v7857, %v7864
    %v7868 = vunpack.c.l.s4 1966171168
    %v7869 = vunpack.c.0.s8 %v7868
    %v7870 = vlaneseq
    %v7871 = vshrl.u32 %v7870, 7
    %v7872 = vsub.s32 %v7869, %v7871
    %v7873 = vrot.slane %v7865, %v7872
    %v7875 = vunpack.c.l.s4 1966171168
    %v7876 = vunpack.c.0.s8 %v7875
    %v7877 = vlaneseq
    %v7878 = vshrl.u32 %v7877, 7
    %v7879 = vsub.s32 %v7876, %v7878
    %v7880 = vrot.slane %v7866, %v7879
    %v7881 = vcombine.low %v7873, %v7880
    %v7882 = vcombine.low %v5208, %v5212
    %v7883 = vcombine.low %v5216, %v5220
    %v7884 = vcombine.low %v5224, %v5228
    %v7885 = vcombine.low %v5232, %v5236
    %v7887 = vunpack.c.l.s4 1966171168
    %v7888 = vunpack.c.0.s8 %v7887
    %v7889 = vlaneseq
    %v7890 = vshrl.u32 %v7889, 7
    %v7891 = vsub.s32 %v7888, %v7890
    %v7892 = vrot.slane %v7882, %v7891
    %v7894 = vunpack.c.l.s4 1966171168
    %v7895 = vunpack.c.0.s8 %v7894
    %v7896 = vlaneseq
    %v7897 = vshrl.u32 %v7896, 7
    %v7898 = vsub.s32 %v7895, %v7897
    %v7899 = vrot.slane %v7883, %v7898
    %v7901 = vunpack.c.l.s4 1966171168
    %v7902 = vunpack.c.0.s8 %v7901
    %v7903 = vlaneseq
    %v7904 = vshrl.u32 %v7903, 7
    %v7905 = vsub.s32 %v7902, %v7904
    %v7906 = vrot.slane %v7884, %v7905
    %v7908 = vunpack.c.l.s4 1966171168
    %v7909 = vunpack.c.0.s8 %v7908
    %v7910 = vlaneseq
    %v7911 = vshrl.u32 %v7910, 7
    %v7912 = vsub.s32 %v7909, %v7911
    %v7913 = vrot.slane %v7885, %v7912
    %v7914 = vcombine.low %v7892, %v7899
    %v7915 = vcombine.low %v7906, %v7913
    %v7917 = vunpack.c.l.s4 1966171168
    %v7918 = vunpack.c.0.s8 %v7917
    %v7919 = vlaneseq
    %v7920 = vshrl.u32 %v7919, 7
    %v7921 = vsub.s32 %v7918, %v7920
    %v7922 = vrot.slane %v7914, %v7921
    %v7924 = vunpack.c.l.s4 1966171168
    %v7925 = vunpack.c.0.s8 %v7924
    %v7926 = vlaneseq
    %v7927 = vshrl.u32 %v7926, 7
    %v7928 = vsub.s32 %v7925, %v7927
    %v7929 = vrot.slane %v7915, %v7928
    %v7930 = vcombine.low %v7922, %v7929
    %v7931 = vcombine.low %v5240, %v5244
    %v7932 = vcombine.low %v5248, %v5252
    %v7933 = vcombine.low %v5256, %v5260
    %v7934 = vcombine.low %v5264, %v5268
    %v7936 = vunpack.c.l.s4 1966171168
    %v7937 = vunpack.c.0.s8 %v7936
    %v7938 = vlaneseq
    %v7939 = vshrl.u32 %v7938, 7
    %v7940 = vsub.s32 %v7937, %v7939
    %v7941 = vrot.slane %v7931, %v7940
    %v7943 = vunpack.c.l.s4 1966171168
    %v7944 = vunpack.c.0.s8 %v7943
    %v7945 = vlaneseq
    %v7946 = vshrl.u32 %v7945, 7
    %v7947 = vsub.s32 %v7944, %v7946
    %v7948 = vrot.slane %v7932, %v7947
    %v7950 = vunpack.c.l.s4 1966171168
    %v7951 = vunpack.c.0.s8 %v7950
    %v7952 = vlaneseq
    %v7953 = vshrl.u32 %v7952, 7
    %v7954 = vsub.s32 %v7951, %v7953
    %v7955 = vrot.slane %v7933, %v7954
    %v7957 = vunpack.c.l.s4 1966171168
    %v7958 = vunpack.c.0.s8 %v7957
    %v7959 = vlaneseq
    %v7960 = vshrl.u32 %v7959, 7
    %v7961 = vsub.s32 %v7958, %v7960
    %v7962 = vrot.slane %v7934, %v7961
    %v7963 = vcombine.low %v7941, %v7948
    %v7964 = vcombine.low %v7955, %v7962
    %v7966 = vunpack.c.l.s4 1966171168
    %v7967 = vunpack.c.0.s8 %v7966
    %v7968 = vlaneseq
    %v7969 = vshrl.u32 %v7968, 7
    %v7970 = vsub.s32 %v7967, %v7969
    %v7971 = vrot.slane %v7963, %v7970
    %v7973 = vunpack.c.l.s4 1966171168
    %v7974 = vunpack.c.0.s8 %v7973
    %v7975 = vlaneseq
    %v7976 = vshrl.u32 %v7975, 7
    %v7977 = vsub.s32 %v7974, %v7976
    %v7978 = vrot.slane %v7964, %v7977
    %v7979 = vcombine.low %v7971, %v7978
    %v7980 = vcombine.low %v5272, %v5276
    %v7981 = vcombine.low %v5280, %v5284
    %v7982 = vcombine.low %v5288, %v5292
    %v7983 = vcombine.low %v5296, %v5300
    %v7985 = vunpack.c.l.s4 1966171168
    %v7986 = vunpack.c.0.s8 %v7985
    %v7987 = vlaneseq
    %v7988 = vshrl.u32 %v7987, 7
    %v7989 = vsub.s32 %v7986, %v7988
    %v7990 = vrot.slane %v7980, %v7989
    %v7992 = vunpack.c.l.s4 1966171168
    %v7993 = vunpack.c.0.s8 %v7992
    %v7994 = vlaneseq
    %v7995 = vshrl.u32 %v7994, 7
    %v7996 = vsub.s32 %v7993, %v7995
    %v7997 = vrot.slane %v7981, %v7996
    %v7999 = vunpack.c.l.s4 1966171168
    %v8000 = vunpack.c.0.s8 %v7999
    %v8001 = vlaneseq
    %v8002 = vshrl.u32 %v8001, 7
    %v8003 = vsub.s32 %v8000, %v8002
    %v8004 = vrot.slane %v7982, %v8003
    %v8006 = vunpack.c.l.s4 1966171168
    %v8007 = vunpack.c.0.s8 %v8006
    %v8008 = vlaneseq
    %v8009 = vshrl.u32 %v8008, 7
    %v8010 = vsub.s32 %v8007, %v8009
    %v8011 = vrot.slane %v7983, %v8010
    %v8012 = vcombine.low %v7990, %v7997
    %v8013 = vcombine.low %v8004, %v8011
    %v8015 = vunpack.c.l.s4 1966171168
    %v8016 = vunpack.c.0.s8 %v8015
    %v8017 = vlaneseq
    %v8018 = vshrl.u32 %v8017, 7
    %v8019 = vsub.s32 %v8016, %v8018
    %v8020 = vrot.slane %v8012, %v8019
    %v8022 = vunpack.c.l.s4 1966171168
    %v8023 = vunpack.c.0.s8 %v8022
    %v8024 = vlaneseq
    %v8025 = vshrl.u32 %v8024, 7
    %v8026 = vsub.s32 %v8023, %v8025
    %v8027 = vrot.slane %v8013, %v8026
    %v8028 = vcombine.low %v8020, %v8027
    %v8029 = vcombine.low %v5304, %v5308
    %v8030 = vcombine.low %v5312, %v5316
    %v8031 = vcombine.low %v5320, %v5324
    %v8032 = vcombine.low %v5328, %v5332
    %v8034 = vunpack.c.l.s4 1966171168
    %v8035 = vunpack.c.0.s8 %v8034
    %v8036 = vlaneseq
    %v8037 = vshrl.u32 %v8036, 7
    %v8038 = vsub.s32 %v8035, %v8037
    %v8039 = vrot.slane %v8029, %v8038
    %v8041 = vunpack.c.l.s4 1966171168
    %v8042 = vunpack.c.0.s8 %v8041
    %v8043 = vlaneseq
    %v8044 = vshrl.u32 %v8043, 7
    %v8045 = vsub.s32 %v8042, %v8044
    %v8046 = vrot.slane %v8030, %v8045
    %v8048 = vunpack.c.l.s4 1966171168
    %v8049 = vunpack.c.0.s8 %v8048
    %v8050 = vlaneseq
    %v8051 = vshrl.u32 %v8050, 7
    %v8052 = vsub.s32 %v8049, %v8051
    %v8053 = vrot.slane %v8031, %v8052
    %v8055 = vunpack.c.l.s4 1966171168
    %v8056 = vunpack.c.0.s8 %v8055
    %v8057 = vlaneseq
    %v8058 = vshrl.u32 %v8057, 7
    %v8059 = vsub.s32 %v8056, %v8058
    %v8060 = vrot.slane %v8032, %v8059
    %v8061 = vcombine.low %v8039, %v8046
    %v8062 = vcombine.low %v8053, %v8060
    %v8064 = vunpack.c.l.s4 1966171168
    %v8065 = vunpack.c.0.s8 %v8064
    %v8066 = vlaneseq
    %v8067 = vshrl.u32 %v8066, 7
    %v8068 = vsub.s32 %v8065, %v8067
    %v8069 = vrot.slane %v8061, %v8068
    %v8071 = vunpack.c.l.s4 1966171168
    %v8072 = vunpack.c.0.s8 %v8071
    %v8073 = vlaneseq
    %v8074 = vshrl.u32 %v8073, 7
    %v8075 = vsub.s32 %v8072, %v8074
    %v8076 = vrot.slane %v8062, %v8075
    %v8077 = vcombine.low %v8069, %v8076
    %v8078 = vcombine.low %v5336, %v5340
    %v8079 = vcombine.low %v5344, %v5348
    %v8080 = vcombine.low %v5352, %v5356
    %v8081 = vcombine.low %v5360, %v5364
    %v8083 = vunpack.c.l.s4 1966171168
    %v8084 = vunpack.c.0.s8 %v8083
    %v8085 = vlaneseq
    %v8086 = vshrl.u32 %v8085, 7
    %v8087 = vsub.s32 %v8084, %v8086
    %v8088 = vrot.slane %v8078, %v8087
    %v8090 = vunpack.c.l.s4 1966171168
    %v8091 = vunpack.c.0.s8 %v8090
    %v8092 = vlaneseq
    %v8093 = vshrl.u32 %v8092, 7
    %v8094 = vsub.s32 %v8091, %v8093
    %v8095 = vrot.slane %v8079, %v8094
    %v8097 = vunpack.c.l.s4 1966171168
    %v8098 = vunpack.c.0.s8 %v8097
    %v8099 = vlaneseq
    %v8100 = vshrl.u32 %v8099, 7
    %v8101 = vsub.s32 %v8098, %v8100
    %v8102 = vrot.slane %v8080, %v8101
    %v8104 = vunpack.c.l.s4 1966171168
    %v8105 = vunpack.c.0.s8 %v8104
    %v8106 = vlaneseq
    %v8107 = vshrl.u32 %v8106, 7
    %v8108 = vsub.s32 %v8105, %v8107
    %v8109 = vrot.slane %v8081, %v8108
    %v8110 = vcombine.low %v8088, %v8095
    %v8111 = vcombine.low %v8102, %v8109
    %v8113 = vunpack.c.l.s4 1966171168
    %v8114 = vunpack.c.0.s8 %v8113
    %v8115 = vlaneseq
    %v8116 = vshrl.u32 %v8115, 7
    %v8117 = vsub.s32 %v8114, %v8116
    %v8118 = vrot.slane %v8110, %v8117
    %v8120 = vunpack.c.l.s4 1966171168
    %v8121 = vunpack.c.0.s8 %v8120
    %v8122 = vlaneseq
    %v8123 = vshrl.u32 %v8122, 7
    %v8124 = vsub.s32 %v8121, %v8123
    %v8125 = vrot.slane %v8111, %v8124
    %v8126 = vcombine.low %v8118, %v8125
    %v8127 = vcombine.low %v5368, %v5372
    %v8128 = vcombine.low %v5376, %v5380
    %v8129 = vcombine.low %v5384, %v5388
    %v8130 = vcombine.low %v5392, %v5396
    %v8132 = vunpack.c.l.s4 1966171168
    %v8133 = vunpack.c.0.s8 %v8132
    %v8134 = vlaneseq
    %v8135 = vshrl.u32 %v8134, 7
    %v8136 = vsub.s32 %v8133, %v8135
    %v8137 = vrot.slane %v8127, %v8136
    %v8139 = vunpack.c.l.s4 1966171168
    %v8140 = vunpack.c.0.s8 %v8139
    %v8141 = vlaneseq
    %v8142 = vshrl.u32 %v8141, 7
    %v8143 = vsub.s32 %v8140, %v8142
    %v8144 = vrot.slane %v8128, %v8143
    %v8146 = vunpack.c.l.s4 1966171168
    %v8147 = vunpack.c.0.s8 %v8146
    %v8148 = vlaneseq
    %v8149 = vshrl.u32 %v8148, 7
    %v8150 = vsub.s32 %v8147, %v8149
    %v8151 = vrot.slane %v8129, %v8150
    %v8153 = vunpack.c.l.s4 1966171168
    %v8154 = vunpack.c.0.s8 %v8153
    %v8155 = vlaneseq
    %v8156 = vshrl.u32 %v8155, 7
    %v8157 = vsub.s32 %v8154, %v8156
    %v8158 = vrot.slane %v8130, %v8157
    %v8159 = vcombine.low %v8137, %v8144
    %v8160 = vcombine.low %v8151, %v8158
    %v8162 = vunpack.c.l.s4 1966171168
    %v8163 = vunpack.c.0.s8 %v8162
    %v8164 = vlaneseq
    %v8165 = vshrl.u32 %v8164, 7
    %v8166 = vsub.s32 %v8163, %v8165
    %v8167 = vrot.slane %v8159, %v8166
    %v8169 = vunpack.c.l.s4 1966171168
    %v8170 = vunpack.c.0.s8 %v8169
    %v8171 = vlaneseq
    %v8172 = vshrl.u32 %v8171, 7
    %v8173 = vsub.s32 %v8170, %v8172
    %v8174 = vrot.slane %v8160, %v8173
    %v8175 = vcombine.low %v8167, %v8174
    %v8176 = vcombine.low %v5400, %v5404
    %v8177 = vcombine.low %v5408, %v5412
    %v8178 = vcombine.low %v5416, %v5420
    %v8179 = vcombine.low %v5424, %v5428
    %v8181 = vunpack.c.l.s4 1966171168
    %v8182 = vunpack.c.0.s8 %v8181
    %v8183 = vlaneseq
    %v8184 = vshrl.u32 %v8183, 7
    %v8185 = vsub.s32 %v8182, %v8184
    %v8186 = vrot.slane %v8176, %v8185
    %v8188 = vunpack.c.l.s4 1966171168
    %v8189 = vunpack.c.0.s8 %v8188
    %v8190 = vlaneseq
    %v8191 = vshrl.u32 %v8190, 7
    %v8192 = vsub.s32 %v8189, %v8191
    %v8193 = vrot.slane %v8177, %v8192
    %v8195 = vunpack.c.l.s4 1966171168
    %v8196 = vunpack.c.0.s8 %v8195
    %v8197 = vlaneseq
    %v8198 = vshrl.u32 %v8197, 7
    %v8199 = vsub.s32 %v8196, %v8198
    %v8200 = vrot.slane %v8178, %v8199
    %v8202 = vunpack.c.l.s4 1966171168
    %v8203 = vunpack.c.0.s8 %v8202
    %v8204 = vlaneseq
    %v8205 = vshrl.u32 %v8204, 7
    %v8206 = vsub.s32 %v8203, %v8205
    %v8207 = vrot.slane %v8179, %v8206
    %v8208 = vcombine.low %v8186, %v8193
    %v8209 = vcombine.low %v8200, %v8207
    %v8211 = vunpack.c.l.s4 1966171168
    %v8212 = vunpack.c.0.s8 %v8211
    %v8213 = vlaneseq
    %v8214 = vshrl.u32 %v8213, 7
    %v8215 = vsub.s32 %v8212, %v8214
    %v8216 = vrot.slane %v8208, %v8215
    %v8218 = vunpack.c.l.s4 1966171168
    %v8219 = vunpack.c.0.s8 %v8218
    %v8220 = vlaneseq
    %v8221 = vshrl.u32 %v8220, 7
    %v8222 = vsub.s32 %v8219, %v8221
    %v8223 = vrot.slane %v8209, %v8222
    %v8224 = vcombine.low %v8216, %v8223
    %v8225 = vcombine.low %v5432, %v5436
    %v8226 = vcombine.low %v5440, %v5444
    %v8227 = vcombine.low %v5448, %v5452
    %v8228 = vcombine.low %v5456, %v5460
    %v8230 = vunpack.c.l.s4 1966171168
    %v8231 = vunpack.c.0.s8 %v8230
    %v8232 = vlaneseq
    %v8233 = vshrl.u32 %v8232, 7
    %v8234 = vsub.s32 %v8231, %v8233
    %v8235 = vrot.slane %v8225, %v8234
    %v8237 = vunpack.c.l.s4 1966171168
    %v8238 = vunpack.c.0.s8 %v8237
    %v8239 = vlaneseq
    %v8240 = vshrl.u32 %v8239, 7
    %v8241 = vsub.s32 %v8238, %v8240
    %v8242 = vrot.slane %v8226, %v8241
    %v8244 = vunpack.c.l.s4 1966171168
    %v8245 = vunpack.c.0.s8 %v8244
    %v8246 = vlaneseq
    %v8247 = vshrl.u32 %v8246, 7
    %v8248 = vsub.s32 %v8245, %v8247
    %v8249 = vrot.slane %v8227, %v8248
    %v8251 = vunpack.c.l.s4 1966171168
    %v8252 = vunpack.c.0.s8 %v8251
    %v8253 = vlaneseq
    %v8254 = vshrl.u32 %v8253, 7
    %v8255 = vsub.s32 %v8252, %v8254
    %v8256 = vrot.slane %v8228, %v8255
    %v8257 = vcombine.low %v8235, %v8242
    %v8258 = vcombine.low %v8249, %v8256
    %v8260 = vunpack.c.l.s4 1966171168
    %v8261 = vunpack.c.0.s8 %v8260
    %v8262 = vlaneseq
    %v8263 = vshrl.u32 %v8262, 7
    %v8264 = vsub.s32 %v8261, %v8263
    %v8265 = vrot.slane %v8257, %v8264
    %v8267 = vunpack.c.l.s4 1966171168
    %v8268 = vunpack.c.0.s8 %v8267
    %v8269 = vlaneseq
    %v8270 = vshrl.u32 %v8269, 7
    %v8271 = vsub.s32 %v8268, %v8270
    %v8272 = vrot.slane %v8258, %v8271
    %v8273 = vcombine.low %v8265, %v8272
    %v8274 = vcombine.low %v5464, %v5468
    %v8275 = vcombine.low %v5472, %v5476
    %v8276 = vcombine.low %v5480, %v5484
    %v8277 = vcombine.low %v5488, %v5492
    %v8279 = vunpack.c.l.s4 1966171168
    %v8280 = vunpack.c.0.s8 %v8279
    %v8281 = vlaneseq
    %v8282 = vshrl.u32 %v8281, 7
    %v8283 = vsub.s32 %v8280, %v8282
    %v8284 = vrot.slane %v8274, %v8283
    %v8286 = vunpack.c.l.s4 1966171168
    %v8287 = vunpack.c.0.s8 %v8286
    %v8288 = vlaneseq
    %v8289 = vshrl.u32 %v8288, 7
    %v8290 = vsub.s32 %v8287, %v8289
    %v8291 = vrot.slane %v8275, %v8290
    %v8293 = vunpack.c.l.s4 1966171168
    %v8294 = vunpack.c.0.s8 %v8293
    %v8295 = vlaneseq
    %v8296 = vshrl.u32 %v8295, 7
    %v8297 = vsub.s32 %v8294, %v8296
    %v8298 = vrot.slane %v8276, %v8297
    %v8300 = vunpack.c.l.s4 1966171168
    %v8301 = vunpack.c.0.s8 %v8300
    %v8302 = vlaneseq
    %v8303 = vshrl.u32 %v8302, 7
    %v8304 = vsub.s32 %v8301, %v8303
    %v8305 = vrot.slane %v8277, %v8304
    %v8306 = vcombine.low %v8284, %v8291
    %v8307 = vcombine.low %v8298, %v8305
    %v8309 = vunpack.c.l.s4 1966171168
    %v8310 = vunpack.c.0.s8 %v8309
    %v8311 = vlaneseq
    %v8312 = vshrl.u32 %v8311, 7
    %v8313 = vsub.s32 %v8310, %v8312
    %v8314 = vrot.slane %v8306, %v8313
    %v8316 = vunpack.c.l.s4 1966171168
    %v8317 = vunpack.c.0.s8 %v8316
    %v8318 = vlaneseq
    %v8319 = vshrl.u32 %v8318, 7
    %v8320 = vsub.s32 %v8317, %v8319
    %v8321 = vrot.slane %v8307, %v8320
    %v8322 = vcombine.low %v8314, %v8321
    %v8323 = vcombine.low %v5496, %v5500
    %v8324 = vcombine.low %v5504, %v5508
    %v8325 = vcombine.low %v5512, %v5516
    %v8326 = vcombine.low %v5520, %v5524
    %v8328 = vunpack.c.l.s4 1966171168
    %v8329 = vunpack.c.0.s8 %v8328
    %v8330 = vlaneseq
    %v8331 = vshrl.u32 %v8330, 7
    %v8332 = vsub.s32 %v8329, %v8331
    %v8333 = vrot.slane %v8323, %v8332
    %v8335 = vunpack.c.l.s4 1966171168
    %v8336 = vunpack.c.0.s8 %v8335
    %v8337 = vlaneseq
    %v8338 = vshrl.u32 %v8337, 7
    %v8339 = vsub.s32 %v8336, %v8338
    %v8340 = vrot.slane %v8324, %v8339
    %v8342 = vunpack.c.l.s4 1966171168
    %v8343 = vunpack.c.0.s8 %v8342
    %v8344 = vlaneseq
    %v8345 = vshrl.u32 %v8344, 7
    %v8346 = vsub.s32 %v8343, %v8345
    %v8347 = vrot.slane %v8325, %v8346
    %v8349 = vunpack.c.l.s4 1966171168
    %v8350 = vunpack.c.0.s8 %v8349
    %v8351 = vlaneseq
    %v8352 = vshrl.u32 %v8351, 7
    %v8353 = vsub.s32 %v8350, %v8352
    %v8354 = vrot.slane %v8326, %v8353
    %v8355 = vcombine.low %v8333, %v8340
    %v8356 = vcombine.low %v8347, %v8354
    %v8358 = vunpack.c.l.s4 1966171168
    %v8359 = vunpack.c.0.s8 %v8358
    %v8360 = vlaneseq
    %v8361 = vshrl.u32 %v8360, 7
    %v8362 = vsub.s32 %v8359, %v8361
    %v8363 = vrot.slane %v8355, %v8362
    %v8365 = vunpack.c.l.s4 1966171168
    %v8366 = vunpack.c.0.s8 %v8365
    %v8367 = vlaneseq
    %v8368 = vshrl.u32 %v8367, 7
    %v8369 = vsub.s32 %v8366, %v8368
    %v8370 = vrot.slane %v8356, %v8369
    %v8371 = vcombine.low %v8363, %v8370
    %v8372 = vcombine.low %v5528, %v5532
    %v8373 = vcombine.low %v5536, %v5540
    %v8374 = vcombine.low %v5544, %v5548
    %v8375 = vcombine.low %v5552, %v5556
    %v8377 = vunpack.c.l.s4 1966171168
    %v8378 = vunpack.c.0.s8 %v8377
    %v8379 = vlaneseq
    %v8380 = vshrl.u32 %v8379, 7
    %v8381 = vsub.s32 %v8378, %v8380
    %v8382 = vrot.slane %v8372, %v8381
    %v8384 = vunpack.c.l.s4 1966171168
    %v8385 = vunpack.c.0.s8 %v8384
    %v8386 = vlaneseq
    %v8387 = vshrl.u32 %v8386, 7
    %v8388 = vsub.s32 %v8385, %v8387
    %v8389 = vrot.slane %v8373, %v8388
    %v8391 = vunpack.c.l.s4 1966171168
    %v8392 = vunpack.c.0.s8 %v8391
    %v8393 = vlaneseq
    %v8394 = vshrl.u32 %v8393, 7
    %v8395 = vsub.s32 %v8392, %v8394
    %v8396 = vrot.slane %v8374, %v8395
    %v8398 = vunpack.c.l.s4 1966171168
    %v8399 = vunpack.c.0.s8 %v8398
    %v8400 = vlaneseq
    %v8401 = vshrl.u32 %v8400, 7
    %v8402 = vsub.s32 %v8399, %v8401
    %v8403 = vrot.slane %v8375, %v8402
    %v8404 = vcombine.low %v8382, %v8389
    %v8405 = vcombine.low %v8396, %v8403
    %v8407 = vunpack.c.l.s4 1966171168
    %v8408 = vunpack.c.0.s8 %v8407
    %v8409 = vlaneseq
    %v8410 = vshrl.u32 %v8409, 7
    %v8411 = vsub.s32 %v8408, %v8410
    %v8412 = vrot.slane %v8404, %v8411
    %v8414 = vunpack.c.l.s4 1966171168
    %v8415 = vunpack.c.0.s8 %v8414
    %v8416 = vlaneseq
    %v8417 = vshrl.u32 %v8416, 7
    %v8418 = vsub.s32 %v8415, %v8417
    %v8419 = vrot.slane %v8405, %v8418
    %v8420 = vcombine.low %v8412, %v8419
    %v8421 = vcombine.low %v5560, %v5564
    %v8422 = vcombine.low %v5568, %v5572
    %v8423 = vcombine.low %v5576, %v5580
    %v8424 = vcombine.low %v5584, %v5588
    %v8426 = vunpack.c.l.s4 1966171168
    %v8427 = vunpack.c.0.s8 %v8426
    %v8428 = vlaneseq
    %v8429 = vshrl.u32 %v8428, 7
    %v8430 = vsub.s32 %v8427, %v8429
    %v8431 = vrot.slane %v8421, %v8430
    %v8433 = vunpack.c.l.s4 1966171168
    %v8434 = vunpack.c.0.s8 %v8433
    %v8435 = vlaneseq
    %v8436 = vshrl.u32 %v8435, 7
    %v8437 = vsub.s32 %v8434, %v8436
    %v8438 = vrot.slane %v8422, %v8437
    %v8440 = vunpack.c.l.s4 1966171168
    %v8441 = vunpack.c.0.s8 %v8440
    %v8442 = vlaneseq
    %v8443 = vshrl.u32 %v8442, 7
    %v8444 = vsub.s32 %v8441, %v8443
    %v8445 = vrot.slane %v8423, %v8444
    %v8447 = vunpack.c.l.s4 1966171168
    %v8448 = vunpack.c.0.s8 %v8447
    %v8449 = vlaneseq
    %v8450 = vshrl.u32 %v8449, 7
    %v8451 = vsub.s32 %v8448, %v8450
    %v8452 = vrot.slane %v8424, %v8451
    %v8453 = vcombine.low %v8431, %v8438
    %v8454 = vcombine.low %v8445, %v8452
    %v8456 = vunpack.c.l.s4 1966171168
    %v8457 = vunpack.c.0.s8 %v8456
    %v8458 = vlaneseq
    %v8459 = vshrl.u32 %v8458, 7
    %v8460 = vsub.s32 %v8457, %v8459
    %v8461 = vrot.slane %v8453, %v8460
    %v8463 = vunpack.c.l.s4 1966171168
    %v8464 = vunpack.c.0.s8 %v8463
    %v8465 = vlaneseq
    %v8466 = vshrl.u32 %v8465, 7
    %v8467 = vsub.s32 %v8464, %v8466
    %v8468 = vrot.slane %v8454, %v8467
    %v8469 = vcombine.low %v8461, %v8468
    %v8470 = vcombine.low %v5592, %v5596
    %v8471 = vcombine.low %v5600, %v5604
    %v8472 = vcombine.low %v5608, %v5612
    %v8473 = vcombine.low %v5616, %v5620
    %v8475 = vunpack.c.l.s4 1966171168
    %v8476 = vunpack.c.0.s8 %v8475
    %v8477 = vlaneseq
    %v8478 = vshrl.u32 %v8477, 7
    %v8479 = vsub.s32 %v8476, %v8478
    %v8480 = vrot.slane %v8470, %v8479
    %v8482 = vunpack.c.l.s4 1966171168
    %v8483 = vunpack.c.0.s8 %v8482
    %v8484 = vlaneseq
    %v8485 = vshrl.u32 %v8484, 7
    %v8486 = vsub.s32 %v8483, %v8485
    %v8487 = vrot.slane %v8471, %v8486
    %v8489 = vunpack.c.l.s4 1966171168
    %v8490 = vunpack.c.0.s8 %v8489
    %v8491 = vlaneseq
    %v8492 = vshrl.u32 %v8491, 7
    %v8493 = vsub.s32 %v8490, %v8492
    %v8494 = vrot.slane %v8472, %v8493
    %v8496 = vunpack.c.l.s4 1966171168
    %v8497 = vunpack.c.0.s8 %v8496
    %v8498 = vlaneseq
    %v8499 = vshrl.u32 %v8498, 7
    %v8500 = vsub.s32 %v8497, %v8499
    %v8501 = vrot.slane %v8473, %v8500
    %v8502 = vcombine.low %v8480, %v8487
    %v8503 = vcombine.low %v8494, %v8501
    %v8505 = vunpack.c.l.s4 1966171168
    %v8506 = vunpack.c.0.s8 %v8505
    %v8507 = vlaneseq
    %v8508 = vshrl.u32 %v8507, 7
    %v8509 = vsub.s32 %v8506, %v8508
    %v8510 = vrot.slane %v8502, %v8509
    %v8512 = vunpack.c.l.s4 1966171168
    %v8513 = vunpack.c.0.s8 %v8512
    %v8514 = vlaneseq
    %v8515 = vshrl.u32 %v8514, 7
    %v8516 = vsub.s32 %v8513, %v8515
    %v8517 = vrot.slane %v8503, %v8516
    %v8518 = vcombine.low %v8510, %v8517
    %v8519 = vcombine.low %v5624, %v5628
    %v8520 = vcombine.low %v5632, %v5636
    %v8521 = vcombine.low %v5640, %v5644
    %v8522 = vcombine.low %v5648, %v5652
    %v8524 = vunpack.c.l.s4 1966171168
    %v8525 = vunpack.c.0.s8 %v8524
    %v8526 = vlaneseq
    %v8527 = vshrl.u32 %v8526, 7
    %v8528 = vsub.s32 %v8525, %v8527
    %v8529 = vrot.slane %v8519, %v8528
    %v8531 = vunpack.c.l.s4 1966171168
    %v8532 = vunpack.c.0.s8 %v8531
    %v8533 = vlaneseq
    %v8534 = vshrl.u32 %v8533, 7
    %v8535 = vsub.s32 %v8532, %v8534
    %v8536 = vrot.slane %v8520, %v8535
    %v8538 = vunpack.c.l.s4 1966171168
    %v8539 = vunpack.c.0.s8 %v8538
    %v8540 = vlaneseq
    %v8541 = vshrl.u32 %v8540, 7
    %v8542 = vsub.s32 %v8539, %v8541
    %v8543 = vrot.slane %v8521, %v8542
    %v8545 = vunpack.c.l.s4 1966171168
    %v8546 = vunpack.c.0.s8 %v8545
    %v8547 = vlaneseq
    %v8548 = vshrl.u32 %v8547, 7
    %v8549 = vsub.s32 %v8546, %v8548
    %v8550 = vrot.slane %v8522, %v8549
    %v8551 = vcombine.low %v8529, %v8536
    %v8552 = vcombine.low %v8543, %v8550
    %v8554 = vunpack.c.l.s4 1966171168
    %v8555 = vunpack.c.0.s8 %v8554
    %v8556 = vlaneseq
    %v8557 = vshrl.u32 %v8556, 7
    %v8558 = vsub.s32 %v8555, %v8557
    %v8559 = vrot.slane %v8551, %v8558
    %v8561 = vunpack.c.l.s4 1966171168
    %v8562 = vunpack.c.0.s8 %v8561
    %v8563 = vlaneseq
    %v8564 = vshrl.u32 %v8563, 7
    %v8565 = vsub.s32 %v8562, %v8564
    %v8566 = vrot.slane %v8552, %v8565
    %v8567 = vcombine.low %v8559, %v8566
    %v8568 = vcombine.low %v5656, %v5660
    %v8569 = vcombine.low %v5664, %v5668
    %v8570 = vcombine.low %v5672, %v5676
    %v8571 = vcombine.low %v5680, %v5684
    %v8573 = vunpack.c.l.s4 1966171168
    %v8574 = vunpack.c.0.s8 %v8573
    %v8575 = vlaneseq
    %v8576 = vshrl.u32 %v8575, 7
    %v8577 = vsub.s32 %v8574, %v8576
    %v8578 = vrot.slane %v8568, %v8577
    %v8580 = vunpack.c.l.s4 1966171168
    %v8581 = vunpack.c.0.s8 %v8580
    %v8582 = vlaneseq
    %v8583 = vshrl.u32 %v8582, 7
    %v8584 = vsub.s32 %v8581, %v8583
    %v8585 = vrot.slane %v8569, %v8584
    %v8587 = vunpack.c.l.s4 1966171168
    %v8588 = vunpack.c.0.s8 %v8587
    %v8589 = vlaneseq
    %v8590 = vshrl.u32 %v8589, 7
    %v8591 = vsub.s32 %v8588, %v8590
    %v8592 = vrot.slane %v8570, %v8591
    %v8594 = vunpack.c.l.s4 1966171168
    %v8595 = vunpack.c.0.s8 %v8594
    %v8596 = vlaneseq
    %v8597 = vshrl.u32 %v8596, 7
    %v8598 = vsub.s32 %v8595, %v8597
    %v8599 = vrot.slane %v8571, %v8598
    %v8600 = vcombine.low %v8578, %v8585
    %v8601 = vcombine.low %v8592, %v8599
    %v8603 = vunpack.c.l.s4 1966171168
    %v8604 = vunpack.c.0.s8 %v8603
    %v8605 = vlaneseq
    %v8606 = vshrl.u32 %v8605, 7
    %v8607 = vsub.s32 %v8604, %v8606
    %v8608 = vrot.slane %v8600, %v8607
    %v8610 = vunpack.c.l.s4 1966171168
    %v8611 = vunpack.c.0.s8 %v8610
    %v8612 = vlaneseq
    %v8613 = vshrl.u32 %v8612, 7
    %v8614 = vsub.s32 %v8611, %v8613
    %v8615 = vrot.slane %v8601, %v8614
    %v8616 = vcombine.low %v8608, %v8615
    %v8617 = vcombine.low %v5688, %v5692
    %v8618 = vcombine.low %v5696, %v5700
    %v8619 = vcombine.low %v5704, %v5708
    %v8620 = vcombine.low %v5712, %v5716
    %v8622 = vunpack.c.l.s4 1966171168
    %v8623 = vunpack.c.0.s8 %v8622
    %v8624 = vlaneseq
    %v8625 = vshrl.u32 %v8624, 7
    %v8626 = vsub.s32 %v8623, %v8625
    %v8627 = vrot.slane %v8617, %v8626
    %v8629 = vunpack.c.l.s4 1966171168
    %v8630 = vunpack.c.0.s8 %v8629
    %v8631 = vlaneseq
    %v8632 = vshrl.u32 %v8631, 7
    %v8633 = vsub.s32 %v8630, %v8632
    %v8634 = vrot.slane %v8618, %v8633
    %v8636 = vunpack.c.l.s4 1966171168
    %v8637 = vunpack.c.0.s8 %v8636
    %v8638 = vlaneseq
    %v8639 = vshrl.u32 %v8638, 7
    %v8640 = vsub.s32 %v8637, %v8639
    %v8641 = vrot.slane %v8619, %v8640
    %v8643 = vunpack.c.l.s4 1966171168
    %v8644 = vunpack.c.0.s8 %v8643
    %v8645 = vlaneseq
    %v8646 = vshrl.u32 %v8645, 7
    %v8647 = vsub.s32 %v8644, %v8646
    %v8648 = vrot.slane %v8620, %v8647
    %v8649 = vcombine.low %v8627, %v8634
    %v8650 = vcombine.low %v8641, %v8648
    %v8652 = vunpack.c.l.s4 1966171168
    %v8653 = vunpack.c.0.s8 %v8652
    %v8654 = vlaneseq
    %v8655 = vshrl.u32 %v8654, 7
    %v8656 = vsub.s32 %v8653, %v8655
    %v8657 = vrot.slane %v8649, %v8656
    %v8659 = vunpack.c.l.s4 1966171168
    %v8660 = vunpack.c.0.s8 %v8659
    %v8661 = vlaneseq
    %v8662 = vshrl.u32 %v8661, 7
    %v8663 = vsub.s32 %v8660, %v8662
    %v8664 = vrot.slane %v8650, %v8663
    %v8665 = vcombine.low %v8657, %v8664
    %v8666 = vcombine.low %v5720, %v5724
    %v8667 = vcombine.low %v5728, %v5732
    %v8668 = vcombine.low %v5736, %v5740
    %v8669 = vcombine.low %v5744, %v5748
    %v8671 = vunpack.c.l.s4 1966171168
    %v8672 = vunpack.c.0.s8 %v8671
    %v8673 = vlaneseq
    %v8674 = vshrl.u32 %v8673, 7
    %v8675 = vsub.s32 %v8672, %v8674
    %v8676 = vrot.slane %v8666, %v8675
    %v8678 = vunpack.c.l.s4 1966171168
    %v8679 = vunpack.c.0.s8 %v8678
    %v8680 = vlaneseq
    %v8681 = vshrl.u32 %v8680, 7
    %v8682 = vsub.s32 %v8679, %v8681
    %v8683 = vrot.slane %v8667, %v8682
    %v8685 = vunpack.c.l.s4 1966171168
    %v8686 = vunpack.c.0.s8 %v8685
    %v8687 = vlaneseq
    %v8688 = vshrl.u32 %v8687, 7
    %v8689 = vsub.s32 %v8686, %v8688
    %v8690 = vrot.slane %v8668, %v8689
    %v8692 = vunpack.c.l.s4 1966171168
    %v8693 = vunpack.c.0.s8 %v8692
    %v8694 = vlaneseq
    %v8695 = vshrl.u32 %v8694, 7
    %v8696 = vsub.s32 %v8693, %v8695
    %v8697 = vrot.slane %v8669, %v8696
    %v8698 = vcombine.low %v8676, %v8683
    %v8699 = vcombine.low %v8690, %v8697
    %v8701 = vunpack.c.l.s4 1966171168
    %v8702 = vunpack.c.0.s8 %v8701
    %v8703 = vlaneseq
    %v8704 = vshrl.u32 %v8703, 7
    %v8705 = vsub.s32 %v8702, %v8704
    %v8706 = vrot.slane %v8698, %v8705
    %v8708 = vunpack.c.l.s4 1966171168
    %v8709 = vunpack.c.0.s8 %v8708
    %v8710 = vlaneseq
    %v8711 = vshrl.u32 %v8710, 7
    %v8712 = vsub.s32 %v8709, %v8711
    %v8713 = vrot.slane %v8699, %v8712
    %v8714 = vcombine.low %v8706, %v8713
    %v8715 = vcombine.low %v5752, %v5756
    %v8716 = vcombine.low %v5760, %v5764
    %v8717 = vcombine.low %v5768, %v5772
    %v8718 = vcombine.low %v5776, %v5780
    %v8720 = vunpack.c.l.s4 1966171168
    %v8721 = vunpack.c.0.s8 %v8720
    %v8722 = vlaneseq
    %v8723 = vshrl.u32 %v8722, 7
    %v8724 = vsub.s32 %v8721, %v8723
    %v8725 = vrot.slane %v8715, %v8724
    %v8727 = vunpack.c.l.s4 1966171168
    %v8728 = vunpack.c.0.s8 %v8727
    %v8729 = vlaneseq
    %v8730 = vshrl.u32 %v8729, 7
    %v8731 = vsub.s32 %v8728, %v8730
    %v8732 = vrot.slane %v8716, %v8731
    %v8734 = vunpack.c.l.s4 1966171168
    %v8735 = vunpack.c.0.s8 %v8734
    %v8736 = vlaneseq
    %v8737 = vshrl.u32 %v8736, 7
    %v8738 = vsub.s32 %v8735, %v8737
    %v8739 = vrot.slane %v8717, %v8738
    %v8741 = vunpack.c.l.s4 1966171168
    %v8742 = vunpack.c.0.s8 %v8741
    %v8743 = vlaneseq
    %v8744 = vshrl.u32 %v8743, 7
    %v8745 = vsub.s32 %v8742, %v8744
    %v8746 = vrot.slane %v8718, %v8745
    %v8747 = vcombine.low %v8725, %v8732
    %v8748 = vcombine.low %v8739, %v8746
    %v8750 = vunpack.c.l.s4 1966171168
    %v8751 = vunpack.c.0.s8 %v8750
    %v8752 = vlaneseq
    %v8753 = vshrl.u32 %v8752, 7
    %v8754 = vsub.s32 %v8751, %v8753
    %v8755 = vrot.slane %v8747, %v8754
    %v8757 = vunpack.c.l.s4 1966171168
    %v8758 = vunpack.c.0.s8 %v8757
    %v8759 = vlaneseq
    %v8760 = vshrl.u32 %v8759, 7
    %v8761 = vsub.s32 %v8758, %v8760
    %v8762 = vrot.slane %v8748, %v8761
    %v8763 = vcombine.low %v8755, %v8762
    %v8764 = vcombine.low %v5784, %v5788
    %v8765 = vcombine.low %v5792, %v5796
    %v8766 = vcombine.low %v5800, %v5804
    %v8767 = vcombine.low %v5808, %v5812
    %v8769 = vunpack.c.l.s4 1966171168
    %v8770 = vunpack.c.0.s8 %v8769
    %v8771 = vlaneseq
    %v8772 = vshrl.u32 %v8771, 7
    %v8773 = vsub.s32 %v8770, %v8772
    %v8774 = vrot.slane %v8764, %v8773
    %v8776 = vunpack.c.l.s4 1966171168
    %v8777 = vunpack.c.0.s8 %v8776
    %v8778 = vlaneseq
    %v8779 = vshrl.u32 %v8778, 7
    %v8780 = vsub.s32 %v8777, %v8779
    %v8781 = vrot.slane %v8765, %v8780
    %v8783 = vunpack.c.l.s4 1966171168
    %v8784 = vunpack.c.0.s8 %v8783
    %v8785 = vlaneseq
    %v8786 = vshrl.u32 %v8785, 7
    %v8787 = vsub.s32 %v8784, %v8786
    %v8788 = vrot.slane %v8766, %v8787
    %v8790 = vunpack.c.l.s4 1966171168
    %v8791 = vunpack.c.0.s8 %v8790
    %v8792 = vlaneseq
    %v8793 = vshrl.u32 %v8792, 7
    %v8794 = vsub.s32 %v8791, %v8793
    %v8795 = vrot.slane %v8767, %v8794
    %v8796 = vcombine.low %v8774, %v8781
    %v8797 = vcombine.low %v8788, %v8795
    %v8799 = vunpack.c.l.s4 1966171168
    %v8800 = vunpack.c.0.s8 %v8799
    %v8801 = vlaneseq
    %v8802 = vshrl.u32 %v8801, 7
    %v8803 = vsub.s32 %v8800, %v8802
    %v8804 = vrot.slane %v8796, %v8803
    %v8806 = vunpack.c.l.s4 1966171168
    %v8807 = vunpack.c.0.s8 %v8806
    %v8808 = vlaneseq
    %v8809 = vshrl.u32 %v8808, 7
    %v8810 = vsub.s32 %v8807, %v8809
    %v8811 = vrot.slane %v8797, %v8810
    %v8812 = vcombine.low %v8804, %v8811
    %v8813 = vcombine.low %v5816, %v5820
    %v8814 = vcombine.low %v5824, %v5828
    %v8815 = vcombine.low %v5832, %v5836
    %v8816 = vcombine.low %v5840, %v5844
    %v8818 = vunpack.c.l.s4 1966171168
    %v8819 = vunpack.c.0.s8 %v8818
    %v8820 = vlaneseq
    %v8821 = vshrl.u32 %v8820, 7
    %v8822 = vsub.s32 %v8819, %v8821
    %v8823 = vrot.slane %v8813, %v8822
    %v8825 = vunpack.c.l.s4 1966171168
    %v8826 = vunpack.c.0.s8 %v8825
    %v8827 = vlaneseq
    %v8828 = vshrl.u32 %v8827, 7
    %v8829 = vsub.s32 %v8826, %v8828
    %v8830 = vrot.slane %v8814, %v8829
    %v8832 = vunpack.c.l.s4 1966171168
    %v8833 = vunpack.c.0.s8 %v8832
    %v8834 = vlaneseq
    %v8835 = vshrl.u32 %v8834, 7
    %v8836 = vsub.s32 %v8833, %v8835
    %v8837 = vrot.slane %v8815, %v8836
    %v8839 = vunpack.c.l.s4 1966171168
    %v8840 = vunpack.c.0.s8 %v8839
    %v8841 = vlaneseq
    %v8842 = vshrl.u32 %v8841, 7
    %v8843 = vsub.s32 %v8840, %v8842
    %v8844 = vrot.slane %v8816, %v8843
    %v8845 = vcombine.low %v8823, %v8830
    %v8846 = vcombine.low %v8837, %v8844
    %v8848 = vunpack.c.l.s4 1966171168
    %v8849 = vunpack.c.0.s8 %v8848
    %v8850 = vlaneseq
    %v8851 = vshrl.u32 %v8850, 7
    %v8852 = vsub.s32 %v8849, %v8851
    %v8853 = vrot.slane %v8845, %v8852
    %v8855 = vunpack.c.l.s4 1966171168
    %v8856 = vunpack.c.0.s8 %v8855
    %v8857 = vlaneseq
    %v8858 = vshrl.u32 %v8857, 7
    %v8859 = vsub.s32 %v8856, %v8858
    %v8860 = vrot.slane %v8846, %v8859
    %v8861 = vcombine.low %v8853, %v8860
    %v8862 = vcombine.low %v5848, %v5852
    %v8863 = vcombine.low %v5856, %v5860
    %v8864 = vcombine.low %v5864, %v5868
    %v8865 = vcombine.low %v5872, %v5876
    %v8867 = vunpack.c.l.s4 1966171168
    %v8868 = vunpack.c.0.s8 %v8867
    %v8869 = vlaneseq
    %v8870 = vshrl.u32 %v8869, 7
    %v8871 = vsub.s32 %v8868, %v8870
    %v8872 = vrot.slane %v8862, %v8871
    %v8874 = vunpack.c.l.s4 1966171168
    %v8875 = vunpack.c.0.s8 %v8874
    %v8876 = vlaneseq
    %v8877 = vshrl.u32 %v8876, 7
    %v8878 = vsub.s32 %v8875, %v8877
    %v8879 = vrot.slane %v8863, %v8878
    %v8881 = vunpack.c.l.s4 1966171168
    %v8882 = vunpack.c.0.s8 %v8881
    %v8883 = vlaneseq
    %v8884 = vshrl.u32 %v8883, 7
    %v8885 = vsub.s32 %v8882, %v8884
    %v8886 = vrot.slane %v8864, %v8885
    %v8888 = vunpack.c.l.s4 1966171168
    %v8889 = vunpack.c.0.s8 %v8888
    %v8890 = vlaneseq
    %v8891 = vshrl.u32 %v8890, 7
    %v8892 = vsub.s32 %v8889, %v8891
    %v8893 = vrot.slane %v8865, %v8892
    %v8894 = vcombine.low %v8872, %v8879
    %v8895 = vcombine.low %v8886, %v8893
    %v8897 = vunpack.c.l.s4 1966171168
    %v8898 = vunpack.c.0.s8 %v8897
    %v8899 = vlaneseq
    %v8900 = vshrl.u32 %v8899, 7
    %v8901 = vsub.s32 %v8898, %v8900
    %v8902 = vrot.slane %v8894, %v8901
    %v8904 = vunpack.c.l.s4 1966171168
    %v8905 = vunpack.c.0.s8 %v8904
    %v8906 = vlaneseq
    %v8907 = vshrl.u32 %v8906, 7
    %v8908 = vsub.s32 %v8905, %v8907
    %v8909 = vrot.slane %v8895, %v8908
    %v8910 = vcombine.low %v8902, %v8909
    %v8911 = vcombine.low %v5880, %v5884
    %v8912 = vcombine.low %v5888, %v5892
    %v8913 = vcombine.low %v5896, %v5900
    %v8914 = vcombine.low %v5904, %v5908
    %v8916 = vunpack.c.l.s4 1966171168
    %v8917 = vunpack.c.0.s8 %v8916
    %v8918 = vlaneseq
    %v8919 = vshrl.u32 %v8918, 7
    %v8920 = vsub.s32 %v8917, %v8919
    %v8921 = vrot.slane %v8911, %v8920
    %v8923 = vunpack.c.l.s4 1966171168
    %v8924 = vunpack.c.0.s8 %v8923
    %v8925 = vlaneseq
    %v8926 = vshrl.u32 %v8925, 7
    %v8927 = vsub.s32 %v8924, %v8926
    %v8928 = vrot.slane %v8912, %v8927
    %v8930 = vunpack.c.l.s4 1966171168
    %v8931 = vunpack.c.0.s8 %v8930
    %v8932 = vlaneseq
    %v8933 = vshrl.u32 %v8932, 7
    %v8934 = vsub.s32 %v8931, %v8933
    %v8935 = vrot.slane %v8913, %v8934
    %v8937 = vunpack.c.l.s4 1966171168
    %v8938 = vunpack.c.0.s8 %v8937
    %v8939 = vlaneseq
    %v8940 = vshrl.u32 %v8939, 7
    %v8941 = vsub.s32 %v8938, %v8940
    %v8942 = vrot.slane %v8914, %v8941
    %v8943 = vcombine.low %v8921, %v8928
    %v8944 = vcombine.low %v8935, %v8942
    %v8946 = vunpack.c.l.s4 1966171168
    %v8947 = vunpack.c.0.s8 %v8946
    %v8948 = vlaneseq
    %v8949 = vshrl.u32 %v8948, 7
    %v8950 = vsub.s32 %v8947, %v8949
    %v8951 = vrot.slane %v8943, %v8950
    %v8953 = vunpack.c.l.s4 1966171168
    %v8954 = vunpack.c.0.s8 %v8953
    %v8955 = vlaneseq
    %v8956 = vshrl.u32 %v8955, 7
    %v8957 = vsub.s32 %v8954, %v8956
    %v8958 = vrot.slane %v8944, %v8957
    %v8959 = vcombine.low %v8951, %v8958
    %v8960 = vcombine.low %v5912, %v5916
    %v8961 = vcombine.low %v5920, %v5924
    %v8962 = vcombine.low %v5928, %v5932
    %v8963 = vcombine.low %v5936, %v5940
    %v8965 = vunpack.c.l.s4 1966171168
    %v8966 = vunpack.c.0.s8 %v8965
    %v8967 = vlaneseq
    %v8968 = vshrl.u32 %v8967, 7
    %v8969 = vsub.s32 %v8966, %v8968
    %v8970 = vrot.slane %v8960, %v8969
    %v8972 = vunpack.c.l.s4 1966171168
    %v8973 = vunpack.c.0.s8 %v8972
    %v8974 = vlaneseq
    %v8975 = vshrl.u32 %v8974, 7
    %v8976 = vsub.s32 %v8973, %v8975
    %v8977 = vrot.slane %v8961, %v8976
    %v8979 = vunpack.c.l.s4 1966171168
    %v8980 = vunpack.c.0.s8 %v8979
    %v8981 = vlaneseq
    %v8982 = vshrl.u32 %v8981, 7
    %v8983 = vsub.s32 %v8980, %v8982
    %v8984 = vrot.slane %v8962, %v8983
    %v8986 = vunpack.c.l.s4 1966171168
    %v8987 = vunpack.c.0.s8 %v8986
    %v8988 = vlaneseq
    %v8989 = vshrl.u32 %v8988, 7
    %v8990 = vsub.s32 %v8987, %v8989
    %v8991 = vrot.slane %v8963, %v8990
    %v8992 = vcombine.low %v8970, %v8977
    %v8993 = vcombine.low %v8984, %v8991
    %v8995 = vunpack.c.l.s4 1966171168
    %v8996 = vunpack.c.0.s8 %v8995
    %v8997 = vlaneseq
    %v8998 = vshrl.u32 %v8997, 7
    %v8999 = vsub.s32 %v8996, %v8998
    %v9000 = vrot.slane %v8992, %v8999
    %v9002 = vunpack.c.l.s4 1966171168
    %v9003 = vunpack.c.0.s8 %v9002
    %v9004 = vlaneseq
    %v9005 = vshrl.u32 %v9004, 7
    %v9006 = vsub.s32 %v9003, %v9005
    %v9007 = vrot.slane %v8993, %v9006
    %v9008 = vcombine.low %v9000, %v9007
    %v9009 = vcombine.low %v5944, %v5948
    %v9010 = vcombine.low %v5952, %v5956
    %v9011 = vcombine.low %v5960, %v5964
    %v9012 = vcombine.low %v5968, %v5972
    %v9014 = vunpack.c.l.s4 1966171168
    %v9015 = vunpack.c.0.s8 %v9014
    %v9016 = vlaneseq
    %v9017 = vshrl.u32 %v9016, 7
    %v9018 = vsub.s32 %v9015, %v9017
    %v9019 = vrot.slane %v9009, %v9018
    %v9021 = vunpack.c.l.s4 1966171168
    %v9022 = vunpack.c.0.s8 %v9021
    %v9023 = vlaneseq
    %v9024 = vshrl.u32 %v9023, 7
    %v9025 = vsub.s32 %v9022, %v9024
    %v9026 = vrot.slane %v9010, %v9025
    %v9028 = vunpack.c.l.s4 1966171168
    %v9029 = vunpack.c.0.s8 %v9028
    %v9030 = vlaneseq
    %v9031 = vshrl.u32 %v9030, 7
    %v9032 = vsub.s32 %v9029, %v9031
    %v9033 = vrot.slane %v9011, %v9032
    %v9035 = vunpack.c.l.s4 1966171168
    %v9036 = vunpack.c.0.s8 %v9035
    %v9037 = vlaneseq
    %v9038 = vshrl.u32 %v9037, 7
    %v9039 = vsub.s32 %v9036, %v9038
    %v9040 = vrot.slane %v9012, %v9039
    %v9041 = vcombine.low %v9019, %v9026
    %v9042 = vcombine.low %v9033, %v9040
    %v9044 = vunpack.c.l.s4 1966171168
    %v9045 = vunpack.c.0.s8 %v9044
    %v9046 = vlaneseq
    %v9047 = vshrl.u32 %v9046, 7
    %v9048 = vsub.s32 %v9045, %v9047
    %v9049 = vrot.slane %v9041, %v9048
    %v9051 = vunpack.c.l.s4 1966171168
    %v9052 = vunpack.c.0.s8 %v9051
    %v9053 = vlaneseq
    %v9054 = vshrl.u32 %v9053, 7
    %v9055 = vsub.s32 %v9052, %v9054
    %v9056 = vrot.slane %v9042, %v9055
    %v9057 = vcombine.low %v9049, %v9056
    %v9058 = vcombine.low %v5976, %v5980
    %v9059 = vcombine.low %v5984, %v5988
    %v9060 = vcombine.low %v5992, %v5996
    %v9061 = vcombine.low %v6000, %v6004
    %v9063 = vunpack.c.l.s4 1966171168
    %v9064 = vunpack.c.0.s8 %v9063
    %v9065 = vlaneseq
    %v9066 = vshrl.u32 %v9065, 7
    %v9067 = vsub.s32 %v9064, %v9066
    %v9068 = vrot.slane %v9058, %v9067
    %v9070 = vunpack.c.l.s4 1966171168
    %v9071 = vunpack.c.0.s8 %v9070
    %v9072 = vlaneseq
    %v9073 = vshrl.u32 %v9072, 7
    %v9074 = vsub.s32 %v9071, %v9073
    %v9075 = vrot.slane %v9059, %v9074
    %v9077 = vunpack.c.l.s4 1966171168
    %v9078 = vunpack.c.0.s8 %v9077
    %v9079 = vlaneseq
    %v9080 = vshrl.u32 %v9079, 7
    %v9081 = vsub.s32 %v9078, %v9080
    %v9082 = vrot.slane %v9060, %v9081
    %v9084 = vunpack.c.l.s4 1966171168
    %v9085 = vunpack.c.0.s8 %v9084
    %v9086 = vlaneseq
    %v9087 = vshrl.u32 %v9086, 7
    %v9088 = vsub.s32 %v9085, %v9087
    %v9089 = vrot.slane %v9061, %v9088
    %v9090 = vcombine.low %v9068, %v9075
    %v9091 = vcombine.low %v9082, %v9089
    %v9093 = vunpack.c.l.s4 1966171168
    %v9094 = vunpack.c.0.s8 %v9093
    %v9095 = vlaneseq
    %v9096 = vshrl.u32 %v9095, 7
    %v9097 = vsub.s32 %v9094, %v9096
    %v9098 = vrot.slane %v9090, %v9097
    %v9100 = vunpack.c.l.s4 1966171168
    %v9101 = vunpack.c.0.s8 %v9100
    %v9102 = vlaneseq
    %v9103 = vshrl.u32 %v9102, 7
    %v9104 = vsub.s32 %v9101, %v9103
    %v9105 = vrot.slane %v9091, %v9104
    %v9106 = vcombine.low %v9098, %v9105
    %v9107 = vcombine.low %v6008, %v6012
    %v9108 = vcombine.low %v6016, %v6020
    %v9109 = vcombine.low %v6024, %v6028
    %v9110 = vcombine.low %v6032, %v6036
    %v9112 = vunpack.c.l.s4 1966171168
    %v9113 = vunpack.c.0.s8 %v9112
    %v9114 = vlaneseq
    %v9115 = vshrl.u32 %v9114, 7
    %v9116 = vsub.s32 %v9113, %v9115
    %v9117 = vrot.slane %v9107, %v9116
    %v9119 = vunpack.c.l.s4 1966171168
    %v9120 = vunpack.c.0.s8 %v9119
    %v9121 = vlaneseq
    %v9122 = vshrl.u32 %v9121, 7
    %v9123 = vsub.s32 %v9120, %v9122
    %v9124 = vrot.slane %v9108, %v9123
    %v9126 = vunpack.c.l.s4 1966171168
    %v9127 = vunpack.c.0.s8 %v9126
    %v9128 = vlaneseq
    %v9129 = vshrl.u32 %v9128, 7
    %v9130 = vsub.s32 %v9127, %v9129
    %v9131 = vrot.slane %v9109, %v9130
    %v9133 = vunpack.c.l.s4 1966171168
    %v9134 = vunpack.c.0.s8 %v9133
    %v9135 = vlaneseq
    %v9136 = vshrl.u32 %v9135, 7
    %v9137 = vsub.s32 %v9134, %v9136
    %v9138 = vrot.slane %v9110, %v9137
    %v9139 = vcombine.low %v9117, %v9124
    %v9140 = vcombine.low %v9131, %v9138
    %v9142 = vunpack.c.l.s4 1966171168
    %v9143 = vunpack.c.0.s8 %v9142
    %v9144 = vlaneseq
    %v9145 = vshrl.u32 %v9144, 7
    %v9146 = vsub.s32 %v9143, %v9145
    %v9147 = vrot.slane %v9139, %v9146
    %v9149 = vunpack.c.l.s4 1966171168
    %v9150 = vunpack.c.0.s8 %v9149
    %v9151 = vlaneseq
    %v9152 = vshrl.u32 %v9151, 7
    %v9153 = vsub.s32 %v9150, %v9152
    %v9154 = vrot.slane %v9140, %v9153
    %v9155 = vcombine.low %v9147, %v9154
    %v9156 = vcombine.low %v6040, %v6044
    %v9157 = vcombine.low %v6048, %v6052
    %v9158 = vcombine.low %v6056, %v6060
    %v9159 = vcombine.low %v6064, %v6068
    %v9161 = vunpack.c.l.s4 1966171168
    %v9162 = vunpack.c.0.s8 %v9161
    %v9163 = vlaneseq
    %v9164 = vshrl.u32 %v9163, 7
    %v9165 = vsub.s32 %v9162, %v9164
    %v9166 = vrot.slane %v9156, %v9165
    %v9168 = vunpack.c.l.s4 1966171168
    %v9169 = vunpack.c.0.s8 %v9168
    %v9170 = vlaneseq
    %v9171 = vshrl.u32 %v9170, 7
    %v9172 = vsub.s32 %v9169, %v9171
    %v9173 = vrot.slane %v9157, %v9172
    %v9175 = vunpack.c.l.s4 1966171168
    %v9176 = vunpack.c.0.s8 %v9175
    %v9177 = vlaneseq
    %v9178 = vshrl.u32 %v9177, 7
    %v9179 = vsub.s32 %v9176, %v9178
    %v9180 = vrot.slane %v9158, %v9179
    %v9182 = vunpack.c.l.s4 1966171168
    %v9183 = vunpack.c.0.s8 %v9182
    %v9184 = vlaneseq
    %v9185 = vshrl.u32 %v9184, 7
    %v9186 = vsub.s32 %v9183, %v9185
    %v9187 = vrot.slane %v9159, %v9186
    %v9188 = vcombine.low %v9166, %v9173
    %v9189 = vcombine.low %v9180, %v9187
    %v9191 = vunpack.c.l.s4 1966171168
    %v9192 = vunpack.c.0.s8 %v9191
    %v9193 = vlaneseq
    %v9194 = vshrl.u32 %v9193, 7
    %v9195 = vsub.s32 %v9192, %v9194
    %v9196 = vrot.slane %v9188, %v9195
    %v9198 = vunpack.c.l.s4 1966171168
    %v9199 = vunpack.c.0.s8 %v9198
    %v9200 = vlaneseq
    %v9201 = vshrl.u32 %v9200, 7
    %v9202 = vsub.s32 %v9199, %v9201
    %v9203 = vrot.slane %v9189, %v9202
    %v9204 = vcombine.low %v9196, %v9203
    %9205 = vset.pattern.permute.xlu0 0
    %9206 = vperm.xlu0 %9205, %v6117
    %v9207 = vpop.permute.xlu0 %9206
    %9208 = vset.pattern.permute.xlu0 0
    %9209 = vperm.xlu0 %9208, %v6166
    %v9210 = vpop.permute.xlu0 %9209
    %9211 = vset.pattern.permute.xlu0 0
    %9212 = vperm.xlu0 %9211, %v6215
    %v9213 = vpop.permute.xlu0 %9212
    %9214 = vset.pattern.permute.xlu0 0
    %9215 = vperm.xlu0 %9214, %v6264
    %v9216 = vpop.permute.xlu0 %9215
    %9217 = vset.pattern.permute.xlu0 0
    %9218 = vperm.xlu0 %9217, %v6313
    %v9219 = vpop.permute.xlu0 %9218
    %9220 = vset.pattern.permute.xlu0 0
    %9221 = vperm.xlu0 %9220, %v6362
    %v9222 = vpop.permute.xlu0 %9221
    %9223 = vset.pattern.permute.xlu0 0
    %9224 = vperm.xlu0 %9223, %v6411
    %v9225 = vpop.permute.xlu0 %9224
    %9226 = vset.pattern.permute.xlu0 0
    %9227 = vperm.xlu0 %9226, %v6460
    %v9228 = vpop.permute.xlu0 %9227
    %9229 = vset.pattern.permute.xlu0 0
    %9230 = vperm.xlu0 %9229, %v6509
    %v9231 = vpop.permute.xlu0 %9230
    %9232 = vset.pattern.permute.xlu0 0
    %9233 = vperm.xlu0 %9232, %v6558
    %v9234 = vpop.permute.xlu0 %9233
    %9235 = vset.pattern.permute.xlu0 0
    %9236 = vperm.xlu0 %9235, %v6607
    %v9237 = vpop.permute.xlu0 %9236
    %9238 = vset.pattern.permute.xlu0 0
    %9239 = vperm.xlu0 %9238, %v6656
    %v9240 = vpop.permute.xlu0 %9239
    %9241 = vset.pattern.permute.xlu0 0
    %9242 = vperm.xlu0 %9241, %v6705
    %v9243 = vpop.permute.xlu0 %9242
    %9244 = vset.pattern.permute.xlu0 0
    %9245 = vperm.xlu0 %9244, %v6754
    %v9246 = vpop.permute.xlu0 %9245
    %9247 = vset.pattern.permute.xlu0 0
    %9248 = vperm.xlu0 %9247, %v6803
    %v9249 = vpop.permute.xlu0 %9248
    %9250 = vset.pattern.permute.xlu0 0
    %9251 = vperm.xlu0 %9250, %v6852
    %v9252 = vpop.permute.xlu0 %9251
    %9253 = vset.pattern.permute.xlu0 0
    %9254 = vperm.xlu0 %9253, %v6901
    %v9255 = vpop.permute.xlu0 %9254
    %9256 = vset.pattern.permute.xlu0 0
    %9257 = vperm.xlu0 %9256, %v6950
    %v9258 = vpop.permute.xlu0 %9257
    %9259 = vset.pattern.permute.xlu0 0
    %9260 = vperm.xlu0 %9259, %v6999
    %v9261 = vpop.permute.xlu0 %9260
    %9262 = vset.pattern.permute.xlu0 0
    %9263 = vperm.xlu0 %9262, %v7048
    %v9264 = vpop.permute.xlu0 %9263
    %9265 = vset.pattern.permute.xlu0 0
    %9266 = vperm.xlu0 %9265, %v7097
    %v9267 = vpop.permute.xlu0 %9266
    %9268 = vset.pattern.permute.xlu0 0
    %9269 = vperm.xlu0 %9268, %v7146
    %v9270 = vpop.permute.xlu0 %9269
    %9271 = vset.pattern.permute.xlu0 0
    %9272 = vperm.xlu0 %9271, %v7195
    %v9273 = vpop.permute.xlu0 %9272
    %9274 = vset.pattern.permute.xlu0 0
    %9275 = vperm.xlu0 %9274, %v7244
    %v9276 = vpop.permute.xlu0 %9275
    %9277 = vset.pattern.permute.xlu0 0
    %9278 = vperm.xlu0 %9277, %v7293
    %v9279 = vpop.permute.xlu0 %9278
    %9280 = vset.pattern.permute.xlu0 0
    %9281 = vperm.xlu0 %9280, %v7342
    %v9282 = vpop.permute.xlu0 %9281
    %9283 = vset.pattern.permute.xlu0 0
    %9284 = vperm.xlu0 %9283, %v7391
    %v9285 = vpop.permute.xlu0 %9284
    %9286 = vset.pattern.permute.xlu0 0
    %9287 = vperm.xlu0 %9286, %v7440
    %v9288 = vpop.permute.xlu0 %9287
    %9289 = vset.pattern.permute.xlu0 0
    %9290 = vperm.xlu0 %9289, %v7489
    %v9291 = vpop.permute.xlu0 %9290
    %9292 = vset.pattern.permute.xlu0 0
    %9293 = vperm.xlu0 %9292, %v7538
    %v9294 = vpop.permute.xlu0 %9293
    %9295 = vset.pattern.permute.xlu0 0
    %9296 = vperm.xlu0 %9295, %v7587
    %v9297 = vpop.permute.xlu0 %9296
    %9298 = vset.pattern.permute.xlu0 0
    %9299 = vperm.xlu0 %9298, %v7636
    %v9300 = vpop.permute.xlu0 %9299
    %9301 = vset.pattern.permute.xlu0 0
    %9302 = vperm.xlu0 %9301, %v7685
    %v9303 = vpop.permute.xlu0 %9302
    %9304 = vset.pattern.permute.xlu0 0
    %9305 = vperm.xlu0 %9304, %v7734
    %v9306 = vpop.permute.xlu0 %9305
    %9307 = vset.pattern.permute.xlu0 0
    %9308 = vperm.xlu0 %9307, %v7783
    %v9309 = vpop.permute.xlu0 %9308
    %9310 = vset.pattern.permute.xlu0 0
    %9311 = vperm.xlu0 %9310, %v7832
    %v9312 = vpop.permute.xlu0 %9311
    %9313 = vset.pattern.permute.xlu0 0
    %9314 = vperm.xlu0 %9313, %v7881
    %v9315 = vpop.permute.xlu0 %9314
    %9316 = vset.pattern.permute.xlu0 0
    %9317 = vperm.xlu0 %9316, %v7930
    %v9318 = vpop.permute.xlu0 %9317
    %9319 = vset.pattern.permute.xlu0 0
    %9320 = vperm.xlu0 %9319, %v7979
    %v9321 = vpop.permute.xlu0 %9320
    %9322 = vset.pattern.permute.xlu0 0
    %9323 = vperm.xlu0 %9322, %v8028
    %v9324 = vpop.permute.xlu0 %9323
    %9325 = vset.pattern.permute.xlu0 0
    %9326 = vperm.xlu0 %9325, %v8077
    %v9327 = vpop.permute.xlu0 %9326
    %9328 = vset.pattern.permute.xlu0 0
    %9329 = vperm.xlu0 %9328, %v8126
    %v9330 = vpop.permute.xlu0 %9329
    %9331 = vset.pattern.permute.xlu0 0
    %9332 = vperm.xlu0 %9331, %v8175
    %v9333 = vpop.permute.xlu0 %9332
    %9334 = vset.pattern.permute.xlu0 0
    %9335 = vperm.xlu0 %9334, %v8224
    %v9336 = vpop.permute.xlu0 %9335
    %9337 = vset.pattern.permute.xlu0 0
    %9338 = vperm.xlu0 %9337, %v8273
    %v9339 = vpop.permute.xlu0 %9338
    %9340 = vset.pattern.permute.xlu0 0
    %9341 = vperm.xlu0 %9340, %v8322
    %v9342 = vpop.permute.xlu0 %9341
    %9343 = vset.pattern.permute.xlu0 0
    %9344 = vperm.xlu0 %9343, %v8371
    %v9345 = vpop.permute.xlu0 %9344
    %9346 = vset.pattern.permute.xlu0 0
    %9347 = vperm.xlu0 %9346, %v8420
    %v9348 = vpop.permute.xlu0 %9347
    %9349 = vset.pattern.permute.xlu0 0
    %9350 = vperm.xlu0 %9349, %v8469
    %v9351 = vpop.permute.xlu0 %9350
    %9352 = vset.pattern.permute.xlu0 0
    %9353 = vperm.xlu0 %9352, %v8518
    %v9354 = vpop.permute.xlu0 %9353
    %9355 = vset.pattern.permute.xlu0 0
    %9356 = vperm.xlu0 %9355, %v8567
    %v9357 = vpop.permute.xlu0 %9356
    %9358 = vset.pattern.permute.xlu0 0
    %9359 = vperm.xlu0 %9358, %v8616
    %v9360 = vpop.permute.xlu0 %9359
    %9361 = vset.pattern.permute.xlu0 0
    %9362 = vperm.xlu0 %9361, %v8665
    %v9363 = vpop.permute.xlu0 %9362
    %9364 = vset.pattern.permute.xlu0 0
    %9365 = vperm.xlu0 %9364, %v8714
    %v9366 = vpop.permute.xlu0 %9365
    %9367 = vset.pattern.permute.xlu0 0
    %9368 = vperm.xlu0 %9367, %v8763
    %v9369 = vpop.permute.xlu0 %9368
    %9370 = vset.pattern.permute.xlu0 0
    %9371 = vperm.xlu0 %9370, %v8812
    %v9372 = vpop.permute.xlu0 %9371
    %9373 = vset.pattern.permute.xlu0 0
    %9374 = vperm.xlu0 %9373, %v8861
    %v9375 = vpop.permute.xlu0 %9374
    %9376 = vset.pattern.permute.xlu0 0
    %9377 = vperm.xlu0 %9376, %v8910
    %v9378 = vpop.permute.xlu0 %9377
    %9379 = vset.pattern.permute.xlu0 0
    %9380 = vperm.xlu0 %9379, %v8959
    %v9381 = vpop.permute.xlu0 %9380
    %9382 = vset.pattern.permute.xlu0 0
    %9383 = vperm.xlu0 %9382, %v9008
    %v9384 = vpop.permute.xlu0 %9383
    %9385 = vset.pattern.permute.xlu0 0
    %9386 = vperm.xlu0 %9385, %v9057
    %v9387 = vpop.permute.xlu0 %9386
    %9388 = vset.pattern.permute.xlu0 0
    %9389 = vperm.xlu0 %9388, %v9106
    %v9390 = vpop.permute.xlu0 %9389
    %9391 = vset.pattern.permute.xlu0 0
    %9392 = vperm.xlu0 %9391, %v9155
    %v9393 = vpop.permute.xlu0 %9392
    %9394 = vset.pattern.permute.xlu0 0
    %9395 = vperm.xlu0 %9394, %v9204
    %v9396 = vpop.permute.xlu0 %9395
    %v9397 = vlaneseq
    %v9398 = vand.u32 %v9397, 127
    %v9399 = vlaneseq
    %v9400 = vshrl.u32 %v9399, 7
    %v9401 = vsub.s32 %v9398, %v9400
    %v9402 = vrot.slane %v9207, %v9401
    %v9403 = vadd.s32 %v9398, 4294967288
    %v9404 = vlaneseq
    %v9405 = vshrl.u32 %v9404, 7
    %v9406 = vsub.s32 %v9403, %v9405
    %v9407 = vrot.slane %v9210, %v9406
    %vm9408 = vcmask 130112
    %v9409 = vsel %vm9408, %v9407, %v9402
    %v9410 = vadd.s32 %v9398, 4294967280
    %v9411 = vlaneseq
    %v9412 = vshrl.u32 %v9411, 7
    %v9413 = vsub.s32 %v9410, %v9412
    %v9414 = vrot.slane %v9213, %v9413
    %vm9415 = vcmask 195712
    %v9416 = vsel %vm9415, %v9414, %v9409
    %v9417 = vadd.s32 %v9398, 4294967272
    %v9418 = vlaneseq
    %v9419 = vshrl.u32 %v9418, 7
    %v9420 = vsub.s32 %v9417, %v9419
    %v9421 = vrot.slane %v9216, %v9420
    %vm9422 = vcmask 261312
    %v9423 = vsel %vm9422, %v9421, %v9416
    %v9424 = vadd.s32 %v9398, 4294967264
    %v9425 = vlaneseq
    %v9426 = vshrl.u32 %v9425, 7
    %v9427 = vsub.s32 %v9424, %v9426
    %v9428 = vrot.slane %v9219, %v9427
    %vm9429 = vcmask 326912
    %v9430 = vsel %vm9429, %v9428, %v9423
    %v9431 = vadd.s32 %v9398, 4294967256
    %v9432 = vlaneseq
    %v9433 = vshrl.u32 %v9432, 7
    %v9434 = vsub.s32 %v9431, %v9433
    %v9435 = vrot.slane %v9222, %v9434
    %vm9436 = vcmask 392512
    %v9437 = vsel %vm9436, %v9435, %v9430
    %v9438 = vadd.s32 %v9398, 4294967248
    %v9439 = vlaneseq
    %v9440 = vshrl.u32 %v9439, 7
    %v9441 = vsub.s32 %v9438, %v9440
    %v9442 = vrot.slane %v9225, %v9441
    %vm9443 = vcmask 458112
    %v9444 = vsel %vm9443, %v9442, %v9437
    %v9445 = vadd.s32 %v9398, 4294967240
    %v9446 = vlaneseq
    %v9447 = vshrl.u32 %v9446, 7
    %v9448 = vsub.s32 %v9445, %v9447
    %v9449 = vrot.slane %v9228, %v9448
    %vm9450 = vcmask 523712
    %v9451 = vsel %vm9450, %v9449, %v9444
    %v9452 = vadd.s32 %v9398, 4294967232
    %v9453 = vlaneseq
    %v9454 = vshrl.u32 %v9453, 7
    %v9455 = vsub.s32 %v9452, %v9454
    %v9456 = vrot.slane %v9231, %v9455
    %vm9457 = vcmask 589312
    %v9458 = vsel %vm9457, %v9456, %v9451
    %v9459 = vadd.s32 %v9398, 4294967224
    %v9460 = vlaneseq
    %v9461 = vshrl.u32 %v9460, 7
    %v9462 = vsub.s32 %v9459, %v9461
    %v9463 = vrot.slane %v9234, %v9462
    %vm9464 = vcmask 654912
    %v9465 = vsel %vm9464, %v9463, %v9458
    %v9466 = vadd.s32 %v9398, 4294967216
    %v9467 = vlaneseq
    %v9468 = vshrl.u32 %v9467, 7
    %v9469 = vsub.s32 %v9466, %v9468
    %v9470 = vrot.slane %v9237, %v9469
    %vm9471 = vcmask 720512
    %v9472 = vsel %vm9471, %v9470, %v9465
    %v9473 = vadd.s32 %v9398, 4294967208
    %v9474 = vlaneseq
    %v9475 = vshrl.u32 %v9474, 7
    %v9476 = vsub.s32 %v9473, %v9475
    %v9477 = vrot.slane %v9240, %v9476
    %vm9478 = vcmask 786112
    %v9479 = vsel %vm9478, %v9477, %v9472
    %v9480 = vadd.s32 %v9398, 4294967200
    %v9481 = vlaneseq
    %v9482 = vshrl.u32 %v9481, 7
    %v9483 = vsub.s32 %v9480, %v9482
    %v9484 = vrot.slane %v9243, %v9483
    %vm9485 = vcmask 851712
    %v9486 = vsel %vm9485, %v9484, %v9479
    %v9487 = vadd.s32 %v9398, 4294967192
    %v9488 = vlaneseq
    %v9489 = vshrl.u32 %v9488, 7
    %v9490 = vsub.s32 %v9487, %v9489
    %v9491 = vrot.slane %v9246, %v9490
    %vm9492 = vcmask 917312
    %v9493 = vsel %vm9492, %v9491, %v9486
    %v9494 = vadd.s32 %v9398, 4294967184
    %v9495 = vlaneseq
    %v9496 = vshrl.u32 %v9495, 7
    %v9497 = vsub.s32 %v9494, %v9496
    %v9498 = vrot.slane %v9249, %v9497
    %vm9499 = vcmask 982912
    %v9500 = vsel %vm9499, %v9498, %v9493
    %v9501 = vadd.s32 %v9398, 4294967176
    %v9502 = vlaneseq
    %v9503 = vshrl.u32 %v9502, 7
    %v9504 = vsub.s32 %v9501, %v9503
    %v9505 = vrot.slane %v9252, %v9504
    %vm9506 = vcmask 1048512
    %v9507 = vsel %vm9506, %v9505, %v9500
    %v9508 = vlaneseq
    %v9509 = vshrl.u32 %v9508, 7
    %v9510 = vsub.s32 %v9398, %v9509
    %v9511 = vrot.slane %v9255, %v9510
    %v9512 = vlaneseq
    %v9513 = vshrl.u32 %v9512, 7
    %v9514 = vsub.s32 %v9403, %v9513
    %v9515 = vrot.slane %v9258, %v9514
    %v9516 = vsel %vm9408, %v9515, %v9511
    %v9517 = vlaneseq
    %v9518 = vshrl.u32 %v9517, 7
    %v9519 = vsub.s32 %v9410, %v9518
    %v9520 = vrot.slane %v9261, %v9519
    %v9521 = vsel %vm9415, %v9520, %v9516
    %v9522 = vlaneseq
    %v9523 = vshrl.u32 %v9522, 7
    %v9524 = vsub.s32 %v9417, %v9523
    %v9525 = vrot.slane %v9264, %v9524
    %v9526 = vsel %vm9422, %v9525, %v9521
    %v9527 = vlaneseq
    %v9528 = vshrl.u32 %v9527, 7
    %v9529 = vsub.s32 %v9424, %v9528
    %v9530 = vrot.slane %v9267, %v9529
    %v9531 = vsel %vm9429, %v9530, %v9526
    %v9532 = vlaneseq
    %v9533 = vshrl.u32 %v9532, 7
    %v9534 = vsub.s32 %v9431, %v9533
    %v9535 = vrot.slane %v9270, %v9534
    %v9536 = vsel %vm9436, %v9535, %v9531
    %v9537 = vlaneseq
    %v9538 = vshrl.u32 %v9537, 7
    %v9539 = vsub.s32 %v9438, %v9538
    %v9540 = vrot.slane %v9273, %v9539
    %v9541 = vsel %vm9443, %v9540, %v9536
    %v9542 = vlaneseq
    %v9543 = vshrl.u32 %v9542, 7
    %v9544 = vsub.s32 %v9445, %v9543
    %v9545 = vrot.slane %v9276, %v9544
    %v9546 = vsel %vm9450, %v9545, %v9541
    %v9547 = vlaneseq
    %v9548 = vshrl.u32 %v9547, 7
    %v9549 = vsub.s32 %v9452, %v9548
    %v9550 = vrot.slane %v9279, %v9549
    %v9551 = vsel %vm9457, %v9550, %v9546
    %v9552 = vlaneseq
    %v9553 = vshrl.u32 %v9552, 7
    %v9554 = vsub.s32 %v9459, %v9553
    %v9555 = vrot.slane %v9282, %v9554
    %v9556 = vsel %vm9464, %v9555, %v9551
    %v9557 = vlaneseq
    %v9558 = vshrl.u32 %v9557, 7
    %v9559 = vsub.s32 %v9466, %v9558
    %v9560 = vrot.slane %v9285, %v9559
    %v9561 = vsel %vm9471, %v9560, %v9556
    %v9562 = vlaneseq
    %v9563 = vshrl.u32 %v9562, 7
    %v9564 = vsub.s32 %v9473, %v9563
    %v9565 = vrot.slane %v9288, %v9564
    %v9566 = vsel %vm9478, %v9565, %v9561
    %v9567 = vlaneseq
    %v9568 = vshrl.u32 %v9567, 7
    %v9569 = vsub.s32 %v9480, %v9568
    %v9570 = vrot.slane %v9291, %v9569
    %v9571 = vsel %vm9485, %v9570, %v9566
    %v9572 = vlaneseq
    %v9573 = vshrl.u32 %v9572, 7
    %v9574 = vsub.s32 %v9487, %v9573
    %v9575 = vrot.slane %v9294, %v9574
    %v9576 = vsel %vm9492, %v9575, %v9571
    %v9577 = vlaneseq
    %v9578 = vshrl.u32 %v9577, 7
    %v9579 = vsub.s32 %v9494, %v9578
    %v9580 = vrot.slane %v9297, %v9579
    %v9581 = vsel %vm9499, %v9580, %v9576
    %v9582 = vlaneseq
    %v9583 = vshrl.u32 %v9582, 7
    %v9584 = vsub.s32 %v9501, %v9583
    %v9585 = vrot.slane %v9300, %v9584
    %v9586 = vsel %vm9506, %v9585, %v9581
    %v9587 = vlaneseq
    %v9588 = vshrl.u32 %v9587, 7
    %v9589 = vsub.s32 %v9398, %v9588
    %v9590 = vrot.slane %v9303, %v9589
    %v9591 = vlaneseq
    %v9592 = vshrl.u32 %v9591, 7
    %v9593 = vsub.s32 %v9403, %v9592
    %v9594 = vrot.slane %v9306, %v9593
    %v9595 = vsel %vm9408, %v9594, %v9590
    %v9596 = vlaneseq
    %v9597 = vshrl.u32 %v9596, 7
    %v9598 = vsub.s32 %v9410, %v9597
    %v9599 = vrot.slane %v9309, %v9598
    %v9600 = vsel %vm9415, %v9599, %v9595
    %v9601 = vlaneseq
    %v9602 = vshrl.u32 %v9601, 7
    %v9603 = vsub.s32 %v9417, %v9602
    %v9604 = vrot.slane %v9312, %v9603
    %v9605 = vsel %vm9422, %v9604, %v9600
    %v9606 = vlaneseq
    %v9607 = vshrl.u32 %v9606, 7
    %v9608 = vsub.s32 %v9424, %v9607
    %v9609 = vrot.slane %v9315, %v9608
    %v9610 = vsel %vm9429, %v9609, %v9605
    %v9611 = vlaneseq
    %v9612 = vshrl.u32 %v9611, 7
    %v9613 = vsub.s32 %v9431, %v9612
    %v9614 = vrot.slane %v9318, %v9613
    %v9615 = vsel %vm9436, %v9614, %v9610
    %v9616 = vlaneseq
    %v9617 = vshrl.u32 %v9616, 7
    %v9618 = vsub.s32 %v9438, %v9617
    %v9619 = vrot.slane %v9321, %v9618
    %v9620 = vsel %vm9443, %v9619, %v9615
    %v9621 = vlaneseq
    %v9622 = vshrl.u32 %v9621, 7
    %v9623 = vsub.s32 %v9445, %v9622
    %v9624 = vrot.slane %v9324, %v9623
    %v9625 = vsel %vm9450, %v9624, %v9620
    %v9626 = vlaneseq
    %v9627 = vshrl.u32 %v9626, 7
    %v9628 = vsub.s32 %v9452, %v9627
    %v9629 = vrot.slane %v9327, %v9628
    %v9630 = vsel %vm9457, %v9629, %v9625
    %v9631 = vlaneseq
    %v9632 = vshrl.u32 %v9631, 7
    %v9633 = vsub.s32 %v9459, %v9632
    %v9634 = vrot.slane %v9330, %v9633
    %v9635 = vsel %vm9464, %v9634, %v9630
    %v9636 = vlaneseq
    %v9637 = vshrl.u32 %v9636, 7
    %v9638 = vsub.s32 %v9466, %v9637
    %v9639 = vrot.slane %v9333, %v9638
    %v9640 = vsel %vm9471, %v9639, %v9635
    %v9641 = vlaneseq
    %v9642 = vshrl.u32 %v9641, 7
    %v9643 = vsub.s32 %v9473, %v9642
    %v9644 = vrot.slane %v9336, %v9643
    %v9645 = vsel %vm9478, %v9644, %v9640
    %v9646 = vlaneseq
    %v9647 = vshrl.u32 %v9646, 7
    %v9648 = vsub.s32 %v9480, %v9647
    %v9649 = vrot.slane %v9339, %v9648
    %v9650 = vsel %vm9485, %v9649, %v9645
    %v9651 = vlaneseq
    %v9652 = vshrl.u32 %v9651, 7
    %v9653 = vsub.s32 %v9487, %v9652
    %v9654 = vrot.slane %v9342, %v9653
    %v9655 = vsel %vm9492, %v9654, %v9650
    %v9656 = vlaneseq
    %v9657 = vshrl.u32 %v9656, 7
    %v9658 = vsub.s32 %v9494, %v9657
    %v9659 = vrot.slane %v9345, %v9658
    %v9660 = vsel %vm9499, %v9659, %v9655
    %v9661 = vlaneseq
    %v9662 = vshrl.u32 %v9661, 7
    %v9663 = vsub.s32 %v9501, %v9662
    %v9664 = vrot.slane %v9348, %v9663
    %v9665 = vsel %vm9506, %v9664, %v9660
    %v9666 = vlaneseq
    %v9667 = vshrl.u32 %v9666, 7
    %v9668 = vsub.s32 %v9398, %v9667
    %v9669 = vrot.slane %v9351, %v9668
    %v9670 = vlaneseq
    %v9671 = vshrl.u32 %v9670, 7
    %v9672 = vsub.s32 %v9403, %v9671
    %v9673 = vrot.slane %v9354, %v9672
    %v9674 = vsel %vm9408, %v9673, %v9669
    %v9675 = vlaneseq
    %v9676 = vshrl.u32 %v9675, 7
    %v9677 = vsub.s32 %v9410, %v9676
    %v9678 = vrot.slane %v9357, %v9677
    %v9679 = vsel %vm9415, %v9678, %v9674
    %v9680 = vlaneseq
    %v9681 = vshrl.u32 %v9680, 7
    %v9682 = vsub.s32 %v9417, %v9681
    %v9683 = vrot.slane %v9360, %v9682
    %v9684 = vsel %vm9422, %v9683, %v9679
    %v9685 = vlaneseq
    %v9686 = vshrl.u32 %v9685, 7
    %v9687 = vsub.s32 %v9424, %v9686
    %v9688 = vrot.slane %v9363, %v9687
    %v9689 = vsel %vm9429, %v9688, %v9684
    %v9690 = vlaneseq
    %v9691 = vshrl.u32 %v9690, 7
    %v9692 = vsub.s32 %v9431, %v9691
    %v9693 = vrot.slane %v9366, %v9692
    %v9694 = vsel %vm9436, %v9693, %v9689
    %v9695 = vlaneseq
    %v9696 = vshrl.u32 %v9695, 7
    %v9697 = vsub.s32 %v9438, %v9696
    %v9698 = vrot.slane %v9369, %v9697
    %v9699 = vsel %vm9443, %v9698, %v9694
    %v9700 = vlaneseq
    %v9701 = vshrl.u32 %v9700, 7
    %v9702 = vsub.s32 %v9445, %v9701
    %v9703 = vrot.slane %v9372, %v9702
    %v9704 = vsel %vm9450, %v9703, %v9699
    %v9705 = vlaneseq
    %v9706 = vshrl.u32 %v9705, 7
    %v9707 = vsub.s32 %v9452, %v9706
    %v9708 = vrot.slane %v9375, %v9707
    %v9709 = vsel %vm9457, %v9708, %v9704
    %v9710 = vlaneseq
    %v9711 = vshrl.u32 %v9710, 7
    %v9712 = vsub.s32 %v9459, %v9711
    %v9713 = vrot.slane %v9378, %v9712
    %v9714 = vsel %vm9464, %v9713, %v9709
    %v9715 = vlaneseq
    %v9716 = vshrl.u32 %v9715, 7
    %v9717 = vsub.s32 %v9466, %v9716
    %v9718 = vrot.slane %v9381, %v9717
    %v9719 = vsel %vm9471, %v9718, %v9714
    %v9720 = vlaneseq
    %v9721 = vshrl.u32 %v9720, 7
    %v9722 = vsub.s32 %v9473, %v9721
    %v9723 = vrot.slane %v9384, %v9722
    %v9724 = vsel %vm9478, %v9723, %v9719
    %v9725 = vlaneseq
    %v9726 = vshrl.u32 %v9725, 7
    %v9727 = vsub.s32 %v9480, %v9726
    %v9728 = vrot.slane %v9387, %v9727
    %v9729 = vsel %vm9485, %v9728, %v9724
    %v9730 = vlaneseq
    %v9731 = vshrl.u32 %v9730, 7
    %v9732 = vsub.s32 %v9487, %v9731
    %v9733 = vrot.slane %v9390, %v9732
    %v9734 = vsel %vm9492, %v9733, %v9729
    %v9735 = vlaneseq
    %v9736 = vshrl.u32 %v9735, 7
    %v9737 = vsub.s32 %v9494, %v9736
    %v9738 = vrot.slane %v9393, %v9737
    %v9739 = vsel %vm9499, %v9738, %v9734
    %v9740 = vlaneseq
    %v9741 = vshrl.u32 %v9740, 7
    %v9742 = vsub.s32 %v9501, %v9741
    %v9743 = vrot.slane %v9396, %v9742
    %v9744 = vsel %vm9506, %v9743, %v9739
    %v9745 = vcombine.low %v9507, %v9586
    %v9746 = vcombine.low %v9665, %v9744
    %v9748 = vunpack.c.l.s4 1966171168
    %v9749 = vunpack.c.0.s8 %v9748
    %v9750 = vlaneseq
    %v9751 = vshrl.u32 %v9750, 7
    %v9752 = vsub.s32 %v9749, %v9751
    %v9753 = vrot.slane %v9745, %v9752
    %v9755 = vunpack.c.l.s4 1966171168
    %v9756 = vunpack.c.0.s8 %v9755
    %v9757 = vlaneseq
    %v9758 = vshrl.u32 %v9757, 7
    %v9759 = vsub.s32 %v9756, %v9758
    %v9760 = vrot.slane %v9746, %v9759
    %v9761 = vcombine.low %v9753, %v9760
    %v9763 = vunpack.c.l.s4 1966171168
    %v9764 = vunpack.c.0.s8 %v9763
    %v9765 = vlaneseq
    %v9766 = vshrl.u32 %v9765, 7
    %v9767 = vsub.s32 %v9764, %v9766
    %v9768 = vrot.slane %v9761, %v9767
    %v9770 = vlaneseq
    %vm9771 = vcmp.ge.s32.totalorder %v9770, 0
    %vm9772 = vcmp.lt.s32.totalorder %v9770, 512
    %vm9773 = vmand %vm9771, %vm9772
    %9774 = vst.msk [vmem:[#allocation3] sm:$0xf] %vm9773, %v9768
    // Predicated region
    $region38: #{tpu_custom_call.1} parent=1 // pred_check
      _
    $region39: #{tpu_custom_call.1} parent=1 // pred_check_branch
      %9776 = sbr.rel (0) target = $region41
    $region40: #{tpu_custom_call.1} parent=1 // pred_region
      %s9778 = ssub.s32 64, 64
      %9779 = vsyncadd [#allocation4], %s9778
      %s9781 = sshll.u32 [#allocation3], 4
      %s9782 = int_to_ptr.vmem [resolvable:$true] %s9781
      %9784 = dma.vmem_to_hbm [thread:$0]  %s9782, 64, %s9, [#allocation4]
    $region41: #{tpu_custom_call.1} parent=1 // pred_fallthru
      _
    // Predicated region
    $region42: #{tpu_custom_call.1} parent=1 // pred_check
      _
    $region43: #{tpu_custom_call.1} parent=1 // pred_check_branch
      %9786 = sbr.rel (0) target = $region45
    $region44: #{tpu_custom_call.1} parent=1 // pred_region
      %9787 = dma.done [#allocation4], 64
    $region45: #{tpu_custom_call.1} parent=1 // pred_fallthru
      _
    %9788 = vsyncpa [#allocation4], 1

</llo_original>
